<compile_context>
chip_gen: v5e
topology: v5e:2x2
jax: 0.10.0
libtpu: 0.0.40
codegen_flags: <defaults>
</compile_context>

<pallas_src>
import functools

import jax
import jax.numpy as jnp
from jax.experimental import pallas as pl
from jax.experimental.pallas import tpu as pltpu

HIDDEN = 128          # real: 512
N_HEADS = 8
HEAD_DIM = HIDDEN // N_HEADS
NH_PAD = 128          # heads padded to one full lane width
FFN = 4 * HIDDEN
XCEP_FEAT = 256       # real: xception.num_features = 2048
EFF_FEAT = 160        # real: efficientnet_b0.num_features = 1280
BB_FEAT = XCEP_FEAT + EFF_FEAT
CLS_HID = HIDDEN // 4
N_LAYERS = 2
LN_EPS = 1e-5
LANE = 128            # lane-dense width of the classifier output slab


# ------------------------------------------------------------------- kernel

def fused_forward_kernel(x_ref,
                         bb_w_ref, bb_b_ref,
                         projx_w_ref, projx_b_ref, proje_w_ref, proje_b_ref,
                         hmask_ref, hmask_t_ref,
                         wqkv_ref, bqkv_ref, wo_ref, bo_ref,
                         ln1w_ref, ln1b_ref,
                         w1_ref, b1_ref, w2_ref, b2_ref,
                         ln2w_ref, ln2b_ref,
                         wc1_ref, bc1_ref, wc2_ref, bc2_ref,
                         o_ref,
                         gap_acc_ref,
                         *, hw_true):
    bt = o_ref.shape[0]            # batch-tile rows
    c = x_ref.shape[0]             # image channels (leading, untiled dim)
    hw_step = pl.program_id(1)
    last_hw = pl.num_programs(1) - 1

    # ---- global-average-pool accumulation over the H*W grid axis ----------
    @pl.when(hw_step == 0)
    def _init():
        gap_acc_ref[...] = jnp.zeros_like(gap_acc_ref)

    # (C, BT, THW) bf16 block, sublane/lane dense; accumulate per-channel
    # sums in f32.  Padded H*W columns are zero, so the sum is exact.
    for ch in range(c):
        col = jnp.sum(x_ref[ch].astype(jnp.float32), axis=-1, keepdims=True)
        gap_acc_ref[:, ch:ch + 1] += col

    # ---- run the rest of the network only on the final H*W step -----------
    @pl.when(hw_step == last_hw)
    def _compute():
        def mm(a, w, b=None):
            # bf16 MXU matmul with f32 accumulation; bias add in f32.
            out = jnp.dot(a.astype(jnp.bfloat16), w,
                          preferred_element_type=jnp.float32)
            return out if b is None else out + b

        gap = gap_acc_ref[...] * (1.0 / hw_true)            # (BT, C)

        # ---- backbones (stand-in) + projections ----------------------------
        # TODO(synk): pretrained timm Xception / EfficientNet-B0 backbones are
        # not reproduced; a deterministic GAP + Linear + ReLU stand-in
        # produces the (B, num_features) activations, then proj_x / proj_e
        # are applied exactly as in the reference module.
        feats = jnp.maximum(mm(gap, bb_w_ref[...], bb_b_ref[...]), 0.0)
        fx = feats[:, :XCEP_FEAT]                           # (BT, XF)
        fe = feats[:, XCEP_FEAT:]                           # (BT, EF)
        px = mm(fx, projx_w_ref[...], projx_b_ref[...])     # (BT, HIDDEN)
        pe = mm(fe, proje_w_ref[...], proje_b_ref[...])     # (BT, HIDDEN)

        # seq positions stacked along sublanes: rows [0:BT]=pos0, [BT:2BT]=pos1
        x_all = jnp.concatenate([px, pe], axis=0)           # (2BT, HIDDEN)

        hmask = hmask_ref[...]                              # (HIDDEN, 128) bf16 0/1
        hmask_t = hmask_t_ref[...]                          # (128, HIDDEN) bf16 0/1
        scale = 1.0 / (HEAD_DIM ** 0.5)

        def layer_norm(v, w, b):
            # one-pass variance: E[x^2] - mean^2 (clamped for safety)
            mu = jnp.mean(v, axis=-1, keepdims=True)
            var = jnp.maximum(
                jnp.mean(v * v, axis=-1, keepdims=True) - mu * mu, 0.0)
            return (v - mu) * jax.lax.rsqrt(var + LN_EPS) * w + b

        def head_scores(qi, kj):
            # segmented per-head reduction on the MXU via the padded
            # block-diagonal mask; lane-dense (BT, 128) output, columns
            # >= N_HEADS are zero.  (Scores are ~bf16 precision.)
            return mm(qi * kj, hmask) * scale               # (BT, 128)

        def softmax2(sa, sb):
            # numerically stable 2-key softmax; reciprocal on the EUP.
            m = jnp.maximum(sa, sb)
            ea, eb = jnp.exp(sa - m), jnp.exp(sb - m)
            inv = pl.reciprocal(ea + eb, approx=True)
            return ea * inv, eb * inv

        # Static unroll is fine at N_LAYERS=2; switch to lax.fori_loop with
        # dynamic ref[l] indexing if the layer count grows.
        for l in range(N_LAYERS):
            qkv = mm(x_all, wqkv_ref[l], bqkv_ref[l])       # (2BT, 3*HIDDEN)
            q = qkv[:, :HIDDEN]
            k = qkv[:, HIDDEN:2 * HIDDEN]
            v = qkv[:, 2 * HIDDEN:]
            q0, q1 = q[:bt], q[bt:]
            k0, k1 = k[:bt], k[bt:]
            v0, v1 = v[:bt], v[bt:]

            s00, s01 = head_scores(q0, k0), head_scores(q0, k1)
            s10, s11 = head_scores(q1, k0), head_scores(q1, k1)
            w00, w01 = softmax2(s00, s01)
            w10, w11 = softmax2(s10, s11)

            # broadcast per-head weights back to full width via mask^T (MXU);
            # the zero rows of hmask_t kill the padded head columns.
            attn0 = mm(w00, hmask_t) * v0 + mm(w01, hmask_t) * v1
            attn1 = mm(w10, hmask_t) * v0 + mm(w11, hmask_t) * v1
            attn = jnp.concatenate([attn0, attn1], axis=0)  # (2BT, HIDDEN)
            attn = mm(attn, wo_ref[l], bo_ref[l])

            x_all = layer_norm(x_all + attn, ln1w_ref[l], ln1b_ref[l])
            ff = mm(jnp.maximum(mm(x_all, w1_ref[l], b1_ref[l]), 0.0),
                    w2_ref[l], b2_ref[l])
            x_all = layer_norm(x_all + ff, ln2w_ref[l], ln2b_ref[l])

        # ---- classifier head ------------------------------------------------
        feat = (x_all[:bt] + x_all[bt:]) * 0.5              # mean over seq (S=2)
        h1 = jnp.maximum(mm(feat, wc1_ref[...], bc1_ref[...]), 0.0)
        logit = mm(h1, wc2_ref[...], bc2_ref[...])          # (BT, LANE) lane-dense
        o_ref[...] = jax.nn.sigmoid(logit)                  # every lane = same prob


# ------------------------------------------------------------------ wrapper

def init_params(key):
    keys = iter(jax.random.split(key, 32))

    def w(shape, scale=0.02):
        return (scale * jax.random.normal(next(keys), shape)).astype(jnp.float32)

    def zeros(shape):
        return jnp.zeros(shape, jnp.float32)

    def ones(shape):
        return jnp.ones(shape, jnp.float32)

    return dict(
        # backbone stand-ins + projections
        xcep_w=w((3, XCEP_FEAT)), xcep_b=zeros((1, XCEP_FEAT)),
        eff_w=w((3, EFF_FEAT)), eff_b=zeros((1, EFF_FEAT)),
        proj_x_w=w((XCEP_FEAT, HIDDEN)), proj_x_b=zeros((1, HIDDEN)),
        proj_e_w=w((EFF_FEAT, HIDDEN)), proj_e_b=zeros((1, HIDDEN)),
        # transformer encoder layers, stacked on a leading layer axis
        wqkv=w((N_LAYERS, HIDDEN, 3 * HIDDEN)),
        bqkv=zeros((N_LAYERS, 1, 3 * HIDDEN)),
        wo=w((N_LAYERS, HIDDEN, HIDDEN)), bo=zeros((N_LAYERS, 1, HIDDEN)),
        ln1w=ones((N_LAYERS, 1, HIDDEN)), ln1b=zeros((N_LAYERS, 1, HIDDEN)),
        w1=w((N_LAYERS, HIDDEN, FFN)), b1=zeros((N_LAYERS, 1, FFN)),
        w2=w((N_LAYERS, FFN, HIDDEN)), b2=zeros((N_LAYERS, 1, HIDDEN)),
        ln2w=ones((N_LAYERS, 1, HIDDEN)), ln2b=zeros((N_LAYERS, 1, HIDDEN)),
        # classifier
        cls1_w=w((HIDDEN, CLS_HID)), cls1_b=zeros((1, CLS_HID)),
        cls2_w=w((CLS_HID, 1)), cls2_b=zeros((1, 1)),
    )


def _vmem_limit_bytes():
    # Per-generation scoped-VMEM limit: ~96 MiB on v5e/v6e (128 MiB physical),
    # 48 MiB on v7x (64 MiB physical).  Conservative fallback if the query is
    # unavailable.
    cap = 64 * 1024 * 1024
    try:
        cap = int(pltpu.get_tpu_info().vmem_capacity_bytes)
    except Exception:
        pass
    return max(min(cap * 3 // 4, 100 * 1024 * 1024), 32 * 1024 * 1024)


def fusion_deepfake_detector(x, params):
    B, C, H, W = x.shape
    HW = H * W

    # ---- batch tiling -------------------------------------------------------
    # Multiple of 8, up to 128 rows (2*BT = 256 stacked rows for the
    # transformer matmuls); batches >= 16 produce >= 2 "parallel" grid steps
    # so both v7x TensorCores get work.
    BT = min(128, max(8, 8 * pl.cdiv(B, 16)))
    nb = pl.cdiv(B, BT)
    B_pad = nb * BT

    # ---- H*W tiling (reduction grid axis; decouples BT from image size) ----
    THW_MAX = 2048
    if HW <= THW_MAX:
        THW = max(128, ((HW + 127) // 128) * 128)
        HW_pad = THW
    else:
        THW = THW_MAX
        HW_pad = THW * pl.cdiv(HW, THW)
    n_hw = HW_pad // THW

    # Channel-leading, zero-padded bf16 image: each (BT, THW) tile is
    # sublane/lane dense.  The transpose fuses with the f32->bf16 convert in
    # XLA so the image is still effectively read once from HBM.
    xi = x.reshape(B, C, HW).astype(jnp.bfloat16)
    xi = jnp.transpose(xi, (1, 0, 2))                        # (C, B, HW)
    xi = jnp.pad(xi, ((0, 0), (0, B_pad - B), (0, HW_pad - HW)))

    bf = jnp.bfloat16
    # block-diagonal head-segment mask, padded to a full 128-lane width
    head_id = jnp.arange(HIDDEN)[:, None] // HEAD_DIM
    hmask = (head_id == jnp.arange(NH_PAD)[None, :]).astype(bf)   # (HIDDEN, 128)
    hmask_t = hmask.T                                             # (128, HIDDEN)

    # fused backbone stand-in weight (one wider-N matmul instead of two)
    bb_w = jnp.concatenate([params["xcep_w"], params["eff_w"]], axis=1).astype(bf)
    bb_b = jnp.concatenate([params["xcep_b"], params["eff_b"]], axis=1)

    # lane-dense classifier head: replicate the single logit column to 128
    wc2 = jnp.tile(params["cls2_w"], (1, LANE)).astype(bf)
    bc2 = jnp.tile(params["cls2_b"], (1, LANE))

    weights = [
        bb_w, bb_b,
        params["proj_x_w"].astype(bf), params["proj_x_b"],
        params["proj_e_w"].astype(bf), params["proj_e_b"],
        hmask, hmask_t,
        params["wqkv"].astype(bf), params["bqkv"],
        params["wo"].astype(bf), params["bo"],
        params["ln1w"], params["ln1b"],
        params["w1"].astype(bf), params["b1"],
        params["w2"].astype(bf), params["b2"],
        params["ln2w"], params["ln2b"],
        params["cls1_w"].astype(bf), params["cls1_b"],
        wc2, bc2,
    ]

    kernel = functools.partial(fused_forward_kernel, hw_true=float(HW))

    def call(single_buffer_weights):
        w_kwargs = ({"pipeline_mode": pl.Buffered(1)}
                    if single_buffer_weights else {})
        in_specs = [pl.BlockSpec((C, BT, THW), lambda i, j: (0, i, j))]
        # Weights: constant block index (fetched once); single-buffered to
        # halve weight VMEM when supported.
        in_specs += [pl.BlockSpec(a.shape,
                                  (lambda i, j, _n=a.ndim: (0,) * _n),
                                  **w_kwargs)
                     for a in weights]
        return pl.pallas_call(
            kernel,
            out_shape=jax.ShapeDtypeStruct((B_pad, LANE), jnp.float32),
            grid=(nb, n_hw),
            in_specs=in_specs,
            out_specs=pl.BlockSpec((BT, LANE), lambda i, j: (i, 0)),
            scratch_shapes=[pltpu.VMEM((BT, C), jnp.float32)],   # GAP accumulator
            compiler_params=pltpu.CompilerParams(
                dimension_semantics=("parallel", "arbitrary"),
                vmem_limit_bytes=_vmem_limit_bytes(),
            ),
        )(xi, *weights)

    try:
        probs = call(True)
    except Exception:
        # Older JAX without per-operand pl.Buffered(1): default double-buffering.
        probs = call(False)

    return probs[:B, 0]                                      # .squeeze(1) -> (B,)


if __name__ == "__main__":
    key = jax.random.PRNGKey(0)
    k_x, k_p = jax.random.split(key)
    x = jax.random.normal(k_x, (2, 3, 16, 16), dtype=jnp.float32)  # NCHW
    params = init_params(k_p)

    out = jax.block_until_ready(fusion_deepfake_detector(x, params))
    assert out.shape == (2,)
    assert bool(jnp.all(jnp.isfinite(out)))
    print("KERNEL_OK")
</pallas_src>

<mosaic_0001>
module attributes {stable_mosaic.version = 11 : i64} {
  func.func @fused_forward_kernel(%arg0: i32, %arg1: i32, %arg2: memref<3x8x256xbf16, #tpu.memory_space<vmem>>, %arg3: memref<3x416xbf16, #tpu.memory_space<vmem>>, %arg4: memref<1x416xf32, #tpu.memory_space<vmem>>, %arg5: memref<256x128xbf16, #tpu.memory_space<vmem>>, %arg6: memref<1x128xf32, #tpu.memory_space<vmem>>, %arg7: memref<160x128xbf16, #tpu.memory_space<vmem>>, %arg8: memref<1x128xf32, #tpu.memory_space<vmem>>, %arg9: memref<128x128xbf16, #tpu.memory_space<vmem>>, %arg10: memref<128x128xbf16, #tpu.memory_space<vmem>>, %arg11: memref<2x128x384xbf16, #tpu.memory_space<vmem>>, %arg12: memref<2x1x384xf32, #tpu.memory_space<vmem>>, %arg13: memref<2x128x128xbf16, #tpu.memory_space<vmem>>, %arg14: memref<2x1x128xf32, #tpu.memory_space<vmem>>, %arg15: memref<2x1x128xf32, #tpu.memory_space<vmem>>, %arg16: memref<2x1x128xf32, #tpu.memory_space<vmem>>, %arg17: memref<2x128x512xbf16, #tpu.memory_space<vmem>>, %arg18: memref<2x1x512xf32, #tpu.memory_space<vmem>>, %arg19: memref<2x512x128xbf16, #tpu.memory_space<vmem>>, %arg20: memref<2x1x128xf32, #tpu.memory_space<vmem>>, %arg21: memref<2x1x128xf32, #tpu.memory_space<vmem>>, %arg22: memref<2x1x128xf32, #tpu.memory_space<vmem>>, %arg23: memref<128x32xbf16, #tpu.memory_space<vmem>>, %arg24: memref<1x32xf32, #tpu.memory_space<vmem>>, %arg25: memref<32x128xbf16, #tpu.memory_space<vmem>>, %arg26: memref<1x128xf32, #tpu.memory_space<vmem>>, %arg27: memref<8x128xf32, #tpu.memory_space<vmem>>, %arg28: memref<8x3xf32, #tpu.memory_space<vmem>>) attributes {dimension_semantics = [#tpu.dimension_semantics<parallel>, #tpu.dimension_semantics<arbitrary>], iteration_bounds = array<i64: 1, 1>, scalar_prefetch = 0 : i64, scratch_operands = 1 : i64, tpu.core_type = #tpu.core_type<tc>, window_params = [{transform_indices = @transform_0, window_bounds = array<i64: 3, 8, 256>}, {pipeline_mode = #tpu.pipeline_mode<synchronous>, transform_indices = @transform_1, window_bounds = array<i64: 3, 416>}, {pipeline_mode = #tpu.pipeline_mode<synchronous>, transform_indices = @transform_2, window_bounds = array<i64: 1, 416>}, {pipeline_mode = #tpu.pipeline_mode<synchronous>, transform_indices = @transform_3, window_bounds = array<i64: 256, 128>}, {pipeline_mode = #tpu.pipeline_mode<synchronous>, transform_indices = @transform_4, window_bounds = array<i64: 1, 128>}, {pipeline_mode = #tpu.pipeline_mode<synchronous>, transform_indices = @transform_5, window_bounds = array<i64: 160, 128>}, {pipeline_mode = #tpu.pipeline_mode<synchronous>, transform_indices = @transform_6, window_bounds = array<i64: 1, 128>}, {pipeline_mode = #tpu.pipeline_mode<synchronous>, transform_indices = @transform_7, window_bounds = array<i64: 128, 128>}, {pipeline_mode = #tpu.pipeline_mode<synchronous>, transform_indices = @transform_8, window_bounds = array<i64: 128, 128>}, {pipeline_mode = #tpu.pipeline_mode<synchronous>, transform_indices = @transform_9, window_bounds = array<i64: 2, 128, 384>}, {pipeline_mode = #tpu.pipeline_mode<synchronous>, transform_indices = @transform_10, window_bounds = array<i64: 2, 1, 384>}, {pipeline_mode = #tpu.pipeline_mode<synchronous>, transform_indices = @transform_11, window_bounds = array<i64: 2, 128, 128>}, {pipeline_mode = #tpu.pipeline_mode<synchronous>, transform_indices = @transform_12, window_bounds = array<i64: 2, 1, 128>}, {pipeline_mode = #tpu.pipeline_mode<synchronous>, transform_indices = @transform_13, window_bounds = array<i64: 2, 1, 128>}, {pipeline_mode = #tpu.pipeline_mode<synchronous>, transform_indices = @transform_14, window_bounds = array<i64: 2, 1, 128>}, {pipeline_mode = #tpu.pipeline_mode<synchronous>, transform_indices = @transform_15, window_bounds = array<i64: 2, 128, 512>}, {pipeline_mode = #tpu.pipeline_mode<synchronous>, transform_indices = @transform_16, window_bounds = array<i64: 2, 1, 512>}, {pipeline_mode = #tpu.pipeline_mode<synchronous>, transform_indices = @transform_17, window_bounds = array<i64: 2, 512, 128>}, {pipeline_mode = #tpu.pipeline_mode<synchronous>, transform_indices = @transform_18, window_bounds = array<i64: 2, 1, 128>}, {pipeline_mode = #tpu.pipeline_mode<synchronous>, transform_indices = @transform_19, window_bounds = array<i64: 2, 1, 128>}, {pipeline_mode = #tpu.pipeline_mode<synchronous>, transform_indices = @transform_20, window_bounds = array<i64: 2, 1, 128>}, {pipeline_mode = #tpu.pipeline_mode<synchronous>, transform_indices = @transform_21, window_bounds = array<i64: 128, 32>}, {pipeline_mode = #tpu.pipeline_mode<synchronous>, transform_indices = @transform_22, window_bounds = array<i64: 1, 32>}, {pipeline_mode = #tpu.pipeline_mode<synchronous>, transform_indices = @transform_23, window_bounds = array<i64: 32, 128>}, {pipeline_mode = #tpu.pipeline_mode<synchronous>, transform_indices = @transform_24, window_bounds = array<i64: 1, 128>}, {transform_indices = @transform_25, window_bounds = array<i64: 8, 128>}]} {
    %c0_i32 = arith.constant 0 : i32
    %0 = arith.cmpi eq, %arg1, %c0_i32 : i32
    %1 = arith.extui %0 : i1 to i32
    %c0_i32_0 = arith.constant 0 : i32
    %2 = arith.cmpi ne, %1, %c0_i32_0 : i32
    scf.if %2 {
      %cst_23 = arith.constant 0.000000e+00 : f32
      %30 = vector.broadcast %cst_23 : f32 to vector<8x3xf32>
      %c0_24 = arith.constant 0 : index
      %c0_25 = arith.constant 0 : index
      %31 = vector.load %arg28[%c0_24, %c0_25] : memref<8x3xf32, #tpu.memory_space<vmem>>, vector<8x3xf32>
      tpu.vector_store %arg28[%c0_24, %c0_25], %30 {strides = array<i32>} : memref<8x3xf32, #tpu.memory_space<vmem>>, vector<8x3xf32>,
    } else {
    }
    %c0 = arith.constant 0 : index
    %c0_1 = arith.constant 0 : index
    %c0_2 = arith.constant 0 : index
    %3 = vector.load %arg2[%c0, %c0_1, %c0_2] : memref<3x8x256xbf16, #tpu.memory_space<vmem>>, vector<1x8x256xbf16>
    %4 = vector.shape_cast %3 : vector<1x8x256xbf16> to vector<8x256xbf16>
    %5 = arith.extf %4 : vector<8x256xbf16> to vector<8x256xf32>
    %cst = arith.constant dense<0.000000e+00> : vector<8xf32>
    %6 = vector.multi_reduction <add>, %5, %cst [1] : vector<8x256xf32> to vector<8xf32>
    %7 = vector.shape_cast %6 : vector<8xf32> to vector<8x1xf32>
    %c0_3 = arith.constant 0 : index
    %c0_4 = arith.constant 0 : index
    %8 = vector.load %arg28[%c0_3, %c0_4] : memref<8x3xf32, #tpu.memory_space<vmem>>, vector<8x1xf32>
    %9 = arith.addf %8, %7 : vector<8x1xf32>
    %c0_5 = arith.constant 0 : index
    %c0_6 = arith.constant 0 : index
    %10 = vector.load %arg28[%c0_5, %c0_6] : memref<8x3xf32, #tpu.memory_space<vmem>>, vector<8x1xf32>
    tpu.vector_store %arg28[%c0_5, %c0_6], %9 {strides = array<i32>} : memref<8x3xf32, #tpu.memory_space<vmem>>, vector<8x1xf32>,
    %c1 = arith.constant 1 : index
    %c0_7 = arith.constant 0 : index
    %c0_8 = arith.constant 0 : index
    %11 = vector.load %arg2[%c1, %c0_7, %c0_8] : memref<3x8x256xbf16, #tpu.memory_space<vmem>>, vector<1x8x256xbf16>
    %12 = vector.shape_cast %11 : vector<1x8x256xbf16> to vector<8x256xbf16>
    %13 = arith.extf %12 : vector<8x256xbf16> to vector<8x256xf32>
    %cst_9 = arith.constant dense<0.000000e+00> : vector<8xf32>
    %14 = vector.multi_reduction <add>, %13, %cst_9 [1] : vector<8x256xf32> to vector<8xf32>
    %15 = vector.shape_cast %14 : vector<8xf32> to vector<8x1xf32>
    %c0_10 = arith.constant 0 : index
    %c1_11 = arith.constant 1 : index
    %16 = vector.load %arg28[%c0_10, %c1_11] : memref<8x3xf32, #tpu.memory_space<vmem>>, vector<8x1xf32>
    %17 = arith.addf %16, %15 : vector<8x1xf32>
    %c0_12 = arith.constant 0 : index
    %c1_13 = arith.constant 1 : index
    %18 = vector.load %arg28[%c0_12, %c1_13] : memref<8x3xf32, #tpu.memory_space<vmem>>, vector<8x1xf32>
    tpu.vector_store %arg28[%c0_12, %c1_13], %17 {strides = array<i32>} : memref<8x3xf32, #tpu.memory_space<vmem>>, vector<8x1xf32>,
    %c2 = arith.constant 2 : index
    %c0_14 = arith.constant 0 : index
    %c0_15 = arith.constant 0 : index
    %19 = vector.load %arg2[%c2, %c0_14, %c0_15] : memref<3x8x256xbf16, #tpu.memory_space<vmem>>, vector<1x8x256xbf16>
    %20 = vector.shape_cast %19 : vector<1x8x256xbf16> to vector<8x256xbf16>
    %21 = arith.extf %20 : vector<8x256xbf16> to vector<8x256xf32>
    %cst_16 = arith.constant dense<0.000000e+00> : vector<8xf32>
    %22 = vector.multi_reduction <add>, %21, %cst_16 [1] : vector<8x256xf32> to vector<8xf32>
    %23 = vector.shape_cast %22 : vector<8xf32> to vector<8x1xf32>
    %c0_17 = arith.constant 0 : index
    %c2_18 = arith.constant 2 : index
    %24 = vector.load %arg28[%c0_17, %c2_18] : memref<8x3xf32, #tpu.memory_space<vmem>>, vector<8x1xf32>
    %25 = arith.addf %24, %23 : vector<8x1xf32>
    %c0_19 = arith.constant 0 : index
    %c2_20 = arith.constant 2 : index
    %26 = vector.load %arg28[%c0_19, %c2_20] : memref<8x3xf32, #tpu.memory_space<vmem>>, vector<8x1xf32>
    tpu.vector_store %arg28[%c0_19, %c2_20], %25 {strides = array<i32>} : memref<8x3xf32, #tpu.memory_space<vmem>>, vector<8x1xf32>,
    %c0_i32_21 = arith.constant 0 : i32
    %27 = arith.cmpi eq, %arg1, %c0_i32_21 : i32
    %28 = arith.extui %27 : i1 to i32
    %c0_i32_22 = arith.constant 0 : i32
    %29 = arith.cmpi ne, %28, %c0_i32_22 : i32
    scf.if %29 {
      %c0_23 = arith.constant 0 : index
      %c0_24 = arith.constant 0 : index
      %30 = vector.load %arg28[%c0_23, %c0_24] : memref<8x3xf32, #tpu.memory_space<vmem>>, vector<8x3xf32>
      %cst_25 = arith.constant 3.906250e-03 : f32
      %31 = vector.broadcast %cst_25 : f32 to vector<8x3xf32>
      %32 = arith.mulf %30, %31 : vector<8x3xf32>
      %c0_26 = arith.constant 0 : index
      %c0_27 = arith.constant 0 : index
      %33 = vector.load %arg3[%c0_26, %c0_27] : memref<3x416xbf16, #tpu.memory_space<vmem>>, vector<3x416xbf16>
      %c0_28 = arith.constant 0 : index
      %c0_29 = arith.constant 0 : index
      %34 = vector.load %arg4[%c0_28, %c0_29] : memref<1x416xf32, #tpu.memory_space<vmem>>, vector<1x416xf32>
      %35 = arith.truncf %32 : vector<8x3xf32> to vector<8x3xbf16>
      %cst_30 = arith.constant dense<0.000000e+00> : vector<8x416xf32>
      %36 = tpu.matmul %35, %33, %cst_30 {dimension_numbers = #tpu.dot_dimension_numbers<[1], [0], [0], [1], [0, 0, 1, 1], [], []>} : vector<8x3xbf16>, vector<3x416xbf16>, vector<8x416xf32> -> vector<8x416xf32>
      %37 = vector.broadcast %34 : vector<1x416xf32> to vector<8x416xf32>
      %38 = arith.addf %36, %37 : vector<8x416xf32>
      %cst_31 = arith.constant 0.000000e+00 : f32
      %39 = vector.broadcast %cst_31 : f32 to vector<8x416xf32>
      %40 = arith.maximumf %38, %39 : vector<8x416xf32>
      %41 = vector.extract_strided_slice %40 {offsets = [0, 0], sizes = [8, 256], strides = [1, 1]} : vector<8x416xf32> to vector<8x256xf32>
      %42 = vector.extract_strided_slice %40 {offsets = [0, 256], sizes = [8, 160], strides = [1, 1]} : vector<8x416xf32> to vector<8x160xf32>
      %c0_32 = arith.constant 0 : index
      %c0_33 = arith.constant 0 : index
      %43 = vector.load %arg5[%c0_32, %c0_33] : memref<256x128xbf16, #tpu.memory_space<vmem>>, vector<256x128xbf16>
      %c0_34 = arith.constant 0 : index
      %c0_35 = arith.constant 0 : index
      %44 = vector.load %arg6[%c0_34, %c0_35] : memref<1x128xf32, #tpu.memory_space<vmem>>, vector<1x128xf32>
      %45 = arith.truncf %41 : vector<8x256xf32> to vector<8x256xbf16>
      %cst_36 = arith.constant dense<0.000000e+00> : vector<8x128xf32>
      %46 = tpu.matmul %45, %43, %cst_36 {dimension_numbers = #tpu.dot_dimension_numbers<[1], [0], [0], [1], [0, 0, 1, 1], [], []>} : vector<8x256xbf16>, vector<256x128xbf16>, vector<8x128xf32> -> vector<8x128xf32>
      %47 = vector.broadcast %44 : vector<1x128xf32> to vector<8x128xf32>
      %48 = arith.addf %46, %47 : vector<8x128xf32>
      %c0_37 = arith.constant 0 : index
      %c0_38 = arith.constant 0 : index
      %49 = vector.load %arg7[%c0_37, %c0_38] : memref<160x128xbf16, #tpu.memory_space<vmem>>, vector<160x128xbf16>
      %c0_39 = arith.constant 0 : index
      %c0_40 = arith.constant 0 : index
      %50 = vector.load %arg8[%c0_39, %c0_40] : memref<1x128xf32, #tpu.memory_space<vmem>>, vector<1x128xf32>
      %51 = arith.truncf %42 : vector<8x160xf32> to vector<8x160xbf16>
      %cst_41 = arith.constant dense<0.000000e+00> : vector<8x128xf32>
      %52 = tpu.matmul %51, %49, %cst_41 {dimension_numbers = #tpu.dot_dimension_numbers<[1], [0], [0], [1], [0, 0, 1, 1], [], []>} : vector<8x160xbf16>, vector<160x128xbf16>, vector<8x128xf32> -> vector<8x128xf32>
      %53 = vector.broadcast %50 : vector<1x128xf32> to vector<8x128xf32>
      %54 = arith.addf %52, %53 : vector<8x128xf32>
      %55 = tpu.concatenate %48, %54 in 0 : vector<8x128xf32>, vector<8x128xf32> -> vector<16x128xf32>
      %c0_42 = arith.constant 0 : index
      %c0_43 = arith.constant 0 : index
      %56 = vector.load %arg9[%c0_42, %c0_43] : memref<128x128xbf16, #tpu.memory_space<vmem>>, vector<128x128xbf16>
      %c0_44 = arith.constant 0 : index
      %c0_45 = arith.constant 0 : index
      %57 = vector.load %arg10[%c0_44, %c0_45] : memref<128x128xbf16, #tpu.memory_space<vmem>>, vector<128x128xbf16>
      %c0_46 = arith.constant 0 : index
      %c0_47 = arith.constant 0 : index
      %c0_48 = arith.constant 0 : index
      %58 = vector.load %arg11[%c0_46, %c0_47, %c0_48] : memref<2x128x384xbf16, #tpu.memory_space<vmem>>, vector<1x128x384xbf16>
      %59 = vector.shape_cast %58 : vector<1x128x384xbf16> to vector<128x384xbf16>
      %c0_49 = arith.constant 0 : index
      %c0_50 = arith.constant 0 : index
      %c0_51 = arith.constant 0 : index
      %60 = vector.load %arg12[%c0_49, %c0_50, %c0_51] : memref<2x1x384xf32, #tpu.memory_space<vmem>>, vector<1x1x384xf32>
      %61 = vector.shape_cast %60 : vector<1x1x384xf32> to vector<1x384xf32>
      %62 = arith.truncf %55 : vector<16x128xf32> to vector<16x128xbf16>
      %cst_52 = arith.constant dense<0.000000e+00> : vector<16x384xf32>
      %63 = tpu.matmul %62, %59, %cst_52 {dimension_numbers = #tpu.dot_dimension_numbers<[1], [0], [0], [1], [0, 0, 1, 1], [], []>} : vector<16x128xbf16>, vector<128x384xbf16>, vector<16x384xf32> -> vector<16x384xf32>
      %64 = vector.broadcast %61 : vector<1x384xf32> to vector<16x384xf32>
      %65 = arith.addf %63, %64 : vector<16x384xf32>
      %66 = vector.extract_strided_slice %65 {offsets = [0, 0], sizes = [16, 128], strides = [1, 1]} : vector<16x384xf32> to vector<16x128xf32>
      %67 = vector.extract_strided_slice %65 {offsets = [0, 128], sizes = [16, 128], strides = [1, 1]} : vector<16x384xf32> to vector<16x128xf32>
      %68 = vector.extract_strided_slice %65 {offsets = [0, 256], sizes = [16, 128], strides = [1, 1]} : vector<16x384xf32> to vector<16x128xf32>
      %69 = vector.extract_strided_slice %66 {offsets = [0, 0], sizes = [8, 128], strides = [1, 1]} : vector<16x128xf32> to vector<8x128xf32>
      %70 = vector.extract_strided_slice %66 {offsets = [8, 0], sizes = [8, 128], strides = [1, 1]} : vector<16x128xf32> to vector<8x128xf32>
      %71 = vector.extract_strided_slice %67 {offsets = [0, 0], sizes = [8, 128], strides = [1, 1]} : vector<16x128xf32> to vector<8x128xf32>
      %72 = vector.extract_strided_slice %67 {offsets = [8, 0], sizes = [8, 128], strides = [1, 1]} : vector<16x128xf32> to vector<8x128xf32>
      %73 = vector.extract_strided_slice %68 {offsets = [0, 0], sizes = [8, 128], strides = [1, 1]} : vector<16x128xf32> to vector<8x128xf32>
      %74 = vector.extract_strided_slice %68 {offsets = [8, 0], sizes = [8, 128], strides = [1, 1]} : vector<16x128xf32> to vector<8x128xf32>
      %75 = arith.mulf %69, %71 : vector<8x128xf32>
      %76 = arith.truncf %75 : vector<8x128xf32> to vector<8x128xbf16>
      %cst_53 = arith.constant dense<0.000000e+00> : vector<8x128xf32>
      %77 = tpu.matmul %76, %56, %cst_53 {dimension_numbers = #tpu.dot_dimension_numbers<[1], [0], [0], [1], [0, 0, 1, 1], [], []>} : vector<8x128xbf16>, vector<128x128xbf16>, vector<8x128xf32> -> vector<8x128xf32>
      %cst_54 = arith.constant 2.500000e-01 : f32
      %78 = vector.broadcast %cst_54 : f32 to vector<8x128xf32>
      %79 = arith.mulf %77, %78 : vector<8x128xf32>
      %80 = arith.mulf %69, %72 : vector<8x128xf32>
      %81 = arith.truncf %80 : vector<8x128xf32> to vector<8x128xbf16>
      %cst_55 = arith.constant dense<0.000000e+00> : vector<8x128xf32>
      %82 = tpu.matmul %81, %56, %cst_55 {dimension_numbers = #tpu.dot_dimension_numbers<[1], [0], [0], [1], [0, 0, 1, 1], [], []>} : vector<8x128xbf16>, vector<128x128xbf16>, vector<8x128xf32> -> vector<8x128xf32>
      %cst_56 = arith.constant 2.500000e-01 : f32
      %83 = vector.broadcast %cst_56 : f32 to vector<8x128xf32>
      %84 = arith.mulf %82, %83 : vector<8x128xf32>
      %85 = arith.mulf %70, %71 : vector<8x128xf32>
      %86 = arith.truncf %85 : vector<8x128xf32> to vector<8x128xbf16>
      %cst_57 = arith.constant dense<0.000000e+00> : vector<8x128xf32>
      %87 = tpu.matmul %86, %56, %cst_57 {dimension_numbers = #tpu.dot_dimension_numbers<[1], [0], [0], [1], [0, 0, 1, 1], [], []>} : vector<8x128xbf16>, vector<128x128xbf16>, vector<8x128xf32> -> vector<8x128xf32>
      %cst_58 = arith.constant 2.500000e-01 : f32
      %88 = vector.broadcast %cst_58 : f32 to vector<8x128xf32>
      %89 = arith.mulf %87, %88 : vector<8x128xf32>
      %90 = arith.mulf %70, %72 : vector<8x128xf32>
      %91 = arith.truncf %90 : vector<8x128xf32> to vector<8x128xbf16>
      %cst_59 = arith.constant dense<0.000000e+00> : vector<8x128xf32>
      %92 = tpu.matmul %91, %56, %cst_59 {dimension_numbers = #tpu.dot_dimension_numbers<[1], [0], [0], [1], [0, 0, 1, 1], [], []>} : vector<8x128xbf16>, vector<128x128xbf16>, vector<8x128xf32> -> vector<8x128xf32>
      %cst_60 = arith.constant 2.500000e-01 : f32
      %93 = vector.broadcast %cst_60 : f32 to vector<8x128xf32>
      %94 = arith.mulf %92, %93 : vector<8x128xf32>
      %95 = arith.maximumf %79, %84 : vector<8x128xf32>
      %96 = arith.subf %79, %95 : vector<8x128xf32>
      %97 = math.exp %96 : vector<8x128xf32>
      %98 = arith.subf %84, %95 : vector<8x128xf32>
      %99 = math.exp %98 : vector<8x128xf32>
      %100 = arith.addf %97, %99 : vector<8x128xf32>
      %101 = tpu.reciprocal %100 {approx = true} : vector<8x128xf32> -> vector<8x128xf32>
      %102 = arith.mulf %97, %101 : vector<8x128xf32>
      %103 = arith.mulf %99, %101 : vector<8x128xf32>
      %104 = arith.maximumf %89, %94 : vector<8x128xf32>
      %105 = arith.subf %89, %104 : vector<8x128xf32>
      %106 = math.exp %105 : vector<8x128xf32>
      %107 = arith.subf %94, %104 : vector<8x128xf32>
      %108 = math.exp %107 : vector<8x128xf32>
      %109 = arith.addf %106, %108 : vector<8x128xf32>
      %110 = tpu.reciprocal %109 {approx = true} : vector<8x128xf32> -> vector<8x128xf32>
      %111 = arith.mulf %106, %110 : vector<8x128xf32>
      %112 = arith.mulf %108, %110 : vector<8x128xf32>
      %113 = arith.truncf %102 : vector<8x128xf32> to vector<8x128xbf16>
      %cst_61 = arith.constant dense<0.000000e+00> : vector<8x128xf32>
      %114 = tpu.matmul %113, %57, %cst_61 {dimension_numbers = #tpu.dot_dimension_numbers<[1], [0], [0], [1], [0, 0, 1, 1], [], []>} : vector<8x128xbf16>, vector<128x128xbf16>, vector<8x128xf32> -> vector<8x128xf32>
      %115 = arith.mulf %114, %73 : vector<8x128xf32>
      %116 = arith.truncf %103 : vector<8x128xf32> to vector<8x128xbf16>
      %cst_62 = arith.constant dense<0.000000e+00> : vector<8x128xf32>
      %117 = tpu.matmul %116, %57, %cst_62 {dimension_numbers = #tpu.dot_dimension_numbers<[1], [0], [0], [1], [0, 0, 1, 1], [], []>} : vector<8x128xbf16>, vector<128x128xbf16>, vector<8x128xf32> -> vector<8x128xf32>
      %118 = arith.mulf %117, %74 : vector<8x128xf32>
      %119 = arith.addf %115, %118 : vector<8x128xf32>
      %120 = arith.truncf %111 : vector<8x128xf32> to vector<8x128xbf16>
      %cst_63 = arith.constant dense<0.000000e+00> : vector<8x128xf32>
      %121 = tpu.matmul %120, %57, %cst_63 {dimension_numbers = #tpu.dot_dimension_numbers<[1], [0], [0], [1], [0, 0, 1, 1], [], []>} : vector<8x128xbf16>, vector<128x128xbf16>, vector<8x128xf32> -> vector<8x128xf32>
      %122 = arith.mulf %121, %73 : vector<8x128xf32>
      %123 = arith.truncf %112 : vector<8x128xf32> to vector<8x128xbf16>
      %cst_64 = arith.constant dense<0.000000e+00> : vector<8x128xf32>
      %124 = tpu.matmul %123, %57, %cst_64 {dimension_numbers = #tpu.dot_dimension_numbers<[1], [0], [0], [1], [0, 0, 1, 1], [], []>} : vector<8x128xbf16>, vector<128x128xbf16>, vector<8x128xf32> -> vector<8x128xf32>
      %125 = arith.mulf %124, %74 : vector<8x128xf32>
      %126 = arith.addf %122, %125 : vector<8x128xf32>
      %127 = tpu.concatenate %119, %126 in 0 : vector<8x128xf32>, vector<8x128xf32> -> vector<16x128xf32>
      %c0_65 = arith.constant 0 : index
      %c0_66 = arith.constant 0 : index
      %c0_67 = arith.constant 0 : index
      %128 = vector.load %arg13[%c0_65, %c0_66, %c0_67] : memref<2x128x128xbf16, #tpu.memory_space<vmem>>, vector<1x128x128xbf16>
      %129 = vector.shape_cast %128 : vector<1x128x128xbf16> to vector<128x128xbf16>
      %c0_68 = arith.constant 0 : index
      %c0_69 = arith.constant 0 : index
      %c0_70 = arith.constant 0 : index
      %130 = vector.load %arg14[%c0_68, %c0_69, %c0_70] : memref<2x1x128xf32, #tpu.memory_space<vmem>>, vector<1x1x128xf32>
      %131 = vector.shape_cast %130 : vector<1x1x128xf32> to vector<1x128xf32>
      %132 = arith.truncf %127 : vector<16x128xf32> to vector<16x128xbf16>
      %cst_71 = arith.constant dense<0.000000e+00> : vector<16x128xf32>
      %133 = tpu.matmul %132, %129, %cst_71 {dimension_numbers = #tpu.dot_dimension_numbers<[1], [0], [0], [1], [0, 0, 1, 1], [], []>} : vector<16x128xbf16>, vector<128x128xbf16>, vector<16x128xf32> -> vector<16x128xf32>
      %134 = vector.broadcast %131 : vector<1x128xf32> to vector<16x128xf32>
      %135 = arith.addf %133, %134 : vector<16x128xf32>
      %136 = arith.addf %55, %135 : vector<16x128xf32>
      %c0_72 = arith.constant 0 : index
      %c0_73 = arith.constant 0 : index
      %c0_74 = arith.constant 0 : index
      %137 = vector.load %arg15[%c0_72, %c0_73, %c0_74] : memref<2x1x128xf32, #tpu.memory_space<vmem>>, vector<1x1x128xf32>
      %138 = vector.shape_cast %137 : vector<1x1x128xf32> to vector<1x128xf32>
      %c0_75 = arith.constant 0 : index
      %c0_76 = arith.constant 0 : index
      %c0_77 = arith.constant 0 : index
      %139 = vector.load %arg16[%c0_75, %c0_76, %c0_77] : memref<2x1x128xf32, #tpu.memory_space<vmem>>, vector<1x1x128xf32>
      %140 = vector.shape_cast %139 : vector<1x1x128xf32> to vector<1x128xf32>
      %cst_78 = arith.constant dense<0.000000e+00> : vector<16xf32>
      %141 = vector.multi_reduction <add>, %136, %cst_78 [1] : vector<16x128xf32> to vector<16xf32>
      %142 = vector.shape_cast %141 : vector<16xf32> to vector<16x1xf32>
      %cst_79 = arith.constant 1.280000e+02 : f32
      %143 = vector.broadcast %cst_79 : f32 to vector<16x1xf32>
      %144 = arith.divf %142, %143 : vector<16x1xf32>
      %145 = arith.mulf %136, %136 : vector<16x128xf32>
      %cst_80 = arith.constant dense<0.000000e+00> : vector<16xf32>
      %146 = vector.multi_reduction <add>, %145, %cst_80 [1] : vector<16x128xf32> to vector<16xf32>
      %147 = vector.shape_cast %146 : vector<16xf32> to vector<16x1xf32>
      %cst_81 = arith.constant 1.280000e+02 : f32
      %148 = vector.broadcast %cst_81 : f32 to vector<16x1xf32>
      %149 = arith.divf %147, %148 : vector<16x1xf32>
      %150 = arith.mulf %144, %144 : vector<16x1xf32>
      %151 = arith.subf %149, %150 : vector<16x1xf32>
      %cst_82 = arith.constant 0.000000e+00 : f32
      %152 = vector.broadcast %cst_82 : f32 to vector<16x1xf32>
      %153 = arith.maximumf %151, %152 : vector<16x1xf32>
      %154 = vector.broadcast %144 : vector<16x1xf32> to vector<16x128xf32>
      %155 = arith.subf %136, %154 : vector<16x128xf32>
      %cst_83 = arith.constant 9.99999974E-6 : f32
      %156 = vector.broadcast %cst_83 : f32 to vector<16x1xf32>
      %157 = arith.addf %153, %156 : vector<16x1xf32>
      %158 = math.rsqrt %157 : vector<16x1xf32>
      %159 = vector.broadcast %158 : vector<16x1xf32> to vector<16x128xf32>
      %160 = arith.mulf %155, %159 : vector<16x128xf32>
      %161 = vector.broadcast %138 : vector<1x128xf32> to vector<16x128xf32>
      %162 = arith.mulf %160, %161 : vector<16x128xf32>
      %163 = vector.broadcast %140 : vector<1x128xf32> to vector<16x128xf32>
      %164 = arith.addf %162, %163 : vector<16x128xf32>
      %c0_84 = arith.constant 0 : index
      %c0_85 = arith.constant 0 : index
      %c0_86 = arith.constant 0 : index
      %165 = vector.load %arg17[%c0_84, %c0_85, %c0_86] : memref<2x128x512xbf16, #tpu.memory_space<vmem>>, vector<1x128x512xbf16>
      %166 = vector.shape_cast %165 : vector<1x128x512xbf16> to vector<128x512xbf16>
      %c0_87 = arith.constant 0 : index
      %c0_88 = arith.constant 0 : index
      %c0_89 = arith.constant 0 : index
      %167 = vector.load %arg18[%c0_87, %c0_88, %c0_89] : memref<2x1x512xf32, #tpu.memory_space<vmem>>, vector<1x1x512xf32>
      %168 = vector.shape_cast %167 : vector<1x1x512xf32> to vector<1x512xf32>
      %169 = arith.truncf %164 : vector<16x128xf32> to vector<16x128xbf16>
      %cst_90 = arith.constant dense<0.000000e+00> : vector<16x512xf32>
      %170 = tpu.matmul %169, %166, %cst_90 {dimension_numbers = #tpu.dot_dimension_numbers<[1], [0], [0], [1], [0, 0, 1, 1], [], []>} : vector<16x128xbf16>, vector<128x512xbf16>, vector<16x512xf32> -> vector<16x512xf32>
      %171 = vector.broadcast %168 : vector<1x512xf32> to vector<16x512xf32>
      %172 = arith.addf %170, %171 : vector<16x512xf32>
      %cst_91 = arith.constant 0.000000e+00 : f32
      %173 = vector.broadcast %cst_91 : f32 to vector<16x512xf32>
      %174 = arith.maximumf %172, %173 : vector<16x512xf32>
      %c0_92 = arith.constant 0 : index
      %c0_93 = arith.constant 0 : index
      %c0_94 = arith.constant 0 : index
      %175 = vector.load %arg19[%c0_92, %c0_93, %c0_94] : memref<2x512x128xbf16, #tpu.memory_space<vmem>>, vector<1x512x128xbf16>
      %176 = vector.shape_cast %175 : vector<1x512x128xbf16> to vector<512x128xbf16>
      %c0_95 = arith.constant 0 : index
      %c0_96 = arith.constant 0 : index
      %c0_97 = arith.constant 0 : index
      %177 = vector.load %arg20[%c0_95, %c0_96, %c0_97] : memref<2x1x128xf32, #tpu.memory_space<vmem>>, vector<1x1x128xf32>
      %178 = vector.shape_cast %177 : vector<1x1x128xf32> to vector<1x128xf32>
      %179 = arith.truncf %174 : vector<16x512xf32> to vector<16x512xbf16>
      %cst_98 = arith.constant dense<0.000000e+00> : vector<16x128xf32>
      %180 = tpu.matmul %179, %176, %cst_98 {dimension_numbers = #tpu.dot_dimension_numbers<[1], [0], [0], [1], [0, 0, 1, 1], [], []>} : vector<16x512xbf16>, vector<512x128xbf16>, vector<16x128xf32> -> vector<16x128xf32>
      %181 = vector.broadcast %178 : vector<1x128xf32> to vector<16x128xf32>
      %182 = arith.addf %180, %181 : vector<16x128xf32>
      %183 = arith.addf %164, %182 : vector<16x128xf32>
      %c0_99 = arith.constant 0 : index
      %c0_100 = arith.constant 0 : index
      %c0_101 = arith.constant 0 : index
      %184 = vector.load %arg21[%c0_99, %c0_100, %c0_101] : memref<2x1x128xf32, #tpu.memory_space<vmem>>, vector<1x1x128xf32>
      %185 = vector.shape_cast %184 : vector<1x1x128xf32> to vector<1x128xf32>
      %c0_102 = arith.constant 0 : index
      %c0_103 = arith.constant 0 : index
      %c0_104 = arith.constant 0 : index
      %186 = vector.load %arg22[%c0_102, %c0_103, %c0_104] : memref<2x1x128xf32, #tpu.memory_space<vmem>>, vector<1x1x128xf32>
      %187 = vector.shape_cast %186 : vector<1x1x128xf32> to vector<1x128xf32>
      %cst_105 = arith.constant dense<0.000000e+00> : vector<16xf32>
      %188 = vector.multi_reduction <add>, %183, %cst_105 [1] : vector<16x128xf32> to vector<16xf32>
      %189 = vector.shape_cast %188 : vector<16xf32> to vector<16x1xf32>
      %cst_106 = arith.constant 1.280000e+02 : f32
      %190 = vector.broadcast %cst_106 : f32 to vector<16x1xf32>
      %191 = arith.divf %189, %190 : vector<16x1xf32>
      %192 = arith.mulf %183, %183 : vector<16x128xf32>
      %cst_107 = arith.constant dense<0.000000e+00> : vector<16xf32>
      %193 = vector.multi_reduction <add>, %192, %cst_107 [1] : vector<16x128xf32> to vector<16xf32>
      %194 = vector.shape_cast %193 : vector<16xf32> to vector<16x1xf32>
      %cst_108 = arith.constant 1.280000e+02 : f32
      %195 = vector.broadcast %cst_108 : f32 to vector<16x1xf32>
      %196 = arith.divf %194, %195 : vector<16x1xf32>
      %197 = arith.mulf %191, %191 : vector<16x1xf32>
      %198 = arith.subf %196, %197 : vector<16x1xf32>
      %cst_109 = arith.constant 0.000000e+00 : f32
      %199 = vector.broadcast %cst_109 : f32 to vector<16x1xf32>
      %200 = arith.maximumf %198, %199 : vector<16x1xf32>
      %201 = vector.broadcast %191 : vector<16x1xf32> to vector<16x128xf32>
      %202 = arith.subf %183, %201 : vector<16x128xf32>
      %cst_110 = arith.constant 9.99999974E-6 : f32
      %203 = vector.broadcast %cst_110 : f32 to vector<16x1xf32>
      %204 = arith.addf %200, %203 : vector<16x1xf32>
      %205 = math.rsqrt %204 : vector<16x1xf32>
      %206 = vector.broadcast %205 : vector<16x1xf32> to vector<16x128xf32>
      %207 = arith.mulf %202, %206 : vector<16x128xf32>
      %208 = vector.broadcast %185 : vector<1x128xf32> to vector<16x128xf32>
      %209 = arith.mulf %207, %208 : vector<16x128xf32>
      %210 = vector.broadcast %187 : vector<1x128xf32> to vector<16x128xf32>
      %211 = arith.addf %209, %210 : vector<16x128xf32>
      %c1_111 = arith.constant 1 : index
      %c0_112 = arith.constant 0 : index
      %c0_113 = arith.constant 0 : index
      %212 = vector.load %arg11[%c1_111, %c0_112, %c0_113] : memref<2x128x384xbf16, #tpu.memory_space<vmem>>, vector<1x128x384xbf16>
      %213 = vector.shape_cast %212 : vector<1x128x384xbf16> to vector<128x384xbf16>
      %c1_114 = arith.constant 1 : index
      %c0_115 = arith.constant 0 : index
      %c0_116 = arith.constant 0 : index
      %214 = vector.load %arg12[%c1_114, %c0_115, %c0_116] : memref<2x1x384xf32, #tpu.memory_space<vmem>>, vector<1x1x384xf32>
      %215 = vector.shape_cast %214 : vector<1x1x384xf32> to vector<1x384xf32>
      %216 = arith.truncf %211 : vector<16x128xf32> to vector<16x128xbf16>
      %cst_117 = arith.constant dense<0.000000e+00> : vector<16x384xf32>
      %217 = tpu.matmul %216, %213, %cst_117 {dimension_numbers = #tpu.dot_dimension_numbers<[1], [0], [0], [1], [0, 0, 1, 1], [], []>} : vector<16x128xbf16>, vector<128x384xbf16>, vector<16x384xf32> -> vector<16x384xf32>
      %218 = vector.broadcast %215 : vector<1x384xf32> to vector<16x384xf32>
      %219 = arith.addf %217, %218 : vector<16x384xf32>
      %220 = vector.extract_strided_slice %219 {offsets = [0, 0], sizes = [16, 128], strides = [1, 1]} : vector<16x384xf32> to vector<16x128xf32>
      %221 = vector.extract_strided_slice %219 {offsets = [0, 128], sizes = [16, 128], strides = [1, 1]} : vector<16x384xf32> to vector<16x128xf32>
      %222 = vector.extract_strided_slice %219 {offsets = [0, 256], sizes = [16, 128], strides = [1, 1]} : vector<16x384xf32> to vector<16x128xf32>
      %223 = vector.extract_strided_slice %220 {offsets = [0, 0], sizes = [8, 128], strides = [1, 1]} : vector<16x128xf32> to vector<8x128xf32>
      %224 = vector.extract_strided_slice %220 {offsets = [8, 0], sizes = [8, 128], strides = [1, 1]} : vector<16x128xf32> to vector<8x128xf32>
      %225 = vector.extract_strided_slice %221 {offsets = [0, 0], sizes = [8, 128], strides = [1, 1]} : vector<16x128xf32> to vector<8x128xf32>
      %226 = vector.extract_strided_slice %221 {offsets = [8, 0], sizes = [8, 128], strides = [1, 1]} : vector<16x128xf32> to vector<8x128xf32>
      %227 = vector.extract_strided_slice %222 {offsets = [0, 0], sizes = [8, 128], strides = [1, 1]} : vector<16x128xf32> to vector<8x128xf32>
      %228 = vector.extract_strided_slice %222 {offsets = [8, 0], sizes = [8, 128], strides = [1, 1]} : vector<16x128xf32> to vector<8x128xf32>
      %229 = arith.mulf %223, %225 : vector<8x128xf32>
      %230 = arith.truncf %229 : vector<8x128xf32> to vector<8x128xbf16>
      %cst_118 = arith.constant dense<0.000000e+00> : vector<8x128xf32>
      %231 = tpu.matmul %230, %56, %cst_118 {dimension_numbers = #tpu.dot_dimension_numbers<[1], [0], [0], [1], [0, 0, 1, 1], [], []>} : vector<8x128xbf16>, vector<128x128xbf16>, vector<8x128xf32> -> vector<8x128xf32>
      %cst_119 = arith.constant 2.500000e-01 : f32
      %232 = vector.broadcast %cst_119 : f32 to vector<8x128xf32>
      %233 = arith.mulf %231, %232 : vector<8x128xf32>
      %234 = arith.mulf %223, %226 : vector<8x128xf32>
      %235 = arith.truncf %234 : vector<8x128xf32> to vector<8x128xbf16>
      %cst_120 = arith.constant dense<0.000000e+00> : vector<8x128xf32>
      %236 = tpu.matmul %235, %56, %cst_120 {dimension_numbers = #tpu.dot_dimension_numbers<[1], [0], [0], [1], [0, 0, 1, 1], [], []>} : vector<8x128xbf16>, vector<128x128xbf16>, vector<8x128xf32> -> vector<8x128xf32>
      %cst_121 = arith.constant 2.500000e-01 : f32
      %237 = vector.broadcast %cst_121 : f32 to vector<8x128xf32>
      %238 = arith.mulf %236, %237 : vector<8x128xf32>
      %239 = arith.mulf %224, %225 : vector<8x128xf32>
      %240 = arith.truncf %239 : vector<8x128xf32> to vector<8x128xbf16>
      %cst_122 = arith.constant dense<0.000000e+00> : vector<8x128xf32>
      %241 = tpu.matmul %240, %56, %cst_122 {dimension_numbers = #tpu.dot_dimension_numbers<[1], [0], [0], [1], [0, 0, 1, 1], [], []>} : vector<8x128xbf16>, vector<128x128xbf16>, vector<8x128xf32> -> vector<8x128xf32>
      %cst_123 = arith.constant 2.500000e-01 : f32
      %242 = vector.broadcast %cst_123 : f32 to vector<8x128xf32>
      %243 = arith.mulf %241, %242 : vector<8x128xf32>
      %244 = arith.mulf %224, %226 : vector<8x128xf32>
      %245 = arith.truncf %244 : vector<8x128xf32> to vector<8x128xbf16>
      %cst_124 = arith.constant dense<0.000000e+00> : vector<8x128xf32>
      %246 = tpu.matmul %245, %56, %cst_124 {dimension_numbers = #tpu.dot_dimension_numbers<[1], [0], [0], [1], [0, 0, 1, 1], [], []>} : vector<8x128xbf16>, vector<128x128xbf16>, vector<8x128xf32> -> vector<8x128xf32>
      %cst_125 = arith.constant 2.500000e-01 : f32
      %247 = vector.broadcast %cst_125 : f32 to vector<8x128xf32>
      %248 = arith.mulf %246, %247 : vector<8x128xf32>
      %249 = arith.maximumf %233, %238 : vector<8x128xf32>
      %250 = arith.subf %233, %249 : vector<8x128xf32>
      %251 = math.exp %250 : vector<8x128xf32>
      %252 = arith.subf %238, %249 : vector<8x128xf32>
      %253 = math.exp %252 : vector<8x128xf32>
      %254 = arith.addf %251, %253 : vector<8x128xf32>
      %255 = tpu.reciprocal %254 {approx = true} : vector<8x128xf32> -> vector<8x128xf32>
      %256 = arith.mulf %251, %255 : vector<8x128xf32>
      %257 = arith.mulf %253, %255 : vector<8x128xf32>
      %258 = arith.maximumf %243, %248 : vector<8x128xf32>
      %259 = arith.subf %243, %258 : vector<8x128xf32>
      %260 = math.exp %259 : vector<8x128xf32>
      %261 = arith.subf %248, %258 : vector<8x128xf32>
      %262 = math.exp %261 : vector<8x128xf32>
      %263 = arith.addf %260, %262 : vector<8x128xf32>
      %264 = tpu.reciprocal %263 {approx = true} : vector<8x128xf32> -> vector<8x128xf32>
      %265 = arith.mulf %260, %264 : vector<8x128xf32>
      %266 = arith.mulf %262, %264 : vector<8x128xf32>
      %267 = arith.truncf %256 : vector<8x128xf32> to vector<8x128xbf16>
      %cst_126 = arith.constant dense<0.000000e+00> : vector<8x128xf32>
      %268 = tpu.matmul %267, %57, %cst_126 {dimension_numbers = #tpu.dot_dimension_numbers<[1], [0], [0], [1], [0, 0, 1, 1], [], []>} : vector<8x128xbf16>, vector<128x128xbf16>, vector<8x128xf32> -> vector<8x128xf32>
      %269 = arith.mulf %268, %227 : vector<8x128xf32>
      %270 = arith.truncf %257 : vector<8x128xf32> to vector<8x128xbf16>
      %cst_127 = arith.constant dense<0.000000e+00> : vector<8x128xf32>
      %271 = tpu.matmul %270, %57, %cst_127 {dimension_numbers = #tpu.dot_dimension_numbers<[1], [0], [0], [1], [0, 0, 1, 1], [], []>} : vector<8x128xbf16>, vector<128x128xbf16>, vector<8x128xf32> -> vector<8x128xf32>
      %272 = arith.mulf %271, %228 : vector<8x128xf32>
      %273 = arith.addf %269, %272 : vector<8x128xf32>
      %274 = arith.truncf %265 : vector<8x128xf32> to vector<8x128xbf16>
      %cst_128 = arith.constant dense<0.000000e+00> : vector<8x128xf32>
      %275 = tpu.matmul %274, %57, %cst_128 {dimension_numbers = #tpu.dot_dimension_numbers<[1], [0], [0], [1], [0, 0, 1, 1], [], []>} : vector<8x128xbf16>, vector<128x128xbf16>, vector<8x128xf32> -> vector<8x128xf32>
      %276 = arith.mulf %275, %227 : vector<8x128xf32>
      %277 = arith.truncf %266 : vector<8x128xf32> to vector<8x128xbf16>
      %cst_129 = arith.constant dense<0.000000e+00> : vector<8x128xf32>
      %278 = tpu.matmul %277, %57, %cst_129 {dimension_numbers = #tpu.dot_dimension_numbers<[1], [0], [0], [1], [0, 0, 1, 1], [], []>} : vector<8x128xbf16>, vector<128x128xbf16>, vector<8x128xf32> -> vector<8x128xf32>
      %279 = arith.mulf %278, %228 : vector<8x128xf32>
      %280 = arith.addf %276, %279 : vector<8x128xf32>
      %281 = tpu.concatenate %273, %280 in 0 : vector<8x128xf32>, vector<8x128xf32> -> vector<16x128xf32>
      %c1_130 = arith.constant 1 : index
      %c0_131 = arith.constant 0 : index
      %c0_132 = arith.constant 0 : index
      %282 = vector.load %arg13[%c1_130, %c0_131, %c0_132] : memref<2x128x128xbf16, #tpu.memory_space<vmem>>, vector<1x128x128xbf16>
      %283 = vector.shape_cast %282 : vector<1x128x128xbf16> to vector<128x128xbf16>
      %c1_133 = arith.constant 1 : index
      %c0_134 = arith.constant 0 : index
      %c0_135 = arith.constant 0 : index
      %284 = vector.load %arg14[%c1_133, %c0_134, %c0_135] : memref<2x1x128xf32, #tpu.memory_space<vmem>>, vector<1x1x128xf32>
      %285 = vector.shape_cast %284 : vector<1x1x128xf32> to vector<1x128xf32>
      %286 = arith.truncf %281 : vector<16x128xf32> to vector<16x128xbf16>
      %cst_136 = arith.constant dense<0.000000e+00> : vector<16x128xf32>
      %287 = tpu.matmul %286, %283, %cst_136 {dimension_numbers = #tpu.dot_dimension_numbers<[1], [0], [0], [1], [0, 0, 1, 1], [], []>} : vector<16x128xbf16>, vector<128x128xbf16>, vector<16x128xf32> -> vector<16x128xf32>
      %288 = vector.broadcast %285 : vector<1x128xf32> to vector<16x128xf32>
      %289 = arith.addf %287, %288 : vector<16x128xf32>
      %290 = arith.addf %211, %289 : vector<16x128xf32>
      %c1_137 = arith.constant 1 : index
      %c0_138 = arith.constant 0 : index
      %c0_139 = arith.constant 0 : index
      %291 = vector.load %arg15[%c1_137, %c0_138, %c0_139] : memref<2x1x128xf32, #tpu.memory_space<vmem>>, vector<1x1x128xf32>
      %292 = vector.shape_cast %291 : vector<1x1x128xf32> to vector<1x128xf32>
      %c1_140 = arith.constant 1 : index
      %c0_141 = arith.constant 0 : index
      %c0_142 = arith.constant 0 : index
      %293 = vector.load %arg16[%c1_140, %c0_141, %c0_142] : memref<2x1x128xf32, #tpu.memory_space<vmem>>, vector<1x1x128xf32>
      %294 = vector.shape_cast %293 : vector<1x1x128xf32> to vector<1x128xf32>
      %cst_143 = arith.constant dense<0.000000e+00> : vector<16xf32>
      %295 = vector.multi_reduction <add>, %290, %cst_143 [1] : vector<16x128xf32> to vector<16xf32>
      %296 = vector.shape_cast %295 : vector<16xf32> to vector<16x1xf32>
      %cst_144 = arith.constant 1.280000e+02 : f32
      %297 = vector.broadcast %cst_144 : f32 to vector<16x1xf32>
      %298 = arith.divf %296, %297 : vector<16x1xf32>
      %299 = arith.mulf %290, %290 : vector<16x128xf32>
      %cst_145 = arith.constant dense<0.000000e+00> : vector<16xf32>
      %300 = vector.multi_reduction <add>, %299, %cst_145 [1] : vector<16x128xf32> to vector<16xf32>
      %301 = vector.shape_cast %300 : vector<16xf32> to vector<16x1xf32>
      %cst_146 = arith.constant 1.280000e+02 : f32
      %302 = vector.broadcast %cst_146 : f32 to vector<16x1xf32>
      %303 = arith.divf %301, %302 : vector<16x1xf32>
      %304 = arith.mulf %298, %298 : vector<16x1xf32>
      %305 = arith.subf %303, %304 : vector<16x1xf32>
      %cst_147 = arith.constant 0.000000e+00 : f32
      %306 = vector.broadcast %cst_147 : f32 to vector<16x1xf32>
      %307 = arith.maximumf %305, %306 : vector<16x1xf32>
      %308 = vector.broadcast %298 : vector<16x1xf32> to vector<16x128xf32>
      %309 = arith.subf %290, %308 : vector<16x128xf32>
      %cst_148 = arith.constant 9.99999974E-6 : f32
      %310 = vector.broadcast %cst_148 : f32 to vector<16x1xf32>
      %311 = arith.addf %307, %310 : vector<16x1xf32>
      %312 = math.rsqrt %311 : vector<16x1xf32>
      %313 = vector.broadcast %312 : vector<16x1xf32> to vector<16x128xf32>
      %314 = arith.mulf %309, %313 : vector<16x128xf32>
      %315 = vector.broadcast %292 : vector<1x128xf32> to vector<16x128xf32>
      %316 = arith.mulf %314, %315 : vector<16x128xf32>
      %317 = vector.broadcast %294 : vector<1x128xf32> to vector<16x128xf32>
      %318 = arith.addf %316, %317 : vector<16x128xf32>
      %c1_149 = arith.constant 1 : index
      %c0_150 = arith.constant 0 : index
      %c0_151 = arith.constant 0 : index
      %319 = vector.load %arg17[%c1_149, %c0_150, %c0_151] : memref<2x128x512xbf16, #tpu.memory_space<vmem>>, vector<1x128x512xbf16>
      %320 = vector.shape_cast %319 : vector<1x128x512xbf16> to vector<128x512xbf16>
      %c1_152 = arith.constant 1 : index
      %c0_153 = arith.constant 0 : index
      %c0_154 = arith.constant 0 : index
      %321 = vector.load %arg18[%c1_152, %c0_153, %c0_154] : memref<2x1x512xf32, #tpu.memory_space<vmem>>, vector<1x1x512xf32>
      %322 = vector.shape_cast %321 : vector<1x1x512xf32> to vector<1x512xf32>
      %323 = arith.truncf %318 : vector<16x128xf32> to vector<16x128xbf16>
      %cst_155 = arith.constant dense<0.000000e+00> : vector<16x512xf32>
      %324 = tpu.matmul %323, %320, %cst_155 {dimension_numbers = #tpu.dot_dimension_numbers<[1], [0], [0], [1], [0, 0, 1, 1], [], []>} : vector<16x128xbf16>, vector<128x512xbf16>, vector<16x512xf32> -> vector<16x512xf32>
      %325 = vector.broadcast %322 : vector<1x512xf32> to vector<16x512xf32>
      %326 = arith.addf %324, %325 : vector<16x512xf32>
      %cst_156 = arith.constant 0.000000e+00 : f32
      %327 = vector.broadcast %cst_156 : f32 to vector<16x512xf32>
      %328 = arith.maximumf %326, %327 : vector<16x512xf32>
      %c1_157 = arith.constant 1 : index
      %c0_158 = arith.constant 0 : index
      %c0_159 = arith.constant 0 : index
      %329 = vector.load %arg19[%c1_157, %c0_158, %c0_159] : memref<2x512x128xbf16, #tpu.memory_space<vmem>>, vector<1x512x128xbf16>
      %330 = vector.shape_cast %329 : vector<1x512x128xbf16> to vector<512x128xbf16>
      %c1_160 = arith.constant 1 : index
      %c0_161 = arith.constant 0 : index
      %c0_162 = arith.constant 0 : index
      %331 = vector.load %arg20[%c1_160, %c0_161, %c0_162] : memref<2x1x128xf32, #tpu.memory_space<vmem>>, vector<1x1x128xf32>
      %332 = vector.shape_cast %331 : vector<1x1x128xf32> to vector<1x128xf32>
      %333 = arith.truncf %328 : vector<16x512xf32> to vector<16x512xbf16>
      %cst_163 = arith.constant dense<0.000000e+00> : vector<16x128xf32>
      %334 = tpu.matmul %333, %330, %cst_163 {dimension_numbers = #tpu.dot_dimension_numbers<[1], [0], [0], [1], [0, 0, 1, 1], [], []>} : vector<16x512xbf16>, vector<512x128xbf16>, vector<16x128xf32> -> vector<16x128xf32>
      %335 = vector.broadcast %332 : vector<1x128xf32> to vector<16x128xf32>
      %336 = arith.addf %334, %335 : vector<16x128xf32>
      %337 = arith.addf %318, %336 : vector<16x128xf32>
      %c1_164 = arith.constant 1 : index
      %c0_165 = arith.constant 0 : index
      %c0_166 = arith.constant 0 : index
      %338 = vector.load %arg21[%c1_164, %c0_165, %c0_166] : memref<2x1x128xf32, #tpu.memory_space<vmem>>, vector<1x1x128xf32>
      %339 = vector.shape_cast %338 : vector<1x1x128xf32> to vector<1x128xf32>
      %c1_167 = arith.constant 1 : index
      %c0_168 = arith.constant 0 : index
      %c0_169 = arith.constant 0 : index
      %340 = vector.load %arg22[%c1_167, %c0_168, %c0_169] : memref<2x1x128xf32, #tpu.memory_space<vmem>>, vector<1x1x128xf32>
      %341 = vector.shape_cast %340 : vector<1x1x128xf32> to vector<1x128xf32>
      %cst_170 = arith.constant dense<0.000000e+00> : vector<16xf32>
      %342 = vector.multi_reduction <add>, %337, %cst_170 [1] : vector<16x128xf32> to vector<16xf32>
      %343 = vector.shape_cast %342 : vector<16xf32> to vector<16x1xf32>
      %cst_171 = arith.constant 1.280000e+02 : f32
      %344 = vector.broadcast %cst_171 : f32 to vector<16x1xf32>
      %345 = arith.divf %343, %344 : vector<16x1xf32>
      %346 = arith.mulf %337, %337 : vector<16x128xf32>
      %cst_172 = arith.constant dense<0.000000e+00> : vector<16xf32>
      %347 = vector.multi_reduction <add>, %346, %cst_172 [1] : vector<16x128xf32> to vector<16xf32>
      %348 = vector.shape_cast %347 : vector<16xf32> to vector<16x1xf32>
      %cst_173 = arith.constant 1.280000e+02 : f32
      %349 = vector.broadcast %cst_173 : f32 to vector<16x1xf32>
      %350 = arith.divf %348, %349 : vector<16x1xf32>
      %351 = arith.mulf %345, %345 : vector<16x1xf32>
      %352 = arith.subf %350, %351 : vector<16x1xf32>
      %cst_174 = arith.constant 0.000000e+00 : f32
      %353 = vector.broadcast %cst_174 : f32 to vector<16x1xf32>
      %354 = arith.maximumf %352, %353 : vector<16x1xf32>
      %355 = vector.broadcast %345 : vector<16x1xf32> to vector<16x128xf32>
      %356 = arith.subf %337, %355 : vector<16x128xf32>
      %cst_175 = arith.constant 9.99999974E-6 : f32
      %357 = vector.broadcast %cst_175 : f32 to vector<16x1xf32>
      %358 = arith.addf %354, %357 : vector<16x1xf32>
      %359 = math.rsqrt %358 : vector<16x1xf32>
      %360 = vector.broadcast %359 : vector<16x1xf32> to vector<16x128xf32>
      %361 = arith.mulf %356, %360 : vector<16x128xf32>
      %362 = vector.broadcast %339 : vector<1x128xf32> to vector<16x128xf32>
      %363 = arith.mulf %361, %362 : vector<16x128xf32>
      %364 = vector.broadcast %341 : vector<1x128xf32> to vector<16x128xf32>
      %365 = arith.addf %363, %364 : vector<16x128xf32>
      %366 = vector.extract_strided_slice %365 {offsets = [0, 0], sizes = [8, 128], strides = [1, 1]} : vector<16x128xf32> to vector<8x128xf32>
      %367 = vector.extract_strided_slice %365 {offsets = [8, 0], sizes = [8, 128], strides = [1, 1]} : vector<16x128xf32> to vector<8x128xf32>
      %368 = arith.addf %366, %367 : vector<8x128xf32>
      %cst_176 = arith.constant 5.000000e-01 : f32
      %369 = vector.broadcast %cst_176 : f32 to vector<8x128xf32>
      %370 = arith.mulf %368, %369 : vector<8x128xf32>
      %c0_177 = arith.constant 0 : index
      %c0_178 = arith.constant 0 : index
      %371 = vector.load %arg23[%c0_177, %c0_178] : memref<128x32xbf16, #tpu.memory_space<vmem>>, vector<128x32xbf16>
      %c0_179 = arith.constant 0 : index
      %c0_180 = arith.constant 0 : index
      %372 = vector.load %arg24[%c0_179, %c0_180] : memref<1x32xf32, #tpu.memory_space<vmem>>, vector<1x32xf32>
      %373 = arith.truncf %370 : vector<8x128xf32> to vector<8x128xbf16>
      %cst_181 = arith.constant dense<0.000000e+00> : vector<8x32xf32>
      %374 = tpu.matmul %373, %371, %cst_181 {dimension_numbers = #tpu.dot_dimension_numbers<[1], [0], [0], [1], [0, 0, 1, 1], [], []>} : vector<8x128xbf16>, vector<128x32xbf16>, vector<8x32xf32> -> vector<8x32xf32>
      %375 = vector.broadcast %372 : vector<1x32xf32> to vector<8x32xf32>
      %376 = arith.addf %374, %375 : vector<8x32xf32>
      %cst_182 = arith.constant 0.000000e+00 : f32
      %377 = vector.broadcast %cst_182 : f32 to vector<8x32xf32>
      %378 = arith.maximumf %376, %377 : vector<8x32xf32>
      %c0_183 = arith.constant 0 : index
      %c0_184 = arith.constant 0 : index
      %379 = vector.load %arg25[%c0_183, %c0_184] : memref<32x128xbf16, #tpu.memory_space<vmem>>, vector<32x128xbf16>
      %c0_185 = arith.constant 0 : index
      %c0_186 = arith.constant 0 : index
      %380 = vector.load %arg26[%c0_185, %c0_186] : memref<1x128xf32, #tpu.memory_space<vmem>>, vector<1x128xf32>
      %381 = arith.truncf %378 : vector<8x32xf32> to vector<8x32xbf16>
      %cst_187 = arith.constant dense<0.000000e+00> : vector<8x128xf32>
      %382 = tpu.matmul %381, %379, %cst_187 {dimension_numbers = #tpu.dot_dimension_numbers<[1], [0], [0], [1], [0, 0, 1, 1], [], []>} : vector<8x32xbf16>, vector<32x128xbf16>, vector<8x128xf32> -> vector<8x128xf32>
      %383 = vector.broadcast %380 : vector<1x128xf32> to vector<8x128xf32>
      %384 = arith.addf %382, %383 : vector<8x128xf32>
      %385 = arith.negf %384 : vector<8x128xf32>
      %386 = math.exp %385 : vector<8x128xf32>
      %cst_188 = arith.constant 1.000000e+00 : f32
      %387 = vector.broadcast %cst_188 : f32 to vector<8x128xf32>
      %388 = arith.addf %387, %386 : vector<8x128xf32>
      %389 = arith.divf %387, %388 : vector<8x128xf32>
      %c0_189 = arith.constant 0 : index
      %c0_190 = arith.constant 0 : index
      %390 = vector.load %arg27[%c0_189, %c0_190] : memref<8x128xf32, #tpu.memory_space<vmem>>, vector<8x128xf32>
      tpu.vector_store %arg27[%c0_189, %c0_190], %389 {strides = array<i32>} : memref<8x128xf32, #tpu.memory_space<vmem>>, vector<8x128xf32>,
    } else {
    }
    return
  }
  func.func @transform_0(%arg0: i32, %arg1: i32) -> (i32, i32, i32) {
    %c0_i32 = arith.constant 0 : i32
    %c0_i32_0 = arith.constant 0 : i32
    return %c0_i32, %arg0, %arg1 : i32, i32, i32
  }
  func.func @transform_1(%arg0: i32, %arg1: i32) -> (i32, i32) {
    %c0_i32 = arith.constant 0 : i32
    %c0_i32_0 = arith.constant 0 : i32
    %c0_i32_1 = arith.constant 0 : i32
    return %c0_i32, %c0_i32_0 : i32, i32
  }
  func.func @transform_2(%arg0: i32, %arg1: i32) -> (i32, i32) {
    %c0_i32 = arith.constant 0 : i32
    %c0_i32_0 = arith.constant 0 : i32
    %c0_i32_1 = arith.constant 0 : i32
    return %c0_i32, %c0_i32_0 : i32, i32
  }
  func.func @transform_3(%arg0: i32, %arg1: i32) -> (i32, i32) {
    %c0_i32 = arith.constant 0 : i32
    %c0_i32_0 = arith.constant 0 : i32
    %c0_i32_1 = arith.constant 0 : i32
    return %c0_i32, %c0_i32_0 : i32, i32
  }
  func.func @transform_4(%arg0: i32, %arg1: i32) -> (i32, i32) {
    %c0_i32 = arith.constant 0 : i32
    %c0_i32_0 = arith.constant 0 : i32
    %c0_i32_1 = arith.constant 0 : i32
    return %c0_i32, %c0_i32_0 : i32, i32
  }
  func.func @transform_5(%arg0: i32, %arg1: i32) -> (i32, i32) {
    %c0_i32 = arith.constant 0 : i32
    %c0_i32_0 = arith.constant 0 : i32
    %c0_i32_1 = arith.constant 0 : i32
    return %c0_i32, %c0_i32_0 : i32, i32
  }
  func.func @transform_6(%arg0: i32, %arg1: i32) -> (i32, i32) {
    %c0_i32 = arith.constant 0 : i32
    %c0_i32_0 = arith.constant 0 : i32
    %c0_i32_1 = arith.constant 0 : i32
    return %c0_i32, %c0_i32_0 : i32, i32
  }
  func.func @transform_7(%arg0: i32, %arg1: i32) -> (i32, i32) {
    %c0_i32 = arith.constant 0 : i32
    %c0_i32_0 = arith.constant 0 : i32
    %c0_i32_1 = arith.constant 0 : i32
    return %c0_i32, %c0_i32_0 : i32, i32
  }
  func.func @transform_8(%arg0: i32, %arg1: i32) -> (i32, i32) {
    %c0_i32 = arith.constant 0 : i32
    %c0_i32_0 = arith.constant 0 : i32
    %c0_i32_1 = arith.constant 0 : i32
    return %c0_i32, %c0_i32_0 : i32, i32
  }
  func.func @transform_9(%arg0: i32, %arg1: i32) -> (i32, i32, i32) {
    %c0_i32 = arith.constant 0 : i32
    %c0_i32_0 = arith.constant 0 : i32
    %c0_i32_1 = arith.constant 0 : i32
    %c0_i32_2 = arith.constant 0 : i32
    return %c0_i32, %c0_i32_0, %c0_i32_1 : i32, i32, i32
  }
  func.func @transform_10(%arg0: i32, %arg1: i32) -> (i32, i32, i32) {
    %c0_i32 = arith.constant 0 : i32
    %c0_i32_0 = arith.constant 0 : i32
    %c0_i32_1 = arith.constant 0 : i32
    %c0_i32_2 = arith.constant 0 : i32
    return %c0_i32, %c0_i32_0, %c0_i32_1 : i32, i32, i32
  }
  func.func @transform_11(%arg0: i32, %arg1: i32) -> (i32, i32, i32) {
    %c0_i32 = arith.constant 0 : i32
    %c0_i32_0 = arith.constant 0 : i32
    %c0_i32_1 = arith.constant 0 : i32
    %c0_i32_2 = arith.constant 0 : i32
    return %c0_i32, %c0_i32_0, %c0_i32_1 : i32, i32, i32
  }
  func.func @transform_12(%arg0: i32, %arg1: i32) -> (i32, i32, i32) {
    %c0_i32 = arith.constant 0 : i32
    %c0_i32_0 = arith.constant 0 : i32
    %c0_i32_1 = arith.constant 0 : i32
    %c0_i32_2 = arith.constant 0 : i32
    return %c0_i32, %c0_i32_0, %c0_i32_1 : i32, i32, i32
  }
  func.func @transform_13(%arg0: i32, %arg1: i32) -> (i32, i32, i32) {
    %c0_i32 = arith.constant 0 : i32
    %c0_i32_0 = arith.constant 0 : i32
    %c0_i32_1 = arith.constant 0 : i32
    %c0_i32_2 = arith.constant 0 : i32
    return %c0_i32, %c0_i32_0, %c0_i32_1 : i32, i32, i32
  }
  func.func @transform_14(%arg0: i32, %arg1: i32) -> (i32, i32, i32) {
    %c0_i32 = arith.constant 0 : i32
    %c0_i32_0 = arith.constant 0 : i32
    %c0_i32_1 = arith.constant 0 : i32
    %c0_i32_2 = arith.constant 0 : i32
    return %c0_i32, %c0_i32_0, %c0_i32_1 : i32, i32, i32
  }
  func.func @transform_15(%arg0: i32, %arg1: i32) -> (i32, i32, i32) {
    %c0_i32 = arith.constant 0 : i32
    %c0_i32_0 = arith.constant 0 : i32
    %c0_i32_1 = arith.constant 0 : i32
    %c0_i32_2 = arith.constant 0 : i32
    return %c0_i32, %c0_i32_0, %c0_i32_1 : i32, i32, i32
  }
  func.func @transform_16(%arg0: i32, %arg1: i32) -> (i32, i32, i32) {
    %c0_i32 = arith.constant 0 : i32
    %c0_i32_0 = arith.constant 0 : i32
    %c0_i32_1 = arith.constant 0 : i32
    %c0_i32_2 = arith.constant 0 : i32
    return %c0_i32, %c0_i32_0, %c0_i32_1 : i32, i32, i32
  }
  func.func @transform_17(%arg0: i32, %arg1: i32) -> (i32, i32, i32) {
    %c0_i32 = arith.constant 0 : i32
    %c0_i32_0 = arith.constant 0 : i32
    %c0_i32_1 = arith.constant 0 : i32
    %c0_i32_2 = arith.constant 0 : i32
    return %c0_i32, %c0_i32_0, %c0_i32_1 : i32, i32, i32
  }
  func.func @transform_18(%arg0: i32, %arg1: i32) -> (i32, i32, i32) {
    %c0_i32 = arith.constant 0 : i32
    %c0_i32_0 = arith.constant 0 : i32
    %c0_i32_1 = arith.constant 0 : i32
    %c0_i32_2 = arith.constant 0 : i32
    return %c0_i32, %c0_i32_0, %c0_i32_1 : i32, i32, i32
  }
  func.func @transform_19(%arg0: i32, %arg1: i32) -> (i32, i32, i32) {
    %c0_i32 = arith.constant 0 : i32
    %c0_i32_0 = arith.constant 0 : i32
    %c0_i32_1 = arith.constant 0 : i32
    %c0_i32_2 = arith.constant 0 : i32
    return %c0_i32, %c0_i32_0, %c0_i32_1 : i32, i32, i32
  }
  func.func @transform_20(%arg0: i32, %arg1: i32) -> (i32, i32, i32) {
    %c0_i32 = arith.constant 0 : i32
    %c0_i32_0 = arith.constant 0 : i32
    %c0_i32_1 = arith.constant 0 : i32
    %c0_i32_2 = arith.constant 0 : i32
    return %c0_i32, %c0_i32_0, %c0_i32_1 : i32, i32, i32
  }
  func.func @transform_21(%arg0: i32, %arg1: i32) -> (i32, i32) {
    %c0_i32 = arith.constant 0 : i32
    %c0_i32_0 = arith.constant 0 : i32
    %c0_i32_1 = arith.constant 0 : i32
    return %c0_i32, %c0_i32_0 : i32, i32
  }
  func.func @transform_22(%arg0: i32, %arg1: i32) -> (i32, i32) {
    %c0_i32 = arith.constant 0 : i32
    %c0_i32_0 = arith.constant 0 : i32
    %c0_i32_1 = arith.constant 0 : i32
    return %c0_i32, %c0_i32_0 : i32, i32
  }
  func.func @transform_23(%arg0: i32, %arg1: i32) -> (i32, i32) {
    %c0_i32 = arith.constant 0 : i32
    %c0_i32_0 = arith.constant 0 : i32
    %c0_i32_1 = arith.constant 0 : i32
    return %c0_i32, %c0_i32_0 : i32, i32
  }
  func.func @transform_24(%arg0: i32, %arg1: i32) -> (i32, i32) {
    %c0_i32 = arith.constant 0 : i32
    %c0_i32_0 = arith.constant 0 : i32
    %c0_i32_1 = arith.constant 0 : i32
    return %c0_i32, %c0_i32_0 : i32, i32
  }
  func.func @transform_25(%arg0: i32, %arg1: i32) -> (i32, i32) {
    %c0_i32 = arith.constant 0 : i32
    %c0_i32_0 = arith.constant 0 : i32
    return %arg0, %c0_i32 : i32, i32
  }
}

module attributes {stable_mosaic.version = 11 : i64} {
  func.func @fused_forward_kernel(%arg0: i32, %arg1: i32, %arg2: memref<3x8x256xbf16, #tpu.memory_space<vmem>>, %arg3: memref<3x416xbf16, #tpu.memory_space<vmem>>, %arg4: memref<1x416xf32, #tpu.memory_space<vmem>>, %arg5: memref<256x128xbf16, #tpu.memory_space<vmem>>, %arg6: memref<1x128xf32, #tpu.memory_space<vmem>>, %arg7: memref<160x128xbf16, #tpu.memory_space<vmem>>, %arg8: memref<1x128xf32, #tpu.memory_space<vmem>>, %arg9: memref<128x128xbf16, #tpu.memory_space<vmem>>, %arg10: memref<128x128xbf16, #tpu.memory_space<vmem>>, %arg11: memref<2x128x384xbf16, #tpu.memory_space<vmem>>, %arg12: memref<2x1x384xf32, #tpu.memory_space<vmem>>, %arg13: memref<2x128x128xbf16, #tpu.memory_space<vmem>>, %arg14: memref<2x1x128xf32, #tpu.memory_space<vmem>>, %arg15: memref<2x1x128xf32, #tpu.memory_space<vmem>>, %arg16: memref<2x1x128xf32, #tpu.memory_space<vmem>>, %arg17: memref<2x128x512xbf16, #tpu.memory_space<vmem>>, %arg18: memref<2x1x512xf32, #tpu.memory_space<vmem>>, %arg19: memref<2x512x128xbf16, #tpu.memory_space<vmem>>, %arg20: memref<2x1x128xf32, #tpu.memory_space<vmem>>, %arg21: memref<2x1x128xf32, #tpu.memory_space<vmem>>, %arg22: memref<2x1x128xf32, #tpu.memory_space<vmem>>, %arg23: memref<128x32xbf16, #tpu.memory_space<vmem>>, %arg24: memref<1x32xf32, #tpu.memory_space<vmem>>, %arg25: memref<32x128xbf16, #tpu.memory_space<vmem>>, %arg26: memref<1x128xf32, #tpu.memory_space<vmem>>, %arg27: memref<8x128xf32, #tpu.memory_space<vmem>>, %arg28: memref<8x3xf32, #tpu.memory_space<vmem>>) attributes {dimension_semantics = [#tpu.dimension_semantics<parallel>, #tpu.dimension_semantics<arbitrary>], iteration_bounds = array<i64: 1, 1>, scalar_prefetch = 0 : i64, scratch_operands = 1 : i64, tpu.core_type = #tpu.core_type<tc>, window_params = [{transform_indices = @transform_0, window_bounds = array<i64: 3, 8, 256>}, {pipeline_mode = #tpu.pipeline_mode<synchronous>, transform_indices = @transform_1, window_bounds = array<i64: 3, 416>}, {pipeline_mode = #tpu.pipeline_mode<synchronous>, transform_indices = @transform_2, window_bounds = array<i64: 1, 416>}, {pipeline_mode = #tpu.pipeline_mode<synchronous>, transform_indices = @transform_3, window_bounds = array<i64: 256, 128>}, {pipeline_mode = #tpu.pipeline_mode<synchronous>, transform_indices = @transform_4, window_bounds = array<i64: 1, 128>}, {pipeline_mode = #tpu.pipeline_mode<synchronous>, transform_indices = @transform_5, window_bounds = array<i64: 160, 128>}, {pipeline_mode = #tpu.pipeline_mode<synchronous>, transform_indices = @transform_6, window_bounds = array<i64: 1, 128>}, {pipeline_mode = #tpu.pipeline_mode<synchronous>, transform_indices = @transform_7, window_bounds = array<i64: 128, 128>}, {pipeline_mode = #tpu.pipeline_mode<synchronous>, transform_indices = @transform_8, window_bounds = array<i64: 128, 128>}, {pipeline_mode = #tpu.pipeline_mode<synchronous>, transform_indices = @transform_9, window_bounds = array<i64: 2, 128, 384>}, {pipeline_mode = #tpu.pipeline_mode<synchronous>, transform_indices = @transform_10, window_bounds = array<i64: 2, 1, 384>}, {pipeline_mode = #tpu.pipeline_mode<synchronous>, transform_indices = @transform_11, window_bounds = array<i64: 2, 128, 128>}, {pipeline_mode = #tpu.pipeline_mode<synchronous>, transform_indices = @transform_12, window_bounds = array<i64: 2, 1, 128>}, {pipeline_mode = #tpu.pipeline_mode<synchronous>, transform_indices = @transform_13, window_bounds = array<i64: 2, 1, 128>}, {pipeline_mode = #tpu.pipeline_mode<synchronous>, transform_indices = @transform_14, window_bounds = array<i64: 2, 1, 128>}, {pipeline_mode = #tpu.pipeline_mode<synchronous>, transform_indices = @transform_15, window_bounds = array<i64: 2, 128, 512>}, {pipeline_mode = #tpu.pipeline_mode<synchronous>, transform_indices = @transform_16, window_bounds = array<i64: 2, 1, 512>}, {pipeline_mode = #tpu.pipeline_mode<synchronous>, transform_indices = @transform_17, window_bounds = array<i64: 2, 512, 128>}, {pipeline_mode = #tpu.pipeline_mode<synchronous>, transform_indices = @transform_18, window_bounds = array<i64: 2, 1, 128>}, {pipeline_mode = #tpu.pipeline_mode<synchronous>, transform_indices = @transform_19, window_bounds = array<i64: 2, 1, 128>}, {pipeline_mode = #tpu.pipeline_mode<synchronous>, transform_indices = @transform_20, window_bounds = array<i64: 2, 1, 128>}, {pipeline_mode = #tpu.pipeline_mode<synchronous>, transform_indices = @transform_21, window_bounds = array<i64: 128, 32>}, {pipeline_mode = #tpu.pipeline_mode<synchronous>, transform_indices = @transform_22, window_bounds = array<i64: 1, 32>}, {pipeline_mode = #tpu.pipeline_mode<synchronous>, transform_indices = @transform_23, window_bounds = array<i64: 32, 128>}, {pipeline_mode = #tpu.pipeline_mode<synchronous>, transform_indices = @transform_24, window_bounds = array<i64: 1, 128>}, {transform_indices = @transform_25, window_bounds = array<i64: 8, 128>}]} {
    %c0_i32 = arith.constant 0 : i32
    %0 = arith.cmpi eq, %arg1, %c0_i32 : i32
    %1 = arith.extui %0 : i1 to i32
    %c0_i32_0 = arith.constant 0 : i32
    %2 = arith.cmpi ne, %1, %c0_i32_0 : i32
    scf.if %2 {
      %cst_23 = arith.constant 0.000000e+00 : f32
      %30 = vector.broadcast %cst_23 : f32 to vector<8x3xf32>
      %c0_24 = arith.constant 0 : index
      %c0_25 = arith.constant 0 : index
      %31 = vector.load %arg28[%c0_24, %c0_25] : memref<8x3xf32, #tpu.memory_space<vmem>>, vector<8x3xf32>
      tpu.vector_store %arg28[%c0_24, %c0_25], %30 {strides = array<i32>} : memref<8x3xf32, #tpu.memory_space<vmem>>, vector<8x3xf32>,
    } else {
    }
    %c0 = arith.constant 0 : index
    %c0_1 = arith.constant 0 : index
    %c0_2 = arith.constant 0 : index
    %3 = vector.load %arg2[%c0, %c0_1, %c0_2] : memref<3x8x256xbf16, #tpu.memory_space<vmem>>, vector<1x8x256xbf16>
    %4 = vector.shape_cast %3 : vector<1x8x256xbf16> to vector<8x256xbf16>
    %5 = arith.extf %4 : vector<8x256xbf16> to vector<8x256xf32>
    %cst = arith.constant dense<0.000000e+00> : vector<8xf32>
    %6 = vector.multi_reduction <add>, %5, %cst [1] : vector<8x256xf32> to vector<8xf32>
    %7 = vector.shape_cast %6 : vector<8xf32> to vector<8x1xf32>
    %c0_3 = arith.constant 0 : index
    %c0_4 = arith.constant 0 : index
    %8 = vector.load %arg28[%c0_3, %c0_4] : memref<8x3xf32, #tpu.memory_space<vmem>>, vector<8x1xf32>
    %9 = arith.addf %8, %7 : vector<8x1xf32>
    %c0_5 = arith.constant 0 : index
    %c0_6 = arith.constant 0 : index
    %10 = vector.load %arg28[%c0_5, %c0_6] : memref<8x3xf32, #tpu.memory_space<vmem>>, vector<8x1xf32>
    tpu.vector_store %arg28[%c0_5, %c0_6], %9 {strides = array<i32>} : memref<8x3xf32, #tpu.memory_space<vmem>>, vector<8x1xf32>,
    %c1 = arith.constant 1 : index
    %c0_7 = arith.constant 0 : index
    %c0_8 = arith.constant 0 : index
    %11 = vector.load %arg2[%c1, %c0_7, %c0_8] : memref<3x8x256xbf16, #tpu.memory_space<vmem>>, vector<1x8x256xbf16>
    %12 = vector.shape_cast %11 : vector<1x8x256xbf16> to vector<8x256xbf16>
    %13 = arith.extf %12 : vector<8x256xbf16> to vector<8x256xf32>
    %cst_9 = arith.constant dense<0.000000e+00> : vector<8xf32>
    %14 = vector.multi_reduction <add>, %13, %cst_9 [1] : vector<8x256xf32> to vector<8xf32>
    %15 = vector.shape_cast %14 : vector<8xf32> to vector<8x1xf32>
    %c0_10 = arith.constant 0 : index
    %c1_11 = arith.constant 1 : index
    %16 = vector.load %arg28[%c0_10, %c1_11] : memref<8x3xf32, #tpu.memory_space<vmem>>, vector<8x1xf32>
    %17 = arith.addf %16, %15 : vector<8x1xf32>
    %c0_12 = arith.constant 0 : index
    %c1_13 = arith.constant 1 : index
    %18 = vector.load %arg28[%c0_12, %c1_13] : memref<8x3xf32, #tpu.memory_space<vmem>>, vector<8x1xf32>
    tpu.vector_store %arg28[%c0_12, %c1_13], %17 {strides = array<i32>} : memref<8x3xf32, #tpu.memory_space<vmem>>, vector<8x1xf32>,
    %c2 = arith.constant 2 : index
    %c0_14 = arith.constant 0 : index
    %c0_15 = arith.constant 0 : index
    %19 = vector.load %arg2[%c2, %c0_14, %c0_15] : memref<3x8x256xbf16, #tpu.memory_space<vmem>>, vector<1x8x256xbf16>
    %20 = vector.shape_cast %19 : vector<1x8x256xbf16> to vector<8x256xbf16>
    %21 = arith.extf %20 : vector<8x256xbf16> to vector<8x256xf32>
    %cst_16 = arith.constant dense<0.000000e+00> : vector<8xf32>
    %22 = vector.multi_reduction <add>, %21, %cst_16 [1] : vector<8x256xf32> to vector<8xf32>
    %23 = vector.shape_cast %22 : vector<8xf32> to vector<8x1xf32>
    %c0_17 = arith.constant 0 : index
    %c2_18 = arith.constant 2 : index
    %24 = vector.load %arg28[%c0_17, %c2_18] : memref<8x3xf32, #tpu.memory_space<vmem>>, vector<8x1xf32>
    %25 = arith.addf %24, %23 : vector<8x1xf32>
    %c0_19 = arith.constant 0 : index
    %c2_20 = arith.constant 2 : index
    %26 = vector.load %arg28[%c0_19, %c2_20] : memref<8x3xf32, #tpu.memory_space<vmem>>, vector<8x1xf32>
    tpu.vector_store %arg28[%c0_19, %c2_20], %25 {strides = array<i32>} : memref<8x3xf32, #tpu.memory_space<vmem>>, vector<8x1xf32>,
    %c0_i32_21 = arith.constant 0 : i32
    %27 = arith.cmpi eq, %arg1, %c0_i32_21 : i32
    %28 = arith.extui %27 : i1 to i32
    %c0_i32_22 = arith.constant 0 : i32
    %29 = arith.cmpi ne, %28, %c0_i32_22 : i32
    scf.if %29 {
      %c0_23 = arith.constant 0 : index
      %c0_24 = arith.constant 0 : index
      %30 = vector.load %arg28[%c0_23, %c0_24] : memref<8x3xf32, #tpu.memory_space<vmem>>, vector<8x3xf32>
      %cst_25 = arith.constant 3.906250e-03 : f32
      %31 = vector.broadcast %cst_25 : f32 to vector<8x3xf32>
      %32 = arith.mulf %30, %31 : vector<8x3xf32>
      %c0_26 = arith.constant 0 : index
      %c0_27 = arith.constant 0 : index
      %33 = vector.load %arg3[%c0_26, %c0_27] : memref<3x416xbf16, #tpu.memory_space<vmem>>, vector<3x416xbf16>
      %c0_28 = arith.constant 0 : index
      %c0_29 = arith.constant 0 : index
      %34 = vector.load %arg4[%c0_28, %c0_29] : memref<1x416xf32, #tpu.memory_space<vmem>>, vector<1x416xf32>
      %35 = arith.truncf %32 : vector<8x3xf32> to vector<8x3xbf16>
      %cst_30 = arith.constant dense<0.000000e+00> : vector<8x416xf32>
      %36 = tpu.matmul %35, %33, %cst_30 {dimension_numbers = #tpu.dot_dimension_numbers<[1], [0], [0], [1], [0, 0, 1, 1], [], []>} : vector<8x3xbf16>, vector<3x416xbf16>, vector<8x416xf32> -> vector<8x416xf32>
      %37 = vector.broadcast %34 : vector<1x416xf32> to vector<8x416xf32>
      %38 = arith.addf %36, %37 : vector<8x416xf32>
      %cst_31 = arith.constant 0.000000e+00 : f32
      %39 = vector.broadcast %cst_31 : f32 to vector<8x416xf32>
      %40 = arith.maximumf %38, %39 : vector<8x416xf32>
      %41 = vector.extract_strided_slice %40 {offsets = [0, 0], sizes = [8, 256], strides = [1, 1]} : vector<8x416xf32> to vector<8x256xf32>
      %42 = vector.extract_strided_slice %40 {offsets = [0, 256], sizes = [8, 160], strides = [1, 1]} : vector<8x416xf32> to vector<8x160xf32>
      %c0_32 = arith.constant 0 : index
      %c0_33 = arith.constant 0 : index
      %43 = vector.load %arg5[%c0_32, %c0_33] : memref<256x128xbf16, #tpu.memory_space<vmem>>, vector<256x128xbf16>
      %c0_34 = arith.constant 0 : index
      %c0_35 = arith.constant 0 : index
      %44 = vector.load %arg6[%c0_34, %c0_35] : memref<1x128xf32, #tpu.memory_space<vmem>>, vector<1x128xf32>
      %45 = arith.truncf %41 : vector<8x256xf32> to vector<8x256xbf16>
      %cst_36 = arith.constant dense<0.000000e+00> : vector<8x128xf32>
      %46 = tpu.matmul %45, %43, %cst_36 {dimension_numbers = #tpu.dot_dimension_numbers<[1], [0], [0], [1], [0, 0, 1, 1], [], []>} : vector<8x256xbf16>, vector<256x128xbf16>, vector<8x128xf32> -> vector<8x128xf32>
      %47 = vector.broadcast %44 : vector<1x128xf32> to vector<8x128xf32>
      %48 = arith.addf %46, %47 : vector<8x128xf32>
      %c0_37 = arith.constant 0 : index
      %c0_38 = arith.constant 0 : index
      %49 = vector.load %arg7[%c0_37, %c0_38] : memref<160x128xbf16, #tpu.memory_space<vmem>>, vector<160x128xbf16>
      %c0_39 = arith.constant 0 : index
      %c0_40 = arith.constant 0 : index
      %50 = vector.load %arg8[%c0_39, %c0_40] : memref<1x128xf32, #tpu.memory_space<vmem>>, vector<1x128xf32>
      %51 = arith.truncf %42 : vector<8x160xf32> to vector<8x160xbf16>
      %cst_41 = arith.constant dense<0.000000e+00> : vector<8x128xf32>
      %52 = tpu.matmul %51, %49, %cst_41 {dimension_numbers = #tpu.dot_dimension_numbers<[1], [0], [0], [1], [0, 0, 1, 1], [], []>} : vector<8x160xbf16>, vector<160x128xbf16>, vector<8x128xf32> -> vector<8x128xf32>
      %53 = vector.broadcast %50 : vector<1x128xf32> to vector<8x128xf32>
      %54 = arith.addf %52, %53 : vector<8x128xf32>
      %55 = tpu.concatenate %48, %54 in 0 : vector<8x128xf32>, vector<8x128xf32> -> vector<16x128xf32>
      %c0_42 = arith.constant 0 : index
      %c0_43 = arith.constant 0 : index
      %56 = vector.load %arg9[%c0_42, %c0_43] : memref<128x128xbf16, #tpu.memory_space<vmem>>, vector<128x128xbf16>
      %c0_44 = arith.constant 0 : index
      %c0_45 = arith.constant 0 : index
      %57 = vector.load %arg10[%c0_44, %c0_45] : memref<128x128xbf16, #tpu.memory_space<vmem>>, vector<128x128xbf16>
      %c0_46 = arith.constant 0 : index
      %c0_47 = arith.constant 0 : index
      %c0_48 = arith.constant 0 : index
      %58 = vector.load %arg11[%c0_46, %c0_47, %c0_48] : memref<2x128x384xbf16, #tpu.memory_space<vmem>>, vector<1x128x384xbf16>
      %59 = vector.shape_cast %58 : vector<1x128x384xbf16> to vector<128x384xbf16>
      %c0_49 = arith.constant 0 : index
      %c0_50 = arith.constant 0 : index
      %c0_51 = arith.constant 0 : index
      %60 = vector.load %arg12[%c0_49, %c0_50, %c0_51] : memref<2x1x384xf32, #tpu.memory_space<vmem>>, vector<1x1x384xf32>
      %61 = vector.shape_cast %60 : vector<1x1x384xf32> to vector<1x384xf32>
      %62 = arith.truncf %55 : vector<16x128xf32> to vector<16x128xbf16>
      %cst_52 = arith.constant dense<0.000000e+00> : vector<16x384xf32>
      %63 = tpu.matmul %62, %59, %cst_52 {dimension_numbers = #tpu.dot_dimension_numbers<[1], [0], [0], [1], [0, 0, 1, 1], [], []>} : vector<16x128xbf16>, vector<128x384xbf16>, vector<16x384xf32> -> vector<16x384xf32>
      %64 = vector.broadcast %61 : vector<1x384xf32> to vector<16x384xf32>
      %65 = arith.addf %63, %64 : vector<16x384xf32>
      %66 = vector.extract_strided_slice %65 {offsets = [0, 0], sizes = [16, 128], strides = [1, 1]} : vector<16x384xf32> to vector<16x128xf32>
      %67 = vector.extract_strided_slice %65 {offsets = [0, 128], sizes = [16, 128], strides = [1, 1]} : vector<16x384xf32> to vector<16x128xf32>
      %68 = vector.extract_strided_slice %65 {offsets = [0, 256], sizes = [16, 128], strides = [1, 1]} : vector<16x384xf32> to vector<16x128xf32>
      %69 = vector.extract_strided_slice %66 {offsets = [0, 0], sizes = [8, 128], strides = [1, 1]} : vector<16x128xf32> to vector<8x128xf32>
      %70 = vector.extract_strided_slice %66 {offsets = [8, 0], sizes = [8, 128], strides = [1, 1]} : vector<16x128xf32> to vector<8x128xf32>
      %71 = vector.extract_strided_slice %67 {offsets = [0, 0], sizes = [8, 128], strides = [1, 1]} : vector<16x128xf32> to vector<8x128xf32>
      %72 = vector.extract_strided_slice %67 {offsets = [8, 0], sizes = [8, 128], strides = [1, 1]} : vector<16x128xf32> to vector<8x128xf32>
      %73 = vector.extract_strided_slice %68 {offsets = [0, 0], sizes = [8, 128], strides = [1, 1]} : vector<16x128xf32> to vector<8x128xf32>
      %74 = vector.extract_strided_slice %68 {offsets = [8, 0], sizes = [8, 128], strides = [1, 1]} : vector<16x128xf32> to vector<8x128xf32>
      %75 = arith.mulf %69, %71 : vector<8x128xf32>
      %76 = arith.truncf %75 : vector<8x128xf32> to vector<8x128xbf16>
      %cst_53 = arith.constant dense<0.000000e+00> : vector<8x128xf32>
      %77 = tpu.matmul %76, %56, %cst_53 {dimension_numbers = #tpu.dot_dimension_numbers<[1], [0], [0], [1], [0, 0, 1, 1], [], []>} : vector<8x128xbf16>, vector<128x128xbf16>, vector<8x128xf32> -> vector<8x128xf32>
      %cst_54 = arith.constant 2.500000e-01 : f32
      %78 = vector.broadcast %cst_54 : f32 to vector<8x128xf32>
      %79 = arith.mulf %77, %78 : vector<8x128xf32>
      %80 = arith.mulf %69, %72 : vector<8x128xf32>
      %81 = arith.truncf %80 : vector<8x128xf32> to vector<8x128xbf16>
      %cst_55 = arith.constant dense<0.000000e+00> : vector<8x128xf32>
      %82 = tpu.matmul %81, %56, %cst_55 {dimension_numbers = #tpu.dot_dimension_numbers<[1], [0], [0], [1], [0, 0, 1, 1], [], []>} : vector<8x128xbf16>, vector<128x128xbf16>, vector<8x128xf32> -> vector<8x128xf32>
      %cst_56 = arith.constant 2.500000e-01 : f32
      %83 = vector.broadcast %cst_56 : f32 to vector<8x128xf32>
      %84 = arith.mulf %82, %83 : vector<8x128xf32>
      %85 = arith.mulf %70, %71 : vector<8x128xf32>
      %86 = arith.truncf %85 : vector<8x128xf32> to vector<8x128xbf16>
      %cst_57 = arith.constant dense<0.000000e+00> : vector<8x128xf32>
      %87 = tpu.matmul %86, %56, %cst_57 {dimension_numbers = #tpu.dot_dimension_numbers<[1], [0], [0], [1], [0, 0, 1, 1], [], []>} : vector<8x128xbf16>, vector<128x128xbf16>, vector<8x128xf32> -> vector<8x128xf32>
      %cst_58 = arith.constant 2.500000e-01 : f32
      %88 = vector.broadcast %cst_58 : f32 to vector<8x128xf32>
      %89 = arith.mulf %87, %88 : vector<8x128xf32>
      %90 = arith.mulf %70, %72 : vector<8x128xf32>
      %91 = arith.truncf %90 : vector<8x128xf32> to vector<8x128xbf16>
      %cst_59 = arith.constant dense<0.000000e+00> : vector<8x128xf32>
      %92 = tpu.matmul %91, %56, %cst_59 {dimension_numbers = #tpu.dot_dimension_numbers<[1], [0], [0], [1], [0, 0, 1, 1], [], []>} : vector<8x128xbf16>, vector<128x128xbf16>, vector<8x128xf32> -> vector<8x128xf32>
      %cst_60 = arith.constant 2.500000e-01 : f32
      %93 = vector.broadcast %cst_60 : f32 to vector<8x128xf32>
      %94 = arith.mulf %92, %93 : vector<8x128xf32>
      %95 = arith.maximumf %79, %84 : vector<8x128xf32>
      %96 = arith.subf %79, %95 : vector<8x128xf32>
      %97 = math.exp %96 : vector<8x128xf32>
      %98 = arith.subf %84, %95 : vector<8x128xf32>
      %99 = math.exp %98 : vector<8x128xf32>
      %100 = arith.addf %97, %99 : vector<8x128xf32>
      %101 = tpu.reciprocal %100 {approx = true} : vector<8x128xf32> -> vector<8x128xf32>
      %102 = arith.mulf %97, %101 : vector<8x128xf32>
      %103 = arith.mulf %99, %101 : vector<8x128xf32>
      %104 = arith.maximumf %89, %94 : vector<8x128xf32>
      %105 = arith.subf %89, %104 : vector<8x128xf32>
      %106 = math.exp %105 : vector<8x128xf32>
      %107 = arith.subf %94, %104 : vector<8x128xf32>
      %108 = math.exp %107 : vector<8x128xf32>
      %109 = arith.addf %106, %108 : vector<8x128xf32>
      %110 = tpu.reciprocal %109 {approx = true} : vector<8x128xf32> -> vector<8x128xf32>
      %111 = arith.mulf %106, %110 : vector<8x128xf32>
      %112 = arith.mulf %108, %110 : vector<8x128xf32>
      %113 = arith.truncf %102 : vector<8x128xf32> to vector<8x128xbf16>
      %cst_61 = arith.constant dense<0.000000e+00> : vector<8x128xf32>
      %114 = tpu.matmul %113, %57, %cst_61 {dimension_numbers = #tpu.dot_dimension_numbers<[1], [0], [0], [1], [0, 0, 1, 1], [], []>} : vector<8x128xbf16>, vector<128x128xbf16>, vector<8x128xf32> -> vector<8x128xf32>
      %115 = arith.mulf %114, %73 : vector<8x128xf32>
      %116 = arith.truncf %103 : vector<8x128xf32> to vector<8x128xbf16>
      %cst_62 = arith.constant dense<0.000000e+00> : vector<8x128xf32>
      %117 = tpu.matmul %116, %57, %cst_62 {dimension_numbers = #tpu.dot_dimension_numbers<[1], [0], [0], [1], [0, 0, 1, 1], [], []>} : vector<8x128xbf16>, vector<128x128xbf16>, vector<8x128xf32> -> vector<8x128xf32>
      %118 = arith.mulf %117, %74 : vector<8x128xf32>
      %119 = arith.addf %115, %118 : vector<8x128xf32>
      %120 = arith.truncf %111 : vector<8x128xf32> to vector<8x128xbf16>
      %cst_63 = arith.constant dense<0.000000e+00> : vector<8x128xf32>
      %121 = tpu.matmul %120, %57, %cst_63 {dimension_numbers = #tpu.dot_dimension_numbers<[1], [0], [0], [1], [0, 0, 1, 1], [], []>} : vector<8x128xbf16>, vector<128x128xbf16>, vector<8x128xf32> -> vector<8x128xf32>
      %122 = arith.mulf %121, %73 : vector<8x128xf32>
      %123 = arith.truncf %112 : vector<8x128xf32> to vector<8x128xbf16>
      %cst_64 = arith.constant dense<0.000000e+00> : vector<8x128xf32>
      %124 = tpu.matmul %123, %57, %cst_64 {dimension_numbers = #tpu.dot_dimension_numbers<[1], [0], [0], [1], [0, 0, 1, 1], [], []>} : vector<8x128xbf16>, vector<128x128xbf16>, vector<8x128xf32> -> vector<8x128xf32>
      %125 = arith.mulf %124, %74 : vector<8x128xf32>
      %126 = arith.addf %122, %125 : vector<8x128xf32>
      %127 = tpu.concatenate %119, %126 in 0 : vector<8x128xf32>, vector<8x128xf32> -> vector<16x128xf32>
      %c0_65 = arith.constant 0 : index
      %c0_66 = arith.constant 0 : index
      %c0_67 = arith.constant 0 : index
      %128 = vector.load %arg13[%c0_65, %c0_66, %c0_67] : memref<2x128x128xbf16, #tpu.memory_space<vmem>>, vector<1x128x128xbf16>
      %129 = vector.shape_cast %128 : vector<1x128x128xbf16> to vector<128x128xbf16>
      %c0_68 = arith.constant 0 : index
      %c0_69 = arith.constant 0 : index
      %c0_70 = arith.constant 0 : index
      %130 = vector.load %arg14[%c0_68, %c0_69, %c0_70] : memref<2x1x128xf32, #tpu.memory_space<vmem>>, vector<1x1x128xf32>
      %131 = vector.shape_cast %130 : vector<1x1x128xf32> to vector<1x128xf32>
      %132 = arith.truncf %127 : vector<16x128xf32> to vector<16x128xbf16>
      %cst_71 = arith.constant dense<0.000000e+00> : vector<16x128xf32>
      %133 = tpu.matmul %132, %129, %cst_71 {dimension_numbers = #tpu.dot_dimension_numbers<[1], [0], [0], [1], [0, 0, 1, 1], [], []>} : vector<16x128xbf16>, vector<128x128xbf16>, vector<16x128xf32> -> vector<16x128xf32>
      %134 = vector.broadcast %131 : vector<1x128xf32> to vector<16x128xf32>
      %135 = arith.addf %133, %134 : vector<16x128xf32>
      %136 = arith.addf %55, %135 : vector<16x128xf32>
      %c0_72 = arith.constant 0 : index
      %c0_73 = arith.constant 0 : index
      %c0_74 = arith.constant 0 : index
      %137 = vector.load %arg15[%c0_72, %c0_73, %c0_74] : memref<2x1x128xf32, #tpu.memory_space<vmem>>, vector<1x1x128xf32>
      %138 = vector.shape_cast %137 : vector<1x1x128xf32> to vector<1x128xf32>
      %c0_75 = arith.constant 0 : index
      %c0_76 = arith.constant 0 : index
      %c0_77 = arith.constant 0 : index
      %139 = vector.load %arg16[%c0_75, %c0_76, %c0_77] : memref<2x1x128xf32, #tpu.memory_space<vmem>>, vector<1x1x128xf32>
      %140 = vector.shape_cast %139 : vector<1x1x128xf32> to vector<1x128xf32>
      %cst_78 = arith.constant dense<0.000000e+00> : vector<16xf32>
      %141 = vector.multi_reduction <add>, %136, %cst_78 [1] : vector<16x128xf32> to vector<16xf32>
      %142 = vector.shape_cast %141 : vector<16xf32> to vector<16x1xf32>
      %cst_79 = arith.constant 1.280000e+02 : f32
      %143 = vector.broadcast %cst_79 : f32 to vector<16x1xf32>
      %144 = arith.divf %142, %143 : vector<16x1xf32>
      %145 = arith.mulf %136, %136 : vector<16x128xf32>
      %cst_80 = arith.constant dense<0.000000e+00> : vector<16xf32>
      %146 = vector.multi_reduction <add>, %145, %cst_80 [1] : vector<16x128xf32> to vector<16xf32>
      %147 = vector.shape_cast %146 : vector<16xf32> to vector<16x1xf32>
      %cst_81 = arith.constant 1.280000e+02 : f32
      %148 = vector.broadcast %cst_81 : f32 to vector<16x1xf32>
      %149 = arith.divf %147, %148 : vector<16x1xf32>
      %150 = arith.mulf %144, %144 : vector<16x1xf32>
      %151 = arith.subf %149, %150 : vector<16x1xf32>
      %cst_82 = arith.constant 0.000000e+00 : f32
      %152 = vector.broadcast %cst_82 : f32 to vector<16x1xf32>
      %153 = arith.maximumf %151, %152 : vector<16x1xf32>
      %154 = vector.broadcast %144 : vector<16x1xf32> to vector<16x128xf32>
      %155 = arith.subf %136, %154 : vector<16x128xf32>
      %cst_83 = arith.constant 9.99999974E-6 : f32
      %156 = vector.broadcast %cst_83 : f32 to vector<16x1xf32>
      %157 = arith.addf %153, %156 : vector<16x1xf32>
      %158 = math.rsqrt %157 : vector<16x1xf32>
      %159 = vector.broadcast %158 : vector<16x1xf32> to vector<16x128xf32>
      %160 = arith.mulf %155, %159 : vector<16x128xf32>
      %161 = vector.broadcast %138 : vector<1x128xf32> to vector<16x128xf32>
      %162 = arith.mulf %160, %161 : vector<16x128xf32>
      %163 = vector.broadcast %140 : vector<1x128xf32> to vector<16x128xf32>
      %164 = arith.addf %162, %163 : vector<16x128xf32>
      %c0_84 = arith.constant 0 : index
      %c0_85 = arith.constant 0 : index
      %c0_86 = arith.constant 0 : index
      %165 = vector.load %arg17[%c0_84, %c0_85, %c0_86] : memref<2x128x512xbf16, #tpu.memory_space<vmem>>, vector<1x128x512xbf16>
      %166 = vector.shape_cast %165 : vector<1x128x512xbf16> to vector<128x512xbf16>
      %c0_87 = arith.constant 0 : index
      %c0_88 = arith.constant 0 : index
      %c0_89 = arith.constant 0 : index
      %167 = vector.load %arg18[%c0_87, %c0_88, %c0_89] : memref<2x1x512xf32, #tpu.memory_space<vmem>>, vector<1x1x512xf32>
      %168 = vector.shape_cast %167 : vector<1x1x512xf32> to vector<1x512xf32>
      %169 = arith.truncf %164 : vector<16x128xf32> to vector<16x128xbf16>
      %cst_90 = arith.constant dense<0.000000e+00> : vector<16x512xf32>
      %170 = tpu.matmul %169, %166, %cst_90 {dimension_numbers = #tpu.dot_dimension_numbers<[1], [0], [0], [1], [0, 0, 1, 1], [], []>} : vector<16x128xbf16>, vector<128x512xbf16>, vector<16x512xf32> -> vector<16x512xf32>
      %171 = vector.broadcast %168 : vector<1x512xf32> to vector<16x512xf32>
      %172 = arith.addf %170, %171 : vector<16x512xf32>
      %cst_91 = arith.constant 0.000000e+00 : f32
      %173 = vector.broadcast %cst_91 : f32 to vector<16x512xf32>
      %174 = arith.maximumf %172, %173 : vector<16x512xf32>
      %c0_92 = arith.constant 0 : index
      %c0_93 = arith.constant 0 : index
      %c0_94 = arith.constant 0 : index
      %175 = vector.load %arg19[%c0_92, %c0_93, %c0_94] : memref<2x512x128xbf16, #tpu.memory_space<vmem>>, vector<1x512x128xbf16>
      %176 = vector.shape_cast %175 : vector<1x512x128xbf16> to vector<512x128xbf16>
      %c0_95 = arith.constant 0 : index
      %c0_96 = arith.constant 0 : index
      %c0_97 = arith.constant 0 : index
      %177 = vector.load %arg20[%c0_95, %c0_96, %c0_97] : memref<2x1x128xf32, #tpu.memory_space<vmem>>, vector<1x1x128xf32>
      %178 = vector.shape_cast %177 : vector<1x1x128xf32> to vector<1x128xf32>
      %179 = arith.truncf %174 : vector<16x512xf32> to vector<16x512xbf16>
      %cst_98 = arith.constant dense<0.000000e+00> : vector<16x128xf32>
      %180 = tpu.matmul %179, %176, %cst_98 {dimension_numbers = #tpu.dot_dimension_numbers<[1], [0], [0], [1], [0, 0, 1, 1], [], []>} : vector<16x512xbf16>, vector<512x128xbf16>, vector<16x128xf32> -> vector<16x128xf32>
      %181 = vector.broadcast %178 : vector<1x128xf32> to vector<16x128xf32>
      %182 = arith.addf %180, %181 : vector<16x128xf32>
      %183 = arith.addf %164, %182 : vector<16x128xf32>
      %c0_99 = arith.constant 0 : index
      %c0_100 = arith.constant 0 : index
      %c0_101 = arith.constant 0 : index
      %184 = vector.load %arg21[%c0_99, %c0_100, %c0_101] : memref<2x1x128xf32, #tpu.memory_space<vmem>>, vector<1x1x128xf32>
      %185 = vector.shape_cast %184 : vector<1x1x128xf32> to vector<1x128xf32>
      %c0_102 = arith.constant 0 : index
      %c0_103 = arith.constant 0 : index
      %c0_104 = arith.constant 0 : index
      %186 = vector.load %arg22[%c0_102, %c0_103, %c0_104] : memref<2x1x128xf32, #tpu.memory_space<vmem>>, vector<1x1x128xf32>
      %187 = vector.shape_cast %186 : vector<1x1x128xf32> to vector<1x128xf32>
      %cst_105 = arith.constant dense<0.000000e+00> : vector<16xf32>
      %188 = vector.multi_reduction <add>, %183, %cst_105 [1] : vector<16x128xf32> to vector<16xf32>
      %189 = vector.shape_cast %188 : vector<16xf32> to vector<16x1xf32>
      %cst_106 = arith.constant 1.280000e+02 : f32
      %190 = vector.broadcast %cst_106 : f32 to vector<16x1xf32>
      %191 = arith.divf %189, %190 : vector<16x1xf32>
      %192 = arith.mulf %183, %183 : vector<16x128xf32>
      %cst_107 = arith.constant dense<0.000000e+00> : vector<16xf32>
      %193 = vector.multi_reduction <add>, %192, %cst_107 [1] : vector<16x128xf32> to vector<16xf32>
      %194 = vector.shape_cast %193 : vector<16xf32> to vector<16x1xf32>
      %cst_108 = arith.constant 1.280000e+02 : f32
      %195 = vector.broadcast %cst_108 : f32 to vector<16x1xf32>
      %196 = arith.divf %194, %195 : vector<16x1xf32>
      %197 = arith.mulf %191, %191 : vector<16x1xf32>
      %198 = arith.subf %196, %197 : vector<16x1xf32>
      %cst_109 = arith.constant 0.000000e+00 : f32
      %199 = vector.broadcast %cst_109 : f32 to vector<16x1xf32>
      %200 = arith.maximumf %198, %199 : vector<16x1xf32>
      %201 = vector.broadcast %191 : vector<16x1xf32> to vector<16x128xf32>
      %202 = arith.subf %183, %201 : vector<16x128xf32>
      %cst_110 = arith.constant 9.99999974E-6 : f32
      %203 = vector.broadcast %cst_110 : f32 to vector<16x1xf32>
      %204 = arith.addf %200, %203 : vector<16x1xf32>
      %205 = math.rsqrt %204 : vector<16x1xf32>
      %206 = vector.broadcast %205 : vector<16x1xf32> to vector<16x128xf32>
      %207 = arith.mulf %202, %206 : vector<16x128xf32>
      %208 = vector.broadcast %185 : vector<1x128xf32> to vector<16x128xf32>
      %209 = arith.mulf %207, %208 : vector<16x128xf32>
      %210 = vector.broadcast %187 : vector<1x128xf32> to vector<16x128xf32>
      %211 = arith.addf %209, %210 : vector<16x128xf32>
      %c1_111 = arith.constant 1 : index
      %c0_112 = arith.constant 0 : index
      %c0_113 = arith.constant 0 : index
      %212 = vector.load %arg11[%c1_111, %c0_112, %c0_113] : memref<2x128x384xbf16, #tpu.memory_space<vmem>>, vector<1x128x384xbf16>
      %213 = vector.shape_cast %212 : vector<1x128x384xbf16> to vector<128x384xbf16>
      %c1_114 = arith.constant 1 : index
      %c0_115 = arith.constant 0 : index
      %c0_116 = arith.constant 0 : index
      %214 = vector.load %arg12[%c1_114, %c0_115, %c0_116] : memref<2x1x384xf32, #tpu.memory_space<vmem>>, vector<1x1x384xf32>
      %215 = vector.shape_cast %214 : vector<1x1x384xf32> to vector<1x384xf32>
      %216 = arith.truncf %211 : vector<16x128xf32> to vector<16x128xbf16>
      %cst_117 = arith.constant dense<0.000000e+00> : vector<16x384xf32>
      %217 = tpu.matmul %216, %213, %cst_117 {dimension_numbers = #tpu.dot_dimension_numbers<[1], [0], [0], [1], [0, 0, 1, 1], [], []>} : vector<16x128xbf16>, vector<128x384xbf16>, vector<16x384xf32> -> vector<16x384xf32>
      %218 = vector.broadcast %215 : vector<1x384xf32> to vector<16x384xf32>
      %219 = arith.addf %217, %218 : vector<16x384xf32>
      %220 = vector.extract_strided_slice %219 {offsets = [0, 0], sizes = [16, 128], strides = [1, 1]} : vector<16x384xf32> to vector<16x128xf32>
      %221 = vector.extract_strided_slice %219 {offsets = [0, 128], sizes = [16, 128], strides = [1, 1]} : vector<16x384xf32> to vector<16x128xf32>
      %222 = vector.extract_strided_slice %219 {offsets = [0, 256], sizes = [16, 128], strides = [1, 1]} : vector<16x384xf32> to vector<16x128xf32>
      %223 = vector.extract_strided_slice %220 {offsets = [0, 0], sizes = [8, 128], strides = [1, 1]} : vector<16x128xf32> to vector<8x128xf32>
      %224 = vector.extract_strided_slice %220 {offsets = [8, 0], sizes = [8, 128], strides = [1, 1]} : vector<16x128xf32> to vector<8x128xf32>
      %225 = vector.extract_strided_slice %221 {offsets = [0, 0], sizes = [8, 128], strides = [1, 1]} : vector<16x128xf32> to vector<8x128xf32>
      %226 = vector.extract_strided_slice %221 {offsets = [8, 0], sizes = [8, 128], strides = [1, 1]} : vector<16x128xf32> to vector<8x128xf32>
      %227 = vector.extract_strided_slice %222 {offsets = [0, 0], sizes = [8, 128], strides = [1, 1]} : vector<16x128xf32> to vector<8x128xf32>
      %228 = vector.extract_strided_slice %222 {offsets = [8, 0], sizes = [8, 128], strides = [1, 1]} : vector<16x128xf32> to vector<8x128xf32>
      %229 = arith.mulf %223, %225 : vector<8x128xf32>
      %230 = arith.truncf %229 : vector<8x128xf32> to vector<8x128xbf16>
      %cst_118 = arith.constant dense<0.000000e+00> : vector<8x128xf32>
      %231 = tpu.matmul %230, %56, %cst_118 {dimension_numbers = #tpu.dot_dimension_numbers<[1], [0], [0], [1], [0, 0, 1, 1], [], []>} : vector<8x128xbf16>, vector<128x128xbf16>, vector<8x128xf32> -> vector<8x128xf32>
      %cst_119 = arith.constant 2.500000e-01 : f32
      %232 = vector.broadcast %cst_119 : f32 to vector<8x128xf32>
      %233 = arith.mulf %231, %232 : vector<8x128xf32>
      %234 = arith.mulf %223, %226 : vector<8x128xf32>
      %235 = arith.truncf %234 : vector<8x128xf32> to vector<8x128xbf16>
      %cst_120 = arith.constant dense<0.000000e+00> : vector<8x128xf32>
      %236 = tpu.matmul %235, %56, %cst_120 {dimension_numbers = #tpu.dot_dimension_numbers<[1], [0], [0], [1], [0, 0, 1, 1], [], []>} : vector<8x128xbf16>, vector<128x128xbf16>, vector<8x128xf32> -> vector<8x128xf32>
      %cst_121 = arith.constant 2.500000e-01 : f32
      %237 = vector.broadcast %cst_121 : f32 to vector<8x128xf32>
      %238 = arith.mulf %236, %237 : vector<8x128xf32>
      %239 = arith.mulf %224, %225 : vector<8x128xf32>
      %240 = arith.truncf %239 : vector<8x128xf32> to vector<8x128xbf16>
      %cst_122 = arith.constant dense<0.000000e+00> : vector<8x128xf32>
      %241 = tpu.matmul %240, %56, %cst_122 {dimension_numbers = #tpu.dot_dimension_numbers<[1], [0], [0], [1], [0, 0, 1, 1], [], []>} : vector<8x128xbf16>, vector<128x128xbf16>, vector<8x128xf32> -> vector<8x128xf32>
      %cst_123 = arith.constant 2.500000e-01 : f32
      %242 = vector.broadcast %cst_123 : f32 to vector<8x128xf32>
      %243 = arith.mulf %241, %242 : vector<8x128xf32>
      %244 = arith.mulf %224, %226 : vector<8x128xf32>
      %245 = arith.truncf %244 : vector<8x128xf32> to vector<8x128xbf16>
      %cst_124 = arith.constant dense<0.000000e+00> : vector<8x128xf32>
      %246 = tpu.matmul %245, %56, %cst_124 {dimension_numbers = #tpu.dot_dimension_numbers<[1], [0], [0], [1], [0, 0, 1, 1], [], []>} : vector<8x128xbf16>, vector<128x128xbf16>, vector<8x128xf32> -> vector<8x128xf32>
      %cst_125 = arith.constant 2.500000e-01 : f32
      %247 = vector.broadcast %cst_125 : f32 to vector<8x128xf32>
      %248 = arith.mulf %246, %247 : vector<8x128xf32>
      %249 = arith.maximumf %233, %238 : vector<8x128xf32>
      %250 = arith.subf %233, %249 : vector<8x128xf32>
      %251 = math.exp %250 : vector<8x128xf32>
      %252 = arith.subf %238, %249 : vector<8x128xf32>
      %253 = math.exp %252 : vector<8x128xf32>
      %254 = arith.addf %251, %253 : vector<8x128xf32>
      %255 = tpu.reciprocal %254 {approx = true} : vector<8x128xf32> -> vector<8x128xf32>
      %256 = arith.mulf %251, %255 : vector<8x128xf32>
      %257 = arith.mulf %253, %255 : vector<8x128xf32>
      %258 = arith.maximumf %243, %248 : vector<8x128xf32>
      %259 = arith.subf %243, %258 : vector<8x128xf32>
      %260 = math.exp %259 : vector<8x128xf32>
      %261 = arith.subf %248, %258 : vector<8x128xf32>
      %262 = math.exp %261 : vector<8x128xf32>
      %263 = arith.addf %260, %262 : vector<8x128xf32>
      %264 = tpu.reciprocal %263 {approx = true} : vector<8x128xf32> -> vector<8x128xf32>
      %265 = arith.mulf %260, %264 : vector<8x128xf32>
      %266 = arith.mulf %262, %264 : vector<8x128xf32>
      %267 = arith.truncf %256 : vector<8x128xf32> to vector<8x128xbf16>
      %cst_126 = arith.constant dense<0.000000e+00> : vector<8x128xf32>
      %268 = tpu.matmul %267, %57, %cst_126 {dimension_numbers = #tpu.dot_dimension_numbers<[1], [0], [0], [1], [0, 0, 1, 1], [], []>} : vector<8x128xbf16>, vector<128x128xbf16>, vector<8x128xf32> -> vector<8x128xf32>
      %269 = arith.mulf %268, %227 : vector<8x128xf32>
      %270 = arith.truncf %257 : vector<8x128xf32> to vector<8x128xbf16>
      %cst_127 = arith.constant dense<0.000000e+00> : vector<8x128xf32>
      %271 = tpu.matmul %270, %57, %cst_127 {dimension_numbers = #tpu.dot_dimension_numbers<[1], [0], [0], [1], [0, 0, 1, 1], [], []>} : vector<8x128xbf16>, vector<128x128xbf16>, vector<8x128xf32> -> vector<8x128xf32>
      %272 = arith.mulf %271, %228 : vector<8x128xf32>
      %273 = arith.addf %269, %272 : vector<8x128xf32>
      %274 = arith.truncf %265 : vector<8x128xf32> to vector<8x128xbf16>
      %cst_128 = arith.constant dense<0.000000e+00> : vector<8x128xf32>
      %275 = tpu.matmul %274, %57, %cst_128 {dimension_numbers = #tpu.dot_dimension_numbers<[1], [0], [0], [1], [0, 0, 1, 1], [], []>} : vector<8x128xbf16>, vector<128x128xbf16>, vector<8x128xf32> -> vector<8x128xf32>
      %276 = arith.mulf %275, %227 : vector<8x128xf32>
      %277 = arith.truncf %266 : vector<8x128xf32> to vector<8x128xbf16>
      %cst_129 = arith.constant dense<0.000000e+00> : vector<8x128xf32>
      %278 = tpu.matmul %277, %57, %cst_129 {dimension_numbers = #tpu.dot_dimension_numbers<[1], [0], [0], [1], [0, 0, 1, 1], [], []>} : vector<8x128xbf16>, vector<128x128xbf16>, vector<8x128xf32> -> vector<8x128xf32>
      %279 = arith.mulf %278, %228 : vector<8x128xf32>
      %280 = arith.addf %276, %279 : vector<8x128xf32>
      %281 = tpu.concatenate %273, %280 in 0 : vector<8x128xf32>, vector<8x128xf32> -> vector<16x128xf32>
      %c1_130 = arith.constant 1 : index
      %c0_131 = arith.constant 0 : index
      %c0_132 = arith.constant 0 : index
      %282 = vector.load %arg13[%c1_130, %c0_131, %c0_132] : memref<2x128x128xbf16, #tpu.memory_space<vmem>>, vector<1x128x128xbf16>
      %283 = vector.shape_cast %282 : vector<1x128x128xbf16> to vector<128x128xbf16>
      %c1_133 = arith.constant 1 : index
      %c0_134 = arith.constant 0 : index
      %c0_135 = arith.constant 0 : index
      %284 = vector.load %arg14[%c1_133, %c0_134, %c0_135] : memref<2x1x128xf32, #tpu.memory_space<vmem>>, vector<1x1x128xf32>
      %285 = vector.shape_cast %284 : vector<1x1x128xf32> to vector<1x128xf32>
      %286 = arith.truncf %281 : vector<16x128xf32> to vector<16x128xbf16>
      %cst_136 = arith.constant dense<0.000000e+00> : vector<16x128xf32>
      %287 = tpu.matmul %286, %283, %cst_136 {dimension_numbers = #tpu.dot_dimension_numbers<[1], [0], [0], [1], [0, 0, 1, 1], [], []>} : vector<16x128xbf16>, vector<128x128xbf16>, vector<16x128xf32> -> vector<16x128xf32>
      %288 = vector.broadcast %285 : vector<1x128xf32> to vector<16x128xf32>
      %289 = arith.addf %287, %288 : vector<16x128xf32>
      %290 = arith.addf %211, %289 : vector<16x128xf32>
      %c1_137 = arith.constant 1 : index
      %c0_138 = arith.constant 0 : index
      %c0_139 = arith.constant 0 : index
      %291 = vector.load %arg15[%c1_137, %c0_138, %c0_139] : memref<2x1x128xf32, #tpu.memory_space<vmem>>, vector<1x1x128xf32>
      %292 = vector.shape_cast %291 : vector<1x1x128xf32> to vector<1x128xf32>
      %c1_140 = arith.constant 1 : index
      %c0_141 = arith.constant 0 : index
      %c0_142 = arith.constant 0 : index
      %293 = vector.load %arg16[%c1_140, %c0_141, %c0_142] : memref<2x1x128xf32, #tpu.memory_space<vmem>>, vector<1x1x128xf32>
      %294 = vector.shape_cast %293 : vector<1x1x128xf32> to vector<1x128xf32>
      %cst_143 = arith.constant dense<0.000000e+00> : vector<16xf32>
      %295 = vector.multi_reduction <add>, %290, %cst_143 [1] : vector<16x128xf32> to vector<16xf32>
      %296 = vector.shape_cast %295 : vector<16xf32> to vector<16x1xf32>
      %cst_144 = arith.constant 1.280000e+02 : f32
      %297 = vector.broadcast %cst_144 : f32 to vector<16x1xf32>
      %298 = arith.divf %296, %297 : vector<16x1xf32>
      %299 = arith.mulf %290, %290 : vector<16x128xf32>
      %cst_145 = arith.constant dense<0.000000e+00> : vector<16xf32>
      %300 = vector.multi_reduction <add>, %299, %cst_145 [1] : vector<16x128xf32> to vector<16xf32>
      %301 = vector.shape_cast %300 : vector<16xf32> to vector<16x1xf32>
      %cst_146 = arith.constant 1.280000e+02 : f32
      %302 = vector.broadcast %cst_146 : f32 to vector<16x1xf32>
      %303 = arith.divf %301, %302 : vector<16x1xf32>
      %304 = arith.mulf %298, %298 : vector<16x1xf32>
      %305 = arith.subf %303, %304 : vector<16x1xf32>
      %cst_147 = arith.constant 0.000000e+00 : f32
      %306 = vector.broadcast %cst_147 : f32 to vector<16x1xf32>
      %307 = arith.maximumf %305, %306 : vector<16x1xf32>
      %308 = vector.broadcast %298 : vector<16x1xf32> to vector<16x128xf32>
      %309 = arith.subf %290, %308 : vector<16x128xf32>
      %cst_148 = arith.constant 9.99999974E-6 : f32
      %310 = vector.broadcast %cst_148 : f32 to vector<16x1xf32>
      %311 = arith.addf %307, %310 : vector<16x1xf32>
      %312 = math.rsqrt %311 : vector<16x1xf32>
      %313 = vector.broadcast %312 : vector<16x1xf32> to vector<16x128xf32>
      %314 = arith.mulf %309, %313 : vector<16x128xf32>
      %315 = vector.broadcast %292 : vector<1x128xf32> to vector<16x128xf32>
      %316 = arith.mulf %314, %315 : vector<16x128xf32>
      %317 = vector.broadcast %294 : vector<1x128xf32> to vector<16x128xf32>
      %318 = arith.addf %316, %317 : vector<16x128xf32>
      %c1_149 = arith.constant 1 : index
      %c0_150 = arith.constant 0 : index
      %c0_151 = arith.constant 0 : index
      %319 = vector.load %arg17[%c1_149, %c0_150, %c0_151] : memref<2x128x512xbf16, #tpu.memory_space<vmem>>, vector<1x128x512xbf16>
      %320 = vector.shape_cast %319 : vector<1x128x512xbf16> to vector<128x512xbf16>
      %c1_152 = arith.constant 1 : index
      %c0_153 = arith.constant 0 : index
      %c0_154 = arith.constant 0 : index
      %321 = vector.load %arg18[%c1_152, %c0_153, %c0_154] : memref<2x1x512xf32, #tpu.memory_space<vmem>>, vector<1x1x512xf32>
      %322 = vector.shape_cast %321 : vector<1x1x512xf32> to vector<1x512xf32>
      %323 = arith.truncf %318 : vector<16x128xf32> to vector<16x128xbf16>
      %cst_155 = arith.constant dense<0.000000e+00> : vector<16x512xf32>
      %324 = tpu.matmul %323, %320, %cst_155 {dimension_numbers = #tpu.dot_dimension_numbers<[1], [0], [0], [1], [0, 0, 1, 1], [], []>} : vector<16x128xbf16>, vector<128x512xbf16>, vector<16x512xf32> -> vector<16x512xf32>
      %325 = vector.broadcast %322 : vector<1x512xf32> to vector<16x512xf32>
      %326 = arith.addf %324, %325 : vector<16x512xf32>
      %cst_156 = arith.constant 0.000000e+00 : f32
      %327 = vector.broadcast %cst_156 : f32 to vector<16x512xf32>
      %328 = arith.maximumf %326, %327 : vector<16x512xf32>
      %c1_157 = arith.constant 1 : index
      %c0_158 = arith.constant 0 : index
      %c0_159 = arith.constant 0 : index
      %329 = vector.load %arg19[%c1_157, %c0_158, %c0_159] : memref<2x512x128xbf16, #tpu.memory_space<vmem>>, vector<1x512x128xbf16>
      %330 = vector.shape_cast %329 : vector<1x512x128xbf16> to vector<512x128xbf16>
      %c1_160 = arith.constant 1 : index
      %c0_161 = arith.constant 0 : index
      %c0_162 = arith.constant 0 : index
      %331 = vector.load %arg20[%c1_160, %c0_161, %c0_162] : memref<2x1x128xf32, #tpu.memory_space<vmem>>, vector<1x1x128xf32>
      %332 = vector.shape_cast %331 : vector<1x1x128xf32> to vector<1x128xf32>
      %333 = arith.truncf %328 : vector<16x512xf32> to vector<16x512xbf16>
      %cst_163 = arith.constant dense<0.000000e+00> : vector<16x128xf32>
      %334 = tpu.matmul %333, %330, %cst_163 {dimension_numbers = #tpu.dot_dimension_numbers<[1], [0], [0], [1], [0, 0, 1, 1], [], []>} : vector<16x512xbf16>, vector<512x128xbf16>, vector<16x128xf32> -> vector<16x128xf32>
      %335 = vector.broadcast %332 : vector<1x128xf32> to vector<16x128xf32>
      %336 = arith.addf %334, %335 : vector<16x128xf32>
      %337 = arith.addf %318, %336 : vector<16x128xf32>
      %c1_164 = arith.constant 1 : index
      %c0_165 = arith.constant 0 : index
      %c0_166 = arith.constant 0 : index
      %338 = vector.load %arg21[%c1_164, %c0_165, %c0_166] : memref<2x1x128xf32, #tpu.memory_space<vmem>>, vector<1x1x128xf32>
      %339 = vector.shape_cast %338 : vector<1x1x128xf32> to vector<1x128xf32>
      %c1_167 = arith.constant 1 : index
      %c0_168 = arith.constant 0 : index
      %c0_169 = arith.constant 0 : index
      %340 = vector.load %arg22[%c1_167, %c0_168, %c0_169] : memref<2x1x128xf32, #tpu.memory_space<vmem>>, vector<1x1x128xf32>
      %341 = vector.shape_cast %340 : vector<1x1x128xf32> to vector<1x128xf32>
      %cst_170 = arith.constant dense<0.000000e+00> : vector<16xf32>
      %342 = vector.multi_reduction <add>, %337, %cst_170 [1] : vector<16x128xf32> to vector<16xf32>
      %343 = vector.shape_cast %342 : vector<16xf32> to vector<16x1xf32>
      %cst_171 = arith.constant 1.280000e+02 : f32
      %344 = vector.broadcast %cst_171 : f32 to vector<16x1xf32>
      %345 = arith.divf %343, %344 : vector<16x1xf32>
      %346 = arith.mulf %337, %337 : vector<16x128xf32>
      %cst_172 = arith.constant dense<0.000000e+00> : vector<16xf32>
      %347 = vector.multi_reduction <add>, %346, %cst_172 [1] : vector<16x128xf32> to vector<16xf32>
      %348 = vector.shape_cast %347 : vector<16xf32> to vector<16x1xf32>
      %cst_173 = arith.constant 1.280000e+02 : f32
      %349 = vector.broadcast %cst_173 : f32 to vector<16x1xf32>
      %350 = arith.divf %348, %349 : vector<16x1xf32>
      %351 = arith.mulf %345, %345 : vector<16x1xf32>
      %352 = arith.subf %350, %351 : vector<16x1xf32>
      %cst_174 = arith.constant 0.000000e+00 : f32
      %353 = vector.broadcast %cst_174 : f32 to vector<16x1xf32>
      %354 = arith.maximumf %352, %353 : vector<16x1xf32>
      %355 = vector.broadcast %345 : vector<16x1xf32> to vector<16x128xf32>
      %356 = arith.subf %337, %355 : vector<16x128xf32>
      %cst_175 = arith.constant 9.99999974E-6 : f32
      %357 = vector.broadcast %cst_175 : f32 to vector<16x1xf32>
      %358 = arith.addf %354, %357 : vector<16x1xf32>
      %359 = math.rsqrt %358 : vector<16x1xf32>
      %360 = vector.broadcast %359 : vector<16x1xf32> to vector<16x128xf32>
      %361 = arith.mulf %356, %360 : vector<16x128xf32>
      %362 = vector.broadcast %339 : vector<1x128xf32> to vector<16x128xf32>
      %363 = arith.mulf %361, %362 : vector<16x128xf32>
      %364 = vector.broadcast %341 : vector<1x128xf32> to vector<16x128xf32>
      %365 = arith.addf %363, %364 : vector<16x128xf32>
      %366 = vector.extract_strided_slice %365 {offsets = [0, 0], sizes = [8, 128], strides = [1, 1]} : vector<16x128xf32> to vector<8x128xf32>
      %367 = vector.extract_strided_slice %365 {offsets = [8, 0], sizes = [8, 128], strides = [1, 1]} : vector<16x128xf32> to vector<8x128xf32>
      %368 = arith.addf %366, %367 : vector<8x128xf32>
      %cst_176 = arith.constant 5.000000e-01 : f32
      %369 = vector.broadcast %cst_176 : f32 to vector<8x128xf32>
      %370 = arith.mulf %368, %369 : vector<8x128xf32>
      %c0_177 = arith.constant 0 : index
      %c0_178 = arith.constant 0 : index
      %371 = vector.load %arg23[%c0_177, %c0_178] : memref<128x32xbf16, #tpu.memory_space<vmem>>, vector<128x32xbf16>
      %c0_179 = arith.constant 0 : index
      %c0_180 = arith.constant 0 : index
      %372 = vector.load %arg24[%c0_179, %c0_180] : memref<1x32xf32, #tpu.memory_space<vmem>>, vector<1x32xf32>
      %373 = arith.truncf %370 : vector<8x128xf32> to vector<8x128xbf16>
      %cst_181 = arith.constant dense<0.000000e+00> : vector<8x32xf32>
      %374 = tpu.matmul %373, %371, %cst_181 {dimension_numbers = #tpu.dot_dimension_numbers<[1], [0], [0], [1], [0, 0, 1, 1], [], []>} : vector<8x128xbf16>, vector<128x32xbf16>, vector<8x32xf32> -> vector<8x32xf32>
      %375 = vector.broadcast %372 : vector<1x32xf32> to vector<8x32xf32>
      %376 = arith.addf %374, %375 : vector<8x32xf32>
      %cst_182 = arith.constant 0.000000e+00 : f32
      %377 = vector.broadcast %cst_182 : f32 to vector<8x32xf32>
      %378 = arith.maximumf %376, %377 : vector<8x32xf32>
      %c0_183 = arith.constant 0 : index
      %c0_184 = arith.constant 0 : index
      %379 = vector.load %arg25[%c0_183, %c0_184] : memref<32x128xbf16, #tpu.memory_space<vmem>>, vector<32x128xbf16>
      %c0_185 = arith.constant 0 : index
      %c0_186 = arith.constant 0 : index
      %380 = vector.load %arg26[%c0_185, %c0_186] : memref<1x128xf32, #tpu.memory_space<vmem>>, vector<1x128xf32>
      %381 = arith.truncf %378 : vector<8x32xf32> to vector<8x32xbf16>
      %cst_187 = arith.constant dense<0.000000e+00> : vector<8x128xf32>
      %382 = tpu.matmul %381, %379, %cst_187 {dimension_numbers = #tpu.dot_dimension_numbers<[1], [0], [0], [1], [0, 0, 1, 1], [], []>} : vector<8x32xbf16>, vector<32x128xbf16>, vector<8x128xf32> -> vector<8x128xf32>
      %383 = vector.broadcast %380 : vector<1x128xf32> to vector<8x128xf32>
      %384 = arith.addf %382, %383 : vector<8x128xf32>
      %385 = arith.negf %384 : vector<8x128xf32>
      %386 = math.exp %385 : vector<8x128xf32>
      %cst_188 = arith.constant 1.000000e+00 : f32
      %387 = vector.broadcast %cst_188 : f32 to vector<8x128xf32>
      %388 = arith.addf %387, %386 : vector<8x128xf32>
      %389 = arith.divf %387, %388 : vector<8x128xf32>
      %c0_189 = arith.constant 0 : index
      %c0_190 = arith.constant 0 : index
      %390 = vector.load %arg27[%c0_189, %c0_190] : memref<8x128xf32, #tpu.memory_space<vmem>>, vector<8x128xf32>
      tpu.vector_store %arg27[%c0_189, %c0_190], %389 {strides = array<i32>} : memref<8x128xf32, #tpu.memory_space<vmem>>, vector<8x128xf32>,
    } else {
    }
    return
  }
  func.func @transform_0(%arg0: i32, %arg1: i32) -> (i32, i32, i32) {
    %c0_i32 = arith.constant 0 : i32
    %c0_i32_0 = arith.constant 0 : i32
    return %c0_i32, %arg0, %arg1 : i32, i32, i32
  }
  func.func @transform_1(%arg0: i32, %arg1: i32) -> (i32, i32) {
    %c0_i32 = arith.constant 0 : i32
    %c0_i32_0 = arith.constant 0 : i32
    %c0_i32_1 = arith.constant 0 : i32
    return %c0_i32, %c0_i32_0 : i32, i32
  }
  func.func @transform_2(%arg0: i32, %arg1: i32) -> (i32, i32) {
    %c0_i32 = arith.constant 0 : i32
    %c0_i32_0 = arith.constant 0 : i32
    %c0_i32_1 = arith.constant 0 : i32
    return %c0_i32, %c0_i32_0 : i32, i32
  }
  func.func @transform_3(%arg0: i32, %arg1: i32) -> (i32, i32) {
    %c0_i32 = arith.constant 0 : i32
    %c0_i32_0 = arith.constant 0 : i32
    %c0_i32_1 = arith.constant 0 : i32
    return %c0_i32, %c0_i32_0 : i32, i32
  }
  func.func @transform_4(%arg0: i32, %arg1: i32) -> (i32, i32) {
    %c0_i32 = arith.constant 0 : i32
    %c0_i32_0 = arith.constant 0 : i32
    %c0_i32_1 = arith.constant 0 : i32
    return %c0_i32, %c0_i32_0 : i32, i32
  }
  func.func @transform_5(%arg0: i32, %arg1: i32) -> (i32, i32) {
    %c0_i32 = arith.constant 0 : i32
    %c0_i32_0 = arith.constant 0 : i32
    %c0_i32_1 = arith.constant 0 : i32
    return %c0_i32, %c0_i32_0 : i32, i32
  }
  func.func @transform_6(%arg0: i32, %arg1: i32) -> (i32, i32) {
    %c0_i32 = arith.constant 0 : i32
    %c0_i32_0 = arith.constant 0 : i32
    %c0_i32_1 = arith.constant 0 : i32
    return %c0_i32, %c0_i32_0 : i32, i32
  }
  func.func @transform_7(%arg0: i32, %arg1: i32) -> (i32, i32) {
    %c0_i32 = arith.constant 0 : i32
    %c0_i32_0 = arith.constant 0 : i32
    %c0_i32_1 = arith.constant 0 : i32
    return %c0_i32, %c0_i32_0 : i32, i32
  }
  func.func @transform_8(%arg0: i32, %arg1: i32) -> (i32, i32) {
    %c0_i32 = arith.constant 0 : i32
    %c0_i32_0 = arith.constant 0 : i32
    %c0_i32_1 = arith.constant 0 : i32
    return %c0_i32, %c0_i32_0 : i32, i32
  }
  func.func @transform_9(%arg0: i32, %arg1: i32) -> (i32, i32, i32) {
    %c0_i32 = arith.constant 0 : i32
    %c0_i32_0 = arith.constant 0 : i32
    %c0_i32_1 = arith.constant 0 : i32
    %c0_i32_2 = arith.constant 0 : i32
    return %c0_i32, %c0_i32_0, %c0_i32_1 : i32, i32, i32
  }
  func.func @transform_10(%arg0: i32, %arg1: i32) -> (i32, i32, i32) {
    %c0_i32 = arith.constant 0 : i32
    %c0_i32_0 = arith.constant 0 : i32
    %c0_i32_1 = arith.constant 0 : i32
    %c0_i32_2 = arith.constant 0 : i32
    return %c0_i32, %c0_i32_0, %c0_i32_1 : i32, i32, i32
  }
  func.func @transform_11(%arg0: i32, %arg1: i32) -> (i32, i32, i32) {
    %c0_i32 = arith.constant 0 : i32
    %c0_i32_0 = arith.constant 0 : i32
    %c0_i32_1 = arith.constant 0 : i32
    %c0_i32_2 = arith.constant 0 : i32
    return %c0_i32, %c0_i32_0, %c0_i32_1 : i32, i32, i32
  }
  func.func @transform_12(%arg0: i32, %arg1: i32) -> (i32, i32, i32) {
    %c0_i32 = arith.constant 0 : i32
    %c0_i32_0 = arith.constant 0 : i32
    %c0_i32_1 = arith.constant 0 : i32
    %c0_i32_2 = arith.constant 0 : i32
    return %c0_i32, %c0_i32_0, %c0_i32_1 : i32, i32, i32
  }
  func.func @transform_13(%arg0: i32, %arg1: i32) -> (i32, i32, i32) {
    %c0_i32 = arith.constant 0 : i32
    %c0_i32_0 = arith.constant 0 : i32
    %c0_i32_1 = arith.constant 0 : i32
    %c0_i32_2 = arith.constant 0 : i32
    return %c0_i32, %c0_i32_0, %c0_i32_1 : i32, i32, i32
  }
  func.func @transform_14(%arg0: i32, %arg1: i32) -> (i32, i32, i32) {
    %c0_i32 = arith.constant 0 : i32
    %c0_i32_0 = arith.constant 0 : i32
    %c0_i32_1 = arith.constant 0 : i32
    %c0_i32_2 = arith.constant 0 : i32
    return %c0_i32, %c0_i32_0, %c0_i32_1 : i32, i32, i32
  }
  func.func @transform_15(%arg0: i32, %arg1: i32) -> (i32, i32, i32) {
    %c0_i32 = arith.constant 0 : i32
    %c0_i32_0 = arith.constant 0 : i32
    %c0_i32_1 = arith.constant 0 : i32
    %c0_i32_2 = arith.constant 0 : i32
    return %c0_i32, %c0_i32_0, %c0_i32_1 : i32, i32, i32
  }
  func.func @transform_16(%arg0: i32, %arg1: i32) -> (i32, i32, i32) {
    %c0_i32 = arith.constant 0 : i32
    %c0_i32_0 = arith.constant 0 : i32
    %c0_i32_1 = arith.constant 0 : i32
    %c0_i32_2 = arith.constant 0 : i32
    return %c0_i32, %c0_i32_0, %c0_i32_1 : i32, i32, i32
  }
  func.func @transform_17(%arg0: i32, %arg1: i32) -> (i32, i32, i32) {
    %c0_i32 = arith.constant 0 : i32
    %c0_i32_0 = arith.constant 0 : i32
    %c0_i32_1 = arith.constant 0 : i32
    %c0_i32_2 = arith.constant 0 : i32
    return %c0_i32, %c0_i32_0, %c0_i32_1 : i32, i32, i32
  }
  func.func @transform_18(%arg0: i32, %arg1: i32) -> (i32, i32, i32) {
    %c0_i32 = arith.constant 0 : i32
    %c0_i32_0 = arith.constant 0 : i32
    %c0_i32_1 = arith.constant 0 : i32
    %c0_i32_2 = arith.constant 0 : i32
    return %c0_i32, %c0_i32_0, %c0_i32_1 : i32, i32, i32
  }
  func.func @transform_19(%arg0: i32, %arg1: i32) -> (i32, i32, i32) {
    %c0_i32 = arith.constant 0 : i32
    %c0_i32_0 = arith.constant 0 : i32
    %c0_i32_1 = arith.constant 0 : i32
    %c0_i32_2 = arith.constant 0 : i32
    return %c0_i32, %c0_i32_0, %c0_i32_1 : i32, i32, i32
  }
  func.func @transform_20(%arg0: i32, %arg1: i32) -> (i32, i32, i32) {
    %c0_i32 = arith.constant 0 : i32
    %c0_i32_0 = arith.constant 0 : i32
    %c0_i32_1 = arith.constant 0 : i32
    %c0_i32_2 = arith.constant 0 : i32
    return %c0_i32, %c0_i32_0, %c0_i32_1 : i32, i32, i32
  }
  func.func @transform_21(%arg0: i32, %arg1: i32) -> (i32, i32) {
    %c0_i32 = arith.constant 0 : i32
    %c0_i32_0 = arith.constant 0 : i32
    %c0_i32_1 = arith.constant 0 : i32
    return %c0_i32, %c0_i32_0 : i32, i32
  }
  func.func @transform_22(%arg0: i32, %arg1: i32) -> (i32, i32) {
    %c0_i32 = arith.constant 0 : i32
    %c0_i32_0 = arith.constant 0 : i32
    %c0_i32_1 = arith.constant 0 : i32
    return %c0_i32, %c0_i32_0 : i32, i32
  }
  func.func @transform_23(%arg0: i32, %arg1: i32) -> (i32, i32) {
    %c0_i32 = arith.constant 0 : i32
    %c0_i32_0 = arith.constant 0 : i32
    %c0_i32_1 = arith.constant 0 : i32
    return %c0_i32, %c0_i32_0 : i32, i32
  }
  func.func @transform_24(%arg0: i32, %arg1: i32) -> (i32, i32) {
    %c0_i32 = arith.constant 0 : i32
    %c0_i32_0 = arith.constant 0 : i32
    %c0_i32_1 = arith.constant 0 : i32
    return %c0_i32, %c0_i32_0 : i32, i32
  }
  func.func @transform_25(%arg0: i32, %arg1: i32) -> (i32, i32) {
    %c0_i32 = arith.constant 0 : i32
    %c0_i32_0 = arith.constant 0 : i32
    return %arg0, %c0_i32 : i32, i32
  }
}

</mosaic_0001>

<llo_original>
// kernel: tpu_custom_call.1
$region0: #{tpu_custom_call.1}
  #allocation0 [shape = 'u32[]', space=smem, size = 0x4, offset = 0x4, fixed_abs, tag = 'smem constant byte address 0x4 - core index']
  #allocation1 [shape = 'u32[72,128]{1,0:T(1,128)}', space=vmem, size = 0x9000, scoped, tag = 'internal scratch']
  #allocation2 [shape = 'f32[8,3]{1,0:T(8,128)}', space=vmem, size = 0x1000, scoped, tag = 'scratch operand']
  %s0 = inlined_call_operand.hbm [shape: bf16[3,8,256], index: 0, kind: input, shape index: {}]
  %s1 = inlined_call_operand.hbm [shape: bf16[3,416], index: 1, kind: input, shape index: {}]
  %s2 = inlined_call_operand.vmem [shape: f32[1,416], index: 2, kind: input, shape index: {}]
  %s3 = inlined_call_operand.hbm [shape: bf16[256,128], index: 3, kind: input, shape index: {}]
  %s4 = inlined_call_operand.hbm [shape: f32[1,128], index: 4, kind: input, shape index: {}]
  %s5 = inlined_call_operand.vmem [shape: bf16[160,128], index: 5, kind: input, shape index: {}]
  %s6 = inlined_call_operand.hbm [shape: f32[1,128], index: 6, kind: input, shape index: {}]
  %s7 = inlined_call_operand.hbm [shape: bf16[128,128], index: 7, kind: input, shape index: {}]
  %s8 = inlined_call_operand.hbm [shape: bf16[128,128], index: 8, kind: input, shape index: {}]
  %s9 = inlined_call_operand.hbm [shape: bf16[2,128,384], index: 9, kind: input, shape index: {}]
  %s10 = inlined_call_operand.hbm [shape: f32[2,1,384], index: 10, kind: input, shape index: {}]
  %s11 = inlined_call_operand.hbm [shape: bf16[2,128,128], index: 11, kind: input, shape index: {}]
  %s12 = inlined_call_operand.hbm [shape: f32[2,1,128], index: 12, kind: input, shape index: {}]
  %s13 = inlined_call_operand.hbm [shape: f32[2,1,128], index: 13, kind: input, shape index: {}]
  %s14 = inlined_call_operand.hbm [shape: f32[2,1,128], index: 14, kind: input, shape index: {}]
  %s15 = inlined_call_operand.hbm [shape: bf16[2,128,512], index: 15, kind: input, shape index: {}]
  %s16 = inlined_call_operand.hbm [shape: f32[2,1,512], index: 16, kind: input, shape index: {}]
  %s17 = inlined_call_operand.hbm [shape: bf16[2,512,128], index: 17, kind: input, shape index: {}]
  %s18 = inlined_call_operand.hbm [shape: f32[2,1,128], index: 18, kind: input, shape index: {}]
  %s19 = inlined_call_operand.hbm [shape: f32[2,1,128], index: 19, kind: input, shape index: {}]
  %s20 = inlined_call_operand.hbm [shape: f32[2,1,128], index: 20, kind: input, shape index: {}]
  %s21 = inlined_call_operand.vmem [shape: bf16[128,32], index: 21, kind: input, shape index: {}]
  %s22 = inlined_call_operand.vmem [shape: f32[1,32], index: 22, kind: input, shape index: {}]
  %s23 = inlined_call_operand.hbm [shape: bf16[32,128], index: 23, kind: input, shape index: {}]
  %s24 = inlined_call_operand.vmem [shape: f32[1,128], index: 24, kind: input, shape index: {}]
  %s25 = inlined_call_operand.hbm [shape: f32[8,128], index: 25, kind: output, shape index: {}]
  %s26 = sld [smem:[#allocation0]]
  $region198: #{tpu_custom_call.1} parent=0
    _
  %s28 = ssub.s32 1, %s26
  %s29 = scalar_select 0, %s28, %s26
  $region1: #{tpu_custom_call.1} parent=0
    #allocation3 [shape = 'u8[12288]{0}', space=vmem, size = 0x3000, scoped, tag = 'input window, operand 0, single buffered']
    #allocation4 [shape = 's32[1]{0}', space=sflag, size = 0x4, scoped, tag = 'scoped memory for tpu_custom_call.1']
    #allocation5 [shape = 's32[1]{0}', space=sflag, size = 0x4, scoped, tag = 'scoped memory for tpu_custom_call.1']
    #allocation6 [shape = 'u8[4096]{0}', space=vmem, size = 0x1000, scoped, tag = 'input window, operand 1, single buffered']
    #allocation7 [shape = 's32[1]{0}', space=sflag, size = 0x4, scoped, tag = 'scoped memory for tpu_custom_call.1']
    #allocation8 [shape = 'u8[65536]{0}', space=vmem, size = 0x10000, scoped, tag = 'input window, operand 3, single buffered']
    #allocation9 [shape = 'u8[512]{0}', space=vmem, size = 0x400, scoped, tag = 'input window, operand 4, single buffered']
    #allocation10 [shape = 's32[1]{0}', space=sflag, size = 0x4, scoped, tag = 'scoped memory for tpu_custom_call.1']
    #allocation11 [shape = 'u8[512]{0}', space=vmem, size = 0x400, scoped, tag = 'input window, operand 6, single buffered']
    #allocation12 [shape = 'u8[32768]{0}', space=vmem, size = 0x8000, scoped, tag = 'input window, operand 7, single buffered']
    #allocation13 [shape = 's32[1]{0}', space=sflag, size = 0x4, scoped, tag = 'scoped memory for tpu_custom_call.1']
    #allocation14 [shape = 'u8[32768]{0}', space=vmem, size = 0x8000, scoped, tag = 'input window, operand 8, single buffered']
    #allocation15 [shape = 'u8[196608]{0}', space=vmem, size = 0x30000, scoped, tag = 'input window, operand 9, single buffered']
    #allocation16 [shape = 's32[1]{0}', space=sflag, size = 0x4, scoped, tag = 'scoped memory for tpu_custom_call.1']
    #allocation17 [shape = 'u8[3072]{0}', space=vmem, size = 0xc00, scoped, tag = 'input window, operand 10, single buffered']
    #allocation18 [shape = 'u8[65536]{0}', space=vmem, size = 0x10000, scoped, tag = 'input window, operand 11, single buffered']
    #allocation19 [shape = 's32[1]{0}', space=sflag, size = 0x4, scoped, tag = 'scoped memory for tpu_custom_call.1']
    #allocation20 [shape = 'u8[1024]{0}', space=vmem, size = 0x400, scoped, tag = 'input window, operand 12, single buffered']
    #allocation21 [shape = 'u8[1024]{0}', space=vmem, size = 0x400, scoped, tag = 'input window, operand 13, single buffered']
    #allocation22 [shape = 's32[1]{0}', space=sflag, size = 0x4, scoped, tag = 'scoped memory for tpu_custom_call.1']
    #allocation23 [shape = 'u8[1024]{0}', space=vmem, size = 0x400, scoped, tag = 'input window, operand 14, single buffered']
    #allocation24 [shape = 'u8[262144]{0}', space=vmem, size = 0x40000, scoped, tag = 'input window, operand 15, single buffered']
    #allocation25 [shape = 's32[1]{0}', space=sflag, size = 0x4, scoped, tag = 'scoped memory for tpu_custom_call.1']
    #allocation26 [shape = 'u8[4096]{0}', space=vmem, size = 0x1000, scoped, tag = 'input window, operand 16, single buffered']
    #allocation27 [shape = 'u8[262144]{0}', space=vmem, size = 0x40000, scoped, tag = 'input window, operand 17, single buffered']
    #allocation28 [shape = 's32[1]{0}', space=sflag, size = 0x4, scoped, tag = 'scoped memory for tpu_custom_call.1']
    #allocation29 [shape = 'u8[1024]{0}', space=vmem, size = 0x400, scoped, tag = 'input window, operand 18, single buffered']
    #allocation30 [shape = 'u8[1024]{0}', space=vmem, size = 0x400, scoped, tag = 'input window, operand 19, single buffered']
    #allocation31 [shape = 's32[1]{0}', space=sflag, size = 0x4, scoped, tag = 'scoped memory for tpu_custom_call.1']
    #allocation32 [shape = 'u8[1024]{0}', space=vmem, size = 0x400, scoped, tag = 'input window, operand 20, single buffered']
    #allocation33 [shape = 'u8[8192]{0}', space=vmem, size = 0x2000, scoped, tag = 'input window, operand 23, single buffered']
    #allocation34 [shape = 's32[1]{0}', space=sflag, size = 0x4, scoped, tag = 'scoped memory for tpu_custom_call.1']
    #allocation35 [shape = 'u8[4096]{0}', space=vmem, size = 0x1000, scoped, tag = 'output window, operand 0, single buffered']
    %30 = vsyncpa [#allocation4], 0
    %31 = vsyncpa [#allocation7], 0
    %32 = vsyncpa [#allocation10], 0
    %33 = vsyncpa [#allocation13], 0
    %34 = vsyncpa [#allocation16], 0
    %35 = vsyncpa [#allocation19], 0
    %36 = vsyncpa [#allocation22], 0
    %37 = vsyncpa [#allocation25], 0
    %38 = vsyncpa [#allocation28], 0
    %39 = vsyncpa [#allocation31], 0
    %40 = vsyncpa [#allocation34], 0
    %41 = vsyncpa [#allocation5], 0
    // Predicated region
    $region2: #{tpu_custom_call.1} parent=1 // pred_check
      _
    $region3: #{tpu_custom_call.1} parent=1 // pred_check_branch
      %43 = sbr.rel (0) target = $region5
    $region4: #{tpu_custom_call.1} parent=1 // pred_region
      %45 = vsyncadd [#allocation4], 0
      %s46 = sshll.u32 %s0, 4
      %s47 = int_to_ptr.hbm [resolvable:$true] %s46
      %s48 = sshll.u32 [#allocation3], 4
      %s49 = int_to_ptr.vmem [resolvable:$true] %s48
      %54 = dma.hbm_to_vmem [thread:$0]  %s47, 384, %s49, [#allocation4], 128, 128, 8
    $region5: #{tpu_custom_call.1} parent=1 // pred_fallthru
      _
    // Predicated region
    $region6: #{tpu_custom_call.1} parent=1 // pred_check
      _
    $region7: #{tpu_custom_call.1} parent=1 // pred_check_branch
      %56 = sbr.rel (0) target = $region9
    $region8: #{tpu_custom_call.1} parent=1 // pred_region
      %58 = vsyncadd [#allocation7], 0
      %s60 = sshll.u32 %s1, 4
      %s61 = int_to_ptr.hbm [resolvable:$true] %s60
      %s62 = sshll.u32 [#allocation6], 4
      %s63 = int_to_ptr.vmem [resolvable:$true] %s62
      %65 = dma.hbm_to_vmem [thread:$0]  %s61, 128, %s63, [#allocation7]
    $region9: #{tpu_custom_call.1} parent=1 // pred_fallthru
      _
    // Predicated region
    $region10: #{tpu_custom_call.1} parent=1 // pred_check
      _
    $region11: #{tpu_custom_call.1} parent=1 // pred_check_branch
      %67 = sbr.rel (0) target = $region13
    $region12: #{tpu_custom_call.1} parent=1 // pred_region
      _
    $region13: #{tpu_custom_call.1} parent=1 // pred_fallthru
      _
    // Predicated region
    $region14: #{tpu_custom_call.1} parent=1 // pred_check
      _
    $region15: #{tpu_custom_call.1} parent=1 // pred_check_branch
      %69 = sbr.rel (0) target = $region17
    $region16: #{tpu_custom_call.1} parent=1 // pred_region
      %71 = vsyncadd [#allocation7], 0
      %s72 = sshll.u32 %s3, 4
      %s73 = int_to_ptr.hbm [resolvable:$true] %s72
      %s74 = sshll.u32 [#allocation8], 4
      %s75 = int_to_ptr.vmem [resolvable:$true] %s74
      %80 = dma.hbm_to_vmem [thread:$0]  %s73, 2048, %s75, [#allocation7], 64, 64, 4
    $region17: #{tpu_custom_call.1} parent=1 // pred_fallthru
      _
    // Predicated region
    $region18: #{tpu_custom_call.1} parent=1 // pred_check
      _
    $region19: #{tpu_custom_call.1} parent=1 // pred_check_branch
      %82 = sbr.rel (0) target = $region21
    $region20: #{tpu_custom_call.1} parent=1 // pred_region
      %84 = vsyncadd [#allocation10], 0
      %s86 = sshll.u32 %s4, 4
      %s87 = int_to_ptr.hbm [resolvable:$true] %s86
      %s88 = sshll.u32 [#allocation9], 4
      %s89 = int_to_ptr.vmem [resolvable:$true] %s88
      %91 = dma.hbm_to_vmem [thread:$0]  %s87, 16, %s89, [#allocation10]
    $region21: #{tpu_custom_call.1} parent=1 // pred_fallthru
      _
    // Predicated region
    $region22: #{tpu_custom_call.1} parent=1 // pred_check
      _
    $region23: #{tpu_custom_call.1} parent=1 // pred_check_branch
      %93 = sbr.rel (0) target = $region25
    $region24: #{tpu_custom_call.1} parent=1 // pred_region
      _
    $region25: #{tpu_custom_call.1} parent=1 // pred_fallthru
      _
    // Predicated region
    $region26: #{tpu_custom_call.1} parent=1 // pred_check
      _
    $region27: #{tpu_custom_call.1} parent=1 // pred_check_branch
      %95 = sbr.rel (0) target = $region29
    $region28: #{tpu_custom_call.1} parent=1 // pred_region
      %97 = vsyncadd [#allocation10], 0
      %s99 = sshll.u32 %s6, 4
      %s100 = int_to_ptr.hbm [resolvable:$true] %s99
      %s101 = sshll.u32 [#allocation11], 4
      %s102 = int_to_ptr.vmem [resolvable:$true] %s101
      %104 = dma.hbm_to_vmem [thread:$0]  %s100, 16, %s102, [#allocation10]
    $region29: #{tpu_custom_call.1} parent=1 // pred_fallthru
      _
    // Predicated region
    $region30: #{tpu_custom_call.1} parent=1 // pred_check
      _
    $region31: #{tpu_custom_call.1} parent=1 // pred_check_branch
      %106 = sbr.rel (0) target = $region33
    $region32: #{tpu_custom_call.1} parent=1 // pred_region
      %108 = vsyncadd [#allocation13], 0
      %s109 = sshll.u32 %s7, 4
      %s110 = int_to_ptr.hbm [resolvable:$true] %s109
      %s111 = sshll.u32 [#allocation12], 4
      %s112 = int_to_ptr.vmem [resolvable:$true] %s111
      %117 = dma.hbm_to_vmem [thread:$0]  %s110, 1024, %s112, [#allocation13], 64, 64, 4
    $region33: #{tpu_custom_call.1} parent=1 // pred_fallthru
      _
    // Predicated region
    $region34: #{tpu_custom_call.1} parent=1 // pred_check
      _
    $region35: #{tpu_custom_call.1} parent=1 // pred_check_branch
      %119 = sbr.rel (0) target = $region37
    $region36: #{tpu_custom_call.1} parent=1 // pred_region
      %121 = vsyncadd [#allocation13], 0
      %s122 = sshll.u32 %s8, 4
      %s123 = int_to_ptr.hbm [resolvable:$true] %s122
      %s124 = sshll.u32 [#allocation14], 4
      %s125 = int_to_ptr.vmem [resolvable:$true] %s124
      %130 = dma.hbm_to_vmem [thread:$0]  %s123, 1024, %s125, [#allocation13], 64, 64, 4
    $region37: #{tpu_custom_call.1} parent=1 // pred_fallthru
      _
    // Predicated region
    $region38: #{tpu_custom_call.1} parent=1 // pred_check
      _
    $region39: #{tpu_custom_call.1} parent=1 // pred_check_branch
      %132 = sbr.rel (0) target = $region41
    $region40: #{tpu_custom_call.1} parent=1 // pred_region
      %134 = vsyncadd [#allocation16], 0
      %s135 = sshll.u32 %s9, 4
      %s136 = int_to_ptr.hbm [resolvable:$true] %s135
      %s137 = sshll.u32 [#allocation15], 4
      %s138 = int_to_ptr.vmem [resolvable:$true] %s137
      %143 = dma.hbm_to_vmem [thread:$0]  %s136, 6144, %s138, [#allocation16], 192, 192, 12
    $region41: #{tpu_custom_call.1} parent=1 // pred_fallthru
      _
    // Predicated region
    $region42: #{tpu_custom_call.1} parent=1 // pred_check
      _
    $region43: #{tpu_custom_call.1} parent=1 // pred_check_branch
      %145 = sbr.rel (0) target = $region45
    $region44: #{tpu_custom_call.1} parent=1 // pred_region
      %147 = vsyncadd [#allocation16], 0
      %s148 = sshll.u32 %s10, 4
      %s149 = int_to_ptr.hbm [resolvable:$true] %s148
      %s150 = sshll.u32 [#allocation17], 4
      %s151 = int_to_ptr.vmem [resolvable:$true] %s150
      %156 = dma.hbm_to_vmem [thread:$0]  %s149, 96, %s151, [#allocation16], 48, 48, 3
    $region45: #{tpu_custom_call.1} parent=1 // pred_fallthru
      _
    // Predicated region
    $region46: #{tpu_custom_call.1} parent=1 // pred_check
      _
    $region47: #{tpu_custom_call.1} parent=1 // pred_check_branch
      %158 = sbr.rel (0) target = $region49
    $region48: #{tpu_custom_call.1} parent=1 // pred_region
      %160 = vsyncadd [#allocation19], 0
      %s161 = sshll.u32 %s11, 4
      %s162 = int_to_ptr.hbm [resolvable:$true] %s161
      %s163 = sshll.u32 [#allocation18], 4
      %s164 = int_to_ptr.vmem [resolvable:$true] %s163
      %169 = dma.hbm_to_vmem [thread:$0]  %s162, 2048, %s164, [#allocation19], 64, 64, 4
    $region49: #{tpu_custom_call.1} parent=1 // pred_fallthru
      _
    // Predicated region
    $region50: #{tpu_custom_call.1} parent=1 // pred_check
      _
    $region51: #{tpu_custom_call.1} parent=1 // pred_check_branch
      %171 = sbr.rel (0) target = $region53
    $region52: #{tpu_custom_call.1} parent=1 // pred_region
      %173 = vsyncadd [#allocation19], 0
      %s174 = sshll.u32 %s12, 4
      %s175 = int_to_ptr.hbm [resolvable:$true] %s174
      %s176 = sshll.u32 [#allocation20], 4
      %s177 = int_to_ptr.vmem [resolvable:$true] %s176
      %182 = dma.hbm_to_vmem [thread:$0]  %s175, 32, %s177, [#allocation19], 16, 16, 1
    $region53: #{tpu_custom_call.1} parent=1 // pred_fallthru
      _
    // Predicated region
    $region54: #{tpu_custom_call.1} parent=1 // pred_check
      _
    $region55: #{tpu_custom_call.1} parent=1 // pred_check_branch
      %184 = sbr.rel (0) target = $region57
    $region56: #{tpu_custom_call.1} parent=1 // pred_region
      %186 = vsyncadd [#allocation22], 0
      %s187 = sshll.u32 %s13, 4
      %s188 = int_to_ptr.hbm [resolvable:$true] %s187
      %s189 = sshll.u32 [#allocation21], 4
      %s190 = int_to_ptr.vmem [resolvable:$true] %s189
      %195 = dma.hbm_to_vmem [thread:$0]  %s188, 32, %s190, [#allocation22], 16, 16, 1
    $region57: #{tpu_custom_call.1} parent=1 // pred_fallthru
      _
    // Predicated region
    $region58: #{tpu_custom_call.1} parent=1 // pred_check
      _
    $region59: #{tpu_custom_call.1} parent=1 // pred_check_branch
      %197 = sbr.rel (0) target = $region61
    $region60: #{tpu_custom_call.1} parent=1 // pred_region
      %199 = vsyncadd [#allocation22], 0
      %s200 = sshll.u32 %s14, 4
      %s201 = int_to_ptr.hbm [resolvable:$true] %s200
      %s202 = sshll.u32 [#allocation23], 4
      %s203 = int_to_ptr.vmem [resolvable:$true] %s202
      %208 = dma.hbm_to_vmem [thread:$0]  %s201, 32, %s203, [#allocation22], 16, 16, 1
    $region61: #{tpu_custom_call.1} parent=1 // pred_fallthru
      _
    // Predicated region
    $region62: #{tpu_custom_call.1} parent=1 // pred_check
      _
    $region63: #{tpu_custom_call.1} parent=1 // pred_check_branch
      %210 = sbr.rel (0) target = $region65
    $region64: #{tpu_custom_call.1} parent=1 // pred_region
      %212 = vsyncadd [#allocation25], 0
      %s213 = sshll.u32 %s15, 4
      %s214 = int_to_ptr.hbm [resolvable:$true] %s213
      %s215 = sshll.u32 [#allocation24], 4
      %s216 = int_to_ptr.vmem [resolvable:$true] %s215
      %221 = dma.hbm_to_vmem [thread:$0]  %s214, 8192, %s216, [#allocation25], 256, 256, 16
    $region65: #{tpu_custom_call.1} parent=1 // pred_fallthru
      _
    // Predicated region
    $region66: #{tpu_custom_call.1} parent=1 // pred_check
      _
    $region67: #{tpu_custom_call.1} parent=1 // pred_check_branch
      %223 = sbr.rel (0) target = $region69
    $region68: #{tpu_custom_call.1} parent=1 // pred_region
      %225 = vsyncadd [#allocation25], 0
      %s226 = sshll.u32 %s16, 4
      %s227 = int_to_ptr.hbm [resolvable:$true] %s226
      %s228 = sshll.u32 [#allocation26], 4
      %s229 = int_to_ptr.vmem [resolvable:$true] %s228
      %234 = dma.hbm_to_vmem [thread:$0]  %s227, 128, %s229, [#allocation25], 64, 64, 4
    $region69: #{tpu_custom_call.1} parent=1 // pred_fallthru
      _
    // Predicated region
    $region70: #{tpu_custom_call.1} parent=1 // pred_check
      _
    $region71: #{tpu_custom_call.1} parent=1 // pred_check_branch
      %236 = sbr.rel (0) target = $region73
    $region72: #{tpu_custom_call.1} parent=1 // pred_region
      %238 = vsyncadd [#allocation28], 0
      %s239 = sshll.u32 %s17, 4
      %s240 = int_to_ptr.hbm [resolvable:$true] %s239
      %s241 = sshll.u32 [#allocation27], 4
      %s242 = int_to_ptr.vmem [resolvable:$true] %s241
      %247 = dma.hbm_to_vmem [thread:$0]  %s240, 8192, %s242, [#allocation28], 64, 64, 4
    $region73: #{tpu_custom_call.1} parent=1 // pred_fallthru
      _
    // Predicated region
    $region74: #{tpu_custom_call.1} parent=1 // pred_check
      _
    $region75: #{tpu_custom_call.1} parent=1 // pred_check_branch
      %249 = sbr.rel (0) target = $region77
    $region76: #{tpu_custom_call.1} parent=1 // pred_region
      %251 = vsyncadd [#allocation28], 0
      %s252 = sshll.u32 %s18, 4
      %s253 = int_to_ptr.hbm [resolvable:$true] %s252
      %s254 = sshll.u32 [#allocation29], 4
      %s255 = int_to_ptr.vmem [resolvable:$true] %s254
      %260 = dma.hbm_to_vmem [thread:$0]  %s253, 32, %s255, [#allocation28], 16, 16, 1
    $region77: #{tpu_custom_call.1} parent=1 // pred_fallthru
      _
    // Predicated region
    $region78: #{tpu_custom_call.1} parent=1 // pred_check
      _
    $region79: #{tpu_custom_call.1} parent=1 // pred_check_branch
      %262 = sbr.rel (0) target = $region81
    $region80: #{tpu_custom_call.1} parent=1 // pred_region
      %264 = vsyncadd [#allocation31], 0
      %s265 = sshll.u32 %s19, 4
      %s266 = int_to_ptr.hbm [resolvable:$true] %s265
      %s267 = sshll.u32 [#allocation30], 4
      %s268 = int_to_ptr.vmem [resolvable:$true] %s267
      %273 = dma.hbm_to_vmem [thread:$0]  %s266, 32, %s268, [#allocation31], 16, 16, 1
    $region81: #{tpu_custom_call.1} parent=1 // pred_fallthru
      _
    // Predicated region
    $region82: #{tpu_custom_call.1} parent=1 // pred_check
      _
    $region83: #{tpu_custom_call.1} parent=1 // pred_check_branch
      %275 = sbr.rel (0) target = $region85
    $region84: #{tpu_custom_call.1} parent=1 // pred_region
      %277 = vsyncadd [#allocation31], 0
      %s278 = sshll.u32 %s20, 4
      %s279 = int_to_ptr.hbm [resolvable:$true] %s278
      %s280 = sshll.u32 [#allocation32], 4
      %s281 = int_to_ptr.vmem [resolvable:$true] %s280
      %286 = dma.hbm_to_vmem [thread:$0]  %s279, 32, %s281, [#allocation31], 16, 16, 1
    $region85: #{tpu_custom_call.1} parent=1 // pred_fallthru
      _
    // Predicated region
    $region86: #{tpu_custom_call.1} parent=1 // pred_check
      _
    $region87: #{tpu_custom_call.1} parent=1 // pred_check_branch
      %288 = sbr.rel (0) target = $region89
    $region88: #{tpu_custom_call.1} parent=1 // pred_region
      _
    $region89: #{tpu_custom_call.1} parent=1 // pred_fallthru
      _
    // Predicated region
    $region90: #{tpu_custom_call.1} parent=1 // pred_check
      _
    $region91: #{tpu_custom_call.1} parent=1 // pred_check_branch
      %290 = sbr.rel (0) target = $region93
    $region92: #{tpu_custom_call.1} parent=1 // pred_region
      _
    $region93: #{tpu_custom_call.1} parent=1 // pred_fallthru
      _
    // Predicated region
    $region94: #{tpu_custom_call.1} parent=1 // pred_check
      _
    $region95: #{tpu_custom_call.1} parent=1 // pred_check_branch
      %292 = sbr.rel (0) target = $region97
    $region96: #{tpu_custom_call.1} parent=1 // pred_region
      %294 = vsyncadd [#allocation34], 0
      %s295 = sshll.u32 %s23, 4
      %s296 = int_to_ptr.hbm [resolvable:$true] %s295
      %s297 = sshll.u32 [#allocation33], 4
      %s298 = int_to_ptr.vmem [resolvable:$true] %s297
      %303 = dma.hbm_to_vmem [thread:$0]  %s296, 256, %s298, [#allocation34], 64, 64, 4
    $region97: #{tpu_custom_call.1} parent=1 // pred_fallthru
      _
    // Predicated region
    $region98: #{tpu_custom_call.1} parent=1 // pred_check
      _
    $region99: #{tpu_custom_call.1} parent=1 // pred_check_branch
      %305 = sbr.rel (0) target = $region101
    $region100: #{tpu_custom_call.1} parent=1 // pred_region
      _
    $region101: #{tpu_custom_call.1} parent=1 // pred_fallthru
      _
    // Predicated region
    $region102: #{tpu_custom_call.1} parent=1 // pred_check
      _
    $region103: #{tpu_custom_call.1} parent=1 // pred_check_branch
      %307 = sbr.rel (0) target = $region105
    $region104: #{tpu_custom_call.1} parent=1 // pred_region
      %309 = dma.done [#allocation4], 384
    $region105: #{tpu_custom_call.1} parent=1 // pred_fallthru
      _
    // Predicated region
    $region106: #{tpu_custom_call.1} parent=1 // pred_check
      _
    $region107: #{tpu_custom_call.1} parent=1 // pred_check_branch
      %311 = sbr.rel (0) target = $region109
    $region108: #{tpu_custom_call.1} parent=1 // pred_region
      %313 = dma.done [#allocation7], 128
    $region109: #{tpu_custom_call.1} parent=1 // pred_fallthru
      _
    // Predicated region
    $region110: #{tpu_custom_call.1} parent=1 // pred_check
      _
    $region111: #{tpu_custom_call.1} parent=1 // pred_check_branch
      %315 = sbr.rel (0) target = $region113
    $region112: #{tpu_custom_call.1} parent=1 // pred_region
      %317 = dma.done [#allocation7], 2048
    $region113: #{tpu_custom_call.1} parent=1 // pred_fallthru
      _
    // Predicated region
    $region114: #{tpu_custom_call.1} parent=1 // pred_check
      _
    $region115: #{tpu_custom_call.1} parent=1 // pred_check_branch
      %319 = sbr.rel (0) target = $region117
    $region116: #{tpu_custom_call.1} parent=1 // pred_region
      %321 = dma.done [#allocation10], 16
    $region117: #{tpu_custom_call.1} parent=1 // pred_fallthru
      _
    // Predicated region
    $region118: #{tpu_custom_call.1} parent=1 // pred_check
      _
    $region119: #{tpu_custom_call.1} parent=1 // pred_check_branch
      %323 = sbr.rel (0) target = $region121
    $region120: #{tpu_custom_call.1} parent=1 // pred_region
      %325 = dma.done [#allocation10], 16
    $region121: #{tpu_custom_call.1} parent=1 // pred_fallthru
      _
    // Predicated region
    $region122: #{tpu_custom_call.1} parent=1 // pred_check
      _
    $region123: #{tpu_custom_call.1} parent=1 // pred_check_branch
      %327 = sbr.rel (0) target = $region125
    $region124: #{tpu_custom_call.1} parent=1 // pred_region
      %329 = dma.done [#allocation13], 1024
    $region125: #{tpu_custom_call.1} parent=1 // pred_fallthru
      _
    // Predicated region
    $region126: #{tpu_custom_call.1} parent=1 // pred_check
      _
    $region127: #{tpu_custom_call.1} parent=1 // pred_check_branch
      %331 = sbr.rel (0) target = $region129
    $region128: #{tpu_custom_call.1} parent=1 // pred_region
      %333 = dma.done [#allocation13], 1024
    $region129: #{tpu_custom_call.1} parent=1 // pred_fallthru
      _
    // Predicated region
    $region130: #{tpu_custom_call.1} parent=1 // pred_check
      _
    $region131: #{tpu_custom_call.1} parent=1 // pred_check_branch
      %335 = sbr.rel (0) target = $region133
    $region132: #{tpu_custom_call.1} parent=1 // pred_region
      %337 = dma.done [#allocation16], 6144
    $region133: #{tpu_custom_call.1} parent=1 // pred_fallthru
      _
    // Predicated region
    $region134: #{tpu_custom_call.1} parent=1 // pred_check
      _
    $region135: #{tpu_custom_call.1} parent=1 // pred_check_branch
      %339 = sbr.rel (0) target = $region137
    $region136: #{tpu_custom_call.1} parent=1 // pred_region
      %341 = dma.done [#allocation16], 96
    $region137: #{tpu_custom_call.1} parent=1 // pred_fallthru
      _
    // Predicated region
    $region138: #{tpu_custom_call.1} parent=1 // pred_check
      _
    $region139: #{tpu_custom_call.1} parent=1 // pred_check_branch
      %343 = sbr.rel (0) target = $region141
    $region140: #{tpu_custom_call.1} parent=1 // pred_region
      %345 = dma.done [#allocation19], 2048
    $region141: #{tpu_custom_call.1} parent=1 // pred_fallthru
      _
    // Predicated region
    $region142: #{tpu_custom_call.1} parent=1 // pred_check
      _
    $region143: #{tpu_custom_call.1} parent=1 // pred_check_branch
      %347 = sbr.rel (0) target = $region145
    $region144: #{tpu_custom_call.1} parent=1 // pred_region
      %349 = dma.done [#allocation19], 32
    $region145: #{tpu_custom_call.1} parent=1 // pred_fallthru
      _
    // Predicated region
    $region146: #{tpu_custom_call.1} parent=1 // pred_check
      _
    $region147: #{tpu_custom_call.1} parent=1 // pred_check_branch
      %351 = sbr.rel (0) target = $region149
    $region148: #{tpu_custom_call.1} parent=1 // pred_region
      %353 = dma.done [#allocation22], 32
    $region149: #{tpu_custom_call.1} parent=1 // pred_fallthru
      _
    // Predicated region
    $region150: #{tpu_custom_call.1} parent=1 // pred_check
      _
    $region151: #{tpu_custom_call.1} parent=1 // pred_check_branch
      %355 = sbr.rel (0) target = $region153
    $region152: #{tpu_custom_call.1} parent=1 // pred_region
      %357 = dma.done [#allocation22], 32
    $region153: #{tpu_custom_call.1} parent=1 // pred_fallthru
      _
    // Predicated region
    $region154: #{tpu_custom_call.1} parent=1 // pred_check
      _
    $region155: #{tpu_custom_call.1} parent=1 // pred_check_branch
      %359 = sbr.rel (0) target = $region157
    $region156: #{tpu_custom_call.1} parent=1 // pred_region
      %361 = dma.done [#allocation25], 8192
    $region157: #{tpu_custom_call.1} parent=1 // pred_fallthru
      _
    // Predicated region
    $region158: #{tpu_custom_call.1} parent=1 // pred_check
      _
    $region159: #{tpu_custom_call.1} parent=1 // pred_check_branch
      %363 = sbr.rel (0) target = $region161
    $region160: #{tpu_custom_call.1} parent=1 // pred_region
      %365 = dma.done [#allocation25], 128
    $region161: #{tpu_custom_call.1} parent=1 // pred_fallthru
      _
    // Predicated region
    $region162: #{tpu_custom_call.1} parent=1 // pred_check
      _
    $region163: #{tpu_custom_call.1} parent=1 // pred_check_branch
      %367 = sbr.rel (0) target = $region165
    $region164: #{tpu_custom_call.1} parent=1 // pred_region
      %369 = dma.done [#allocation28], 8192
    $region165: #{tpu_custom_call.1} parent=1 // pred_fallthru
      _
    // Predicated region
    $region166: #{tpu_custom_call.1} parent=1 // pred_check
      _
    $region167: #{tpu_custom_call.1} parent=1 // pred_check_branch
      %371 = sbr.rel (0) target = $region169
    $region168: #{tpu_custom_call.1} parent=1 // pred_region
      %373 = dma.done [#allocation28], 32
    $region169: #{tpu_custom_call.1} parent=1 // pred_fallthru
      _
    // Predicated region
    $region170: #{tpu_custom_call.1} parent=1 // pred_check
      _
    $region171: #{tpu_custom_call.1} parent=1 // pred_check_branch
      %375 = sbr.rel (0) target = $region173
    $region172: #{tpu_custom_call.1} parent=1 // pred_region
      %377 = dma.done [#allocation31], 32
    $region173: #{tpu_custom_call.1} parent=1 // pred_fallthru
      _
    // Predicated region
    $region174: #{tpu_custom_call.1} parent=1 // pred_check
      _
    $region175: #{tpu_custom_call.1} parent=1 // pred_check_branch
      %379 = sbr.rel (0) target = $region177
    $region176: #{tpu_custom_call.1} parent=1 // pred_region
      %381 = dma.done [#allocation31], 32
    $region177: #{tpu_custom_call.1} parent=1 // pred_fallthru
      _
    // Predicated region
    $region178: #{tpu_custom_call.1} parent=1 // pred_check
      _
    $region179: #{tpu_custom_call.1} parent=1 // pred_check_branch
      %383 = sbr.rel (0) target = $region181
    $region180: #{tpu_custom_call.1} parent=1 // pred_region
      %385 = dma.done [#allocation34], 256
    $region181: #{tpu_custom_call.1} parent=1 // pred_fallthru
      _
    %p387 = scmp.eq.s32.totalorder 0, 0
    // Predicated region
    $region182: #{tpu_custom_call.1} parent=1 // pred_check
      %p388 = pneg %p387
    $region183: #{tpu_custom_call.1} parent=1 // pred_check_branch
      %390 = sbr.rel (%p388) target = $region185
    $region184: #{tpu_custom_call.1} parent=1 // pred_region
      %vm391 = vcmask 23552
      %392 = vst.msk [vmem:[#allocation2] sm:$0xff] %vm391, 0.0
    $region185: #{tpu_custom_call.1} parent=1 // pred_fallthru
      _
    %v393 = vld [vmem:[#allocation3] sm:$0xff]
    %v394 = vunpack.c.l.bf16 %v393
    %v395 = vunpack.c.h.bf16 %v393
    %v396 = vadd.f32 %v394, %v395
    %397 = vadd.xlane.f32.xlu0 %v396
    %v398 = vpop.xlane.xlu0 %397
    %v399 = vld [vmem:[#allocation2] sm:$0xff]
    %v400 = vadd.f32 %v399, %v398
    %vm401 = vcmask 7168
    %402 = vst.msk [vmem:[#allocation2] sm:$0xff] %vm401, %v400
    %s403 = scalar_lea.vmem [#allocation3], 8
    %v404 = vld [vmem:[%s403] sm:$0xff]
    %v405 = vunpack.c.l.bf16 %v404
    %v406 = vunpack.c.h.bf16 %v404
    %v407 = vadd.f32 %v405, %v406
    %408 = vadd.xlane.f32.xlu0 %v407
    %v409 = vpop.xlane.xlu0 %408
    %v410 = vld [vmem:[#allocation2] sm:$0xff]
    %v411 = vadd.f32 %v410, %v409
    %vm412 = vcmask 15368
    %413 = vst.msk [vmem:[#allocation2] sm:$0xff] %vm412, %v411
    %s414 = scalar_lea.vmem [#allocation3], 16
    %v415 = vld [vmem:[%s414] sm:$0xff]
    %v416 = vunpack.c.l.bf16 %v415
    %v417 = vunpack.c.h.bf16 %v415
    %v418 = vadd.f32 %v416, %v417
    %419 = vadd.xlane.f32.xlu0 %v418
    %v420 = vpop.xlane.xlu0 %419
    %v421 = vld [vmem:[#allocation2] sm:$0xff]
    %v422 = vadd.f32 %v421, %v420
    %vm423 = vcmask 23568
    %424 = vst.msk [vmem:[#allocation2] sm:$0xff] %vm423, %v422
    // Predicated region
    $region186: #{tpu_custom_call.1} parent=1 // pred_check
      %p425 = pneg %p387
    $region187: #{tpu_custom_call.1} parent=1 // pred_check_branch
      %427 = sbr.rel (%p425) target = $region189
    $region188: #{tpu_custom_call.1} parent=1 // pred_region
      %v428 = vld [vmem:[#allocation2] sm:$0xff]
      %v429 = vmul.f32 %v428, 0.00390625
      %v430 = vld [vmem:[#allocation6] sm:$0xff]
      %v431 = vld [vmem:[%s2] sm:$0xf]
      %v432 = vpack.c.bf16 %v429, %v429
      %v434 = vperm.slane %v431, 0
      %v435 = vperm.slane %v431, 1
      %v436 = vperm.slane %v431, 2
      %v437 = vperm.slane %v431, 3
      %443 = vst [vmem:[#allocation1] ss:$4 sm:$0xff] %v430
      %v444 = vld.sshfl [vmem:[#allocation1] sm:$0xff pattern:$0x73625140]
      %v445 = vld.sshfl [vmem:[#allocation1 + $0x8] sm:$0xff pattern:$0x73625140]
      %v446 = vld.sshfl [vmem:[#allocation1 + $0x10] sm:$0xff pattern:$0x73625140]
      %v447 = vld.sshfl [vmem:[#allocation1 + $0x18] sm:$0xff pattern:$0x73625140]
      %vm448 = vcmask 23552
      %v450 = vsel %vm448, %v432, 0
      %vm452 = vcmask 1040384
      %vm453 = vcmask 1041408
      %v454 = vsel %vm452, 4294967295, 65535
      %v455 = vsel %vm453, %v454, 0
      %v456 = vand.u32 %v444, %v455
      %v458 = vand.u32 %v445, %v455
      %v460 = vand.u32 %v446, %v455
      %v462 = vand.u32 %v447, %v455
      %464 = vmatpush.bf16.msra.mxu0 0
      %465 = vmatpush.bf16.msra.mxu0 0
      %466 = vmatpush.bf16.msra.mxu0 0
      %467 = vmatpush.bf16.msra.mxu0 0
      %468 = vmatpush.bf16.msra.mxu0 0
      %469 = vmatpush.bf16.msra.mxu0 0
      %470 = vmatpush.bf16.msra.mxu0 0
      %471 = vmatpush.bf16.msra.mxu0 %v456
      %472 = vmatmul.bf16.gmra.mxu0 %v450
      %v473 = vpop.f32.mrf.mxu0
      %v474 = vadd.f32 %v434, %v473
      %v475 = vpop.f32.mrf.mxu0
      %476 = vdwg.mxu0
      %477 = vmatpush.bf16.msra.mxu0 0
      %478 = vmatpush.bf16.msra.mxu0 0
      %479 = vmatpush.bf16.msra.mxu0 0
      %480 = vmatpush.bf16.msra.mxu0 0
      %481 = vmatpush.bf16.msra.mxu0 0
      %482 = vmatpush.bf16.msra.mxu0 0
      %483 = vmatpush.bf16.msra.mxu0 0
      %484 = vmatpush.bf16.msra.mxu0 %v458
      %485 = vmatmul.bf16.gmra.mxu0 %v450
      %v486 = vpop.f32.mrf.mxu0
      %v487 = vadd.f32 %v435, %v486
      %v488 = vpop.f32.mrf.mxu0
      %489 = vdwg.mxu0
      %490 = vmatpush.bf16.msra.mxu0 0
      %491 = vmatpush.bf16.msra.mxu0 0
      %492 = vmatpush.bf16.msra.mxu0 0
      %493 = vmatpush.bf16.msra.mxu0 0
      %494 = vmatpush.bf16.msra.mxu0 0
      %495 = vmatpush.bf16.msra.mxu0 0
      %496 = vmatpush.bf16.msra.mxu0 0
      %497 = vmatpush.bf16.msra.mxu0 %v460
      %498 = vmatmul.bf16.gmra.mxu0 %v450
      %v499 = vpop.f32.mrf.mxu0
      %v500 = vadd.f32 %v436, %v499
      %v501 = vpop.f32.mrf.mxu0
      %502 = vdwg.mxu0
      %503 = vmatpush.bf16.msra.mxu0 0
      %504 = vmatpush.bf16.msra.mxu0 0
      %505 = vmatpush.bf16.msra.mxu0 0
      %506 = vmatpush.bf16.msra.mxu0 0
      %507 = vmatpush.bf16.msra.mxu0 0
      %508 = vmatpush.bf16.msra.mxu0 0
      %509 = vmatpush.bf16.msra.mxu0 0
      %510 = vmatpush.bf16.msra.mxu0 %v462
      %511 = vmatmul.bf16.gmra.mxu0 %v450
      %v512 = vpop.f32.mrf.mxu0
      %v513 = vadd.f32 %v437, %v512
      %v514 = vpop.f32.mrf.mxu0
      %515 = vdwg.mxu0
      %v516 = vmax.f32 %v474, 0.0
      %v517 = vmax.f32 %v487, 0.0
      %v518 = vmax.f32 %v500, 0.0
      %v519 = vmax.f32 %v513, 0.0
      %v520 = vld [vmem:[#allocation8] sm:$0xf]
      %v521 = vld [vmem:[#allocation8 + $0x4] sm:$0xf]
      %v522 = vld [vmem:[#allocation8 + $0x8] sm:$0xf]
      %v523 = vld [vmem:[#allocation8 + $0xc] sm:$0xf]
      %v524 = vld [vmem:[#allocation8 + $0x10] sm:$0xf]
      %v525 = vld [vmem:[#allocation8 + $0x14] sm:$0xf]
      %v526 = vld [vmem:[#allocation8 + $0x18] sm:$0xf]
      %v527 = vld [vmem:[#allocation8 + $0x1c] sm:$0xf]
      %v528 = vld [vmem:[#allocation8 + $0x20] sm:$0xf]
      %v529 = vld [vmem:[#allocation8 + $0x24] sm:$0xf]
      %v530 = vld [vmem:[#allocation8 + $0x28] sm:$0xf]
      %v531 = vld [vmem:[#allocation8 + $0x2c] sm:$0xf]
      %v532 = vld [vmem:[#allocation8 + $0x30] sm:$0xf]
      %v533 = vld [vmem:[#allocation8 + $0x34] sm:$0xf]
      %v534 = vld [vmem:[#allocation8 + $0x38] sm:$0xf]
      %v535 = vld [vmem:[#allocation8 + $0x3c] sm:$0xf]
      %v536 = vld [vmem:[#allocation8 + $0x40] sm:$0xf]
      %v537 = vld [vmem:[#allocation8 + $0x44] sm:$0xf]
      %v538 = vld [vmem:[#allocation8 + $0x48] sm:$0xf]
      %v539 = vld [vmem:[#allocation8 + $0x4c] sm:$0xf]
      %v540 = vld [vmem:[#allocation8 + $0x50] sm:$0xf]
      %v541 = vld [vmem:[#allocation8 + $0x54] sm:$0xf]
      %v542 = vld [vmem:[#allocation8 + $0x58] sm:$0xf]
      %v543 = vld [vmem:[#allocation8 + $0x5c] sm:$0xf]
      %v544 = vld [vmem:[#allocation8 + $0x60] sm:$0xf]
      %v545 = vld [vmem:[#allocation8 + $0x64] sm:$0xf]
      %v546 = vld [vmem:[#allocation8 + $0x68] sm:$0xf]
      %v547 = vld [vmem:[#allocation8 + $0x6c] sm:$0xf]
      %v548 = vld [vmem:[#allocation8 + $0x70] sm:$0xf]
      %v549 = vld [vmem:[#allocation8 + $0x74] sm:$0xf]
      %v550 = vld [vmem:[#allocation8 + $0x78] sm:$0xf]
      %v551 = vld [vmem:[#allocation8 + $0x7c] sm:$0xf]
      %v552 = vld [vmem:[#allocation9] sm:$0x1]
      %v553 = vpack.c.bf16 %v516, %v516
      %v554 = vpack.c.bf16 %v517, %v517
      %v556 = vperm.slane %v552, 0
      %v590 = vunpack.c.l.b16 %v520
      %v591 = vunpack.c.l.b16 %v521
      %v592 = vunpack.c.l.b16 %v522
      %v593 = vunpack.c.l.b16 %v523
      %v594 = vunpack.c.l.b16 %v524
      %v595 = vunpack.c.l.b16 %v525
      %v596 = vunpack.c.l.b16 %v526
      %v597 = vunpack.c.l.b16 %v527
      %v598 = vunpack.c.l.b16 %v528
      %v599 = vunpack.c.l.b16 %v529
      %v600 = vunpack.c.l.b16 %v530
      %v601 = vunpack.c.l.b16 %v531
      %v602 = vunpack.c.l.b16 %v532
      %v603 = vunpack.c.l.b16 %v533
      %v604 = vunpack.c.l.b16 %v534
      %v605 = vunpack.c.l.b16 %v535
      %v606 = vunpack.c.l.b16 %v536
      %v607 = vunpack.c.l.b16 %v537
      %v608 = vunpack.c.l.b16 %v538
      %v609 = vunpack.c.l.b16 %v539
      %v610 = vunpack.c.l.b16 %v540
      %v611 = vunpack.c.l.b16 %v541
      %v612 = vunpack.c.l.b16 %v542
      %v613 = vunpack.c.l.b16 %v543
      %v614 = vunpack.c.l.b16 %v544
      %v615 = vunpack.c.l.b16 %v545
      %v616 = vunpack.c.l.b16 %v546
      %v617 = vunpack.c.l.b16 %v547
      %v618 = vunpack.c.l.b16 %v548
      %v619 = vunpack.c.l.b16 %v549
      %v620 = vunpack.c.l.b16 %v550
      %v621 = vunpack.c.l.b16 %v551
      %v622 = vpack.c.b16 %v591, %v590
      %v623 = vpack.c.b16 %v593, %v592
      %v624 = vpack.c.b16 %v595, %v594
      %v625 = vpack.c.b16 %v597, %v596
      %v626 = vpack.c.b16 %v599, %v598
      %v627 = vpack.c.b16 %v601, %v600
      %v628 = vpack.c.b16 %v603, %v602
      %v629 = vpack.c.b16 %v605, %v604
      %v630 = vpack.c.b16 %v607, %v606
      %v631 = vpack.c.b16 %v609, %v608
      %v632 = vpack.c.b16 %v611, %v610
      %v633 = vpack.c.b16 %v613, %v612
      %v634 = vpack.c.b16 %v615, %v614
      %v635 = vpack.c.b16 %v617, %v616
      %v636 = vpack.c.b16 %v619, %v618
      %v637 = vpack.c.b16 %v621, %v620
      %654 = vmatpush.bf16.msra.mxu0 %v629
      %655 = vmatpush.bf16.msra.mxu0 %v628
      %656 = vmatpush.bf16.msra.mxu0 %v627
      %657 = vmatpush.bf16.msra.mxu0 %v626
      %658 = vmatpush.bf16.msra.mxu0 %v625
      %659 = vmatpush.bf16.msra.mxu0 %v624
      %660 = vmatpush.bf16.msra.mxu0 %v623
      %661 = vmatpush.bf16.msra.mxu0 %v622
      %662 = vmatmul.bf16.gmra.mxu0 %v553
      %v663 = vpop.f32.mrf.mxu0
      %v664 = vadd.f32 %v556, %v663
      %v665 = vpop.f32.mrf.mxu0
      %666 = vdwg.mxu0
      %667 = vmatpush.bf16.msra.mxu0 %v637
      %668 = vmatpush.bf16.msra.mxu0 %v636
      %669 = vmatpush.bf16.msra.mxu0 %v635
      %670 = vmatpush.bf16.msra.mxu0 %v634
      %671 = vmatpush.bf16.msra.mxu0 %v633
      %672 = vmatpush.bf16.msra.mxu0 %v632
      %673 = vmatpush.bf16.msra.mxu0 %v631
      %674 = vmatpush.bf16.msra.mxu0 %v630
      %675 = vmatmul.bf16.gmra.mxu0 %v554
      %v676 = vpop.f32.mrf.mxu0
      %v677 = vadd.f32 %v664, %v676
      %v678 = vpop.f32.mrf.mxu0
      %679 = vdwg.mxu0
      %v680 = vld [vmem:[%s5] sm:$0xf]
      %v681 = vld [vmem:[%s5 + $0x4] sm:$0xf]
      %v682 = vld [vmem:[%s5 + $0x8] sm:$0xf]
      %v683 = vld [vmem:[%s5 + $0xc] sm:$0xf]
      %v684 = vld [vmem:[%s5 + $0x10] sm:$0xf]
      %v685 = vld [vmem:[%s5 + $0x14] sm:$0xf]
      %v686 = vld [vmem:[%s5 + $0x18] sm:$0xf]
      %v687 = vld [vmem:[%s5 + $0x1c] sm:$0xf]
      %v688 = vld [vmem:[%s5 + $0x20] sm:$0xf]
      %v689 = vld [vmem:[%s5 + $0x24] sm:$0xf]
      %v690 = vld [vmem:[%s5 + $0x28] sm:$0xf]
      %v691 = vld [vmem:[%s5 + $0x2c] sm:$0xf]
      %v692 = vld [vmem:[%s5 + $0x30] sm:$0xf]
      %v693 = vld [vmem:[%s5 + $0x34] sm:$0xf]
      %v694 = vld [vmem:[%s5 + $0x38] sm:$0xf]
      %v695 = vld [vmem:[%s5 + $0x3c] sm:$0xf]
      %v696 = vld [vmem:[%s5 + $0x40] sm:$0xf]
      %v697 = vld [vmem:[%s5 + $0x44] sm:$0xf]
      %v698 = vld [vmem:[%s5 + $0x48] sm:$0xf]
      %v699 = vld [vmem:[%s5 + $0x4c] sm:$0xf]
      %v700 = vld [vmem:[#allocation11] sm:$0x1]
      %v701 = vpack.c.bf16 %v518, %v518
      %v702 = vpack.c.bf16 %v519, %v519
      %v704 = vperm.slane %v700, 0
      %v726 = vunpack.c.l.b16 %v680
      %v727 = vunpack.c.l.b16 %v681
      %v728 = vunpack.c.l.b16 %v682
      %v729 = vunpack.c.l.b16 %v683
      %v730 = vunpack.c.l.b16 %v684
      %v731 = vunpack.c.l.b16 %v685
      %v732 = vunpack.c.l.b16 %v686
      %v733 = vunpack.c.l.b16 %v687
      %v734 = vunpack.c.l.b16 %v688
      %v735 = vunpack.c.l.b16 %v689
      %v736 = vunpack.c.l.b16 %v690
      %v737 = vunpack.c.l.b16 %v691
      %v738 = vunpack.c.l.b16 %v692
      %v739 = vunpack.c.l.b16 %v693
      %v740 = vunpack.c.l.b16 %v694
      %v741 = vunpack.c.l.b16 %v695
      %v742 = vunpack.c.l.b16 %v696
      %v743 = vunpack.c.l.b16 %v697
      %v744 = vunpack.c.l.b16 %v698
      %v745 = vunpack.c.l.b16 %v699
      %v746 = vpack.c.b16 %v727, %v726
      %v747 = vpack.c.b16 %v729, %v728
      %v748 = vpack.c.b16 %v731, %v730
      %v749 = vpack.c.b16 %v733, %v732
      %v750 = vpack.c.b16 %v735, %v734
      %v751 = vpack.c.b16 %v737, %v736
      %v752 = vpack.c.b16 %v739, %v738
      %v753 = vpack.c.b16 %v741, %v740
      %v754 = vpack.c.b16 %v743, %v742
      %v755 = vpack.c.b16 %v745, %v744
      %vm766 = vcmask 261120
      %v768 = vsel %vm766, %v702, 0
      %770 = vmatpush.bf16.msra.mxu0 %v753
      %771 = vmatpush.bf16.msra.mxu0 %v752
      %772 = vmatpush.bf16.msra.mxu0 %v751
      %773 = vmatpush.bf16.msra.mxu0 %v750
      %774 = vmatpush.bf16.msra.mxu0 %v749
      %775 = vmatpush.bf16.msra.mxu0 %v748
      %776 = vmatpush.bf16.msra.mxu0 %v747
      %777 = vmatpush.bf16.msra.mxu0 %v746
      %778 = vmatmul.bf16.gmra.mxu0 %v701
      %v779 = vpop.f32.mrf.mxu0
      %v780 = vadd.f32 %v704, %v779
      %v781 = vpop.f32.mrf.mxu0
      %782 = vdwg.mxu0
      %783 = vmatpush.bf16.msra.mxu0 0
      %784 = vmatpush.bf16.msra.mxu0 0
      %785 = vmatpush.bf16.msra.mxu0 0
      %786 = vmatpush.bf16.msra.mxu0 0
      %787 = vmatpush.bf16.msra.mxu0 0
      %788 = vmatpush.bf16.msra.mxu0 0
      %789 = vmatpush.bf16.msra.mxu0 %v755
      %790 = vmatpush.bf16.msra.mxu0 %v754
      %791 = vmatmul.bf16.gmra.mxu0 %v768
      %v792 = vpop.f32.mrf.mxu0
      %v793 = vadd.f32 %v780, %v792
      %v794 = vpop.f32.mrf.mxu0
      %795 = vdwg.mxu0
      %v796 = vld [vmem:[#allocation12] sm:$0xf]
      %v797 = vld [vmem:[#allocation12 + $0x4] sm:$0xf]
      %v798 = vld [vmem:[#allocation12 + $0x8] sm:$0xf]
      %v799 = vld [vmem:[#allocation12 + $0xc] sm:$0xf]
      %v800 = vld [vmem:[#allocation12 + $0x10] sm:$0xf]
      %v801 = vld [vmem:[#allocation12 + $0x14] sm:$0xf]
      %v802 = vld [vmem:[#allocation12 + $0x18] sm:$0xf]
      %v803 = vld [vmem:[#allocation12 + $0x1c] sm:$0xf]
      %v804 = vld [vmem:[#allocation12 + $0x20] sm:$0xf]
      %v805 = vld [vmem:[#allocation12 + $0x24] sm:$0xf]
      %v806 = vld [vmem:[#allocation12 + $0x28] sm:$0xf]
      %v807 = vld [vmem:[#allocation12 + $0x2c] sm:$0xf]
      %v808 = vld [vmem:[#allocation12 + $0x30] sm:$0xf]
      %v809 = vld [vmem:[#allocation12 + $0x34] sm:$0xf]
      %v810 = vld [vmem:[#allocation12 + $0x38] sm:$0xf]
      %v811 = vld [vmem:[#allocation12 + $0x3c] sm:$0xf]
      %v812 = vld [vmem:[#allocation14] sm:$0xf]
      %v813 = vld [vmem:[#allocation14 + $0x4] sm:$0xf]
      %v814 = vld [vmem:[#allocation14 + $0x8] sm:$0xf]
      %v815 = vld [vmem:[#allocation14 + $0xc] sm:$0xf]
      %v816 = vld [vmem:[#allocation14 + $0x10] sm:$0xf]
      %v817 = vld [vmem:[#allocation14 + $0x14] sm:$0xf]
      %v818 = vld [vmem:[#allocation14 + $0x18] sm:$0xf]
      %v819 = vld [vmem:[#allocation14 + $0x1c] sm:$0xf]
      %v820 = vld [vmem:[#allocation14 + $0x20] sm:$0xf]
      %v821 = vld [vmem:[#allocation14 + $0x24] sm:$0xf]
      %v822 = vld [vmem:[#allocation14 + $0x28] sm:$0xf]
      %v823 = vld [vmem:[#allocation14 + $0x2c] sm:$0xf]
      %v824 = vld [vmem:[#allocation14 + $0x30] sm:$0xf]
      %v825 = vld [vmem:[#allocation14 + $0x34] sm:$0xf]
      %v826 = vld [vmem:[#allocation14 + $0x38] sm:$0xf]
      %v827 = vld [vmem:[#allocation14 + $0x3c] sm:$0xf]
      %v828 = vld [vmem:[#allocation15] sm:$0xff]
      %v829 = vld [vmem:[#allocation15 + $0x8] sm:$0xf]
      %v830 = vld [vmem:[#allocation15 + $0xc] sm:$0xff]
      %v831 = vld [vmem:[#allocation15 + $0x14] sm:$0xf]
      %v832 = vld [vmem:[#allocation15 + $0x18] sm:$0xff]
      %v833 = vld [vmem:[#allocation15 + $0x20] sm:$0xf]
      %v834 = vld [vmem:[#allocation15 + $0x24] sm:$0xff]
      %v835 = vld [vmem:[#allocation15 + $0x2c] sm:$0xf]
      %v836 = vld [vmem:[#allocation15 + $0x30] sm:$0xff]
      %v837 = vld [vmem:[#allocation15 + $0x38] sm:$0xf]
      %v838 = vld [vmem:[#allocation15 + $0x3c] sm:$0xff]
      %v839 = vld [vmem:[#allocation15 + $0x44] sm:$0xf]
      %v840 = vld [vmem:[#allocation15 + $0x48] sm:$0xff]
      %v841 = vld [vmem:[#allocation15 + $0x50] sm:$0xf]
      %v842 = vld [vmem:[#allocation15 + $0x54] sm:$0xff]
      %v843 = vld [vmem:[#allocation15 + $0x5c] sm:$0xf]
      %v844 = vld [vmem:[#allocation15 + $0x60] sm:$0xff]
      %v845 = vld [vmem:[#allocation15 + $0x68] sm:$0xf]
      %v846 = vld [vmem:[#allocation15 + $0x6c] sm:$0xff]
      %v847 = vld [vmem:[#allocation15 + $0x74] sm:$0xf]
      %v848 = vld [vmem:[#allocation15 + $0x78] sm:$0xff]
      %v849 = vld [vmem:[#allocation15 + $0x80] sm:$0xf]
      %v850 = vld [vmem:[#allocation15 + $0x84] sm:$0xff]
      %v851 = vld [vmem:[#allocation15 + $0x8c] sm:$0xf]
      %v852 = vld [vmem:[#allocation15 + $0x90] sm:$0xff]
      %v853 = vld [vmem:[#allocation15 + $0x98] sm:$0xf]
      %v854 = vld [vmem:[#allocation15 + $0x9c] sm:$0xff]
      %v855 = vld [vmem:[#allocation15 + $0xa4] sm:$0xf]
      %v856 = vld [vmem:[#allocation15 + $0xa8] sm:$0xff]
      %v857 = vld [vmem:[#allocation15 + $0xb0] sm:$0xf]
      %v858 = vld [vmem:[#allocation15 + $0xb4] sm:$0xff]
      %v859 = vld [vmem:[#allocation15 + $0xbc] sm:$0xf]
      %v860 = vld [vmem:[#allocation17] sm:$0x7]
      %v861 = vpack.c.bf16 %v793, %v677
      %v863 = vperm.slane %v860, 0
      %v864 = vperm.slane %v860, 1
      %v865 = vperm.slane %v860, 2
      %v901 = vunpack.c.l.b16 %v828
      %v902 = vunpack.c.h.b16 %v828
      %v903 = vunpack.c.l.b16 %v829
      %v904 = vunpack.c.l.b16 %v830
      %v905 = vunpack.c.h.b16 %v830
      %v906 = vunpack.c.l.b16 %v831
      %v907 = vunpack.c.l.b16 %v832
      %v908 = vunpack.c.h.b16 %v832
      %v909 = vunpack.c.l.b16 %v833
      %v910 = vunpack.c.l.b16 %v834
      %v911 = vunpack.c.h.b16 %v834
      %v912 = vunpack.c.l.b16 %v835
      %v913 = vunpack.c.l.b16 %v836
      %v914 = vunpack.c.h.b16 %v836
      %v915 = vunpack.c.l.b16 %v837
      %v916 = vunpack.c.l.b16 %v838
      %v917 = vunpack.c.h.b16 %v838
      %v918 = vunpack.c.l.b16 %v839
      %v919 = vunpack.c.l.b16 %v840
      %v920 = vunpack.c.h.b16 %v840
      %v921 = vunpack.c.l.b16 %v841
      %v922 = vunpack.c.l.b16 %v842
      %v923 = vunpack.c.h.b16 %v842
      %v924 = vunpack.c.l.b16 %v843
      %v925 = vunpack.c.l.b16 %v844
      %v926 = vunpack.c.h.b16 %v844
      %v927 = vunpack.c.l.b16 %v845
      %v928 = vunpack.c.l.b16 %v846
      %v929 = vunpack.c.h.b16 %v846
      %v930 = vunpack.c.l.b16 %v847
      %v931 = vunpack.c.l.b16 %v848
      %v932 = vunpack.c.h.b16 %v848
      %v933 = vunpack.c.l.b16 %v849
      %v934 = vunpack.c.l.b16 %v850
      %v935 = vunpack.c.h.b16 %v850
      %v936 = vunpack.c.l.b16 %v851
      %v937 = vunpack.c.l.b16 %v852
      %v938 = vunpack.c.h.b16 %v852
      %v939 = vunpack.c.l.b16 %v853
      %v940 = vunpack.c.l.b16 %v854
      %v941 = vunpack.c.h.b16 %v854
      %v942 = vunpack.c.l.b16 %v855
      %v943 = vunpack.c.l.b16 %v856
      %v944 = vunpack.c.h.b16 %v856
      %v945 = vunpack.c.l.b16 %v857
      %v946 = vunpack.c.l.b16 %v858
      %v947 = vunpack.c.h.b16 %v858
      %v948 = vunpack.c.l.b16 %v859
      %v949 = vpack.c.b16 %v904, %v901
      %v950 = vpack.c.b16 %v905, %v902
      %v951 = vpack.c.b16 %v906, %v903
      %v952 = vpack.c.b16 %v910, %v907
      %v953 = vpack.c.b16 %v911, %v908
      %v954 = vpack.c.b16 %v912, %v909
      %v955 = vpack.c.b16 %v916, %v913
      %v956 = vpack.c.b16 %v917, %v914
      %v957 = vpack.c.b16 %v918, %v915
      %v958 = vpack.c.b16 %v922, %v919
      %v959 = vpack.c.b16 %v923, %v920
      %v960 = vpack.c.b16 %v924, %v921
      %v961 = vpack.c.b16 %v928, %v925
      %v962 = vpack.c.b16 %v929, %v926
      %v963 = vpack.c.b16 %v930, %v927
      %v964 = vpack.c.b16 %v934, %v931
      %v965 = vpack.c.b16 %v935, %v932
      %v966 = vpack.c.b16 %v936, %v933
      %v967 = vpack.c.b16 %v940, %v937
      %v968 = vpack.c.b16 %v941, %v938
      %v969 = vpack.c.b16 %v942, %v939
      %v970 = vpack.c.b16 %v946, %v943
      %v971 = vpack.c.b16 %v947, %v944
      %v972 = vpack.c.b16 %v948, %v945
      %997 = vmatpush.bf16.msra.mxu0 %v970
      %998 = vmatpush.bf16.msra.mxu0 %v967
      %999 = vmatpush.bf16.msra.mxu0 %v964
      %1000 = vmatpush.bf16.msra.mxu0 %v961
      %1001 = vmatpush.bf16.msra.mxu0 %v958
      %1002 = vmatpush.bf16.msra.mxu0 %v955
      %1003 = vmatpush.bf16.msra.mxu0 %v952
      %1004 = vmatpush.bf16.msra.mxu0 %v949
      %1005 = vmatmul.bf16.gmra.mxu0 %v861
      %v1006 = vpop.f32.mrf.mxu0
      %v1007 = vadd.f32 %v863, %v1006
      %v1008 = vpop.f32.mrf.mxu0
      %v1009 = vadd.f32 %v863, %v1008
      %1010 = vdwg.mxu0
      %1011 = vmatpush.bf16.msra.mxu0 %v971
      %1012 = vmatpush.bf16.msra.mxu0 %v968
      %1013 = vmatpush.bf16.msra.mxu0 %v965
      %1014 = vmatpush.bf16.msra.mxu0 %v962
      %1015 = vmatpush.bf16.msra.mxu0 %v959
      %1016 = vmatpush.bf16.msra.mxu0 %v956
      %1017 = vmatpush.bf16.msra.mxu0 %v953
      %1018 = vmatpush.bf16.msra.mxu0 %v950
      %1019 = vmatmul.bf16.gmra.mxu0 %v861
      %v1020 = vpop.f32.mrf.mxu0
      %v1021 = vadd.f32 %v864, %v1020
      %v1022 = vpop.f32.mrf.mxu0
      %v1023 = vadd.f32 %v864, %v1022
      %1024 = vdwg.mxu0
      %1025 = vmatpush.bf16.msra.mxu0 %v972
      %1026 = vmatpush.bf16.msra.mxu0 %v969
      %1027 = vmatpush.bf16.msra.mxu0 %v966
      %1028 = vmatpush.bf16.msra.mxu0 %v963
      %1029 = vmatpush.bf16.msra.mxu0 %v960
      %1030 = vmatpush.bf16.msra.mxu0 %v957
      %1031 = vmatpush.bf16.msra.mxu0 %v954
      %1032 = vmatpush.bf16.msra.mxu0 %v951
      %1033 = vmatmul.bf16.gmra.mxu0 %v861
      %v1034 = vpop.f32.mrf.mxu0
      %v1035 = vadd.f32 %v865, %v1034
      %v1036 = vpop.f32.mrf.mxu0
      %v1037 = vadd.f32 %v865, %v1036
      %1038 = vdwg.mxu0
      %v1039 = vmul.f32 %v1007, %v1021
      %v1040 = vpack.c.bf16 %v1039, %v1039
      %v1057 = vunpack.c.l.b16 %v796
      %v1058 = vunpack.c.l.b16 %v797
      %v1059 = vunpack.c.l.b16 %v798
      %v1060 = vunpack.c.l.b16 %v799
      %v1061 = vunpack.c.l.b16 %v800
      %v1062 = vunpack.c.l.b16 %v801
      %v1063 = vunpack.c.l.b16 %v802
      %v1064 = vunpack.c.l.b16 %v803
      %v1065 = vunpack.c.l.b16 %v804
      %v1066 = vunpack.c.l.b16 %v805
      %v1067 = vunpack.c.l.b16 %v806
      %v1068 = vunpack.c.l.b16 %v807
      %v1069 = vunpack.c.l.b16 %v808
      %v1070 = vunpack.c.l.b16 %v809
      %v1071 = vunpack.c.l.b16 %v810
      %v1072 = vunpack.c.l.b16 %v811
      %v1073 = vpack.c.b16 %v1058, %v1057
      %v1074 = vpack.c.b16 %v1060, %v1059
      %v1075 = vpack.c.b16 %v1062, %v1061
      %v1076 = vpack.c.b16 %v1064, %v1063
      %v1077 = vpack.c.b16 %v1066, %v1065
      %v1078 = vpack.c.b16 %v1068, %v1067
      %v1079 = vpack.c.b16 %v1070, %v1069
      %v1080 = vpack.c.b16 %v1072, %v1071
      %1089 = vmatpush.bf16.msra.mxu0 %v1080
      %1090 = vmatpush.bf16.msra.mxu0 %v1079
      %1091 = vmatpush.bf16.msra.mxu0 %v1078
      %1092 = vmatpush.bf16.msra.mxu0 %v1077
      %1093 = vmatpush.bf16.msra.mxu0 %v1076
      %1094 = vmatpush.bf16.msra.mxu0 %v1075
      %1095 = vmatpush.bf16.msra.mxu0 %v1074
      %1096 = vmatpush.bf16.msra.mxu0 %v1073
      %1097 = vmatmul.bf16.gmra.mxu0 %v1040
      %v1098 = vpop.f32.mrf.mxu0
      %v1099 = vadd.f32 0.0, %v1098
      %v1100 = vpop.f32.mrf.mxu0
      %1101 = vdwg.mxu0
      %v1102 = vmul.f32 %v1099, 0.25
      %v1103 = vmul.f32 %v1007, %v1023
      %v1104 = vpack.c.bf16 %v1103, %v1103
      %1105 = vmatpush.bf16.msra.mxu0 %v1080
      %1106 = vmatpush.bf16.msra.mxu0 %v1079
      %1107 = vmatpush.bf16.msra.mxu0 %v1078
      %1108 = vmatpush.bf16.msra.mxu0 %v1077
      %1109 = vmatpush.bf16.msra.mxu0 %v1076
      %1110 = vmatpush.bf16.msra.mxu0 %v1075
      %1111 = vmatpush.bf16.msra.mxu0 %v1074
      %1112 = vmatpush.bf16.msra.mxu0 %v1073
      %1113 = vmatmul.bf16.gmra.mxu0 %v1104
      %v1114 = vpop.f32.mrf.mxu0
      %v1115 = vadd.f32 0.0, %v1114
      %v1116 = vpop.f32.mrf.mxu0
      %1117 = vdwg.mxu0
      %v1118 = vmul.f32 %v1115, 0.25
      %v1119 = vmul.f32 %v1009, %v1021
      %v1120 = vpack.c.bf16 %v1119, %v1119
      %1121 = vmatpush.bf16.msra.mxu0 %v1080
      %1122 = vmatpush.bf16.msra.mxu0 %v1079
      %1123 = vmatpush.bf16.msra.mxu0 %v1078
      %1124 = vmatpush.bf16.msra.mxu0 %v1077
      %1125 = vmatpush.bf16.msra.mxu0 %v1076
      %1126 = vmatpush.bf16.msra.mxu0 %v1075
      %1127 = vmatpush.bf16.msra.mxu0 %v1074
      %1128 = vmatpush.bf16.msra.mxu0 %v1073
      %1129 = vmatmul.bf16.gmra.mxu0 %v1120
      %v1130 = vpop.f32.mrf.mxu0
      %v1131 = vadd.f32 0.0, %v1130
      %v1132 = vpop.f32.mrf.mxu0
      %1133 = vdwg.mxu0
      %v1134 = vmul.f32 %v1131, 0.25
      %v1135 = vmul.f32 %v1009, %v1023
      %v1136 = vpack.c.bf16 %v1135, %v1135
      %1137 = vmatpush.bf16.msra.mxu0 %v1080
      %1138 = vmatpush.bf16.msra.mxu0 %v1079
      %1139 = vmatpush.bf16.msra.mxu0 %v1078
      %1140 = vmatpush.bf16.msra.mxu0 %v1077
      %1141 = vmatpush.bf16.msra.mxu0 %v1076
      %1142 = vmatpush.bf16.msra.mxu0 %v1075
      %1143 = vmatpush.bf16.msra.mxu0 %v1074
      %1144 = vmatpush.bf16.msra.mxu0 %v1073
      %1145 = vmatmul.bf16.gmra.mxu0 %v1136
      %v1146 = vpop.f32.mrf.mxu0
      %v1147 = vadd.f32 0.0, %v1146
      %v1148 = vpop.f32.mrf.mxu0
      %1149 = vdwg.mxu0
      %v1150 = vmul.f32 %v1147, 0.25
      %v1151 = vmax.f32 %v1102, %v1118
      %v1152 = vsub.f32 %v1102, %v1151
      %v1153 = vmul.f32 %v1152, 1.442695
      %v1154 = vpow.pop %v1153
      %v1155 = vsub.f32 %v1118, %v1151
      %v1156 = vmul.f32 %v1155, 1.442695
      %v1157 = vpow.pop %v1156
      %v1158 = vadd.f32 %v1154, %v1157
      %v1159 = vrcp.pop %v1158
      %v1160 = vmul.f32 %v1154, %v1159
      %v1161 = vmul.f32 %v1157, %v1159
      %v1162 = vmax.f32 %v1134, %v1150
      %v1163 = vsub.f32 %v1134, %v1162
      %v1164 = vmul.f32 %v1163, 1.442695
      %v1165 = vpow.pop %v1164
      %v1166 = vsub.f32 %v1150, %v1162
      %v1167 = vmul.f32 %v1166, 1.442695
      %v1168 = vpow.pop %v1167
      %v1169 = vadd.f32 %v1165, %v1168
      %v1170 = vrcp.pop %v1169
      %v1171 = vmul.f32 %v1165, %v1170
      %v1172 = vmul.f32 %v1168, %v1170
      %v1173 = vpack.c.bf16 %v1160, %v1160
      %v1190 = vunpack.c.l.b16 %v812
      %v1191 = vunpack.c.l.b16 %v813
      %v1192 = vunpack.c.l.b16 %v814
      %v1193 = vunpack.c.l.b16 %v815
      %v1194 = vunpack.c.l.b16 %v816
      %v1195 = vunpack.c.l.b16 %v817
      %v1196 = vunpack.c.l.b16 %v818
      %v1197 = vunpack.c.l.b16 %v819
      %v1198 = vunpack.c.l.b16 %v820
      %v1199 = vunpack.c.l.b16 %v821
      %v1200 = vunpack.c.l.b16 %v822
      %v1201 = vunpack.c.l.b16 %v823
      %v1202 = vunpack.c.l.b16 %v824
      %v1203 = vunpack.c.l.b16 %v825
      %v1204 = vunpack.c.l.b16 %v826
      %v1205 = vunpack.c.l.b16 %v827
      %v1206 = vpack.c.b16 %v1191, %v1190
      %v1207 = vpack.c.b16 %v1193, %v1192
      %v1208 = vpack.c.b16 %v1195, %v1194
      %v1209 = vpack.c.b16 %v1197, %v1196
      %v1210 = vpack.c.b16 %v1199, %v1198
      %v1211 = vpack.c.b16 %v1201, %v1200
      %v1212 = vpack.c.b16 %v1203, %v1202
      %v1213 = vpack.c.b16 %v1205, %v1204
      %1222 = vmatpush.bf16.msra.mxu0 %v1213
      %1223 = vmatpush.bf16.msra.mxu0 %v1212
      %1224 = vmatpush.bf16.msra.mxu0 %v1211
      %1225 = vmatpush.bf16.msra.mxu0 %v1210
      %1226 = vmatpush.bf16.msra.mxu0 %v1209
      %1227 = vmatpush.bf16.msra.mxu0 %v1208
      %1228 = vmatpush.bf16.msra.mxu0 %v1207
      %1229 = vmatpush.bf16.msra.mxu0 %v1206
      %1230 = vmatmul.bf16.gmra.mxu0 %v1173
      %v1231 = vpop.f32.mrf.mxu0
      %v1232 = vadd.f32 0.0, %v1231
      %v1233 = vpop.f32.mrf.mxu0
      %1234 = vdwg.mxu0
      %v1235 = vmul.f32 %v1232, %v1035
      %v1236 = vpack.c.bf16 %v1161, %v1161
      %1237 = vmatpush.bf16.msra.mxu0 %v1213
      %1238 = vmatpush.bf16.msra.mxu0 %v1212
      %1239 = vmatpush.bf16.msra.mxu0 %v1211
      %1240 = vmatpush.bf16.msra.mxu0 %v1210
      %1241 = vmatpush.bf16.msra.mxu0 %v1209
      %1242 = vmatpush.bf16.msra.mxu0 %v1208
      %1243 = vmatpush.bf16.msra.mxu0 %v1207
      %1244 = vmatpush.bf16.msra.mxu0 %v1206
      %1245 = vmatmul.bf16.gmra.mxu0 %v1236
      %v1246 = vpop.f32.mrf.mxu0
      %v1247 = vadd.f32 0.0, %v1246
      %v1248 = vpop.f32.mrf.mxu0
      %1249 = vdwg.mxu0
      %v1250 = vmul.f32 %v1247, %v1037
      %v1251 = vadd.f32 %v1235, %v1250
      %v1252 = vpack.c.bf16 %v1171, %v1171
      %1253 = vmatpush.bf16.msra.mxu0 %v1213
      %1254 = vmatpush.bf16.msra.mxu0 %v1212
      %1255 = vmatpush.bf16.msra.mxu0 %v1211
      %1256 = vmatpush.bf16.msra.mxu0 %v1210
      %1257 = vmatpush.bf16.msra.mxu0 %v1209
      %1258 = vmatpush.bf16.msra.mxu0 %v1208
      %1259 = vmatpush.bf16.msra.mxu0 %v1207
      %1260 = vmatpush.bf16.msra.mxu0 %v1206
      %1261 = vmatmul.bf16.gmra.mxu0 %v1252
      %v1262 = vpop.f32.mrf.mxu0
      %v1263 = vadd.f32 0.0, %v1262
      %v1264 = vpop.f32.mrf.mxu0
      %1265 = vdwg.mxu0
      %v1266 = vmul.f32 %v1263, %v1035
      %v1267 = vpack.c.bf16 %v1172, %v1172
      %1268 = vmatpush.bf16.msra.mxu0 %v1213
      %1269 = vmatpush.bf16.msra.mxu0 %v1212
      %1270 = vmatpush.bf16.msra.mxu0 %v1211
      %1271 = vmatpush.bf16.msra.mxu0 %v1210
      %1272 = vmatpush.bf16.msra.mxu0 %v1209
      %1273 = vmatpush.bf16.msra.mxu0 %v1208
      %1274 = vmatpush.bf16.msra.mxu0 %v1207
      %1275 = vmatpush.bf16.msra.mxu0 %v1206
      %1276 = vmatmul.bf16.gmra.mxu0 %v1267
      %v1277 = vpop.f32.mrf.mxu0
      %v1278 = vadd.f32 0.0, %v1277
      %v1279 = vpop.f32.mrf.mxu0
      %1280 = vdwg.mxu0
      %v1281 = vmul.f32 %v1278, %v1037
      %v1282 = vadd.f32 %v1266, %v1281
      %v1283 = vld [vmem:[#allocation18] sm:$0xf]
      %v1284 = vld [vmem:[#allocation18 + $0x4] sm:$0xf]
      %v1285 = vld [vmem:[#allocation18 + $0x8] sm:$0xf]
      %v1286 = vld [vmem:[#allocation18 + $0xc] sm:$0xf]
      %v1287 = vld [vmem:[#allocation18 + $0x10] sm:$0xf]
      %v1288 = vld [vmem:[#allocation18 + $0x14] sm:$0xf]
      %v1289 = vld [vmem:[#allocation18 + $0x18] sm:$0xf]
      %v1290 = vld [vmem:[#allocation18 + $0x1c] sm:$0xf]
      %v1291 = vld [vmem:[#allocation18 + $0x20] sm:$0xf]
      %v1292 = vld [vmem:[#allocation18 + $0x24] sm:$0xf]
      %v1293 = vld [vmem:[#allocation18 + $0x28] sm:$0xf]
      %v1294 = vld [vmem:[#allocation18 + $0x2c] sm:$0xf]
      %v1295 = vld [vmem:[#allocation18 + $0x30] sm:$0xf]
      %v1296 = vld [vmem:[#allocation18 + $0x34] sm:$0xf]
      %v1297 = vld [vmem:[#allocation18 + $0x38] sm:$0xf]
      %v1298 = vld [vmem:[#allocation18 + $0x3c] sm:$0xf]
      %v1299 = vld [vmem:[#allocation20] sm:$0x1]
      %v1300 = vpack.c.bf16 %v1282, %v1251
      %v1302 = vperm.slane %v1299, 0
      %v1320 = vunpack.c.l.b16 %v1283
      %v1321 = vunpack.c.l.b16 %v1284
      %v1322 = vunpack.c.l.b16 %v1285
      %v1323 = vunpack.c.l.b16 %v1286
      %v1324 = vunpack.c.l.b16 %v1287
      %v1325 = vunpack.c.l.b16 %v1288
      %v1326 = vunpack.c.l.b16 %v1289
      %v1327 = vunpack.c.l.b16 %v1290
      %v1328 = vunpack.c.l.b16 %v1291
      %v1329 = vunpack.c.l.b16 %v1292
      %v1330 = vunpack.c.l.b16 %v1293
      %v1331 = vunpack.c.l.b16 %v1294
      %v1332 = vunpack.c.l.b16 %v1295
      %v1333 = vunpack.c.l.b16 %v1296
      %v1334 = vunpack.c.l.b16 %v1297
      %v1335 = vunpack.c.l.b16 %v1298
      %v1336 = vpack.c.b16 %v1321, %v1320
      %v1337 = vpack.c.b16 %v1323, %v1322
      %v1338 = vpack.c.b16 %v1325, %v1324
      %v1339 = vpack.c.b16 %v1327, %v1326
      %v1340 = vpack.c.b16 %v1329, %v1328
      %v1341 = vpack.c.b16 %v1331, %v1330
      %v1342 = vpack.c.b16 %v1333, %v1332
      %v1343 = vpack.c.b16 %v1335, %v1334
      %1352 = vmatpush.bf16.msra.mxu0 %v1343
      %1353 = vmatpush.bf16.msra.mxu0 %v1342
      %1354 = vmatpush.bf16.msra.mxu0 %v1341
      %1355 = vmatpush.bf16.msra.mxu0 %v1340
      %1356 = vmatpush.bf16.msra.mxu0 %v1339
      %1357 = vmatpush.bf16.msra.mxu0 %v1338
      %1358 = vmatpush.bf16.msra.mxu0 %v1337
      %1359 = vmatpush.bf16.msra.mxu0 %v1336
      %1360 = vmatmul.bf16.gmra.mxu0 %v1300
      %v1361 = vpop.f32.mrf.mxu0
      %v1362 = vadd.f32 %v1302, %v1361
      %v1363 = vpop.f32.mrf.mxu0
      %v1364 = vadd.f32 %v1302, %v1363
      %1365 = vdwg.mxu0
      %v1366 = vadd.f32 %v677, %v1362
      %v1367 = vadd.f32 %v793, %v1364
      %v1368 = vld [vmem:[#allocation21] sm:$0x1]
      %v1369 = vld [vmem:[#allocation23] sm:$0x1]
      %1370 = vadd.xlane.f32.xlu0 %v1366
      %v1371 = vpop.xlane.xlu0 %1370
      %1372 = vadd.xlane.f32.xlu0 %v1367
      %v1373 = vpop.xlane.xlu0 %1372
      %v1374 = vrcp.pop 128.0
      %v1375 = vmul.f32 128.0, %v1374
      %v1376 = vsub.f32 1.0, %v1375
      %v1377 = vmul.f32 %v1374, %v1376
      %v1378 = vadd.f32 %v1374, %v1377
      %vm1379 = vweird.f32 %v1374
      %v1380 = vsel %vm1379, %v1374, %v1378
      %v1381 = vmul.f32 %v1371, %v1380
      %v1382 = vmul.f32 %v1373, %v1380
      %v1383 = vmul.f32 %v1366, %v1366
      %v1384 = vmul.f32 %v1367, %v1367
      %1385 = vadd.xlane.f32.xlu0 %v1383
      %v1386 = vpop.xlane.xlu0 %1385
      %1387 = vadd.xlane.f32.xlu0 %v1384
      %v1388 = vpop.xlane.xlu0 %1387
      %v1389 = vmul.f32 %v1386, %v1380
      %v1390 = vmul.f32 %v1388, %v1380
      %v1391 = vmul.f32 %v1381, %v1381
      %v1392 = vmul.f32 %v1382, %v1382
      %v1393 = vsub.f32 %v1389, %v1391
      %v1394 = vsub.f32 %v1390, %v1392
      %v1395 = vmax.f32 %v1393, 0.0
      %v1396 = vmax.f32 %v1394, 0.0
      %v1397 = vsub.f32 %v1366, %v1381
      %v1398 = vsub.f32 %v1367, %v1382
      %v1399 = vadd.f32 %v1395, 1e-05
      %v1400 = vadd.f32 %v1396, 1e-05
      %v1401 = vrsqrt.pop %v1399
      %v1402 = vmul.f32 %v1401, %v1399
      %v1403 = vmul.f32 %v1402, %v1401
      %v1404 = vmul.f32 0.5, %v1403
      %v1405 = vsub.f32 1.5, %v1404
      %v1406 = vmul.f32 %v1401, %v1405
      %vm1407 = vweird.f32 %v1399
      %vm1408 = vweird.f32 %v1401
      %vm1409 = vmor %vm1407, %vm1408
      %v1410 = vsel %vm1409, %v1401, %v1406
      %v1411 = vrsqrt.pop %v1400
      %v1412 = vmul.f32 %v1411, %v1400
      %v1413 = vmul.f32 %v1412, %v1411
      %v1414 = vmul.f32 0.5, %v1413
      %v1415 = vsub.f32 1.5, %v1414
      %v1416 = vmul.f32 %v1411, %v1415
      %vm1417 = vweird.f32 %v1400
      %vm1418 = vweird.f32 %v1411
      %vm1419 = vmor %vm1417, %vm1418
      %v1420 = vsel %vm1419, %v1411, %v1416
      %v1421 = vmul.f32 %v1397, %v1410
      %v1422 = vmul.f32 %v1398, %v1420
      %v1424 = vperm.slane %v1368, 0
      %v1426 = vmul.f32 %v1421, %v1424
      %v1427 = vmul.f32 %v1422, %v1424
      %v1429 = vperm.slane %v1369, 0
      %v1431 = vadd.f32 %v1426, %v1429
      %v1432 = vadd.f32 %v1427, %v1429
      %v1433 = vld [vmem:[#allocation24] sm:$0xff]
      %v1434 = vld [vmem:[#allocation24 + $0x8] sm:$0xff]
      %v1435 = vld [vmem:[#allocation24 + $0x10] sm:$0xff]
      %v1436 = vld [vmem:[#allocation24 + $0x18] sm:$0xff]
      %v1437 = vld [vmem:[#allocation24 + $0x20] sm:$0xff]
      %v1438 = vld [vmem:[#allocation24 + $0x28] sm:$0xff]
      %v1439 = vld [vmem:[#allocation24 + $0x30] sm:$0xff]
      %v1440 = vld [vmem:[#allocation24 + $0x38] sm:$0xff]
      %v1441 = vld [vmem:[#allocation24 + $0x40] sm:$0xff]
      %v1442 = vld [vmem:[#allocation24 + $0x48] sm:$0xff]
      %v1443 = vld [vmem:[#allocation24 + $0x50] sm:$0xff]
      %v1444 = vld [vmem:[#allocation24 + $0x58] sm:$0xff]
      %v1445 = vld [vmem:[#allocation24 + $0x60] sm:$0xff]
      %v1446 = vld [vmem:[#allocation24 + $0x68] sm:$0xff]
      %v1447 = vld [vmem:[#allocation24 + $0x70] sm:$0xff]
      %v1448 = vld [vmem:[#allocation24 + $0x78] sm:$0xff]
      %v1449 = vld [vmem:[#allocation24 + $0x80] sm:$0xff]
      %v1450 = vld [vmem:[#allocation24 + $0x88] sm:$0xff]
      %v1451 = vld [vmem:[#allocation24 + $0x90] sm:$0xff]
      %v1452 = vld [vmem:[#allocation24 + $0x98] sm:$0xff]
      %v1453 = vld [vmem:[#allocation24 + $0xa0] sm:$0xff]
      %v1454 = vld [vmem:[#allocation24 + $0xa8] sm:$0xff]
      %v1455 = vld [vmem:[#allocation24 + $0xb0] sm:$0xff]
      %v1456 = vld [vmem:[#allocation24 + $0xb8] sm:$0xff]
      %v1457 = vld [vmem:[#allocation24 + $0xc0] sm:$0xff]
      %v1458 = vld [vmem:[#allocation24 + $0xc8] sm:$0xff]
      %v1459 = vld [vmem:[#allocation24 + $0xd0] sm:$0xff]
      %v1460 = vld [vmem:[#allocation24 + $0xd8] sm:$0xff]
      %v1461 = vld [vmem:[#allocation24 + $0xe0] sm:$0xff]
      %v1462 = vld [vmem:[#allocation24 + $0xe8] sm:$0xff]
      %v1463 = vld [vmem:[#allocation24 + $0xf0] sm:$0xff]
      %v1464 = vld [vmem:[#allocation24 + $0xf8] sm:$0xff]
      %v1465 = vld [vmem:[#allocation26] sm:$0xf]
      %v1466 = vpack.c.bf16 %v1432, %v1431
      %v1468 = vperm.slane %v1465, 0
      %v1469 = vperm.slane %v1465, 1
      %v1470 = vperm.slane %v1465, 2
      %v1471 = vperm.slane %v1465, 3
      %v1508 = vunpack.c.l.b16 %v1433
      %v1509 = vunpack.c.h.b16 %v1433
      %v1510 = vunpack.c.l.b16 %v1434
      %v1511 = vunpack.c.h.b16 %v1434
      %v1512 = vunpack.c.l.b16 %v1435
      %v1513 = vunpack.c.h.b16 %v1435
      %v1514 = vunpack.c.l.b16 %v1436
      %v1515 = vunpack.c.h.b16 %v1436
      %v1516 = vunpack.c.l.b16 %v1437
      %v1517 = vunpack.c.h.b16 %v1437
      %v1518 = vunpack.c.l.b16 %v1438
      %v1519 = vunpack.c.h.b16 %v1438
      %v1520 = vunpack.c.l.b16 %v1439
      %v1521 = vunpack.c.h.b16 %v1439
      %v1522 = vunpack.c.l.b16 %v1440
      %v1523 = vunpack.c.h.b16 %v1440
      %v1524 = vunpack.c.l.b16 %v1441
      %v1525 = vunpack.c.h.b16 %v1441
      %v1526 = vunpack.c.l.b16 %v1442
      %v1527 = vunpack.c.h.b16 %v1442
      %v1528 = vunpack.c.l.b16 %v1443
      %v1529 = vunpack.c.h.b16 %v1443
      %v1530 = vunpack.c.l.b16 %v1444
      %v1531 = vunpack.c.h.b16 %v1444
      %v1532 = vunpack.c.l.b16 %v1445
      %v1533 = vunpack.c.h.b16 %v1445
      %v1534 = vunpack.c.l.b16 %v1446
      %v1535 = vunpack.c.h.b16 %v1446
      %v1536 = vunpack.c.l.b16 %v1447
      %v1537 = vunpack.c.h.b16 %v1447
      %v1538 = vunpack.c.l.b16 %v1448
      %v1539 = vunpack.c.h.b16 %v1448
      %v1540 = vunpack.c.l.b16 %v1449
      %v1541 = vunpack.c.h.b16 %v1449
      %v1542 = vunpack.c.l.b16 %v1450
      %v1543 = vunpack.c.h.b16 %v1450
      %v1544 = vunpack.c.l.b16 %v1451
      %v1545 = vunpack.c.h.b16 %v1451
      %v1546 = vunpack.c.l.b16 %v1452
      %v1547 = vunpack.c.h.b16 %v1452
      %v1548 = vunpack.c.l.b16 %v1453
      %v1549 = vunpack.c.h.b16 %v1453
      %v1550 = vunpack.c.l.b16 %v1454
      %v1551 = vunpack.c.h.b16 %v1454
      %v1552 = vunpack.c.l.b16 %v1455
      %v1553 = vunpack.c.h.b16 %v1455
      %v1554 = vunpack.c.l.b16 %v1456
      %v1555 = vunpack.c.h.b16 %v1456
      %v1556 = vunpack.c.l.b16 %v1457
      %v1557 = vunpack.c.h.b16 %v1457
      %v1558 = vunpack.c.l.b16 %v1458
      %v1559 = vunpack.c.h.b16 %v1458
      %v1560 = vunpack.c.l.b16 %v1459
      %v1561 = vunpack.c.h.b16 %v1459
      %v1562 = vunpack.c.l.b16 %v1460
      %v1563 = vunpack.c.h.b16 %v1460
      %v1564 = vunpack.c.l.b16 %v1461
      %v1565 = vunpack.c.h.b16 %v1461
      %v1566 = vunpack.c.l.b16 %v1462
      %v1567 = vunpack.c.h.b16 %v1462
      %v1568 = vunpack.c.l.b16 %v1463
      %v1569 = vunpack.c.h.b16 %v1463
      %v1570 = vunpack.c.l.b16 %v1464
      %v1571 = vunpack.c.h.b16 %v1464
      %v1572 = vpack.c.b16 %v1512, %v1508
      %v1573 = vpack.c.b16 %v1513, %v1509
      %v1574 = vpack.c.b16 %v1514, %v1510
      %v1575 = vpack.c.b16 %v1515, %v1511
      %v1576 = vpack.c.b16 %v1520, %v1516
      %v1577 = vpack.c.b16 %v1521, %v1517
      %v1578 = vpack.c.b16 %v1522, %v1518
      %v1579 = vpack.c.b16 %v1523, %v1519
      %v1580 = vpack.c.b16 %v1528, %v1524
      %v1581 = vpack.c.b16 %v1529, %v1525
      %v1582 = vpack.c.b16 %v1530, %v1526
      %v1583 = vpack.c.b16 %v1531, %v1527
      %v1584 = vpack.c.b16 %v1536, %v1532
      %v1585 = vpack.c.b16 %v1537, %v1533
      %v1586 = vpack.c.b16 %v1538, %v1534
      %v1587 = vpack.c.b16 %v1539, %v1535
      %v1588 = vpack.c.b16 %v1544, %v1540
      %v1589 = vpack.c.b16 %v1545, %v1541
      %v1590 = vpack.c.b16 %v1546, %v1542
      %v1591 = vpack.c.b16 %v1547, %v1543
      %v1592 = vpack.c.b16 %v1552, %v1548
      %v1593 = vpack.c.b16 %v1553, %v1549
      %v1594 = vpack.c.b16 %v1554, %v1550
      %v1595 = vpack.c.b16 %v1555, %v1551
      %v1596 = vpack.c.b16 %v1560, %v1556
      %v1597 = vpack.c.b16 %v1561, %v1557
      %v1598 = vpack.c.b16 %v1562, %v1558
      %v1599 = vpack.c.b16 %v1563, %v1559
      %v1600 = vpack.c.b16 %v1568, %v1564
      %v1601 = vpack.c.b16 %v1569, %v1565
      %v1602 = vpack.c.b16 %v1570, %v1566
      %v1603 = vpack.c.b16 %v1571, %v1567
      %1636 = vmatpush.bf16.msra.mxu0 %v1600
      %1637 = vmatpush.bf16.msra.mxu0 %v1596
      %1638 = vmatpush.bf16.msra.mxu0 %v1592
      %1639 = vmatpush.bf16.msra.mxu0 %v1588
      %1640 = vmatpush.bf16.msra.mxu0 %v1584
      %1641 = vmatpush.bf16.msra.mxu0 %v1580
      %1642 = vmatpush.bf16.msra.mxu0 %v1576
      %1643 = vmatpush.bf16.msra.mxu0 %v1572
      %1644 = vmatmul.bf16.gmra.mxu0 %v1466
      %v1645 = vpop.f32.mrf.mxu0
      %v1646 = vadd.f32 %v1468, %v1645
      %v1647 = vpop.f32.mrf.mxu0
      %v1648 = vadd.f32 %v1468, %v1647
      %1649 = vdwg.mxu0
      %1650 = vmatpush.bf16.msra.mxu0 %v1601
      %1651 = vmatpush.bf16.msra.mxu0 %v1597
      %1652 = vmatpush.bf16.msra.mxu0 %v1593
      %1653 = vmatpush.bf16.msra.mxu0 %v1589
      %1654 = vmatpush.bf16.msra.mxu0 %v1585
      %1655 = vmatpush.bf16.msra.mxu0 %v1581
      %1656 = vmatpush.bf16.msra.mxu0 %v1577
      %1657 = vmatpush.bf16.msra.mxu0 %v1573
      %1658 = vmatmul.bf16.gmra.mxu0 %v1466
      %v1659 = vpop.f32.mrf.mxu0
      %v1660 = vadd.f32 %v1469, %v1659
      %v1661 = vpop.f32.mrf.mxu0
      %v1662 = vadd.f32 %v1469, %v1661
      %1663 = vdwg.mxu0
      %1664 = vmatpush.bf16.msra.mxu0 %v1602
      %1665 = vmatpush.bf16.msra.mxu0 %v1598
      %1666 = vmatpush.bf16.msra.mxu0 %v1594
      %1667 = vmatpush.bf16.msra.mxu0 %v1590
      %1668 = vmatpush.bf16.msra.mxu0 %v1586
      %1669 = vmatpush.bf16.msra.mxu0 %v1582
      %1670 = vmatpush.bf16.msra.mxu0 %v1578
      %1671 = vmatpush.bf16.msra.mxu0 %v1574
      %1672 = vmatmul.bf16.gmra.mxu0 %v1466
      %v1673 = vpop.f32.mrf.mxu0
      %v1674 = vadd.f32 %v1470, %v1673
      %v1675 = vpop.f32.mrf.mxu0
      %v1676 = vadd.f32 %v1470, %v1675
      %1677 = vdwg.mxu0
      %1678 = vmatpush.bf16.msra.mxu0 %v1603
      %1679 = vmatpush.bf16.msra.mxu0 %v1599
      %1680 = vmatpush.bf16.msra.mxu0 %v1595
      %1681 = vmatpush.bf16.msra.mxu0 %v1591
      %1682 = vmatpush.bf16.msra.mxu0 %v1587
      %1683 = vmatpush.bf16.msra.mxu0 %v1583
      %1684 = vmatpush.bf16.msra.mxu0 %v1579
      %1685 = vmatpush.bf16.msra.mxu0 %v1575
      %1686 = vmatmul.bf16.gmra.mxu0 %v1466
      %v1687 = vpop.f32.mrf.mxu0
      %v1688 = vadd.f32 %v1471, %v1687
      %v1689 = vpop.f32.mrf.mxu0
      %v1690 = vadd.f32 %v1471, %v1689
      %1691 = vdwg.mxu0
      %v1692 = vmax.f32 %v1646, 0.0
      %v1693 = vmax.f32 %v1660, 0.0
      %v1694 = vmax.f32 %v1674, 0.0
      %v1695 = vmax.f32 %v1688, 0.0
      %v1696 = vmax.f32 %v1648, 0.0
      %v1697 = vmax.f32 %v1662, 0.0
      %v1698 = vmax.f32 %v1676, 0.0
      %v1699 = vmax.f32 %v1690, 0.0
      %v1700 = vld [vmem:[#allocation27] sm:$0xf]
      %v1701 = vld [vmem:[#allocation27 + $0x4] sm:$0xf]
      %v1702 = vld [vmem:[#allocation27 + $0x8] sm:$0xf]
      %v1703 = vld [vmem:[#allocation27 + $0xc] sm:$0xf]
      %v1704 = vld [vmem:[#allocation27 + $0x10] sm:$0xf]
      %v1705 = vld [vmem:[#allocation27 + $0x14] sm:$0xf]
      %v1706 = vld [vmem:[#allocation27 + $0x18] sm:$0xf]
      %v1707 = vld [vmem:[#allocation27 + $0x1c] sm:$0xf]
      %v1708 = vld [vmem:[#allocation27 + $0x20] sm:$0xf]
      %v1709 = vld [vmem:[#allocation27 + $0x24] sm:$0xf]
      %v1710 = vld [vmem:[#allocation27 + $0x28] sm:$0xf]
      %v1711 = vld [vmem:[#allocation27 + $0x2c] sm:$0xf]
      %v1712 = vld [vmem:[#allocation27 + $0x30] sm:$0xf]
      %v1713 = vld [vmem:[#allocation27 + $0x34] sm:$0xf]
      %v1714 = vld [vmem:[#allocation27 + $0x38] sm:$0xf]
      %v1715 = vld [vmem:[#allocation27 + $0x3c] sm:$0xf]
      %v1716 = vld [vmem:[#allocation27 + $0x40] sm:$0xf]
      %v1717 = vld [vmem:[#allocation27 + $0x44] sm:$0xf]
      %v1718 = vld [vmem:[#allocation27 + $0x48] sm:$0xf]
      %v1719 = vld [vmem:[#allocation27 + $0x4c] sm:$0xf]
      %v1720 = vld [vmem:[#allocation27 + $0x50] sm:$0xf]
      %v1721 = vld [vmem:[#allocation27 + $0x54] sm:$0xf]
      %v1722 = vld [vmem:[#allocation27 + $0x58] sm:$0xf]
      %v1723 = vld [vmem:[#allocation27 + $0x5c] sm:$0xf]
      %v1724 = vld [vmem:[#allocation27 + $0x60] sm:$0xf]
      %v1725 = vld [vmem:[#allocation27 + $0x64] sm:$0xf]
      %v1726 = vld [vmem:[#allocation27 + $0x68] sm:$0xf]
      %v1727 = vld [vmem:[#allocation27 + $0x6c] sm:$0xf]
      %v1728 = vld [vmem:[#allocation27 + $0x70] sm:$0xf]
      %v1729 = vld [vmem:[#allocation27 + $0x74] sm:$0xf]
      %v1730 = vld [vmem:[#allocation27 + $0x78] sm:$0xf]
      %v1731 = vld [vmem:[#allocation27 + $0x7c] sm:$0xf]
      %v1732 = vld [vmem:[#allocation27 + $0x80] sm:$0xf]
      %v1733 = vld [vmem:[#allocation27 + $0x84] sm:$0xf]
      %v1734 = vld [vmem:[#allocation27 + $0x88] sm:$0xf]
      %v1735 = vld [vmem:[#allocation27 + $0x8c] sm:$0xf]
      %v1736 = vld [vmem:[#allocation27 + $0x90] sm:$0xf]
      %v1737 = vld [vmem:[#allocation27 + $0x94] sm:$0xf]
      %v1738 = vld [vmem:[#allocation27 + $0x98] sm:$0xf]
      %v1739 = vld [vmem:[#allocation27 + $0x9c] sm:$0xf]
      %v1740 = vld [vmem:[#allocation27 + $0xa0] sm:$0xf]
      %v1741 = vld [vmem:[#allocation27 + $0xa4] sm:$0xf]
      %v1742 = vld [vmem:[#allocation27 + $0xa8] sm:$0xf]
      %v1743 = vld [vmem:[#allocation27 + $0xac] sm:$0xf]
      %v1744 = vld [vmem:[#allocation27 + $0xb0] sm:$0xf]
      %v1745 = vld [vmem:[#allocation27 + $0xb4] sm:$0xf]
      %v1746 = vld [vmem:[#allocation27 + $0xb8] sm:$0xf]
      %v1747 = vld [vmem:[#allocation27 + $0xbc] sm:$0xf]
      %v1748 = vld [vmem:[#allocation27 + $0xc0] sm:$0xf]
      %v1749 = vld [vmem:[#allocation27 + $0xc4] sm:$0xf]
      %v1750 = vld [vmem:[#allocation27 + $0xc8] sm:$0xf]
      %v1751 = vld [vmem:[#allocation27 + $0xcc] sm:$0xf]
      %v1752 = vld [vmem:[#allocation27 + $0xd0] sm:$0xf]
      %v1753 = vld [vmem:[#allocation27 + $0xd4] sm:$0xf]
      %v1754 = vld [vmem:[#allocation27 + $0xd8] sm:$0xf]
      %v1755 = vld [vmem:[#allocation27 + $0xdc] sm:$0xf]
      %v1756 = vld [vmem:[#allocation27 + $0xe0] sm:$0xf]
      %v1757 = vld [vmem:[#allocation27 + $0xe4] sm:$0xf]
      %v1758 = vld [vmem:[#allocation27 + $0xe8] sm:$0xf]
      %v1759 = vld [vmem:[#allocation27 + $0xec] sm:$0xf]
      %v1760 = vld [vmem:[#allocation27 + $0xf0] sm:$0xf]
      %v1761 = vld [vmem:[#allocation27 + $0xf4] sm:$0xf]
      %v1762 = vld [vmem:[#allocation27 + $0xf8] sm:$0xf]
      %v1763 = vld [vmem:[#allocation27 + $0xfc] sm:$0xf]
      %v1764 = vld [vmem:[#allocation29] sm:$0x1]
      %v1765 = vpack.c.bf16 %v1696, %v1692
      %v1766 = vpack.c.bf16 %v1697, %v1693
      %v1767 = vpack.c.bf16 %v1698, %v1694
      %v1768 = vpack.c.bf16 %v1699, %v1695
      %v1770 = vperm.slane %v1764, 0
      %v1836 = vunpack.c.l.b16 %v1700
      %v1837 = vunpack.c.l.b16 %v1701
      %v1838 = vunpack.c.l.b16 %v1702
      %v1839 = vunpack.c.l.b16 %v1703
      %v1840 = vunpack.c.l.b16 %v1704
      %v1841 = vunpack.c.l.b16 %v1705
      %v1842 = vunpack.c.l.b16 %v1706
      %v1843 = vunpack.c.l.b16 %v1707
      %v1844 = vunpack.c.l.b16 %v1708
      %v1845 = vunpack.c.l.b16 %v1709
      %v1846 = vunpack.c.l.b16 %v1710
      %v1847 = vunpack.c.l.b16 %v1711
      %v1848 = vunpack.c.l.b16 %v1712
      %v1849 = vunpack.c.l.b16 %v1713
      %v1850 = vunpack.c.l.b16 %v1714
      %v1851 = vunpack.c.l.b16 %v1715
      %v1852 = vunpack.c.l.b16 %v1716
      %v1853 = vunpack.c.l.b16 %v1717
      %v1854 = vunpack.c.l.b16 %v1718
      %v1855 = vunpack.c.l.b16 %v1719
      %v1856 = vunpack.c.l.b16 %v1720
      %v1857 = vunpack.c.l.b16 %v1721
      %v1858 = vunpack.c.l.b16 %v1722
      %v1859 = vunpack.c.l.b16 %v1723
      %v1860 = vunpack.c.l.b16 %v1724
      %v1861 = vunpack.c.l.b16 %v1725
      %v1862 = vunpack.c.l.b16 %v1726
      %v1863 = vunpack.c.l.b16 %v1727
      %v1864 = vunpack.c.l.b16 %v1728
      %v1865 = vunpack.c.l.b16 %v1729
      %v1866 = vunpack.c.l.b16 %v1730
      %v1867 = vunpack.c.l.b16 %v1731
      %v1868 = vunpack.c.l.b16 %v1732
      %v1869 = vunpack.c.l.b16 %v1733
      %v1870 = vunpack.c.l.b16 %v1734
      %v1871 = vunpack.c.l.b16 %v1735
      %v1872 = vunpack.c.l.b16 %v1736
      %v1873 = vunpack.c.l.b16 %v1737
      %v1874 = vunpack.c.l.b16 %v1738
      %v1875 = vunpack.c.l.b16 %v1739
      %v1876 = vunpack.c.l.b16 %v1740
      %v1877 = vunpack.c.l.b16 %v1741
      %v1878 = vunpack.c.l.b16 %v1742
      %v1879 = vunpack.c.l.b16 %v1743
      %v1880 = vunpack.c.l.b16 %v1744
      %v1881 = vunpack.c.l.b16 %v1745
      %v1882 = vunpack.c.l.b16 %v1746
      %v1883 = vunpack.c.l.b16 %v1747
      %v1884 = vunpack.c.l.b16 %v1748
      %v1885 = vunpack.c.l.b16 %v1749
      %v1886 = vunpack.c.l.b16 %v1750
      %v1887 = vunpack.c.l.b16 %v1751
      %v1888 = vunpack.c.l.b16 %v1752
      %v1889 = vunpack.c.l.b16 %v1753
      %v1890 = vunpack.c.l.b16 %v1754
      %v1891 = vunpack.c.l.b16 %v1755
      %v1892 = vunpack.c.l.b16 %v1756
      %v1893 = vunpack.c.l.b16 %v1757
      %v1894 = vunpack.c.l.b16 %v1758
      %v1895 = vunpack.c.l.b16 %v1759
      %v1896 = vunpack.c.l.b16 %v1760
      %v1897 = vunpack.c.l.b16 %v1761
      %v1898 = vunpack.c.l.b16 %v1762
      %v1899 = vunpack.c.l.b16 %v1763
      %v1900 = vpack.c.b16 %v1837, %v1836
      %v1901 = vpack.c.b16 %v1839, %v1838
      %v1902 = vpack.c.b16 %v1841, %v1840
      %v1903 = vpack.c.b16 %v1843, %v1842
      %v1904 = vpack.c.b16 %v1845, %v1844
      %v1905 = vpack.c.b16 %v1847, %v1846
      %v1906 = vpack.c.b16 %v1849, %v1848
      %v1907 = vpack.c.b16 %v1851, %v1850
      %v1908 = vpack.c.b16 %v1853, %v1852
      %v1909 = vpack.c.b16 %v1855, %v1854
      %v1910 = vpack.c.b16 %v1857, %v1856
      %v1911 = vpack.c.b16 %v1859, %v1858
      %v1912 = vpack.c.b16 %v1861, %v1860
      %v1913 = vpack.c.b16 %v1863, %v1862
      %v1914 = vpack.c.b16 %v1865, %v1864
      %v1915 = vpack.c.b16 %v1867, %v1866
      %v1916 = vpack.c.b16 %v1869, %v1868
      %v1917 = vpack.c.b16 %v1871, %v1870
      %v1918 = vpack.c.b16 %v1873, %v1872
      %v1919 = vpack.c.b16 %v1875, %v1874
      %v1920 = vpack.c.b16 %v1877, %v1876
      %v1921 = vpack.c.b16 %v1879, %v1878
      %v1922 = vpack.c.b16 %v1881, %v1880
      %v1923 = vpack.c.b16 %v1883, %v1882
      %v1924 = vpack.c.b16 %v1885, %v1884
      %v1925 = vpack.c.b16 %v1887, %v1886
      %v1926 = vpack.c.b16 %v1889, %v1888
      %v1927 = vpack.c.b16 %v1891, %v1890
      %v1928 = vpack.c.b16 %v1893, %v1892
      %v1929 = vpack.c.b16 %v1895, %v1894
      %v1930 = vpack.c.b16 %v1897, %v1896
      %v1931 = vpack.c.b16 %v1899, %v1898
      %1964 = vmatpush.bf16.msra.mxu0 %v1907
      %1965 = vmatpush.bf16.msra.mxu0 %v1906
      %1966 = vmatpush.bf16.msra.mxu0 %v1905
      %1967 = vmatpush.bf16.msra.mxu0 %v1904
      %1968 = vmatpush.bf16.msra.mxu0 %v1903
      %1969 = vmatpush.bf16.msra.mxu0 %v1902
      %1970 = vmatpush.bf16.msra.mxu0 %v1901
      %1971 = vmatpush.bf16.msra.mxu0 %v1900
      %1972 = vmatmul.bf16.gmra.mxu0 %v1765
      %v1973 = vpop.f32.mrf.mxu0
      %v1974 = vadd.f32 %v1770, %v1973
      %v1975 = vpop.f32.mrf.mxu0
      %v1976 = vadd.f32 %v1770, %v1975
      %1977 = vdwg.mxu0
      %1978 = vmatpush.bf16.msra.mxu0 %v1915
      %1979 = vmatpush.bf16.msra.mxu0 %v1914
      %1980 = vmatpush.bf16.msra.mxu0 %v1913
      %1981 = vmatpush.bf16.msra.mxu0 %v1912
      %1982 = vmatpush.bf16.msra.mxu0 %v1911
      %1983 = vmatpush.bf16.msra.mxu0 %v1910
      %1984 = vmatpush.bf16.msra.mxu0 %v1909
      %1985 = vmatpush.bf16.msra.mxu0 %v1908
      %1986 = vmatmul.bf16.gmra.mxu0 %v1766
      %v1987 = vpop.f32.mrf.mxu0
      %v1988 = vadd.f32 %v1974, %v1987
      %v1989 = vpop.f32.mrf.mxu0
      %v1990 = vadd.f32 %v1976, %v1989
      %1991 = vdwg.mxu0
      %1992 = vmatpush.bf16.msra.mxu0 %v1923
      %1993 = vmatpush.bf16.msra.mxu0 %v1922
      %1994 = vmatpush.bf16.msra.mxu0 %v1921
      %1995 = vmatpush.bf16.msra.mxu0 %v1920
      %1996 = vmatpush.bf16.msra.mxu0 %v1919
      %1997 = vmatpush.bf16.msra.mxu0 %v1918
      %1998 = vmatpush.bf16.msra.mxu0 %v1917
      %1999 = vmatpush.bf16.msra.mxu0 %v1916
      %2000 = vmatmul.bf16.gmra.mxu0 %v1767
      %v2001 = vpop.f32.mrf.mxu0
      %v2002 = vadd.f32 %v1988, %v2001
      %v2003 = vpop.f32.mrf.mxu0
      %v2004 = vadd.f32 %v1990, %v2003
      %2005 = vdwg.mxu0
      %2006 = vmatpush.bf16.msra.mxu0 %v1931
      %2007 = vmatpush.bf16.msra.mxu0 %v1930
      %2008 = vmatpush.bf16.msra.mxu0 %v1929
      %2009 = vmatpush.bf16.msra.mxu0 %v1928
      %2010 = vmatpush.bf16.msra.mxu0 %v1927
      %2011 = vmatpush.bf16.msra.mxu0 %v1926
      %2012 = vmatpush.bf16.msra.mxu0 %v1925
      %2013 = vmatpush.bf16.msra.mxu0 %v1924
      %2014 = vmatmul.bf16.gmra.mxu0 %v1768
      %v2015 = vpop.f32.mrf.mxu0
      %v2016 = vadd.f32 %v2002, %v2015
      %v2017 = vpop.f32.mrf.mxu0
      %v2018 = vadd.f32 %v2004, %v2017
      %2019 = vdwg.mxu0
      %v2020 = vadd.f32 %v1431, %v2016
      %v2021 = vadd.f32 %v1432, %v2018
      %v2022 = vld [vmem:[#allocation30] sm:$0x1]
      %v2023 = vld [vmem:[#allocation32] sm:$0x1]
      %2024 = vadd.xlane.f32.xlu0 %v2020
      %v2025 = vpop.xlane.xlu0 %2024
      %2026 = vadd.xlane.f32.xlu0 %v2021
      %v2027 = vpop.xlane.xlu0 %2026
      %v2028 = vmul.f32 %v2025, %v1380
      %v2029 = vmul.f32 %v2027, %v1380
      %v2030 = vmul.f32 %v2020, %v2020
      %v2031 = vmul.f32 %v2021, %v2021
      %2032 = vadd.xlane.f32.xlu0 %v2030
      %v2033 = vpop.xlane.xlu0 %2032
      %2034 = vadd.xlane.f32.xlu0 %v2031
      %v2035 = vpop.xlane.xlu0 %2034
      %v2036 = vmul.f32 %v2033, %v1380
      %v2037 = vmul.f32 %v2035, %v1380
      %v2038 = vmul.f32 %v2028, %v2028
      %v2039 = vmul.f32 %v2029, %v2029
      %v2040 = vsub.f32 %v2036, %v2038
      %v2041 = vsub.f32 %v2037, %v2039
      %v2042 = vmax.f32 %v2040, 0.0
      %v2043 = vmax.f32 %v2041, 0.0
      %v2044 = vsub.f32 %v2020, %v2028
      %v2045 = vsub.f32 %v2021, %v2029
      %v2046 = vadd.f32 %v2042, 1e-05
      %v2047 = vadd.f32 %v2043, 1e-05
      %v2048 = vrsqrt.pop %v2046
      %v2049 = vmul.f32 %v2048, %v2046
      %v2050 = vmul.f32 %v2049, %v2048
      %v2051 = vmul.f32 0.5, %v2050
      %v2052 = vsub.f32 1.5, %v2051
      %v2053 = vmul.f32 %v2048, %v2052
      %vm2054 = vweird.f32 %v2046
      %vm2055 = vweird.f32 %v2048
      %vm2056 = vmor %vm2054, %vm2055
      %v2057 = vsel %vm2056, %v2048, %v2053
      %v2058 = vrsqrt.pop %v2047
      %v2059 = vmul.f32 %v2058, %v2047
      %v2060 = vmul.f32 %v2059, %v2058
      %v2061 = vmul.f32 0.5, %v2060
      %v2062 = vsub.f32 1.5, %v2061
      %v2063 = vmul.f32 %v2058, %v2062
      %vm2064 = vweird.f32 %v2047
      %vm2065 = vweird.f32 %v2058
      %vm2066 = vmor %vm2064, %vm2065
      %v2067 = vsel %vm2066, %v2058, %v2063
      %v2068 = vmul.f32 %v2044, %v2057
      %v2069 = vmul.f32 %v2045, %v2067
      %v2071 = vperm.slane %v2022, 0
      %v2073 = vmul.f32 %v2068, %v2071
      %v2074 = vmul.f32 %v2069, %v2071
      %v2076 = vperm.slane %v2023, 0
      %v2078 = vadd.f32 %v2073, %v2076
      %v2079 = vadd.f32 %v2074, %v2076
      %s2080 = scalar_lea.vmem [#allocation15], 192
      %v2081 = vld [vmem:[%s2080] sm:$0xff]
      %v2082 = vld [vmem:[%s2080 + $0x8] sm:$0xf]
      %v2083 = vld [vmem:[%s2080 + $0xc] sm:$0xff]
      %v2084 = vld [vmem:[%s2080 + $0x14] sm:$0xf]
      %v2085 = vld [vmem:[%s2080 + $0x18] sm:$0xff]
      %v2086 = vld [vmem:[%s2080 + $0x20] sm:$0xf]
      %v2087 = vld [vmem:[%s2080 + $0x24] sm:$0xff]
      %v2088 = vld [vmem:[%s2080 + $0x2c] sm:$0xf]
      %v2089 = vld [vmem:[%s2080 + $0x30] sm:$0xff]
      %v2090 = vld [vmem:[%s2080 + $0x38] sm:$0xf]
      %v2091 = vld [vmem:[%s2080 + $0x3c] sm:$0xff]
      %v2092 = vld [vmem:[%s2080 + $0x44] sm:$0xf]
      %v2093 = vld [vmem:[%s2080 + $0x48] sm:$0xff]
      %v2094 = vld [vmem:[%s2080 + $0x50] sm:$0xf]
      %v2095 = vld [vmem:[%s2080 + $0x54] sm:$0xff]
      %v2096 = vld [vmem:[%s2080 + $0x5c] sm:$0xf]
      %v2097 = vld [vmem:[%s2080 + $0x60] sm:$0xff]
      %v2098 = vld [vmem:[%s2080 + $0x68] sm:$0xf]
      %v2099 = vld [vmem:[%s2080 + $0x6c] sm:$0xff]
      %v2100 = vld [vmem:[%s2080 + $0x74] sm:$0xf]
      %v2101 = vld [vmem:[%s2080 + $0x78] sm:$0xff]
      %v2102 = vld [vmem:[%s2080 + $0x80] sm:$0xf]
      %v2103 = vld [vmem:[%s2080 + $0x84] sm:$0xff]
      %v2104 = vld [vmem:[%s2080 + $0x8c] sm:$0xf]
      %v2105 = vld [vmem:[%s2080 + $0x90] sm:$0xff]
      %v2106 = vld [vmem:[%s2080 + $0x98] sm:$0xf]
      %v2107 = vld [vmem:[%s2080 + $0x9c] sm:$0xff]
      %v2108 = vld [vmem:[%s2080 + $0xa4] sm:$0xf]
      %v2109 = vld [vmem:[%s2080 + $0xa8] sm:$0xff]
      %v2110 = vld [vmem:[%s2080 + $0xb0] sm:$0xf]
      %v2111 = vld [vmem:[%s2080 + $0xb4] sm:$0xff]
      %v2112 = vld [vmem:[%s2080 + $0xbc] sm:$0xf]
      %s2113 = scalar_lea.vmem [#allocation17], 3
      %v2114 = vld [vmem:[%s2113] sm:$0x7]
      %v2115 = vpack.c.bf16 %v2079, %v2078
      %v2117 = vperm.slane %v2114, 0
      %v2118 = vperm.slane %v2114, 1
      %v2119 = vperm.slane %v2114, 2
      %v2155 = vunpack.c.l.b16 %v2081
      %v2156 = vunpack.c.h.b16 %v2081
      %v2157 = vunpack.c.l.b16 %v2082
      %v2158 = vunpack.c.l.b16 %v2083
      %v2159 = vunpack.c.h.b16 %v2083
      %v2160 = vunpack.c.l.b16 %v2084
      %v2161 = vunpack.c.l.b16 %v2085
      %v2162 = vunpack.c.h.b16 %v2085
      %v2163 = vunpack.c.l.b16 %v2086
      %v2164 = vunpack.c.l.b16 %v2087
      %v2165 = vunpack.c.h.b16 %v2087
      %v2166 = vunpack.c.l.b16 %v2088
      %v2167 = vunpack.c.l.b16 %v2089
      %v2168 = vunpack.c.h.b16 %v2089
      %v2169 = vunpack.c.l.b16 %v2090
      %v2170 = vunpack.c.l.b16 %v2091
      %v2171 = vunpack.c.h.b16 %v2091
      %v2172 = vunpack.c.l.b16 %v2092
      %v2173 = vunpack.c.l.b16 %v2093
      %v2174 = vunpack.c.h.b16 %v2093
      %v2175 = vunpack.c.l.b16 %v2094
      %v2176 = vunpack.c.l.b16 %v2095
      %v2177 = vunpack.c.h.b16 %v2095
      %v2178 = vunpack.c.l.b16 %v2096
      %v2179 = vunpack.c.l.b16 %v2097
      %v2180 = vunpack.c.h.b16 %v2097
      %v2181 = vunpack.c.l.b16 %v2098
      %v2182 = vunpack.c.l.b16 %v2099
      %v2183 = vunpack.c.h.b16 %v2099
      %v2184 = vunpack.c.l.b16 %v2100
      %v2185 = vunpack.c.l.b16 %v2101
      %v2186 = vunpack.c.h.b16 %v2101
      %v2187 = vunpack.c.l.b16 %v2102
      %v2188 = vunpack.c.l.b16 %v2103
      %v2189 = vunpack.c.h.b16 %v2103
      %v2190 = vunpack.c.l.b16 %v2104
      %v2191 = vunpack.c.l.b16 %v2105
      %v2192 = vunpack.c.h.b16 %v2105
      %v2193 = vunpack.c.l.b16 %v2106
      %v2194 = vunpack.c.l.b16 %v2107
      %v2195 = vunpack.c.h.b16 %v2107
      %v2196 = vunpack.c.l.b16 %v2108
      %v2197 = vunpack.c.l.b16 %v2109
      %v2198 = vunpack.c.h.b16 %v2109
      %v2199 = vunpack.c.l.b16 %v2110
      %v2200 = vunpack.c.l.b16 %v2111
      %v2201 = vunpack.c.h.b16 %v2111
      %v2202 = vunpack.c.l.b16 %v2112
      %v2203 = vpack.c.b16 %v2158, %v2155
      %v2204 = vpack.c.b16 %v2159, %v2156
      %v2205 = vpack.c.b16 %v2160, %v2157
      %v2206 = vpack.c.b16 %v2164, %v2161
      %v2207 = vpack.c.b16 %v2165, %v2162
      %v2208 = vpack.c.b16 %v2166, %v2163
      %v2209 = vpack.c.b16 %v2170, %v2167
      %v2210 = vpack.c.b16 %v2171, %v2168
      %v2211 = vpack.c.b16 %v2172, %v2169
      %v2212 = vpack.c.b16 %v2176, %v2173
      %v2213 = vpack.c.b16 %v2177, %v2174
      %v2214 = vpack.c.b16 %v2178, %v2175
      %v2215 = vpack.c.b16 %v2182, %v2179
      %v2216 = vpack.c.b16 %v2183, %v2180
      %v2217 = vpack.c.b16 %v2184, %v2181
      %v2218 = vpack.c.b16 %v2188, %v2185
      %v2219 = vpack.c.b16 %v2189, %v2186
      %v2220 = vpack.c.b16 %v2190, %v2187
      %v2221 = vpack.c.b16 %v2194, %v2191
      %v2222 = vpack.c.b16 %v2195, %v2192
      %v2223 = vpack.c.b16 %v2196, %v2193
      %v2224 = vpack.c.b16 %v2200, %v2197
      %v2225 = vpack.c.b16 %v2201, %v2198
      %v2226 = vpack.c.b16 %v2202, %v2199
      %2251 = vmatpush.bf16.msra.mxu0 %v2224
      %2252 = vmatpush.bf16.msra.mxu0 %v2221
      %2253 = vmatpush.bf16.msra.mxu0 %v2218
      %2254 = vmatpush.bf16.msra.mxu0 %v2215
      %2255 = vmatpush.bf16.msra.mxu0 %v2212
      %2256 = vmatpush.bf16.msra.mxu0 %v2209
      %2257 = vmatpush.bf16.msra.mxu0 %v2206
      %2258 = vmatpush.bf16.msra.mxu0 %v2203
      %2259 = vmatmul.bf16.gmra.mxu0 %v2115
      %v2260 = vpop.f32.mrf.mxu0
      %v2261 = vadd.f32 %v2117, %v2260
      %v2262 = vpop.f32.mrf.mxu0
      %v2263 = vadd.f32 %v2117, %v2262
      %2264 = vdwg.mxu0
      %2265 = vmatpush.bf16.msra.mxu0 %v2225
      %2266 = vmatpush.bf16.msra.mxu0 %v2222
      %2267 = vmatpush.bf16.msra.mxu0 %v2219
      %2268 = vmatpush.bf16.msra.mxu0 %v2216
      %2269 = vmatpush.bf16.msra.mxu0 %v2213
      %2270 = vmatpush.bf16.msra.mxu0 %v2210
      %2271 = vmatpush.bf16.msra.mxu0 %v2207
      %2272 = vmatpush.bf16.msra.mxu0 %v2204
      %2273 = vmatmul.bf16.gmra.mxu0 %v2115
      %v2274 = vpop.f32.mrf.mxu0
      %v2275 = vadd.f32 %v2118, %v2274
      %v2276 = vpop.f32.mrf.mxu0
      %v2277 = vadd.f32 %v2118, %v2276
      %2278 = vdwg.mxu0
      %2279 = vmatpush.bf16.msra.mxu0 %v2226
      %2280 = vmatpush.bf16.msra.mxu0 %v2223
      %2281 = vmatpush.bf16.msra.mxu0 %v2220
      %2282 = vmatpush.bf16.msra.mxu0 %v2217
      %2283 = vmatpush.bf16.msra.mxu0 %v2214
      %2284 = vmatpush.bf16.msra.mxu0 %v2211
      %2285 = vmatpush.bf16.msra.mxu0 %v2208
      %2286 = vmatpush.bf16.msra.mxu0 %v2205
      %2287 = vmatmul.bf16.gmra.mxu0 %v2115
      %v2288 = vpop.f32.mrf.mxu0
      %v2289 = vadd.f32 %v2119, %v2288
      %v2290 = vpop.f32.mrf.mxu0
      %v2291 = vadd.f32 %v2119, %v2290
      %2292 = vdwg.mxu0
      %v2293 = vmul.f32 %v2261, %v2275
      %v2294 = vpack.c.bf16 %v2293, %v2293
      %2295 = vmatpush.bf16.msra.mxu0 %v1080
      %2296 = vmatpush.bf16.msra.mxu0 %v1079
      %2297 = vmatpush.bf16.msra.mxu0 %v1078
      %2298 = vmatpush.bf16.msra.mxu0 %v1077
      %2299 = vmatpush.bf16.msra.mxu0 %v1076
      %2300 = vmatpush.bf16.msra.mxu0 %v1075
      %2301 = vmatpush.bf16.msra.mxu0 %v1074
      %2302 = vmatpush.bf16.msra.mxu0 %v1073
      %2303 = vmatmul.bf16.gmra.mxu0 %v2294
      %v2304 = vpop.f32.mrf.mxu0
      %v2305 = vadd.f32 0.0, %v2304
      %v2306 = vpop.f32.mrf.mxu0
      %2307 = vdwg.mxu0
      %v2308 = vmul.f32 %v2305, 0.25
      %v2309 = vmul.f32 %v2261, %v2277
      %v2310 = vpack.c.bf16 %v2309, %v2309
      %2311 = vmatpush.bf16.msra.mxu0 %v1080
      %2312 = vmatpush.bf16.msra.mxu0 %v1079
      %2313 = vmatpush.bf16.msra.mxu0 %v1078
      %2314 = vmatpush.bf16.msra.mxu0 %v1077
      %2315 = vmatpush.bf16.msra.mxu0 %v1076
      %2316 = vmatpush.bf16.msra.mxu0 %v1075
      %2317 = vmatpush.bf16.msra.mxu0 %v1074
      %2318 = vmatpush.bf16.msra.mxu0 %v1073
      %2319 = vmatmul.bf16.gmra.mxu0 %v2310
      %v2320 = vpop.f32.mrf.mxu0
      %v2321 = vadd.f32 0.0, %v2320
      %v2322 = vpop.f32.mrf.mxu0
      %2323 = vdwg.mxu0
      %v2324 = vmul.f32 %v2321, 0.25
      %v2325 = vmul.f32 %v2263, %v2275
      %v2326 = vpack.c.bf16 %v2325, %v2325
      %2327 = vmatpush.bf16.msra.mxu0 %v1080
      %2328 = vmatpush.bf16.msra.mxu0 %v1079
      %2329 = vmatpush.bf16.msra.mxu0 %v1078
      %2330 = vmatpush.bf16.msra.mxu0 %v1077
      %2331 = vmatpush.bf16.msra.mxu0 %v1076
      %2332 = vmatpush.bf16.msra.mxu0 %v1075
      %2333 = vmatpush.bf16.msra.mxu0 %v1074
      %2334 = vmatpush.bf16.msra.mxu0 %v1073
      %2335 = vmatmul.bf16.gmra.mxu0 %v2326
      %v2336 = vpop.f32.mrf.mxu0
      %v2337 = vadd.f32 0.0, %v2336
      %v2338 = vpop.f32.mrf.mxu0
      %2339 = vdwg.mxu0
      %v2340 = vmul.f32 %v2337, 0.25
      %v2341 = vmul.f32 %v2263, %v2277
      %v2342 = vpack.c.bf16 %v2341, %v2341
      %2343 = vmatpush.bf16.msra.mxu0 %v1080
      %2344 = vmatpush.bf16.msra.mxu0 %v1079
      %2345 = vmatpush.bf16.msra.mxu0 %v1078
      %2346 = vmatpush.bf16.msra.mxu0 %v1077
      %2347 = vmatpush.bf16.msra.mxu0 %v1076
      %2348 = vmatpush.bf16.msra.mxu0 %v1075
      %2349 = vmatpush.bf16.msra.mxu0 %v1074
      %2350 = vmatpush.bf16.msra.mxu0 %v1073
      %2351 = vmatmul.bf16.gmra.mxu0 %v2342
      %v2352 = vpop.f32.mrf.mxu0
      %v2353 = vadd.f32 0.0, %v2352
      %v2354 = vpop.f32.mrf.mxu0
      %2355 = vdwg.mxu0
      %v2356 = vmul.f32 %v2353, 0.25
      %v2357 = vmax.f32 %v2308, %v2324
      %v2358 = vsub.f32 %v2308, %v2357
      %v2359 = vmul.f32 %v2358, 1.442695
      %v2360 = vpow.pop %v2359
      %v2361 = vsub.f32 %v2324, %v2357
      %v2362 = vmul.f32 %v2361, 1.442695
      %v2363 = vpow.pop %v2362
      %v2364 = vadd.f32 %v2360, %v2363
      %v2365 = vrcp.pop %v2364
      %v2366 = vmul.f32 %v2360, %v2365
      %v2367 = vmul.f32 %v2363, %v2365
      %v2368 = vmax.f32 %v2340, %v2356
      %v2369 = vsub.f32 %v2340, %v2368
      %v2370 = vmul.f32 %v2369, 1.442695
      %v2371 = vpow.pop %v2370
      %v2372 = vsub.f32 %v2356, %v2368
      %v2373 = vmul.f32 %v2372, 1.442695
      %v2374 = vpow.pop %v2373
      %v2375 = vadd.f32 %v2371, %v2374
      %v2376 = vrcp.pop %v2375
      %v2377 = vmul.f32 %v2371, %v2376
      %v2378 = vmul.f32 %v2374, %v2376
      %v2379 = vpack.c.bf16 %v2366, %v2366
      %2380 = vmatpush.bf16.msra.mxu0 %v1213
      %2381 = vmatpush.bf16.msra.mxu0 %v1212
      %2382 = vmatpush.bf16.msra.mxu0 %v1211
      %2383 = vmatpush.bf16.msra.mxu0 %v1210
      %2384 = vmatpush.bf16.msra.mxu0 %v1209
      %2385 = vmatpush.bf16.msra.mxu0 %v1208
      %2386 = vmatpush.bf16.msra.mxu0 %v1207
      %2387 = vmatpush.bf16.msra.mxu0 %v1206
      %2388 = vmatmul.bf16.gmra.mxu0 %v2379
      %v2389 = vpop.f32.mrf.mxu0
      %v2390 = vadd.f32 0.0, %v2389
      %v2391 = vpop.f32.mrf.mxu0
      %2392 = vdwg.mxu0
      %v2393 = vmul.f32 %v2390, %v2289
      %v2394 = vpack.c.bf16 %v2367, %v2367
      %2395 = vmatpush.bf16.msra.mxu0 %v1213
      %2396 = vmatpush.bf16.msra.mxu0 %v1212
      %2397 = vmatpush.bf16.msra.mxu0 %v1211
      %2398 = vmatpush.bf16.msra.mxu0 %v1210
      %2399 = vmatpush.bf16.msra.mxu0 %v1209
      %2400 = vmatpush.bf16.msra.mxu0 %v1208
      %2401 = vmatpush.bf16.msra.mxu0 %v1207
      %2402 = vmatpush.bf16.msra.mxu0 %v1206
      %2403 = vmatmul.bf16.gmra.mxu0 %v2394
      %v2404 = vpop.f32.mrf.mxu0
      %v2405 = vadd.f32 0.0, %v2404
      %v2406 = vpop.f32.mrf.mxu0
      %2407 = vdwg.mxu0
      %v2408 = vmul.f32 %v2405, %v2291
      %v2409 = vadd.f32 %v2393, %v2408
      %v2410 = vpack.c.bf16 %v2377, %v2377
      %2411 = vmatpush.bf16.msra.mxu0 %v1213
      %2412 = vmatpush.bf16.msra.mxu0 %v1212
      %2413 = vmatpush.bf16.msra.mxu0 %v1211
      %2414 = vmatpush.bf16.msra.mxu0 %v1210
      %2415 = vmatpush.bf16.msra.mxu0 %v1209
      %2416 = vmatpush.bf16.msra.mxu0 %v1208
      %2417 = vmatpush.bf16.msra.mxu0 %v1207
      %2418 = vmatpush.bf16.msra.mxu0 %v1206
      %2419 = vmatmul.bf16.gmra.mxu0 %v2410
      %v2420 = vpop.f32.mrf.mxu0
      %v2421 = vadd.f32 0.0, %v2420
      %v2422 = vpop.f32.mrf.mxu0
      %2423 = vdwg.mxu0
      %v2424 = vmul.f32 %v2421, %v2289
      %v2425 = vpack.c.bf16 %v2378, %v2378
      %2426 = vmatpush.bf16.msra.mxu0 %v1213
      %2427 = vmatpush.bf16.msra.mxu0 %v1212
      %2428 = vmatpush.bf16.msra.mxu0 %v1211
      %2429 = vmatpush.bf16.msra.mxu0 %v1210
      %2430 = vmatpush.bf16.msra.mxu0 %v1209
      %2431 = vmatpush.bf16.msra.mxu0 %v1208
      %2432 = vmatpush.bf16.msra.mxu0 %v1207
      %2433 = vmatpush.bf16.msra.mxu0 %v1206
      %2434 = vmatmul.bf16.gmra.mxu0 %v2425
      %v2435 = vpop.f32.mrf.mxu0
      %v2436 = vadd.f32 0.0, %v2435
      %v2437 = vpop.f32.mrf.mxu0
      %2438 = vdwg.mxu0
      %v2439 = vmul.f32 %v2436, %v2291
      %v2440 = vadd.f32 %v2424, %v2439
      %s2441 = scalar_lea.vmem [#allocation18], 64
      %v2442 = vld [vmem:[%s2441] sm:$0xf]
      %v2443 = vld [vmem:[%s2441 + $0x4] sm:$0xf]
      %v2444 = vld [vmem:[%s2441 + $0x8] sm:$0xf]
      %v2445 = vld [vmem:[%s2441 + $0xc] sm:$0xf]
      %v2446 = vld [vmem:[%s2441 + $0x10] sm:$0xf]
      %v2447 = vld [vmem:[%s2441 + $0x14] sm:$0xf]
      %v2448 = vld [vmem:[%s2441 + $0x18] sm:$0xf]
      %v2449 = vld [vmem:[%s2441 + $0x1c] sm:$0xf]
      %v2450 = vld [vmem:[%s2441 + $0x20] sm:$0xf]
      %v2451 = vld [vmem:[%s2441 + $0x24] sm:$0xf]
      %v2452 = vld [vmem:[%s2441 + $0x28] sm:$0xf]
      %v2453 = vld [vmem:[%s2441 + $0x2c] sm:$0xf]
      %v2454 = vld [vmem:[%s2441 + $0x30] sm:$0xf]
      %v2455 = vld [vmem:[%s2441 + $0x34] sm:$0xf]
      %v2456 = vld [vmem:[%s2441 + $0x38] sm:$0xf]
      %v2457 = vld [vmem:[%s2441 + $0x3c] sm:$0xf]
      %s2458 = scalar_lea.vmem [#allocation20], 1
      %v2459 = vld [vmem:[%s2458] sm:$0x1]
      %v2460 = vpack.c.bf16 %v2440, %v2409
      %v2462 = vperm.slane %v2459, 0
      %v2480 = vunpack.c.l.b16 %v2442
      %v2481 = vunpack.c.l.b16 %v2443
      %v2482 = vunpack.c.l.b16 %v2444
      %v2483 = vunpack.c.l.b16 %v2445
      %v2484 = vunpack.c.l.b16 %v2446
      %v2485 = vunpack.c.l.b16 %v2447
      %v2486 = vunpack.c.l.b16 %v2448
      %v2487 = vunpack.c.l.b16 %v2449
      %v2488 = vunpack.c.l.b16 %v2450
      %v2489 = vunpack.c.l.b16 %v2451
      %v2490 = vunpack.c.l.b16 %v2452
      %v2491 = vunpack.c.l.b16 %v2453
      %v2492 = vunpack.c.l.b16 %v2454
      %v2493 = vunpack.c.l.b16 %v2455
      %v2494 = vunpack.c.l.b16 %v2456
      %v2495 = vunpack.c.l.b16 %v2457
      %v2496 = vpack.c.b16 %v2481, %v2480
      %v2497 = vpack.c.b16 %v2483, %v2482
      %v2498 = vpack.c.b16 %v2485, %v2484
      %v2499 = vpack.c.b16 %v2487, %v2486
      %v2500 = vpack.c.b16 %v2489, %v2488
      %v2501 = vpack.c.b16 %v2491, %v2490
      %v2502 = vpack.c.b16 %v2493, %v2492
      %v2503 = vpack.c.b16 %v2495, %v2494
      %2512 = vmatpush.bf16.msra.mxu0 %v2503
      %2513 = vmatpush.bf16.msra.mxu0 %v2502
      %2514 = vmatpush.bf16.msra.mxu0 %v2501
      %2515 = vmatpush.bf16.msra.mxu0 %v2500
      %2516 = vmatpush.bf16.msra.mxu0 %v2499
      %2517 = vmatpush.bf16.msra.mxu0 %v2498
      %2518 = vmatpush.bf16.msra.mxu0 %v2497
      %2519 = vmatpush.bf16.msra.mxu0 %v2496
      %2520 = vmatmul.bf16.gmra.mxu0 %v2460
      %v2521 = vpop.f32.mrf.mxu0
      %v2522 = vadd.f32 %v2462, %v2521
      %v2523 = vpop.f32.mrf.mxu0
      %v2524 = vadd.f32 %v2462, %v2523
      %2525 = vdwg.mxu0
      %v2526 = vadd.f32 %v2078, %v2522
      %v2527 = vadd.f32 %v2079, %v2524
      %s2528 = scalar_lea.vmem [#allocation21], 1
      %v2529 = vld [vmem:[%s2528] sm:$0x1]
      %s2530 = scalar_lea.vmem [#allocation23], 1
      %v2531 = vld [vmem:[%s2530] sm:$0x1]
      %2532 = vadd.xlane.f32.xlu0 %v2526
      %v2533 = vpop.xlane.xlu0 %2532
      %2534 = vadd.xlane.f32.xlu0 %v2527
      %v2535 = vpop.xlane.xlu0 %2534
      %v2536 = vmul.f32 %v2533, %v1380
      %v2537 = vmul.f32 %v2535, %v1380
      %v2538 = vmul.f32 %v2526, %v2526
      %v2539 = vmul.f32 %v2527, %v2527
      %2540 = vadd.xlane.f32.xlu0 %v2538
      %v2541 = vpop.xlane.xlu0 %2540
      %2542 = vadd.xlane.f32.xlu0 %v2539
      %v2543 = vpop.xlane.xlu0 %2542
      %v2544 = vmul.f32 %v2541, %v1380
      %v2545 = vmul.f32 %v2543, %v1380
      %v2546 = vmul.f32 %v2536, %v2536
      %v2547 = vmul.f32 %v2537, %v2537
      %v2548 = vsub.f32 %v2544, %v2546
      %v2549 = vsub.f32 %v2545, %v2547
      %v2550 = vmax.f32 %v2548, 0.0
      %v2551 = vmax.f32 %v2549, 0.0
      %v2552 = vsub.f32 %v2526, %v2536
      %v2553 = vsub.f32 %v2527, %v2537
      %v2554 = vadd.f32 %v2550, 1e-05
      %v2555 = vadd.f32 %v2551, 1e-05
      %v2556 = vrsqrt.pop %v2554
      %v2557 = vmul.f32 %v2556, %v2554
      %v2558 = vmul.f32 %v2557, %v2556
      %v2559 = vmul.f32 0.5, %v2558
      %v2560 = vsub.f32 1.5, %v2559
      %v2561 = vmul.f32 %v2556, %v2560
      %vm2562 = vweird.f32 %v2554
      %vm2563 = vweird.f32 %v2556
      %vm2564 = vmor %vm2562, %vm2563
      %v2565 = vsel %vm2564, %v2556, %v2561
      %v2566 = vrsqrt.pop %v2555
      %v2567 = vmul.f32 %v2566, %v2555
      %v2568 = vmul.f32 %v2567, %v2566
      %v2569 = vmul.f32 0.5, %v2568
      %v2570 = vsub.f32 1.5, %v2569
      %v2571 = vmul.f32 %v2566, %v2570
      %vm2572 = vweird.f32 %v2555
      %vm2573 = vweird.f32 %v2566
      %vm2574 = vmor %vm2572, %vm2573
      %v2575 = vsel %vm2574, %v2566, %v2571
      %v2576 = vmul.f32 %v2552, %v2565
      %v2577 = vmul.f32 %v2553, %v2575
      %v2579 = vperm.slane %v2529, 0
      %v2581 = vmul.f32 %v2576, %v2579
      %v2582 = vmul.f32 %v2577, %v2579
      %v2584 = vperm.slane %v2531, 0
      %v2586 = vadd.f32 %v2581, %v2584
      %v2587 = vadd.f32 %v2582, %v2584
      %s2588 = scalar_lea.vmem [#allocation24], 256
      %v2589 = vld [vmem:[%s2588] sm:$0xff]
      %v2590 = vld [vmem:[%s2588 + $0x8] sm:$0xff]
      %v2591 = vld [vmem:[%s2588 + $0x10] sm:$0xff]
      %v2592 = vld [vmem:[%s2588 + $0x18] sm:$0xff]
      %v2593 = vld [vmem:[%s2588 + $0x20] sm:$0xff]
      %v2594 = vld [vmem:[%s2588 + $0x28] sm:$0xff]
      %v2595 = vld [vmem:[%s2588 + $0x30] sm:$0xff]
      %v2596 = vld [vmem:[%s2588 + $0x38] sm:$0xff]
      %v2597 = vld [vmem:[%s2588 + $0x40] sm:$0xff]
      %v2598 = vld [vmem:[%s2588 + $0x48] sm:$0xff]
      %v2599 = vld [vmem:[%s2588 + $0x50] sm:$0xff]
      %v2600 = vld [vmem:[%s2588 + $0x58] sm:$0xff]
      %v2601 = vld [vmem:[%s2588 + $0x60] sm:$0xff]
      %v2602 = vld [vmem:[%s2588 + $0x68] sm:$0xff]
      %v2603 = vld [vmem:[%s2588 + $0x70] sm:$0xff]
      %v2604 = vld [vmem:[%s2588 + $0x78] sm:$0xff]
      %v2605 = vld [vmem:[%s2588 + $0x80] sm:$0xff]
      %v2606 = vld [vmem:[%s2588 + $0x88] sm:$0xff]
      %v2607 = vld [vmem:[%s2588 + $0x90] sm:$0xff]
      %v2608 = vld [vmem:[%s2588 + $0x98] sm:$0xff]
      %v2609 = vld [vmem:[%s2588 + $0xa0] sm:$0xff]
      %v2610 = vld [vmem:[%s2588 + $0xa8] sm:$0xff]
      %v2611 = vld [vmem:[%s2588 + $0xb0] sm:$0xff]
      %v2612 = vld [vmem:[%s2588 + $0xb8] sm:$0xff]
      %v2613 = vld [vmem:[%s2588 + $0xc0] sm:$0xff]
      %v2614 = vld [vmem:[%s2588 + $0xc8] sm:$0xff]
      %v2615 = vld [vmem:[%s2588 + $0xd0] sm:$0xff]
      %v2616 = vld [vmem:[%s2588 + $0xd8] sm:$0xff]
      %v2617 = vld [vmem:[%s2588 + $0xe0] sm:$0xff]
      %v2618 = vld [vmem:[%s2588 + $0xe8] sm:$0xff]
      %v2619 = vld [vmem:[%s2588 + $0xf0] sm:$0xff]
      %v2620 = vld [vmem:[%s2588 + $0xf8] sm:$0xff]
      %s2621 = scalar_lea.vmem [#allocation26], 4
      %v2622 = vld [vmem:[%s2621] sm:$0xf]
      %v2623 = vpack.c.bf16 %v2587, %v2586
      %v2625 = vperm.slane %v2622, 0
      %v2626 = vperm.slane %v2622, 1
      %v2627 = vperm.slane %v2622, 2
      %v2628 = vperm.slane %v2622, 3
      %v2665 = vunpack.c.l.b16 %v2589
      %v2666 = vunpack.c.h.b16 %v2589
      %v2667 = vunpack.c.l.b16 %v2590
      %v2668 = vunpack.c.h.b16 %v2590
      %v2669 = vunpack.c.l.b16 %v2591
      %v2670 = vunpack.c.h.b16 %v2591
      %v2671 = vunpack.c.l.b16 %v2592
      %v2672 = vunpack.c.h.b16 %v2592
      %v2673 = vunpack.c.l.b16 %v2593
      %v2674 = vunpack.c.h.b16 %v2593
      %v2675 = vunpack.c.l.b16 %v2594
      %v2676 = vunpack.c.h.b16 %v2594
      %v2677 = vunpack.c.l.b16 %v2595
      %v2678 = vunpack.c.h.b16 %v2595
      %v2679 = vunpack.c.l.b16 %v2596
      %v2680 = vunpack.c.h.b16 %v2596
      %v2681 = vunpack.c.l.b16 %v2597
      %v2682 = vunpack.c.h.b16 %v2597
      %v2683 = vunpack.c.l.b16 %v2598
      %v2684 = vunpack.c.h.b16 %v2598
      %v2685 = vunpack.c.l.b16 %v2599
      %v2686 = vunpack.c.h.b16 %v2599
      %v2687 = vunpack.c.l.b16 %v2600
      %v2688 = vunpack.c.h.b16 %v2600
      %v2689 = vunpack.c.l.b16 %v2601
      %v2690 = vunpack.c.h.b16 %v2601
      %v2691 = vunpack.c.l.b16 %v2602
      %v2692 = vunpack.c.h.b16 %v2602
      %v2693 = vunpack.c.l.b16 %v2603
      %v2694 = vunpack.c.h.b16 %v2603
      %v2695 = vunpack.c.l.b16 %v2604
      %v2696 = vunpack.c.h.b16 %v2604
      %v2697 = vunpack.c.l.b16 %v2605
      %v2698 = vunpack.c.h.b16 %v2605
      %v2699 = vunpack.c.l.b16 %v2606
      %v2700 = vunpack.c.h.b16 %v2606
      %v2701 = vunpack.c.l.b16 %v2607
      %v2702 = vunpack.c.h.b16 %v2607
      %v2703 = vunpack.c.l.b16 %v2608
      %v2704 = vunpack.c.h.b16 %v2608
      %v2705 = vunpack.c.l.b16 %v2609
      %v2706 = vunpack.c.h.b16 %v2609
      %v2707 = vunpack.c.l.b16 %v2610
      %v2708 = vunpack.c.h.b16 %v2610
      %v2709 = vunpack.c.l.b16 %v2611
      %v2710 = vunpack.c.h.b16 %v2611
      %v2711 = vunpack.c.l.b16 %v2612
      %v2712 = vunpack.c.h.b16 %v2612
      %v2713 = vunpack.c.l.b16 %v2613
      %v2714 = vunpack.c.h.b16 %v2613
      %v2715 = vunpack.c.l.b16 %v2614
      %v2716 = vunpack.c.h.b16 %v2614
      %v2717 = vunpack.c.l.b16 %v2615
      %v2718 = vunpack.c.h.b16 %v2615
      %v2719 = vunpack.c.l.b16 %v2616
      %v2720 = vunpack.c.h.b16 %v2616
      %v2721 = vunpack.c.l.b16 %v2617
      %v2722 = vunpack.c.h.b16 %v2617
      %v2723 = vunpack.c.l.b16 %v2618
      %v2724 = vunpack.c.h.b16 %v2618
      %v2725 = vunpack.c.l.b16 %v2619
      %v2726 = vunpack.c.h.b16 %v2619
      %v2727 = vunpack.c.l.b16 %v2620
      %v2728 = vunpack.c.h.b16 %v2620
      %v2729 = vpack.c.b16 %v2669, %v2665
      %v2730 = vpack.c.b16 %v2670, %v2666
      %v2731 = vpack.c.b16 %v2671, %v2667
      %v2732 = vpack.c.b16 %v2672, %v2668
      %v2733 = vpack.c.b16 %v2677, %v2673
      %v2734 = vpack.c.b16 %v2678, %v2674
      %v2735 = vpack.c.b16 %v2679, %v2675
      %v2736 = vpack.c.b16 %v2680, %v2676
      %v2737 = vpack.c.b16 %v2685, %v2681
      %v2738 = vpack.c.b16 %v2686, %v2682
      %v2739 = vpack.c.b16 %v2687, %v2683
      %v2740 = vpack.c.b16 %v2688, %v2684
      %v2741 = vpack.c.b16 %v2693, %v2689
      %v2742 = vpack.c.b16 %v2694, %v2690
      %v2743 = vpack.c.b16 %v2695, %v2691
      %v2744 = vpack.c.b16 %v2696, %v2692
      %v2745 = vpack.c.b16 %v2701, %v2697
      %v2746 = vpack.c.b16 %v2702, %v2698
      %v2747 = vpack.c.b16 %v2703, %v2699
      %v2748 = vpack.c.b16 %v2704, %v2700
      %v2749 = vpack.c.b16 %v2709, %v2705
      %v2750 = vpack.c.b16 %v2710, %v2706
      %v2751 = vpack.c.b16 %v2711, %v2707
      %v2752 = vpack.c.b16 %v2712, %v2708
      %v2753 = vpack.c.b16 %v2717, %v2713
      %v2754 = vpack.c.b16 %v2718, %v2714
      %v2755 = vpack.c.b16 %v2719, %v2715
      %v2756 = vpack.c.b16 %v2720, %v2716
      %v2757 = vpack.c.b16 %v2725, %v2721
      %v2758 = vpack.c.b16 %v2726, %v2722
      %v2759 = vpack.c.b16 %v2727, %v2723
      %v2760 = vpack.c.b16 %v2728, %v2724
      %2793 = vmatpush.bf16.msra.mxu0 %v2757
      %2794 = vmatpush.bf16.msra.mxu0 %v2753
      %2795 = vmatpush.bf16.msra.mxu0 %v2749
      %2796 = vmatpush.bf16.msra.mxu0 %v2745
      %2797 = vmatpush.bf16.msra.mxu0 %v2741
      %2798 = vmatpush.bf16.msra.mxu0 %v2737
      %2799 = vmatpush.bf16.msra.mxu0 %v2733
      %2800 = vmatpush.bf16.msra.mxu0 %v2729
      %2801 = vmatmul.bf16.gmra.mxu0 %v2623
      %v2802 = vpop.f32.mrf.mxu0
      %v2803 = vadd.f32 %v2625, %v2802
      %v2804 = vpop.f32.mrf.mxu0
      %v2805 = vadd.f32 %v2625, %v2804
      %2806 = vdwg.mxu0
      %2807 = vmatpush.bf16.msra.mxu0 %v2758
      %2808 = vmatpush.bf16.msra.mxu0 %v2754
      %2809 = vmatpush.bf16.msra.mxu0 %v2750
      %2810 = vmatpush.bf16.msra.mxu0 %v2746
      %2811 = vmatpush.bf16.msra.mxu0 %v2742
      %2812 = vmatpush.bf16.msra.mxu0 %v2738
      %2813 = vmatpush.bf16.msra.mxu0 %v2734
      %2814 = vmatpush.bf16.msra.mxu0 %v2730
      %2815 = vmatmul.bf16.gmra.mxu0 %v2623
      %v2816 = vpop.f32.mrf.mxu0
      %v2817 = vadd.f32 %v2626, %v2816
      %v2818 = vpop.f32.mrf.mxu0
      %v2819 = vadd.f32 %v2626, %v2818
      %2820 = vdwg.mxu0
      %2821 = vmatpush.bf16.msra.mxu0 %v2759
      %2822 = vmatpush.bf16.msra.mxu0 %v2755
      %2823 = vmatpush.bf16.msra.mxu0 %v2751
      %2824 = vmatpush.bf16.msra.mxu0 %v2747
      %2825 = vmatpush.bf16.msra.mxu0 %v2743
      %2826 = vmatpush.bf16.msra.mxu0 %v2739
      %2827 = vmatpush.bf16.msra.mxu0 %v2735
      %2828 = vmatpush.bf16.msra.mxu0 %v2731
      %2829 = vmatmul.bf16.gmra.mxu0 %v2623
      %v2830 = vpop.f32.mrf.mxu0
      %v2831 = vadd.f32 %v2627, %v2830
      %v2832 = vpop.f32.mrf.mxu0
      %v2833 = vadd.f32 %v2627, %v2832
      %2834 = vdwg.mxu0
      %2835 = vmatpush.bf16.msra.mxu0 %v2760
      %2836 = vmatpush.bf16.msra.mxu0 %v2756
      %2837 = vmatpush.bf16.msra.mxu0 %v2752
      %2838 = vmatpush.bf16.msra.mxu0 %v2748
      %2839 = vmatpush.bf16.msra.mxu0 %v2744
      %2840 = vmatpush.bf16.msra.mxu0 %v2740
      %2841 = vmatpush.bf16.msra.mxu0 %v2736
      %2842 = vmatpush.bf16.msra.mxu0 %v2732
      %2843 = vmatmul.bf16.gmra.mxu0 %v2623
      %v2844 = vpop.f32.mrf.mxu0
      %v2845 = vadd.f32 %v2628, %v2844
      %v2846 = vpop.f32.mrf.mxu0
      %v2847 = vadd.f32 %v2628, %v2846
      %2848 = vdwg.mxu0
      %v2849 = vmax.f32 %v2803, 0.0
      %v2850 = vmax.f32 %v2817, 0.0
      %v2851 = vmax.f32 %v2831, 0.0
      %v2852 = vmax.f32 %v2845, 0.0
      %v2853 = vmax.f32 %v2805, 0.0
      %v2854 = vmax.f32 %v2819, 0.0
      %v2855 = vmax.f32 %v2833, 0.0
      %v2856 = vmax.f32 %v2847, 0.0
      %s2857 = scalar_lea.vmem [#allocation27], 256
      %v2858 = vld [vmem:[%s2857] sm:$0xf]
      %v2859 = vld [vmem:[%s2857 + $0x4] sm:$0xf]
      %v2860 = vld [vmem:[%s2857 + $0x8] sm:$0xf]
      %v2861 = vld [vmem:[%s2857 + $0xc] sm:$0xf]
      %v2862 = vld [vmem:[%s2857 + $0x10] sm:$0xf]
      %v2863 = vld [vmem:[%s2857 + $0x14] sm:$0xf]
      %v2864 = vld [vmem:[%s2857 + $0x18] sm:$0xf]
      %v2865 = vld [vmem:[%s2857 + $0x1c] sm:$0xf]
      %v2866 = vld [vmem:[%s2857 + $0x20] sm:$0xf]
      %v2867 = vld [vmem:[%s2857 + $0x24] sm:$0xf]
      %v2868 = vld [vmem:[%s2857 + $0x28] sm:$0xf]
      %v2869 = vld [vmem:[%s2857 + $0x2c] sm:$0xf]
      %v2870 = vld [vmem:[%s2857 + $0x30] sm:$0xf]
      %v2871 = vld [vmem:[%s2857 + $0x34] sm:$0xf]
      %v2872 = vld [vmem:[%s2857 + $0x38] sm:$0xf]
      %v2873 = vld [vmem:[%s2857 + $0x3c] sm:$0xf]
      %v2874 = vld [vmem:[%s2857 + $0x40] sm:$0xf]
      %v2875 = vld [vmem:[%s2857 + $0x44] sm:$0xf]
      %v2876 = vld [vmem:[%s2857 + $0x48] sm:$0xf]
      %v2877 = vld [vmem:[%s2857 + $0x4c] sm:$0xf]
      %v2878 = vld [vmem:[%s2857 + $0x50] sm:$0xf]
      %v2879 = vld [vmem:[%s2857 + $0x54] sm:$0xf]
      %v2880 = vld [vmem:[%s2857 + $0x58] sm:$0xf]
      %v2881 = vld [vmem:[%s2857 + $0x5c] sm:$0xf]
      %v2882 = vld [vmem:[%s2857 + $0x60] sm:$0xf]
      %v2883 = vld [vmem:[%s2857 + $0x64] sm:$0xf]
      %v2884 = vld [vmem:[%s2857 + $0x68] sm:$0xf]
      %v2885 = vld [vmem:[%s2857 + $0x6c] sm:$0xf]
      %v2886 = vld [vmem:[%s2857 + $0x70] sm:$0xf]
      %v2887 = vld [vmem:[%s2857 + $0x74] sm:$0xf]
      %v2888 = vld [vmem:[%s2857 + $0x78] sm:$0xf]
      %v2889 = vld [vmem:[%s2857 + $0x7c] sm:$0xf]
      %v2890 = vld [vmem:[%s2857 + $0x80] sm:$0xf]
      %v2891 = vld [vmem:[%s2857 + $0x84] sm:$0xf]
      %v2892 = vld [vmem:[%s2857 + $0x88] sm:$0xf]
      %v2893 = vld [vmem:[%s2857 + $0x8c] sm:$0xf]
      %v2894 = vld [vmem:[%s2857 + $0x90] sm:$0xf]
      %v2895 = vld [vmem:[%s2857 + $0x94] sm:$0xf]
      %v2896 = vld [vmem:[%s2857 + $0x98] sm:$0xf]
      %v2897 = vld [vmem:[%s2857 + $0x9c] sm:$0xf]
      %v2898 = vld [vmem:[%s2857 + $0xa0] sm:$0xf]
      %v2899 = vld [vmem:[%s2857 + $0xa4] sm:$0xf]
      %v2900 = vld [vmem:[%s2857 + $0xa8] sm:$0xf]
      %v2901 = vld [vmem:[%s2857 + $0xac] sm:$0xf]
      %v2902 = vld [vmem:[%s2857 + $0xb0] sm:$0xf]
      %v2903 = vld [vmem:[%s2857 + $0xb4] sm:$0xf]
      %v2904 = vld [vmem:[%s2857 + $0xb8] sm:$0xf]
      %v2905 = vld [vmem:[%s2857 + $0xbc] sm:$0xf]
      %v2906 = vld [vmem:[%s2857 + $0xc0] sm:$0xf]
      %v2907 = vld [vmem:[%s2857 + $0xc4] sm:$0xf]
      %v2908 = vld [vmem:[%s2857 + $0xc8] sm:$0xf]
      %v2909 = vld [vmem:[%s2857 + $0xcc] sm:$0xf]
      %v2910 = vld [vmem:[%s2857 + $0xd0] sm:$0xf]
      %v2911 = vld [vmem:[%s2857 + $0xd4] sm:$0xf]
      %v2912 = vld [vmem:[%s2857 + $0xd8] sm:$0xf]
      %v2913 = vld [vmem:[%s2857 + $0xdc] sm:$0xf]
      %v2914 = vld [vmem:[%s2857 + $0xe0] sm:$0xf]
      %v2915 = vld [vmem:[%s2857 + $0xe4] sm:$0xf]
      %v2916 = vld [vmem:[%s2857 + $0xe8] sm:$0xf]
      %v2917 = vld [vmem:[%s2857 + $0xec] sm:$0xf]
      %v2918 = vld [vmem:[%s2857 + $0xf0] sm:$0xf]
      %v2919 = vld [vmem:[%s2857 + $0xf4] sm:$0xf]
      %v2920 = vld [vmem:[%s2857 + $0xf8] sm:$0xf]
      %v2921 = vld [vmem:[%s2857 + $0xfc] sm:$0xf]
      %s2922 = scalar_lea.vmem [#allocation29], 1
      %v2923 = vld [vmem:[%s2922] sm:$0x1]
      %v2924 = vpack.c.bf16 %v2853, %v2849
      %v2925 = vpack.c.bf16 %v2854, %v2850
      %v2926 = vpack.c.bf16 %v2855, %v2851
      %v2927 = vpack.c.bf16 %v2856, %v2852
      %v2929 = vperm.slane %v2923, 0
      %v2995 = vunpack.c.l.b16 %v2858
      %v2996 = vunpack.c.l.b16 %v2859
      %v2997 = vunpack.c.l.b16 %v2860
      %v2998 = vunpack.c.l.b16 %v2861
      %v2999 = vunpack.c.l.b16 %v2862
      %v3000 = vunpack.c.l.b16 %v2863
      %v3001 = vunpack.c.l.b16 %v2864
      %v3002 = vunpack.c.l.b16 %v2865
      %v3003 = vunpack.c.l.b16 %v2866
      %v3004 = vunpack.c.l.b16 %v2867
      %v3005 = vunpack.c.l.b16 %v2868
      %v3006 = vunpack.c.l.b16 %v2869
      %v3007 = vunpack.c.l.b16 %v2870
      %v3008 = vunpack.c.l.b16 %v2871
      %v3009 = vunpack.c.l.b16 %v2872
      %v3010 = vunpack.c.l.b16 %v2873
      %v3011 = vunpack.c.l.b16 %v2874
      %v3012 = vunpack.c.l.b16 %v2875
      %v3013 = vunpack.c.l.b16 %v2876
      %v3014 = vunpack.c.l.b16 %v2877
      %v3015 = vunpack.c.l.b16 %v2878
      %v3016 = vunpack.c.l.b16 %v2879
      %v3017 = vunpack.c.l.b16 %v2880
      %v3018 = vunpack.c.l.b16 %v2881
      %v3019 = vunpack.c.l.b16 %v2882
      %v3020 = vunpack.c.l.b16 %v2883
      %v3021 = vunpack.c.l.b16 %v2884
      %v3022 = vunpack.c.l.b16 %v2885
      %v3023 = vunpack.c.l.b16 %v2886
      %v3024 = vunpack.c.l.b16 %v2887
      %v3025 = vunpack.c.l.b16 %v2888
      %v3026 = vunpack.c.l.b16 %v2889
      %v3027 = vunpack.c.l.b16 %v2890
      %v3028 = vunpack.c.l.b16 %v2891
      %v3029 = vunpack.c.l.b16 %v2892
      %v3030 = vunpack.c.l.b16 %v2893
      %v3031 = vunpack.c.l.b16 %v2894
      %v3032 = vunpack.c.l.b16 %v2895
      %v3033 = vunpack.c.l.b16 %v2896
      %v3034 = vunpack.c.l.b16 %v2897
      %v3035 = vunpack.c.l.b16 %v2898
      %v3036 = vunpack.c.l.b16 %v2899
      %v3037 = vunpack.c.l.b16 %v2900
      %v3038 = vunpack.c.l.b16 %v2901
      %v3039 = vunpack.c.l.b16 %v2902
      %v3040 = vunpack.c.l.b16 %v2903
      %v3041 = vunpack.c.l.b16 %v2904
      %v3042 = vunpack.c.l.b16 %v2905
      %v3043 = vunpack.c.l.b16 %v2906
      %v3044 = vunpack.c.l.b16 %v2907
      %v3045 = vunpack.c.l.b16 %v2908
      %v3046 = vunpack.c.l.b16 %v2909
      %v3047 = vunpack.c.l.b16 %v2910
      %v3048 = vunpack.c.l.b16 %v2911
      %v3049 = vunpack.c.l.b16 %v2912
      %v3050 = vunpack.c.l.b16 %v2913
      %v3051 = vunpack.c.l.b16 %v2914
      %v3052 = vunpack.c.l.b16 %v2915
      %v3053 = vunpack.c.l.b16 %v2916
      %v3054 = vunpack.c.l.b16 %v2917
      %v3055 = vunpack.c.l.b16 %v2918
      %v3056 = vunpack.c.l.b16 %v2919
      %v3057 = vunpack.c.l.b16 %v2920
      %v3058 = vunpack.c.l.b16 %v2921
      %v3059 = vpack.c.b16 %v2996, %v2995
      %v3060 = vpack.c.b16 %v2998, %v2997
      %v3061 = vpack.c.b16 %v3000, %v2999
      %v3062 = vpack.c.b16 %v3002, %v3001
      %v3063 = vpack.c.b16 %v3004, %v3003
      %v3064 = vpack.c.b16 %v3006, %v3005
      %v3065 = vpack.c.b16 %v3008, %v3007
      %v3066 = vpack.c.b16 %v3010, %v3009
      %v3067 = vpack.c.b16 %v3012, %v3011
      %v3068 = vpack.c.b16 %v3014, %v3013
      %v3069 = vpack.c.b16 %v3016, %v3015
      %v3070 = vpack.c.b16 %v3018, %v3017
      %v3071 = vpack.c.b16 %v3020, %v3019
      %v3072 = vpack.c.b16 %v3022, %v3021
      %v3073 = vpack.c.b16 %v3024, %v3023
      %v3074 = vpack.c.b16 %v3026, %v3025
      %v3075 = vpack.c.b16 %v3028, %v3027
      %v3076 = vpack.c.b16 %v3030, %v3029
      %v3077 = vpack.c.b16 %v3032, %v3031
      %v3078 = vpack.c.b16 %v3034, %v3033
      %v3079 = vpack.c.b16 %v3036, %v3035
      %v3080 = vpack.c.b16 %v3038, %v3037
      %v3081 = vpack.c.b16 %v3040, %v3039
      %v3082 = vpack.c.b16 %v3042, %v3041
      %v3083 = vpack.c.b16 %v3044, %v3043
      %v3084 = vpack.c.b16 %v3046, %v3045
      %v3085 = vpack.c.b16 %v3048, %v3047
      %v3086 = vpack.c.b16 %v3050, %v3049
      %v3087 = vpack.c.b16 %v3052, %v3051
      %v3088 = vpack.c.b16 %v3054, %v3053
      %v3089 = vpack.c.b16 %v3056, %v3055
      %v3090 = vpack.c.b16 %v3058, %v3057
      %3123 = vmatpush.bf16.msra.mxu0 %v3066
      %3124 = vmatpush.bf16.msra.mxu0 %v3065
      %3125 = vmatpush.bf16.msra.mxu0 %v3064
      %3126 = vmatpush.bf16.msra.mxu0 %v3063
      %3127 = vmatpush.bf16.msra.mxu0 %v3062
      %3128 = vmatpush.bf16.msra.mxu0 %v3061
      %3129 = vmatpush.bf16.msra.mxu0 %v3060
      %3130 = vmatpush.bf16.msra.mxu0 %v3059
      %3131 = vmatmul.bf16.gmra.mxu0 %v2924
      %v3132 = vpop.f32.mrf.mxu0
      %v3133 = vadd.f32 %v2929, %v3132
      %v3134 = vpop.f32.mrf.mxu0
      %v3135 = vadd.f32 %v2929, %v3134
      %3136 = vdwg.mxu0
      %3137 = vmatpush.bf16.msra.mxu0 %v3074
      %3138 = vmatpush.bf16.msra.mxu0 %v3073
      %3139 = vmatpush.bf16.msra.mxu0 %v3072
      %3140 = vmatpush.bf16.msra.mxu0 %v3071
      %3141 = vmatpush.bf16.msra.mxu0 %v3070
      %3142 = vmatpush.bf16.msra.mxu0 %v3069
      %3143 = vmatpush.bf16.msra.mxu0 %v3068
      %3144 = vmatpush.bf16.msra.mxu0 %v3067
      %3145 = vmatmul.bf16.gmra.mxu0 %v2925
      %v3146 = vpop.f32.mrf.mxu0
      %v3147 = vadd.f32 %v3133, %v3146
      %v3148 = vpop.f32.mrf.mxu0
      %v3149 = vadd.f32 %v3135, %v3148
      %3150 = vdwg.mxu0
      %3151 = vmatpush.bf16.msra.mxu0 %v3082
      %3152 = vmatpush.bf16.msra.mxu0 %v3081
      %3153 = vmatpush.bf16.msra.mxu0 %v3080
      %3154 = vmatpush.bf16.msra.mxu0 %v3079
      %3155 = vmatpush.bf16.msra.mxu0 %v3078
      %3156 = vmatpush.bf16.msra.mxu0 %v3077
      %3157 = vmatpush.bf16.msra.mxu0 %v3076
      %3158 = vmatpush.bf16.msra.mxu0 %v3075
      %3159 = vmatmul.bf16.gmra.mxu0 %v2926
      %v3160 = vpop.f32.mrf.mxu0
      %v3161 = vadd.f32 %v3147, %v3160
      %v3162 = vpop.f32.mrf.mxu0
      %v3163 = vadd.f32 %v3149, %v3162
      %3164 = vdwg.mxu0
      %3165 = vmatpush.bf16.msra.mxu0 %v3090
      %3166 = vmatpush.bf16.msra.mxu0 %v3089
      %3167 = vmatpush.bf16.msra.mxu0 %v3088
      %3168 = vmatpush.bf16.msra.mxu0 %v3087
      %3169 = vmatpush.bf16.msra.mxu0 %v3086
      %3170 = vmatpush.bf16.msra.mxu0 %v3085
      %3171 = vmatpush.bf16.msra.mxu0 %v3084
      %3172 = vmatpush.bf16.msra.mxu0 %v3083
      %3173 = vmatmul.bf16.gmra.mxu0 %v2927
      %v3174 = vpop.f32.mrf.mxu0
      %v3175 = vadd.f32 %v3161, %v3174
      %v3176 = vpop.f32.mrf.mxu0
      %v3177 = vadd.f32 %v3163, %v3176
      %3178 = vdwg.mxu0
      %v3179 = vadd.f32 %v2586, %v3175
      %v3180 = vadd.f32 %v2587, %v3177
      %s3181 = scalar_lea.vmem [#allocation30], 1
      %v3182 = vld [vmem:[%s3181] sm:$0x1]
      %s3183 = scalar_lea.vmem [#allocation32], 1
      %v3184 = vld [vmem:[%s3183] sm:$0x1]
      %3185 = vadd.xlane.f32.xlu0 %v3179
      %v3186 = vpop.xlane.xlu0 %3185
      %3187 = vadd.xlane.f32.xlu0 %v3180
      %v3188 = vpop.xlane.xlu0 %3187
      %v3189 = vmul.f32 %v3186, %v1380
      %v3190 = vmul.f32 %v3188, %v1380
      %v3191 = vmul.f32 %v3179, %v3179
      %v3192 = vmul.f32 %v3180, %v3180
      %3193 = vadd.xlane.f32.xlu0 %v3191
      %v3194 = vpop.xlane.xlu0 %3193
      %3195 = vadd.xlane.f32.xlu0 %v3192
      %v3196 = vpop.xlane.xlu0 %3195
      %v3197 = vmul.f32 %v3194, %v1380
      %v3198 = vmul.f32 %v3196, %v1380
      %v3199 = vmul.f32 %v3189, %v3189
      %v3200 = vmul.f32 %v3190, %v3190
      %v3201 = vsub.f32 %v3197, %v3199
      %v3202 = vsub.f32 %v3198, %v3200
      %v3203 = vmax.f32 %v3201, 0.0
      %v3204 = vmax.f32 %v3202, 0.0
      %v3205 = vsub.f32 %v3179, %v3189
      %v3206 = vsub.f32 %v3180, %v3190
      %v3207 = vadd.f32 %v3203, 1e-05
      %v3208 = vadd.f32 %v3204, 1e-05
      %v3209 = vrsqrt.pop %v3207
      %v3210 = vmul.f32 %v3209, %v3207
      %v3211 = vmul.f32 %v3210, %v3209
      %v3212 = vmul.f32 0.5, %v3211
      %v3213 = vsub.f32 1.5, %v3212
      %v3214 = vmul.f32 %v3209, %v3213
      %vm3215 = vweird.f32 %v3207
      %vm3216 = vweird.f32 %v3209
      %vm3217 = vmor %vm3215, %vm3216
      %v3218 = vsel %vm3217, %v3209, %v3214
      %v3219 = vrsqrt.pop %v3208
      %v3220 = vmul.f32 %v3219, %v3208
      %v3221 = vmul.f32 %v3220, %v3219
      %v3222 = vmul.f32 0.5, %v3221
      %v3223 = vsub.f32 1.5, %v3222
      %v3224 = vmul.f32 %v3219, %v3223
      %vm3225 = vweird.f32 %v3208
      %vm3226 = vweird.f32 %v3219
      %vm3227 = vmor %vm3225, %vm3226
      %v3228 = vsel %vm3227, %v3219, %v3224
      %v3229 = vmul.f32 %v3205, %v3218
      %v3230 = vmul.f32 %v3206, %v3228
      %v3232 = vperm.slane %v3182, 0
      %v3234 = vmul.f32 %v3229, %v3232
      %v3235 = vmul.f32 %v3230, %v3232
      %v3237 = vperm.slane %v3184, 0
      %v3239 = vadd.f32 %v3234, %v3237
      %v3240 = vadd.f32 %v3235, %v3237
      %v3241 = vadd.f32 %v3239, %v3240
      %v3242 = vmul.f32 %v3241, 0.5
      %v3243 = vld [vmem:[%s21] sm:$0xf]
      %v3244 = vld [vmem:[%s21 + $0x4] sm:$0xf]
      %v3245 = vld [vmem:[%s21 + $0x8] sm:$0xf]
      %v3246 = vld [vmem:[%s21 + $0xc] sm:$0xf]
      %v3247 = vld [vmem:[%s21 + $0x10] sm:$0xf]
      %v3248 = vld [vmem:[%s21 + $0x14] sm:$0xf]
      %v3249 = vld [vmem:[%s21 + $0x18] sm:$0xf]
      %v3250 = vld [vmem:[%s21 + $0x1c] sm:$0xf]
      %v3251 = vld [vmem:[%s21 + $0x20] sm:$0xf]
      %v3252 = vld [vmem:[%s21 + $0x24] sm:$0xf]
      %v3253 = vld [vmem:[%s21 + $0x28] sm:$0xf]
      %v3254 = vld [vmem:[%s21 + $0x2c] sm:$0xf]
      %v3255 = vld [vmem:[%s21 + $0x30] sm:$0xf]
      %v3256 = vld [vmem:[%s21 + $0x34] sm:$0xf]
      %v3257 = vld [vmem:[%s21 + $0x38] sm:$0xf]
      %v3258 = vld [vmem:[%s21 + $0x3c] sm:$0xf]
      %v3259 = vld [vmem:[%s22] sm:$0x1]
      %v3260 = vpack.c.bf16 %v3242, %v3242
      %v3262 = vperm.slane %v3259, 0
      %v3280 = vunpack.c.l.b16 %v3243
      %v3281 = vunpack.c.l.b16 %v3244
      %v3282 = vunpack.c.l.b16 %v3245
      %v3283 = vunpack.c.l.b16 %v3246
      %v3284 = vunpack.c.l.b16 %v3247
      %v3285 = vunpack.c.l.b16 %v3248
      %v3286 = vunpack.c.l.b16 %v3249
      %v3287 = vunpack.c.l.b16 %v3250
      %v3288 = vunpack.c.l.b16 %v3251
      %v3289 = vunpack.c.l.b16 %v3252
      %v3290 = vunpack.c.l.b16 %v3253
      %v3291 = vunpack.c.l.b16 %v3254
      %v3292 = vunpack.c.l.b16 %v3255
      %v3293 = vunpack.c.l.b16 %v3256
      %v3294 = vunpack.c.l.b16 %v3257
      %v3295 = vunpack.c.l.b16 %v3258
      %v3296 = vpack.c.b16 %v3281, %v3280
      %v3297 = vpack.c.b16 %v3283, %v3282
      %v3298 = vpack.c.b16 %v3285, %v3284
      %v3299 = vpack.c.b16 %v3287, %v3286
      %v3300 = vpack.c.b16 %v3289, %v3288
      %v3301 = vpack.c.b16 %v3291, %v3290
      %v3302 = vpack.c.b16 %v3293, %v3292
      %v3303 = vpack.c.b16 %v3295, %v3294
      %3312 = vmatpush.bf16.msra.mxu0 %v3303
      %3313 = vmatpush.bf16.msra.mxu0 %v3302
      %3314 = vmatpush.bf16.msra.mxu0 %v3301
      %3315 = vmatpush.bf16.msra.mxu0 %v3300
      %3316 = vmatpush.bf16.msra.mxu0 %v3299
      %3317 = vmatpush.bf16.msra.mxu0 %v3298
      %3318 = vmatpush.bf16.msra.mxu0 %v3297
      %3319 = vmatpush.bf16.msra.mxu0 %v3296
      %3320 = vmatmul.bf16.gmra.mxu0 %v3260
      %v3321 = vpop.f32.mrf.mxu0
      %v3322 = vadd.f32 %v3262, %v3321
      %v3323 = vpop.f32.mrf.mxu0
      %3324 = vdwg.mxu0
      %v3325 = vmax.f32 %v3322, 0.0
      %v3326 = vld [vmem:[#allocation33] sm:$0xf]
      %v3327 = vld [vmem:[#allocation33 + $0x4] sm:$0xf]
      %v3328 = vld [vmem:[#allocation33 + $0x8] sm:$0xf]
      %v3329 = vld [vmem:[#allocation33 + $0xc] sm:$0xf]
      %v3330 = vld [vmem:[%s24] sm:$0x1]
      %v3331 = vpack.c.bf16 %v3325, %v3325
      %v3333 = vperm.slane %v3330, 0
      %v3339 = vunpack.c.l.b16 %v3326
      %v3340 = vunpack.c.l.b16 %v3327
      %v3341 = vunpack.c.l.b16 %v3328
      %v3342 = vunpack.c.l.b16 %v3329
      %v3343 = vpack.c.b16 %v3340, %v3339
      %v3344 = vpack.c.b16 %v3342, %v3341
      %v3348 = vsel %vm766, %v3331, 0
      %3350 = vmatpush.bf16.msra.mxu0 0
      %3351 = vmatpush.bf16.msra.mxu0 0
      %3352 = vmatpush.bf16.msra.mxu0 0
      %3353 = vmatpush.bf16.msra.mxu0 0
      %3354 = vmatpush.bf16.msra.mxu0 0
      %3355 = vmatpush.bf16.msra.mxu0 0
      %3356 = vmatpush.bf16.msra.mxu0 %v3344
      %3357 = vmatpush.bf16.msra.mxu0 %v3343
      %3358 = vmatmul.bf16.gmra.mxu0 %v3348
      %v3359 = vpop.f32.mrf.mxu0
      %v3360 = vadd.f32 %v3333, %v3359
      %v3361 = vpop.f32.mrf.mxu0
      %3362 = vdwg.mxu0
      %v3363 = vxor.u32 %v3360, 2147483648
      %v3364 = vmul.f32 %v3363, 1.442695
      %v3365 = vpow.pop %v3364
      %v3366 = vadd.f32 %v3365, 1.0
      %v3367 = vrcp.pop %v3366
      %v3368 = vmul.f32 %v3366, %v3367
      %v3369 = vsub.f32 1.0, %v3368
      %v3370 = vmul.f32 %v3367, %v3369
      %v3371 = vadd.f32 %v3367, %v3370
      %vm3372 = vweird.f32 %v3366
      %vm3373 = vweird.f32 %v3367
      %vm3374 = vmor %vm3372, %vm3373
      %v3375 = vsel %vm3374, %v3367, %v3371
      %v3376 = vand.u32 2147483647, %v3366
      %vm3377 = vcmp.eq.f32.partialorder %v3376, 8.507059e+37
      %v3378 = vand.u32 %v3366, 2147483648
      %v3379 = vor.u32 1.1754944e-38, %v3378
      %v3380 = vsel %vm3377, %v3379, %v3375
      %v3381 = vmul.f32 1.0, %v3380
      %3382 = vst [vmem:[#allocation35] sm:$0xff] %v3381
    $region189: #{tpu_custom_call.1} parent=1 // pred_fallthru
      _
    // Predicated region
    $region190: #{tpu_custom_call.1} parent=1 // pred_check
      _
    $region191: #{tpu_custom_call.1} parent=1 // pred_check_branch
      %3384 = sbr.rel (0) target = $region193
    $region192: #{tpu_custom_call.1} parent=1 // pred_region
      %3386 = vsyncadd [#allocation5], 0
      %s3388 = sshll.u32 [#allocation35], 4
      %s3389 = int_to_ptr.vmem [resolvable:$true] %s3388
      %s3390 = sshll.u32 %s25, 4
      %s3391 = int_to_ptr.hbm [resolvable:$true] %s3390
      %3393 = dma.vmem_to_hbm [thread:$0]  %s3389, 128, %s3391, [#allocation5]
    $region193: #{tpu_custom_call.1} parent=1 // pred_fallthru
      _
    // Predicated region
    $region194: #{tpu_custom_call.1} parent=1 // pred_check
      _
    $region195: #{tpu_custom_call.1} parent=1 // pred_check_branch
      %3395 = sbr.rel (0) target = $region197
    $region196: #{tpu_custom_call.1} parent=1 // pred_region
      %3397 = dma.done [#allocation5], 128
    $region197: #{tpu_custom_call.1} parent=1 // pred_fallthru
      _
    %3398 = vsyncpa [#allocation4], 1
    %3399 = vsyncpa [#allocation7], 1
    %3400 = vsyncpa [#allocation10], 1
    %3401 = vsyncpa [#allocation13], 1
    %3402 = vsyncpa [#allocation16], 1
    %3403 = vsyncpa [#allocation19], 1
    %3404 = vsyncpa [#allocation22], 1
    %3405 = vsyncpa [#allocation25], 1
    %3406 = vsyncpa [#allocation28], 1
    %3407 = vsyncpa [#allocation31], 1
    %3408 = vsyncpa [#allocation34], 1
    %3409 = vsyncpa [#allocation5], 1

// kernel: tpu_custom_call.1
$region0: #{tpu_custom_call.1}
  #allocation0 [shape = 'u32[]', space=smem, size = 0x4, offset = 0x4, fixed_abs, tag = 'smem constant byte address 0x4 - core index']
  #allocation1 [shape = 'u32[72,128]{1,0:T(1,128)}', space=vmem, size = 0x9000, scoped, tag = 'internal scratch']
  #allocation2 [shape = 'f32[8,3]{1,0:T(8,128)}', space=vmem, size = 0x1000, scoped, tag = 'scratch operand']
  %s0 = inlined_call_operand.hbm [shape: bf16[3,8,256], index: 0, kind: input, shape index: {}]
  %s1 = inlined_call_operand.hbm [shape: bf16[3,416], index: 1, kind: input, shape index: {}]
  %s2 = inlined_call_operand.vmem [shape: f32[1,416], index: 2, kind: input, shape index: {}]
  %s3 = inlined_call_operand.hbm [shape: bf16[256,128], index: 3, kind: input, shape index: {}]
  %s4 = inlined_call_operand.hbm [shape: f32[1,128], index: 4, kind: input, shape index: {}]
  %s5 = inlined_call_operand.vmem [shape: bf16[160,128], index: 5, kind: input, shape index: {}]
  %s6 = inlined_call_operand.hbm [shape: f32[1,128], index: 6, kind: input, shape index: {}]
  %s7 = inlined_call_operand.hbm [shape: bf16[128,128], index: 7, kind: input, shape index: {}]
  %s8 = inlined_call_operand.hbm [shape: bf16[128,128], index: 8, kind: input, shape index: {}]
  %s9 = inlined_call_operand.hbm [shape: bf16[2,128,384], index: 9, kind: input, shape index: {}]
  %s10 = inlined_call_operand.hbm [shape: f32[2,1,384], index: 10, kind: input, shape index: {}]
  %s11 = inlined_call_operand.hbm [shape: bf16[2,128,128], index: 11, kind: input, shape index: {}]
  %s12 = inlined_call_operand.hbm [shape: f32[2,1,128], index: 12, kind: input, shape index: {}]
  %s13 = inlined_call_operand.hbm [shape: f32[2,1,128], index: 13, kind: input, shape index: {}]
  %s14 = inlined_call_operand.hbm [shape: f32[2,1,128], index: 14, kind: input, shape index: {}]
  %s15 = inlined_call_operand.hbm [shape: bf16[2,128,512], index: 15, kind: input, shape index: {}]
  %s16 = inlined_call_operand.hbm [shape: f32[2,1,512], index: 16, kind: input, shape index: {}]
  %s17 = inlined_call_operand.hbm [shape: bf16[2,512,128], index: 17, kind: input, shape index: {}]
  %s18 = inlined_call_operand.hbm [shape: f32[2,1,128], index: 18, kind: input, shape index: {}]
  %s19 = inlined_call_operand.hbm [shape: f32[2,1,128], index: 19, kind: input, shape index: {}]
  %s20 = inlined_call_operand.hbm [shape: f32[2,1,128], index: 20, kind: input, shape index: {}]
  %s21 = inlined_call_operand.vmem [shape: bf16[128,32], index: 21, kind: input, shape index: {}]
  %s22 = inlined_call_operand.vmem [shape: f32[1,32], index: 22, kind: input, shape index: {}]
  %s23 = inlined_call_operand.hbm [shape: bf16[32,128], index: 23, kind: input, shape index: {}]
  %s24 = inlined_call_operand.vmem [shape: f32[1,128], index: 24, kind: input, shape index: {}]
  %s25 = inlined_call_operand.hbm [shape: f32[8,128], index: 25, kind: output, shape index: {}]
  %s26 = sld [smem:[#allocation0]]
  $region198: #{tpu_custom_call.1} parent=0
    _
  %s28 = ssub.s32 1, %s26
  %s29 = scalar_select 0, %s28, %s26
  $region1: #{tpu_custom_call.1} parent=0
    #allocation3 [shape = 'u8[12288]{0}', space=vmem, size = 0x3000, scoped, tag = 'input window, operand 0, single buffered']
    #allocation4 [shape = 's32[1]{0}', space=sflag, size = 0x4, scoped, tag = 'scoped memory for tpu_custom_call.1']
    #allocation5 [shape = 's32[1]{0}', space=sflag, size = 0x4, scoped, tag = 'scoped memory for tpu_custom_call.1']
    #allocation6 [shape = 'u8[4096]{0}', space=vmem, size = 0x1000, scoped, tag = 'input window, operand 1, single buffered']
    #allocation7 [shape = 's32[1]{0}', space=sflag, size = 0x4, scoped, tag = 'scoped memory for tpu_custom_call.1']
    #allocation8 [shape = 'u8[65536]{0}', space=vmem, size = 0x10000, scoped, tag = 'input window, operand 3, single buffered']
    #allocation9 [shape = 'u8[512]{0}', space=vmem, size = 0x400, scoped, tag = 'input window, operand 4, single buffered']
    #allocation10 [shape = 's32[1]{0}', space=sflag, size = 0x4, scoped, tag = 'scoped memory for tpu_custom_call.1']
    #allocation11 [shape = 'u8[512]{0}', space=vmem, size = 0x400, scoped, tag = 'input window, operand 6, single buffered']
    #allocation12 [shape = 'u8[32768]{0}', space=vmem, size = 0x8000, scoped, tag = 'input window, operand 7, single buffered']
    #allocation13 [shape = 's32[1]{0}', space=sflag, size = 0x4, scoped, tag = 'scoped memory for tpu_custom_call.1']
    #allocation14 [shape = 'u8[32768]{0}', space=vmem, size = 0x8000, scoped, tag = 'input window, operand 8, single buffered']
    #allocation15 [shape = 'u8[196608]{0}', space=vmem, size = 0x30000, scoped, tag = 'input window, operand 9, single buffered']
    #allocation16 [shape = 's32[1]{0}', space=sflag, size = 0x4, scoped, tag = 'scoped memory for tpu_custom_call.1']
    #allocation17 [shape = 'u8[3072]{0}', space=vmem, size = 0xc00, scoped, tag = 'input window, operand 10, single buffered']
    #allocation18 [shape = 'u8[65536]{0}', space=vmem, size = 0x10000, scoped, tag = 'input window, operand 11, single buffered']
    #allocation19 [shape = 's32[1]{0}', space=sflag, size = 0x4, scoped, tag = 'scoped memory for tpu_custom_call.1']
    #allocation20 [shape = 'u8[1024]{0}', space=vmem, size = 0x400, scoped, tag = 'input window, operand 12, single buffered']
    #allocation21 [shape = 'u8[1024]{0}', space=vmem, size = 0x400, scoped, tag = 'input window, operand 13, single buffered']
    #allocation22 [shape = 's32[1]{0}', space=sflag, size = 0x4, scoped, tag = 'scoped memory for tpu_custom_call.1']
    #allocation23 [shape = 'u8[1024]{0}', space=vmem, size = 0x400, scoped, tag = 'input window, operand 14, single buffered']
    #allocation24 [shape = 'u8[262144]{0}', space=vmem, size = 0x40000, scoped, tag = 'input window, operand 15, single buffered']
    #allocation25 [shape = 's32[1]{0}', space=sflag, size = 0x4, scoped, tag = 'scoped memory for tpu_custom_call.1']
    #allocation26 [shape = 'u8[4096]{0}', space=vmem, size = 0x1000, scoped, tag = 'input window, operand 16, single buffered']
    #allocation27 [shape = 'u8[262144]{0}', space=vmem, size = 0x40000, scoped, tag = 'input window, operand 17, single buffered']
    #allocation28 [shape = 's32[1]{0}', space=sflag, size = 0x4, scoped, tag = 'scoped memory for tpu_custom_call.1']
    #allocation29 [shape = 'u8[1024]{0}', space=vmem, size = 0x400, scoped, tag = 'input window, operand 18, single buffered']
    #allocation30 [shape = 'u8[1024]{0}', space=vmem, size = 0x400, scoped, tag = 'input window, operand 19, single buffered']
    #allocation31 [shape = 's32[1]{0}', space=sflag, size = 0x4, scoped, tag = 'scoped memory for tpu_custom_call.1']
    #allocation32 [shape = 'u8[1024]{0}', space=vmem, size = 0x400, scoped, tag = 'input window, operand 20, single buffered']
    #allocation33 [shape = 'u8[8192]{0}', space=vmem, size = 0x2000, scoped, tag = 'input window, operand 23, single buffered']
    #allocation34 [shape = 's32[1]{0}', space=sflag, size = 0x4, scoped, tag = 'scoped memory for tpu_custom_call.1']
    #allocation35 [shape = 'u8[4096]{0}', space=vmem, size = 0x1000, scoped, tag = 'output window, operand 0, single buffered']
    %30 = vsyncpa [#allocation4], 0
    %31 = vsyncpa [#allocation7], 0
    %32 = vsyncpa [#allocation10], 0
    %33 = vsyncpa [#allocation13], 0
    %34 = vsyncpa [#allocation16], 0
    %35 = vsyncpa [#allocation19], 0
    %36 = vsyncpa [#allocation22], 0
    %37 = vsyncpa [#allocation25], 0
    %38 = vsyncpa [#allocation28], 0
    %39 = vsyncpa [#allocation31], 0
    %40 = vsyncpa [#allocation34], 0
    %41 = vsyncpa [#allocation5], 0
    // Predicated region
    $region2: #{tpu_custom_call.1} parent=1 // pred_check
      _
    $region3: #{tpu_custom_call.1} parent=1 // pred_check_branch
      %43 = sbr.rel (0) target = $region5
    $region4: #{tpu_custom_call.1} parent=1 // pred_region
      %45 = vsyncadd [#allocation4], 0
      %s46 = sshll.u32 %s0, 4
      %s47 = int_to_ptr.hbm [resolvable:$true] %s46
      %s48 = sshll.u32 [#allocation3], 4
      %s49 = int_to_ptr.vmem [resolvable:$true] %s48
      %54 = dma.hbm_to_vmem [thread:$0]  %s47, 384, %s49, [#allocation4], 128, 128, 8
    $region5: #{tpu_custom_call.1} parent=1 // pred_fallthru
      _
    // Predicated region
    $region6: #{tpu_custom_call.1} parent=1 // pred_check
      _
    $region7: #{tpu_custom_call.1} parent=1 // pred_check_branch
      %56 = sbr.rel (0) target = $region9
    $region8: #{tpu_custom_call.1} parent=1 // pred_region
      %58 = vsyncadd [#allocation7], 0
      %s60 = sshll.u32 %s1, 4
      %s61 = int_to_ptr.hbm [resolvable:$true] %s60
      %s62 = sshll.u32 [#allocation6], 4
      %s63 = int_to_ptr.vmem [resolvable:$true] %s62
      %65 = dma.hbm_to_vmem [thread:$0]  %s61, 128, %s63, [#allocation7]
    $region9: #{tpu_custom_call.1} parent=1 // pred_fallthru
      _
    // Predicated region
    $region10: #{tpu_custom_call.1} parent=1 // pred_check
      _
    $region11: #{tpu_custom_call.1} parent=1 // pred_check_branch
      %67 = sbr.rel (0) target = $region13
    $region12: #{tpu_custom_call.1} parent=1 // pred_region
      _
    $region13: #{tpu_custom_call.1} parent=1 // pred_fallthru
      _
    // Predicated region
    $region14: #{tpu_custom_call.1} parent=1 // pred_check
      _
    $region15: #{tpu_custom_call.1} parent=1 // pred_check_branch
      %69 = sbr.rel (0) target = $region17
    $region16: #{tpu_custom_call.1} parent=1 // pred_region
      %71 = vsyncadd [#allocation7], 0
      %s72 = sshll.u32 %s3, 4
      %s73 = int_to_ptr.hbm [resolvable:$true] %s72
      %s74 = sshll.u32 [#allocation8], 4
      %s75 = int_to_ptr.vmem [resolvable:$true] %s74
      %80 = dma.hbm_to_vmem [thread:$0]  %s73, 2048, %s75, [#allocation7], 64, 64, 4
    $region17: #{tpu_custom_call.1} parent=1 // pred_fallthru
      _
    // Predicated region
    $region18: #{tpu_custom_call.1} parent=1 // pred_check
      _
    $region19: #{tpu_custom_call.1} parent=1 // pred_check_branch
      %82 = sbr.rel (0) target = $region21
    $region20: #{tpu_custom_call.1} parent=1 // pred_region
      %84 = vsyncadd [#allocation10], 0
      %s86 = sshll.u32 %s4, 4
      %s87 = int_to_ptr.hbm [resolvable:$true] %s86
      %s88 = sshll.u32 [#allocation9], 4
      %s89 = int_to_ptr.vmem [resolvable:$true] %s88
      %91 = dma.hbm_to_vmem [thread:$0]  %s87, 16, %s89, [#allocation10]
    $region21: #{tpu_custom_call.1} parent=1 // pred_fallthru
      _
    // Predicated region
    $region22: #{tpu_custom_call.1} parent=1 // pred_check
      _
    $region23: #{tpu_custom_call.1} parent=1 // pred_check_branch
      %93 = sbr.rel (0) target = $region25
    $region24: #{tpu_custom_call.1} parent=1 // pred_region
      _
    $region25: #{tpu_custom_call.1} parent=1 // pred_fallthru
      _
    // Predicated region
    $region26: #{tpu_custom_call.1} parent=1 // pred_check
      _
    $region27: #{tpu_custom_call.1} parent=1 // pred_check_branch
      %95 = sbr.rel (0) target = $region29
    $region28: #{tpu_custom_call.1} parent=1 // pred_region
      %97 = vsyncadd [#allocation10], 0
      %s99 = sshll.u32 %s6, 4
      %s100 = int_to_ptr.hbm [resolvable:$true] %s99
      %s101 = sshll.u32 [#allocation11], 4
      %s102 = int_to_ptr.vmem [resolvable:$true] %s101
      %104 = dma.hbm_to_vmem [thread:$0]  %s100, 16, %s102, [#allocation10]
    $region29: #{tpu_custom_call.1} parent=1 // pred_fallthru
      _
    // Predicated region
    $region30: #{tpu_custom_call.1} parent=1 // pred_check
      _
    $region31: #{tpu_custom_call.1} parent=1 // pred_check_branch
      %106 = sbr.rel (0) target = $region33
    $region32: #{tpu_custom_call.1} parent=1 // pred_region
      %108 = vsyncadd [#allocation13], 0
      %s109 = sshll.u32 %s7, 4
      %s110 = int_to_ptr.hbm [resolvable:$true] %s109
      %s111 = sshll.u32 [#allocation12], 4
      %s112 = int_to_ptr.vmem [resolvable:$true] %s111
      %117 = dma.hbm_to_vmem [thread:$0]  %s110, 1024, %s112, [#allocation13], 64, 64, 4
    $region33: #{tpu_custom_call.1} parent=1 // pred_fallthru
      _
    // Predicated region
    $region34: #{tpu_custom_call.1} parent=1 // pred_check
      _
    $region35: #{tpu_custom_call.1} parent=1 // pred_check_branch
      %119 = sbr.rel (0) target = $region37
    $region36: #{tpu_custom_call.1} parent=1 // pred_region
      %121 = vsyncadd [#allocation13], 0
      %s122 = sshll.u32 %s8, 4
      %s123 = int_to_ptr.hbm [resolvable:$true] %s122
      %s124 = sshll.u32 [#allocation14], 4
      %s125 = int_to_ptr.vmem [resolvable:$true] %s124
      %130 = dma.hbm_to_vmem [thread:$0]  %s123, 1024, %s125, [#allocation13], 64, 64, 4
    $region37: #{tpu_custom_call.1} parent=1 // pred_fallthru
      _
    // Predicated region
    $region38: #{tpu_custom_call.1} parent=1 // pred_check
      _
    $region39: #{tpu_custom_call.1} parent=1 // pred_check_branch
      %132 = sbr.rel (0) target = $region41
    $region40: #{tpu_custom_call.1} parent=1 // pred_region
      %134 = vsyncadd [#allocation16], 0
      %s135 = sshll.u32 %s9, 4
      %s136 = int_to_ptr.hbm [resolvable:$true] %s135
      %s137 = sshll.u32 [#allocation15], 4
      %s138 = int_to_ptr.vmem [resolvable:$true] %s137
      %143 = dma.hbm_to_vmem [thread:$0]  %s136, 6144, %s138, [#allocation16], 192, 192, 12
    $region41: #{tpu_custom_call.1} parent=1 // pred_fallthru
      _
    // Predicated region
    $region42: #{tpu_custom_call.1} parent=1 // pred_check
      _
    $region43: #{tpu_custom_call.1} parent=1 // pred_check_branch
      %145 = sbr.rel (0) target = $region45
    $region44: #{tpu_custom_call.1} parent=1 // pred_region
      %147 = vsyncadd [#allocation16], 0
      %s148 = sshll.u32 %s10, 4
      %s149 = int_to_ptr.hbm [resolvable:$true] %s148
      %s150 = sshll.u32 [#allocation17], 4
      %s151 = int_to_ptr.vmem [resolvable:$true] %s150
      %156 = dma.hbm_to_vmem [thread:$0]  %s149, 96, %s151, [#allocation16], 48, 48, 3
    $region45: #{tpu_custom_call.1} parent=1 // pred_fallthru
      _
    // Predicated region
    $region46: #{tpu_custom_call.1} parent=1 // pred_check
      _
    $region47: #{tpu_custom_call.1} parent=1 // pred_check_branch
      %158 = sbr.rel (0) target = $region49
    $region48: #{tpu_custom_call.1} parent=1 // pred_region
      %160 = vsyncadd [#allocation19], 0
      %s161 = sshll.u32 %s11, 4
      %s162 = int_to_ptr.hbm [resolvable:$true] %s161
      %s163 = sshll.u32 [#allocation18], 4
      %s164 = int_to_ptr.vmem [resolvable:$true] %s163
      %169 = dma.hbm_to_vmem [thread:$0]  %s162, 2048, %s164, [#allocation19], 64, 64, 4
    $region49: #{tpu_custom_call.1} parent=1 // pred_fallthru
      _
    // Predicated region
    $region50: #{tpu_custom_call.1} parent=1 // pred_check
      _
    $region51: #{tpu_custom_call.1} parent=1 // pred_check_branch
      %171 = sbr.rel (0) target = $region53
    $region52: #{tpu_custom_call.1} parent=1 // pred_region
      %173 = vsyncadd [#allocation19], 0
      %s174 = sshll.u32 %s12, 4
      %s175 = int_to_ptr.hbm [resolvable:$true] %s174
      %s176 = sshll.u32 [#allocation20], 4
      %s177 = int_to_ptr.vmem [resolvable:$true] %s176
      %182 = dma.hbm_to_vmem [thread:$0]  %s175, 32, %s177, [#allocation19], 16, 16, 1
    $region53: #{tpu_custom_call.1} parent=1 // pred_fallthru
      _
    // Predicated region
    $region54: #{tpu_custom_call.1} parent=1 // pred_check
      _
    $region55: #{tpu_custom_call.1} parent=1 // pred_check_branch
      %184 = sbr.rel (0) target = $region57
    $region56: #{tpu_custom_call.1} parent=1 // pred_region
      %186 = vsyncadd [#allocation22], 0
      %s187 = sshll.u32 %s13, 4
      %s188 = int_to_ptr.hbm [resolvable:$true] %s187
      %s189 = sshll.u32 [#allocation21], 4
      %s190 = int_to_ptr.vmem [resolvable:$true] %s189
      %195 = dma.hbm_to_vmem [thread:$0]  %s188, 32, %s190, [#allocation22], 16, 16, 1
    $region57: #{tpu_custom_call.1} parent=1 // pred_fallthru
      _
    // Predicated region
    $region58: #{tpu_custom_call.1} parent=1 // pred_check
      _
    $region59: #{tpu_custom_call.1} parent=1 // pred_check_branch
      %197 = sbr.rel (0) target = $region61
    $region60: #{tpu_custom_call.1} parent=1 // pred_region
      %199 = vsyncadd [#allocation22], 0
      %s200 = sshll.u32 %s14, 4
      %s201 = int_to_ptr.hbm [resolvable:$true] %s200
      %s202 = sshll.u32 [#allocation23], 4
      %s203 = int_to_ptr.vmem [resolvable:$true] %s202
      %208 = dma.hbm_to_vmem [thread:$0]  %s201, 32, %s203, [#allocation22], 16, 16, 1
    $region61: #{tpu_custom_call.1} parent=1 // pred_fallthru
      _
    // Predicated region
    $region62: #{tpu_custom_call.1} parent=1 // pred_check
      _
    $region63: #{tpu_custom_call.1} parent=1 // pred_check_branch
      %210 = sbr.rel (0) target = $region65
    $region64: #{tpu_custom_call.1} parent=1 // pred_region
      %212 = vsyncadd [#allocation25], 0
      %s213 = sshll.u32 %s15, 4
      %s214 = int_to_ptr.hbm [resolvable:$true] %s213
      %s215 = sshll.u32 [#allocation24], 4
      %s216 = int_to_ptr.vmem [resolvable:$true] %s215
      %221 = dma.hbm_to_vmem [thread:$0]  %s214, 8192, %s216, [#allocation25], 256, 256, 16
    $region65: #{tpu_custom_call.1} parent=1 // pred_fallthru
      _
    // Predicated region
    $region66: #{tpu_custom_call.1} parent=1 // pred_check
      _
    $region67: #{tpu_custom_call.1} parent=1 // pred_check_branch
      %223 = sbr.rel (0) target = $region69
    $region68: #{tpu_custom_call.1} parent=1 // pred_region
      %225 = vsyncadd [#allocation25], 0
      %s226 = sshll.u32 %s16, 4
      %s227 = int_to_ptr.hbm [resolvable:$true] %s226
      %s228 = sshll.u32 [#allocation26], 4
      %s229 = int_to_ptr.vmem [resolvable:$true] %s228
      %234 = dma.hbm_to_vmem [thread:$0]  %s227, 128, %s229, [#allocation25], 64, 64, 4
    $region69: #{tpu_custom_call.1} parent=1 // pred_fallthru
      _
    // Predicated region
    $region70: #{tpu_custom_call.1} parent=1 // pred_check
      _
    $region71: #{tpu_custom_call.1} parent=1 // pred_check_branch
      %236 = sbr.rel (0) target = $region73
    $region72: #{tpu_custom_call.1} parent=1 // pred_region
      %238 = vsyncadd [#allocation28], 0
      %s239 = sshll.u32 %s17, 4
      %s240 = int_to_ptr.hbm [resolvable:$true] %s239
      %s241 = sshll.u32 [#allocation27], 4
      %s242 = int_to_ptr.vmem [resolvable:$true] %s241
      %247 = dma.hbm_to_vmem [thread:$0]  %s240, 8192, %s242, [#allocation28], 64, 64, 4
    $region73: #{tpu_custom_call.1} parent=1 // pred_fallthru
      _
    // Predicated region
    $region74: #{tpu_custom_call.1} parent=1 // pred_check
      _
    $region75: #{tpu_custom_call.1} parent=1 // pred_check_branch
      %249 = sbr.rel (0) target = $region77
    $region76: #{tpu_custom_call.1} parent=1 // pred_region
      %251 = vsyncadd [#allocation28], 0
      %s252 = sshll.u32 %s18, 4
      %s253 = int_to_ptr.hbm [resolvable:$true] %s252
      %s254 = sshll.u32 [#allocation29], 4
      %s255 = int_to_ptr.vmem [resolvable:$true] %s254
      %260 = dma.hbm_to_vmem [thread:$0]  %s253, 32, %s255, [#allocation28], 16, 16, 1
    $region77: #{tpu_custom_call.1} parent=1 // pred_fallthru
      _
    // Predicated region
    $region78: #{tpu_custom_call.1} parent=1 // pred_check
      _
    $region79: #{tpu_custom_call.1} parent=1 // pred_check_branch
      %262 = sbr.rel (0) target = $region81
    $region80: #{tpu_custom_call.1} parent=1 // pred_region
      %264 = vsyncadd [#allocation31], 0
      %s265 = sshll.u32 %s19, 4
      %s266 = int_to_ptr.hbm [resolvable:$true] %s265
      %s267 = sshll.u32 [#allocation30], 4
      %s268 = int_to_ptr.vmem [resolvable:$true] %s267
      %273 = dma.hbm_to_vmem [thread:$0]  %s266, 32, %s268, [#allocation31], 16, 16, 1
    $region81: #{tpu_custom_call.1} parent=1 // pred_fallthru
      _
    // Predicated region
    $region82: #{tpu_custom_call.1} parent=1 // pred_check
      _
    $region83: #{tpu_custom_call.1} parent=1 // pred_check_branch
      %275 = sbr.rel (0) target = $region85
    $region84: #{tpu_custom_call.1} parent=1 // pred_region
      %277 = vsyncadd [#allocation31], 0
      %s278 = sshll.u32 %s20, 4
      %s279 = int_to_ptr.hbm [resolvable:$true] %s278
      %s280 = sshll.u32 [#allocation32], 4
      %s281 = int_to_ptr.vmem [resolvable:$true] %s280
      %286 = dma.hbm_to_vmem [thread:$0]  %s279, 32, %s281, [#allocation31], 16, 16, 1
    $region85: #{tpu_custom_call.1} parent=1 // pred_fallthru
      _
    // Predicated region
    $region86: #{tpu_custom_call.1} parent=1 // pred_check
      _
    $region87: #{tpu_custom_call.1} parent=1 // pred_check_branch
      %288 = sbr.rel (0) target = $region89
    $region88: #{tpu_custom_call.1} parent=1 // pred_region
      _
    $region89: #{tpu_custom_call.1} parent=1 // pred_fallthru
      _
    // Predicated region
    $region90: #{tpu_custom_call.1} parent=1 // pred_check
      _
    $region91: #{tpu_custom_call.1} parent=1 // pred_check_branch
      %290 = sbr.rel (0) target = $region93
    $region92: #{tpu_custom_call.1} parent=1 // pred_region
      _
    $region93: #{tpu_custom_call.1} parent=1 // pred_fallthru
      _
    // Predicated region
    $region94: #{tpu_custom_call.1} parent=1 // pred_check
      _
    $region95: #{tpu_custom_call.1} parent=1 // pred_check_branch
      %292 = sbr.rel (0) target = $region97
    $region96: #{tpu_custom_call.1} parent=1 // pred_region
      %294 = vsyncadd [#allocation34], 0
      %s295 = sshll.u32 %s23, 4
      %s296 = int_to_ptr.hbm [resolvable:$true] %s295
      %s297 = sshll.u32 [#allocation33], 4
      %s298 = int_to_ptr.vmem [resolvable:$true] %s297
      %303 = dma.hbm_to_vmem [thread:$0]  %s296, 256, %s298, [#allocation34], 64, 64, 4
    $region97: #{tpu_custom_call.1} parent=1 // pred_fallthru
      _
    // Predicated region
    $region98: #{tpu_custom_call.1} parent=1 // pred_check
      _
    $region99: #{tpu_custom_call.1} parent=1 // pred_check_branch
      %305 = sbr.rel (0) target = $region101
    $region100: #{tpu_custom_call.1} parent=1 // pred_region
      _
    $region101: #{tpu_custom_call.1} parent=1 // pred_fallthru
      _
    // Predicated region
    $region102: #{tpu_custom_call.1} parent=1 // pred_check
      _
    $region103: #{tpu_custom_call.1} parent=1 // pred_check_branch
      %307 = sbr.rel (0) target = $region105
    $region104: #{tpu_custom_call.1} parent=1 // pred_region
      %309 = dma.done [#allocation4], 384
    $region105: #{tpu_custom_call.1} parent=1 // pred_fallthru
      _
    // Predicated region
    $region106: #{tpu_custom_call.1} parent=1 // pred_check
      _
    $region107: #{tpu_custom_call.1} parent=1 // pred_check_branch
      %311 = sbr.rel (0) target = $region109
    $region108: #{tpu_custom_call.1} parent=1 // pred_region
      %313 = dma.done [#allocation7], 128
    $region109: #{tpu_custom_call.1} parent=1 // pred_fallthru
      _
    // Predicated region
    $region110: #{tpu_custom_call.1} parent=1 // pred_check
      _
    $region111: #{tpu_custom_call.1} parent=1 // pred_check_branch
      %315 = sbr.rel (0) target = $region113
    $region112: #{tpu_custom_call.1} parent=1 // pred_region
      %317 = dma.done [#allocation7], 2048
    $region113: #{tpu_custom_call.1} parent=1 // pred_fallthru
      _
    // Predicated region
    $region114: #{tpu_custom_call.1} parent=1 // pred_check
      _
    $region115: #{tpu_custom_call.1} parent=1 // pred_check_branch
      %319 = sbr.rel (0) target = $region117
    $region116: #{tpu_custom_call.1} parent=1 // pred_region
      %321 = dma.done [#allocation10], 16
    $region117: #{tpu_custom_call.1} parent=1 // pred_fallthru
      _
    // Predicated region
    $region118: #{tpu_custom_call.1} parent=1 // pred_check
      _
    $region119: #{tpu_custom_call.1} parent=1 // pred_check_branch
      %323 = sbr.rel (0) target = $region121
    $region120: #{tpu_custom_call.1} parent=1 // pred_region
      %325 = dma.done [#allocation10], 16
    $region121: #{tpu_custom_call.1} parent=1 // pred_fallthru
      _
    // Predicated region
    $region122: #{tpu_custom_call.1} parent=1 // pred_check
      _
    $region123: #{tpu_custom_call.1} parent=1 // pred_check_branch
      %327 = sbr.rel (0) target = $region125
    $region124: #{tpu_custom_call.1} parent=1 // pred_region
      %329 = dma.done [#allocation13], 1024
    $region125: #{tpu_custom_call.1} parent=1 // pred_fallthru
      _
    // Predicated region
    $region126: #{tpu_custom_call.1} parent=1 // pred_check
      _
    $region127: #{tpu_custom_call.1} parent=1 // pred_check_branch
      %331 = sbr.rel (0) target = $region129
    $region128: #{tpu_custom_call.1} parent=1 // pred_region
      %333 = dma.done [#allocation13], 1024
    $region129: #{tpu_custom_call.1} parent=1 // pred_fallthru
      _
    // Predicated region
    $region130: #{tpu_custom_call.1} parent=1 // pred_check
      _
    $region131: #{tpu_custom_call.1} parent=1 // pred_check_branch
      %335 = sbr.rel (0) target = $region133
    $region132: #{tpu_custom_call.1} parent=1 // pred_region
      %337 = dma.done [#allocation16], 6144
    $region133: #{tpu_custom_call.1} parent=1 // pred_fallthru
      _
    // Predicated region
    $region134: #{tpu_custom_call.1} parent=1 // pred_check
      _
    $region135: #{tpu_custom_call.1} parent=1 // pred_check_branch
      %339 = sbr.rel (0) target = $region137
    $region136: #{tpu_custom_call.1} parent=1 // pred_region
      %341 = dma.done [#allocation16], 96
    $region137: #{tpu_custom_call.1} parent=1 // pred_fallthru
      _
    // Predicated region
    $region138: #{tpu_custom_call.1} parent=1 // pred_check
      _
    $region139: #{tpu_custom_call.1} parent=1 // pred_check_branch
      %343 = sbr.rel (0) target = $region141
    $region140: #{tpu_custom_call.1} parent=1 // pred_region
      %345 = dma.done [#allocation19], 2048
    $region141: #{tpu_custom_call.1} parent=1 // pred_fallthru
      _
    // Predicated region
    $region142: #{tpu_custom_call.1} parent=1 // pred_check
      _
    $region143: #{tpu_custom_call.1} parent=1 // pred_check_branch
      %347 = sbr.rel (0) target = $region145
    $region144: #{tpu_custom_call.1} parent=1 // pred_region
      %349 = dma.done [#allocation19], 32
    $region145: #{tpu_custom_call.1} parent=1 // pred_fallthru
      _
    // Predicated region
    $region146: #{tpu_custom_call.1} parent=1 // pred_check
      _
    $region147: #{tpu_custom_call.1} parent=1 // pred_check_branch
      %351 = sbr.rel (0) target = $region149
    $region148: #{tpu_custom_call.1} parent=1 // pred_region
      %353 = dma.done [#allocation22], 32
    $region149: #{tpu_custom_call.1} parent=1 // pred_fallthru
      _
    // Predicated region
    $region150: #{tpu_custom_call.1} parent=1 // pred_check
      _
    $region151: #{tpu_custom_call.1} parent=1 // pred_check_branch
      %355 = sbr.rel (0) target = $region153
    $region152: #{tpu_custom_call.1} parent=1 // pred_region
      %357 = dma.done [#allocation22], 32
    $region153: #{tpu_custom_call.1} parent=1 // pred_fallthru
      _
    // Predicated region
    $region154: #{tpu_custom_call.1} parent=1 // pred_check
      _
    $region155: #{tpu_custom_call.1} parent=1 // pred_check_branch
      %359 = sbr.rel (0) target = $region157
    $region156: #{tpu_custom_call.1} parent=1 // pred_region
      %361 = dma.done [#allocation25], 8192
    $region157: #{tpu_custom_call.1} parent=1 // pred_fallthru
      _
    // Predicated region
    $region158: #{tpu_custom_call.1} parent=1 // pred_check
      _
    $region159: #{tpu_custom_call.1} parent=1 // pred_check_branch
      %363 = sbr.rel (0) target = $region161
    $region160: #{tpu_custom_call.1} parent=1 // pred_region
      %365 = dma.done [#allocation25], 128
    $region161: #{tpu_custom_call.1} parent=1 // pred_fallthru
      _
    // Predicated region
    $region162: #{tpu_custom_call.1} parent=1 // pred_check
      _
    $region163: #{tpu_custom_call.1} parent=1 // pred_check_branch
      %367 = sbr.rel (0) target = $region165
    $region164: #{tpu_custom_call.1} parent=1 // pred_region
      %369 = dma.done [#allocation28], 8192
    $region165: #{tpu_custom_call.1} parent=1 // pred_fallthru
      _
    // Predicated region
    $region166: #{tpu_custom_call.1} parent=1 // pred_check
      _
    $region167: #{tpu_custom_call.1} parent=1 // pred_check_branch
      %371 = sbr.rel (0) target = $region169
    $region168: #{tpu_custom_call.1} parent=1 // pred_region
      %373 = dma.done [#allocation28], 32
    $region169: #{tpu_custom_call.1} parent=1 // pred_fallthru
      _
    // Predicated region
    $region170: #{tpu_custom_call.1} parent=1 // pred_check
      _
    $region171: #{tpu_custom_call.1} parent=1 // pred_check_branch
      %375 = sbr.rel (0) target = $region173
    $region172: #{tpu_custom_call.1} parent=1 // pred_region
      %377 = dma.done [#allocation31], 32
    $region173: #{tpu_custom_call.1} parent=1 // pred_fallthru
      _
    // Predicated region
    $region174: #{tpu_custom_call.1} parent=1 // pred_check
      _
    $region175: #{tpu_custom_call.1} parent=1 // pred_check_branch
      %379 = sbr.rel (0) target = $region177
    $region176: #{tpu_custom_call.1} parent=1 // pred_region
      %381 = dma.done [#allocation31], 32
    $region177: #{tpu_custom_call.1} parent=1 // pred_fallthru
      _
    // Predicated region
    $region178: #{tpu_custom_call.1} parent=1 // pred_check
      _
    $region179: #{tpu_custom_call.1} parent=1 // pred_check_branch
      %383 = sbr.rel (0) target = $region181
    $region180: #{tpu_custom_call.1} parent=1 // pred_region
      %385 = dma.done [#allocation34], 256
    $region181: #{tpu_custom_call.1} parent=1 // pred_fallthru
      _
    %p387 = scmp.eq.s32.totalorder 0, 0
    // Predicated region
    $region182: #{tpu_custom_call.1} parent=1 // pred_check
      %p388 = pneg %p387
    $region183: #{tpu_custom_call.1} parent=1 // pred_check_branch
      %390 = sbr.rel (%p388) target = $region185
    $region184: #{tpu_custom_call.1} parent=1 // pred_region
      %vm391 = vcmask 23552
      %392 = vst.msk [vmem:[#allocation2] sm:$0xff] %vm391, 0.0
    $region185: #{tpu_custom_call.1} parent=1 // pred_fallthru
      _
    %v393 = vld [vmem:[#allocation3] sm:$0xff]
    %v394 = vunpack.c.l.bf16 %v393
    %v395 = vunpack.c.h.bf16 %v393
    %v396 = vadd.f32 %v394, %v395
    %397 = vadd.xlane.f32.xlu0 %v396
    %v398 = vpop.xlane.xlu0 %397
    %v399 = vld [vmem:[#allocation2] sm:$0xff]
    %v400 = vadd.f32 %v399, %v398
    %vm401 = vcmask 7168
    %402 = vst.msk [vmem:[#allocation2] sm:$0xff] %vm401, %v400
    %s403 = scalar_lea.vmem [#allocation3], 8
    %v404 = vld [vmem:[%s403] sm:$0xff]
    %v405 = vunpack.c.l.bf16 %v404
    %v406 = vunpack.c.h.bf16 %v404
    %v407 = vadd.f32 %v405, %v406
    %408 = vadd.xlane.f32.xlu0 %v407
    %v409 = vpop.xlane.xlu0 %408
    %v410 = vld [vmem:[#allocation2] sm:$0xff]
    %v411 = vadd.f32 %v410, %v409
    %vm412 = vcmask 15368
    %413 = vst.msk [vmem:[#allocation2] sm:$0xff] %vm412, %v411
    %s414 = scalar_lea.vmem [#allocation3], 16
    %v415 = vld [vmem:[%s414] sm:$0xff]
    %v416 = vunpack.c.l.bf16 %v415
    %v417 = vunpack.c.h.bf16 %v415
    %v418 = vadd.f32 %v416, %v417
    %419 = vadd.xlane.f32.xlu0 %v418
    %v420 = vpop.xlane.xlu0 %419
    %v421 = vld [vmem:[#allocation2] sm:$0xff]
    %v422 = vadd.f32 %v421, %v420
    %vm423 = vcmask 23568
    %424 = vst.msk [vmem:[#allocation2] sm:$0xff] %vm423, %v422
    // Predicated region
    $region186: #{tpu_custom_call.1} parent=1 // pred_check
      %p425 = pneg %p387
    $region187: #{tpu_custom_call.1} parent=1 // pred_check_branch
      %427 = sbr.rel (%p425) target = $region189
    $region188: #{tpu_custom_call.1} parent=1 // pred_region
      %v428 = vld [vmem:[#allocation2] sm:$0xff]
      %v429 = vmul.f32 %v428, 0.00390625
      %v430 = vld [vmem:[#allocation6] sm:$0xff]
      %v431 = vld [vmem:[%s2] sm:$0xf]
      %v432 = vpack.c.bf16 %v429, %v429
      %v434 = vperm.slane %v431, 0
      %v435 = vperm.slane %v431, 1
      %v436 = vperm.slane %v431, 2
      %v437 = vperm.slane %v431, 3
      %443 = vst [vmem:[#allocation1] ss:$4 sm:$0xff] %v430
      %v444 = vld.sshfl [vmem:[#allocation1] sm:$0xff pattern:$0x73625140]
      %v445 = vld.sshfl [vmem:[#allocation1 + $0x8] sm:$0xff pattern:$0x73625140]
      %v446 = vld.sshfl [vmem:[#allocation1 + $0x10] sm:$0xff pattern:$0x73625140]
      %v447 = vld.sshfl [vmem:[#allocation1 + $0x18] sm:$0xff pattern:$0x73625140]
      %vm448 = vcmask 23552
      %v450 = vsel %vm448, %v432, 0
      %vm452 = vcmask 1040384
      %vm453 = vcmask 1041408
      %v454 = vsel %vm452, 4294967295, 65535
      %v455 = vsel %vm453, %v454, 0
      %v456 = vand.u32 %v444, %v455
      %v458 = vand.u32 %v445, %v455
      %v460 = vand.u32 %v446, %v455
      %v462 = vand.u32 %v447, %v455
      %464 = vmatpush.bf16.msra.mxu0 0
      %465 = vmatpush.bf16.msra.mxu0 0
      %466 = vmatpush.bf16.msra.mxu0 0
      %467 = vmatpush.bf16.msra.mxu0 0
      %468 = vmatpush.bf16.msra.mxu0 0
      %469 = vmatpush.bf16.msra.mxu0 0
      %470 = vmatpush.bf16.msra.mxu0 0
      %471 = vmatpush.bf16.msra.mxu0 %v456
      %472 = vmatmul.bf16.gmra.mxu0 %v450
      %v473 = vpop.f32.mrf.mxu0
      %v474 = vadd.f32 %v434, %v473
      %v475 = vpop.f32.mrf.mxu0
      %476 = vdwg.mxu0
      %477 = vmatpush.bf16.msra.mxu0 0
      %478 = vmatpush.bf16.msra.mxu0 0
      %479 = vmatpush.bf16.msra.mxu0 0
      %480 = vmatpush.bf16.msra.mxu0 0
      %481 = vmatpush.bf16.msra.mxu0 0
      %482 = vmatpush.bf16.msra.mxu0 0
      %483 = vmatpush.bf16.msra.mxu0 0
      %484 = vmatpush.bf16.msra.mxu0 %v458
      %485 = vmatmul.bf16.gmra.mxu0 %v450
      %v486 = vpop.f32.mrf.mxu0
      %v487 = vadd.f32 %v435, %v486
      %v488 = vpop.f32.mrf.mxu0
      %489 = vdwg.mxu0
      %490 = vmatpush.bf16.msra.mxu0 0
      %491 = vmatpush.bf16.msra.mxu0 0
      %492 = vmatpush.bf16.msra.mxu0 0
      %493 = vmatpush.bf16.msra.mxu0 0
      %494 = vmatpush.bf16.msra.mxu0 0
      %495 = vmatpush.bf16.msra.mxu0 0
      %496 = vmatpush.bf16.msra.mxu0 0
      %497 = vmatpush.bf16.msra.mxu0 %v460
      %498 = vmatmul.bf16.gmra.mxu0 %v450
      %v499 = vpop.f32.mrf.mxu0
      %v500 = vadd.f32 %v436, %v499
      %v501 = vpop.f32.mrf.mxu0
      %502 = vdwg.mxu0
      %503 = vmatpush.bf16.msra.mxu0 0
      %504 = vmatpush.bf16.msra.mxu0 0
      %505 = vmatpush.bf16.msra.mxu0 0
      %506 = vmatpush.bf16.msra.mxu0 0
      %507 = vmatpush.bf16.msra.mxu0 0
      %508 = vmatpush.bf16.msra.mxu0 0
      %509 = vmatpush.bf16.msra.mxu0 0
      %510 = vmatpush.bf16.msra.mxu0 %v462
      %511 = vmatmul.bf16.gmra.mxu0 %v450
      %v512 = vpop.f32.mrf.mxu0
      %v513 = vadd.f32 %v437, %v512
      %v514 = vpop.f32.mrf.mxu0
      %515 = vdwg.mxu0
      %v516 = vmax.f32 %v474, 0.0
      %v517 = vmax.f32 %v487, 0.0
      %v518 = vmax.f32 %v500, 0.0
      %v519 = vmax.f32 %v513, 0.0
      %v520 = vld [vmem:[#allocation8] sm:$0xf]
      %v521 = vld [vmem:[#allocation8 + $0x4] sm:$0xf]
      %v522 = vld [vmem:[#allocation8 + $0x8] sm:$0xf]
      %v523 = vld [vmem:[#allocation8 + $0xc] sm:$0xf]
      %v524 = vld [vmem:[#allocation8 + $0x10] sm:$0xf]
      %v525 = vld [vmem:[#allocation8 + $0x14] sm:$0xf]
      %v526 = vld [vmem:[#allocation8 + $0x18] sm:$0xf]
      %v527 = vld [vmem:[#allocation8 + $0x1c] sm:$0xf]
      %v528 = vld [vmem:[#allocation8 + $0x20] sm:$0xf]
      %v529 = vld [vmem:[#allocation8 + $0x24] sm:$0xf]
      %v530 = vld [vmem:[#allocation8 + $0x28] sm:$0xf]
      %v531 = vld [vmem:[#allocation8 + $0x2c] sm:$0xf]
      %v532 = vld [vmem:[#allocation8 + $0x30] sm:$0xf]
      %v533 = vld [vmem:[#allocation8 + $0x34] sm:$0xf]
      %v534 = vld [vmem:[#allocation8 + $0x38] sm:$0xf]
      %v535 = vld [vmem:[#allocation8 + $0x3c] sm:$0xf]
      %v536 = vld [vmem:[#allocation8 + $0x40] sm:$0xf]
      %v537 = vld [vmem:[#allocation8 + $0x44] sm:$0xf]
      %v538 = vld [vmem:[#allocation8 + $0x48] sm:$0xf]
      %v539 = vld [vmem:[#allocation8 + $0x4c] sm:$0xf]
      %v540 = vld [vmem:[#allocation8 + $0x50] sm:$0xf]
      %v541 = vld [vmem:[#allocation8 + $0x54] sm:$0xf]
      %v542 = vld [vmem:[#allocation8 + $0x58] sm:$0xf]
      %v543 = vld [vmem:[#allocation8 + $0x5c] sm:$0xf]
      %v544 = vld [vmem:[#allocation8 + $0x60] sm:$0xf]
      %v545 = vld [vmem:[#allocation8 + $0x64] sm:$0xf]
      %v546 = vld [vmem:[#allocation8 + $0x68] sm:$0xf]
      %v547 = vld [vmem:[#allocation8 + $0x6c] sm:$0xf]
      %v548 = vld [vmem:[#allocation8 + $0x70] sm:$0xf]
      %v549 = vld [vmem:[#allocation8 + $0x74] sm:$0xf]
      %v550 = vld [vmem:[#allocation8 + $0x78] sm:$0xf]
      %v551 = vld [vmem:[#allocation8 + $0x7c] sm:$0xf]
      %v552 = vld [vmem:[#allocation9] sm:$0x1]
      %v553 = vpack.c.bf16 %v516, %v516
      %v554 = vpack.c.bf16 %v517, %v517
      %v556 = vperm.slane %v552, 0
      %v590 = vunpack.c.l.b16 %v520
      %v591 = vunpack.c.l.b16 %v521
      %v592 = vunpack.c.l.b16 %v522
      %v593 = vunpack.c.l.b16 %v523
      %v594 = vunpack.c.l.b16 %v524
      %v595 = vunpack.c.l.b16 %v525
      %v596 = vunpack.c.l.b16 %v526
      %v597 = vunpack.c.l.b16 %v527
      %v598 = vunpack.c.l.b16 %v528
      %v599 = vunpack.c.l.b16 %v529
      %v600 = vunpack.c.l.b16 %v530
      %v601 = vunpack.c.l.b16 %v531
      %v602 = vunpack.c.l.b16 %v532
      %v603 = vunpack.c.l.b16 %v533
      %v604 = vunpack.c.l.b16 %v534
      %v605 = vunpack.c.l.b16 %v535
      %v606 = vunpack.c.l.b16 %v536
      %v607 = vunpack.c.l.b16 %v537
      %v608 = vunpack.c.l.b16 %v538
      %v609 = vunpack.c.l.b16 %v539
      %v610 = vunpack.c.l.b16 %v540
      %v611 = vunpack.c.l.b16 %v541
      %v612 = vunpack.c.l.b16 %v542
      %v613 = vunpack.c.l.b16 %v543
      %v614 = vunpack.c.l.b16 %v544
      %v615 = vunpack.c.l.b16 %v545
      %v616 = vunpack.c.l.b16 %v546
      %v617 = vunpack.c.l.b16 %v547
      %v618 = vunpack.c.l.b16 %v548
      %v619 = vunpack.c.l.b16 %v549
      %v620 = vunpack.c.l.b16 %v550
      %v621 = vunpack.c.l.b16 %v551
      %v622 = vpack.c.b16 %v591, %v590
      %v623 = vpack.c.b16 %v593, %v592
      %v624 = vpack.c.b16 %v595, %v594
      %v625 = vpack.c.b16 %v597, %v596
      %v626 = vpack.c.b16 %v599, %v598
      %v627 = vpack.c.b16 %v601, %v600
      %v628 = vpack.c.b16 %v603, %v602
      %v629 = vpack.c.b16 %v605, %v604
      %v630 = vpack.c.b16 %v607, %v606
      %v631 = vpack.c.b16 %v609, %v608
      %v632 = vpack.c.b16 %v611, %v610
      %v633 = vpack.c.b16 %v613, %v612
      %v634 = vpack.c.b16 %v615, %v614
      %v635 = vpack.c.b16 %v617, %v616
      %v636 = vpack.c.b16 %v619, %v618
      %v637 = vpack.c.b16 %v621, %v620
      %654 = vmatpush.bf16.msra.mxu0 %v629
      %655 = vmatpush.bf16.msra.mxu0 %v628
      %656 = vmatpush.bf16.msra.mxu0 %v627
      %657 = vmatpush.bf16.msra.mxu0 %v626
      %658 = vmatpush.bf16.msra.mxu0 %v625
      %659 = vmatpush.bf16.msra.mxu0 %v624
      %660 = vmatpush.bf16.msra.mxu0 %v623
      %661 = vmatpush.bf16.msra.mxu0 %v622
      %662 = vmatmul.bf16.gmra.mxu0 %v553
      %v663 = vpop.f32.mrf.mxu0
      %v664 = vadd.f32 %v556, %v663
      %v665 = vpop.f32.mrf.mxu0
      %666 = vdwg.mxu0
      %667 = vmatpush.bf16.msra.mxu0 %v637
      %668 = vmatpush.bf16.msra.mxu0 %v636
      %669 = vmatpush.bf16.msra.mxu0 %v635
      %670 = vmatpush.bf16.msra.mxu0 %v634
      %671 = vmatpush.bf16.msra.mxu0 %v633
      %672 = vmatpush.bf16.msra.mxu0 %v632
      %673 = vmatpush.bf16.msra.mxu0 %v631
      %674 = vmatpush.bf16.msra.mxu0 %v630
      %675 = vmatmul.bf16.gmra.mxu0 %v554
      %v676 = vpop.f32.mrf.mxu0
      %v677 = vadd.f32 %v664, %v676
      %v678 = vpop.f32.mrf.mxu0
      %679 = vdwg.mxu0
      %v680 = vld [vmem:[%s5] sm:$0xf]
      %v681 = vld [vmem:[%s5 + $0x4] sm:$0xf]
      %v682 = vld [vmem:[%s5 + $0x8] sm:$0xf]
      %v683 = vld [vmem:[%s5 + $0xc] sm:$0xf]
      %v684 = vld [vmem:[%s5 + $0x10] sm:$0xf]
      %v685 = vld [vmem:[%s5 + $0x14] sm:$0xf]
      %v686 = vld [vmem:[%s5 + $0x18] sm:$0xf]
      %v687 = vld [vmem:[%s5 + $0x1c] sm:$0xf]
      %v688 = vld [vmem:[%s5 + $0x20] sm:$0xf]
      %v689 = vld [vmem:[%s5 + $0x24] sm:$0xf]
      %v690 = vld [vmem:[%s5 + $0x28] sm:$0xf]
      %v691 = vld [vmem:[%s5 + $0x2c] sm:$0xf]
      %v692 = vld [vmem:[%s5 + $0x30] sm:$0xf]
      %v693 = vld [vmem:[%s5 + $0x34] sm:$0xf]
      %v694 = vld [vmem:[%s5 + $0x38] sm:$0xf]
      %v695 = vld [vmem:[%s5 + $0x3c] sm:$0xf]
      %v696 = vld [vmem:[%s5 + $0x40] sm:$0xf]
      %v697 = vld [vmem:[%s5 + $0x44] sm:$0xf]
      %v698 = vld [vmem:[%s5 + $0x48] sm:$0xf]
      %v699 = vld [vmem:[%s5 + $0x4c] sm:$0xf]
      %v700 = vld [vmem:[#allocation11] sm:$0x1]
      %v701 = vpack.c.bf16 %v518, %v518
      %v702 = vpack.c.bf16 %v519, %v519
      %v704 = vperm.slane %v700, 0
      %v726 = vunpack.c.l.b16 %v680
      %v727 = vunpack.c.l.b16 %v681
      %v728 = vunpack.c.l.b16 %v682
      %v729 = vunpack.c.l.b16 %v683
      %v730 = vunpack.c.l.b16 %v684
      %v731 = vunpack.c.l.b16 %v685
      %v732 = vunpack.c.l.b16 %v686
      %v733 = vunpack.c.l.b16 %v687
      %v734 = vunpack.c.l.b16 %v688
      %v735 = vunpack.c.l.b16 %v689
      %v736 = vunpack.c.l.b16 %v690
      %v737 = vunpack.c.l.b16 %v691
      %v738 = vunpack.c.l.b16 %v692
      %v739 = vunpack.c.l.b16 %v693
      %v740 = vunpack.c.l.b16 %v694
      %v741 = vunpack.c.l.b16 %v695
      %v742 = vunpack.c.l.b16 %v696
      %v743 = vunpack.c.l.b16 %v697
      %v744 = vunpack.c.l.b16 %v698
      %v745 = vunpack.c.l.b16 %v699
      %v746 = vpack.c.b16 %v727, %v726
      %v747 = vpack.c.b16 %v729, %v728
      %v748 = vpack.c.b16 %v731, %v730
      %v749 = vpack.c.b16 %v733, %v732
      %v750 = vpack.c.b16 %v735, %v734
      %v751 = vpack.c.b16 %v737, %v736
      %v752 = vpack.c.b16 %v739, %v738
      %v753 = vpack.c.b16 %v741, %v740
      %v754 = vpack.c.b16 %v743, %v742
      %v755 = vpack.c.b16 %v745, %v744
      %vm766 = vcmask 261120
      %v768 = vsel %vm766, %v702, 0
      %770 = vmatpush.bf16.msra.mxu0 %v753
      %771 = vmatpush.bf16.msra.mxu0 %v752
      %772 = vmatpush.bf16.msra.mxu0 %v751
      %773 = vmatpush.bf16.msra.mxu0 %v750
      %774 = vmatpush.bf16.msra.mxu0 %v749
      %775 = vmatpush.bf16.msra.mxu0 %v748
      %776 = vmatpush.bf16.msra.mxu0 %v747
      %777 = vmatpush.bf16.msra.mxu0 %v746
      %778 = vmatmul.bf16.gmra.mxu0 %v701
      %v779 = vpop.f32.mrf.mxu0
      %v780 = vadd.f32 %v704, %v779
      %v781 = vpop.f32.mrf.mxu0
      %782 = vdwg.mxu0
      %783 = vmatpush.bf16.msra.mxu0 0
      %784 = vmatpush.bf16.msra.mxu0 0
      %785 = vmatpush.bf16.msra.mxu0 0
      %786 = vmatpush.bf16.msra.mxu0 0
      %787 = vmatpush.bf16.msra.mxu0 0
      %788 = vmatpush.bf16.msra.mxu0 0
      %789 = vmatpush.bf16.msra.mxu0 %v755
      %790 = vmatpush.bf16.msra.mxu0 %v754
      %791 = vmatmul.bf16.gmra.mxu0 %v768
      %v792 = vpop.f32.mrf.mxu0
      %v793 = vadd.f32 %v780, %v792
      %v794 = vpop.f32.mrf.mxu0
      %795 = vdwg.mxu0
      %v796 = vld [vmem:[#allocation12] sm:$0xf]
      %v797 = vld [vmem:[#allocation12 + $0x4] sm:$0xf]
      %v798 = vld [vmem:[#allocation12 + $0x8] sm:$0xf]
      %v799 = vld [vmem:[#allocation12 + $0xc] sm:$0xf]
      %v800 = vld [vmem:[#allocation12 + $0x10] sm:$0xf]
      %v801 = vld [vmem:[#allocation12 + $0x14] sm:$0xf]
      %v802 = vld [vmem:[#allocation12 + $0x18] sm:$0xf]
      %v803 = vld [vmem:[#allocation12 + $0x1c] sm:$0xf]
      %v804 = vld [vmem:[#allocation12 + $0x20] sm:$0xf]
      %v805 = vld [vmem:[#allocation12 + $0x24] sm:$0xf]
      %v806 = vld [vmem:[#allocation12 + $0x28] sm:$0xf]
      %v807 = vld [vmem:[#allocation12 + $0x2c] sm:$0xf]
      %v808 = vld [vmem:[#allocation12 + $0x30] sm:$0xf]
      %v809 = vld [vmem:[#allocation12 + $0x34] sm:$0xf]
      %v810 = vld [vmem:[#allocation12 + $0x38] sm:$0xf]
      %v811 = vld [vmem:[#allocation12 + $0x3c] sm:$0xf]
      %v812 = vld [vmem:[#allocation14] sm:$0xf]
      %v813 = vld [vmem:[#allocation14 + $0x4] sm:$0xf]
      %v814 = vld [vmem:[#allocation14 + $0x8] sm:$0xf]
      %v815 = vld [vmem:[#allocation14 + $0xc] sm:$0xf]
      %v816 = vld [vmem:[#allocation14 + $0x10] sm:$0xf]
      %v817 = vld [vmem:[#allocation14 + $0x14] sm:$0xf]
      %v818 = vld [vmem:[#allocation14 + $0x18] sm:$0xf]
      %v819 = vld [vmem:[#allocation14 + $0x1c] sm:$0xf]
      %v820 = vld [vmem:[#allocation14 + $0x20] sm:$0xf]
      %v821 = vld [vmem:[#allocation14 + $0x24] sm:$0xf]
      %v822 = vld [vmem:[#allocation14 + $0x28] sm:$0xf]
      %v823 = vld [vmem:[#allocation14 + $0x2c] sm:$0xf]
      %v824 = vld [vmem:[#allocation14 + $0x30] sm:$0xf]
      %v825 = vld [vmem:[#allocation14 + $0x34] sm:$0xf]
      %v826 = vld [vmem:[#allocation14 + $0x38] sm:$0xf]
      %v827 = vld [vmem:[#allocation14 + $0x3c] sm:$0xf]
      %v828 = vld [vmem:[#allocation15] sm:$0xff]
      %v829 = vld [vmem:[#allocation15 + $0x8] sm:$0xf]
      %v830 = vld [vmem:[#allocation15 + $0xc] sm:$0xff]
      %v831 = vld [vmem:[#allocation15 + $0x14] sm:$0xf]
      %v832 = vld [vmem:[#allocation15 + $0x18] sm:$0xff]
      %v833 = vld [vmem:[#allocation15 + $0x20] sm:$0xf]
      %v834 = vld [vmem:[#allocation15 + $0x24] sm:$0xff]
      %v835 = vld [vmem:[#allocation15 + $0x2c] sm:$0xf]
      %v836 = vld [vmem:[#allocation15 + $0x30] sm:$0xff]
      %v837 = vld [vmem:[#allocation15 + $0x38] sm:$0xf]
      %v838 = vld [vmem:[#allocation15 + $0x3c] sm:$0xff]
      %v839 = vld [vmem:[#allocation15 + $0x44] sm:$0xf]
      %v840 = vld [vmem:[#allocation15 + $0x48] sm:$0xff]
      %v841 = vld [vmem:[#allocation15 + $0x50] sm:$0xf]
      %v842 = vld [vmem:[#allocation15 + $0x54] sm:$0xff]
      %v843 = vld [vmem:[#allocation15 + $0x5c] sm:$0xf]
      %v844 = vld [vmem:[#allocation15 + $0x60] sm:$0xff]
      %v845 = vld [vmem:[#allocation15 + $0x68] sm:$0xf]
      %v846 = vld [vmem:[#allocation15 + $0x6c] sm:$0xff]
      %v847 = vld [vmem:[#allocation15 + $0x74] sm:$0xf]
      %v848 = vld [vmem:[#allocation15 + $0x78] sm:$0xff]
      %v849 = vld [vmem:[#allocation15 + $0x80] sm:$0xf]
      %v850 = vld [vmem:[#allocation15 + $0x84] sm:$0xff]
      %v851 = vld [vmem:[#allocation15 + $0x8c] sm:$0xf]
      %v852 = vld [vmem:[#allocation15 + $0x90] sm:$0xff]
      %v853 = vld [vmem:[#allocation15 + $0x98] sm:$0xf]
      %v854 = vld [vmem:[#allocation15 + $0x9c] sm:$0xff]
      %v855 = vld [vmem:[#allocation15 + $0xa4] sm:$0xf]
      %v856 = vld [vmem:[#allocation15 + $0xa8] sm:$0xff]
      %v857 = vld [vmem:[#allocation15 + $0xb0] sm:$0xf]
      %v858 = vld [vmem:[#allocation15 + $0xb4] sm:$0xff]
      %v859 = vld [vmem:[#allocation15 + $0xbc] sm:$0xf]
      %v860 = vld [vmem:[#allocation17] sm:$0x7]
      %v861 = vpack.c.bf16 %v793, %v677
      %v863 = vperm.slane %v860, 0
      %v864 = vperm.slane %v860, 1
      %v865 = vperm.slane %v860, 2
      %v901 = vunpack.c.l.b16 %v828
      %v902 = vunpack.c.h.b16 %v828
      %v903 = vunpack.c.l.b16 %v829
      %v904 = vunpack.c.l.b16 %v830
      %v905 = vunpack.c.h.b16 %v830
      %v906 = vunpack.c.l.b16 %v831
      %v907 = vunpack.c.l.b16 %v832
      %v908 = vunpack.c.h.b16 %v832
      %v909 = vunpack.c.l.b16 %v833
      %v910 = vunpack.c.l.b16 %v834
      %v911 = vunpack.c.h.b16 %v834
      %v912 = vunpack.c.l.b16 %v835
      %v913 = vunpack.c.l.b16 %v836
      %v914 = vunpack.c.h.b16 %v836
      %v915 = vunpack.c.l.b16 %v837
      %v916 = vunpack.c.l.b16 %v838
      %v917 = vunpack.c.h.b16 %v838
      %v918 = vunpack.c.l.b16 %v839
      %v919 = vunpack.c.l.b16 %v840
      %v920 = vunpack.c.h.b16 %v840
      %v921 = vunpack.c.l.b16 %v841
      %v922 = vunpack.c.l.b16 %v842
      %v923 = vunpack.c.h.b16 %v842
      %v924 = vunpack.c.l.b16 %v843
      %v925 = vunpack.c.l.b16 %v844
      %v926 = vunpack.c.h.b16 %v844
      %v927 = vunpack.c.l.b16 %v845
      %v928 = vunpack.c.l.b16 %v846
      %v929 = vunpack.c.h.b16 %v846
      %v930 = vunpack.c.l.b16 %v847
      %v931 = vunpack.c.l.b16 %v848
      %v932 = vunpack.c.h.b16 %v848
      %v933 = vunpack.c.l.b16 %v849
      %v934 = vunpack.c.l.b16 %v850
      %v935 = vunpack.c.h.b16 %v850
      %v936 = vunpack.c.l.b16 %v851
      %v937 = vunpack.c.l.b16 %v852
      %v938 = vunpack.c.h.b16 %v852
      %v939 = vunpack.c.l.b16 %v853
      %v940 = vunpack.c.l.b16 %v854
      %v941 = vunpack.c.h.b16 %v854
      %v942 = vunpack.c.l.b16 %v855
      %v943 = vunpack.c.l.b16 %v856
      %v944 = vunpack.c.h.b16 %v856
      %v945 = vunpack.c.l.b16 %v857
      %v946 = vunpack.c.l.b16 %v858
      %v947 = vunpack.c.h.b16 %v858
      %v948 = vunpack.c.l.b16 %v859
      %v949 = vpack.c.b16 %v904, %v901
      %v950 = vpack.c.b16 %v905, %v902
      %v951 = vpack.c.b16 %v906, %v903
      %v952 = vpack.c.b16 %v910, %v907
      %v953 = vpack.c.b16 %v911, %v908
      %v954 = vpack.c.b16 %v912, %v909
      %v955 = vpack.c.b16 %v916, %v913
      %v956 = vpack.c.b16 %v917, %v914
      %v957 = vpack.c.b16 %v918, %v915
      %v958 = vpack.c.b16 %v922, %v919
      %v959 = vpack.c.b16 %v923, %v920
      %v960 = vpack.c.b16 %v924, %v921
      %v961 = vpack.c.b16 %v928, %v925
      %v962 = vpack.c.b16 %v929, %v926
      %v963 = vpack.c.b16 %v930, %v927
      %v964 = vpack.c.b16 %v934, %v931
      %v965 = vpack.c.b16 %v935, %v932
      %v966 = vpack.c.b16 %v936, %v933
      %v967 = vpack.c.b16 %v940, %v937
      %v968 = vpack.c.b16 %v941, %v938
      %v969 = vpack.c.b16 %v942, %v939
      %v970 = vpack.c.b16 %v946, %v943
      %v971 = vpack.c.b16 %v947, %v944
      %v972 = vpack.c.b16 %v948, %v945
      %997 = vmatpush.bf16.msra.mxu0 %v970
      %998 = vmatpush.bf16.msra.mxu0 %v967
      %999 = vmatpush.bf16.msra.mxu0 %v964
      %1000 = vmatpush.bf16.msra.mxu0 %v961
      %1001 = vmatpush.bf16.msra.mxu0 %v958
      %1002 = vmatpush.bf16.msra.mxu0 %v955
      %1003 = vmatpush.bf16.msra.mxu0 %v952
      %1004 = vmatpush.bf16.msra.mxu0 %v949
      %1005 = vmatmul.bf16.gmra.mxu0 %v861
      %v1006 = vpop.f32.mrf.mxu0
      %v1007 = vadd.f32 %v863, %v1006
      %v1008 = vpop.f32.mrf.mxu0
      %v1009 = vadd.f32 %v863, %v1008
      %1010 = vdwg.mxu0
      %1011 = vmatpush.bf16.msra.mxu0 %v971
      %1012 = vmatpush.bf16.msra.mxu0 %v968
      %1013 = vmatpush.bf16.msra.mxu0 %v965
      %1014 = vmatpush.bf16.msra.mxu0 %v962
      %1015 = vmatpush.bf16.msra.mxu0 %v959
      %1016 = vmatpush.bf16.msra.mxu0 %v956
      %1017 = vmatpush.bf16.msra.mxu0 %v953
      %1018 = vmatpush.bf16.msra.mxu0 %v950
      %1019 = vmatmul.bf16.gmra.mxu0 %v861
      %v1020 = vpop.f32.mrf.mxu0
      %v1021 = vadd.f32 %v864, %v1020
      %v1022 = vpop.f32.mrf.mxu0
      %v1023 = vadd.f32 %v864, %v1022
      %1024 = vdwg.mxu0
      %1025 = vmatpush.bf16.msra.mxu0 %v972
      %1026 = vmatpush.bf16.msra.mxu0 %v969
      %1027 = vmatpush.bf16.msra.mxu0 %v966
      %1028 = vmatpush.bf16.msra.mxu0 %v963
      %1029 = vmatpush.bf16.msra.mxu0 %v960
      %1030 = vmatpush.bf16.msra.mxu0 %v957
      %1031 = vmatpush.bf16.msra.mxu0 %v954
      %1032 = vmatpush.bf16.msra.mxu0 %v951
      %1033 = vmatmul.bf16.gmra.mxu0 %v861
      %v1034 = vpop.f32.mrf.mxu0
      %v1035 = vadd.f32 %v865, %v1034
      %v1036 = vpop.f32.mrf.mxu0
      %v1037 = vadd.f32 %v865, %v1036
      %1038 = vdwg.mxu0
      %v1039 = vmul.f32 %v1007, %v1021
      %v1040 = vpack.c.bf16 %v1039, %v1039
      %v1057 = vunpack.c.l.b16 %v796
      %v1058 = vunpack.c.l.b16 %v797
      %v1059 = vunpack.c.l.b16 %v798
      %v1060 = vunpack.c.l.b16 %v799
      %v1061 = vunpack.c.l.b16 %v800
      %v1062 = vunpack.c.l.b16 %v801
      %v1063 = vunpack.c.l.b16 %v802
      %v1064 = vunpack.c.l.b16 %v803
      %v1065 = vunpack.c.l.b16 %v804
      %v1066 = vunpack.c.l.b16 %v805
      %v1067 = vunpack.c.l.b16 %v806
      %v1068 = vunpack.c.l.b16 %v807
      %v1069 = vunpack.c.l.b16 %v808
      %v1070 = vunpack.c.l.b16 %v809
      %v1071 = vunpack.c.l.b16 %v810
      %v1072 = vunpack.c.l.b16 %v811
      %v1073 = vpack.c.b16 %v1058, %v1057
      %v1074 = vpack.c.b16 %v1060, %v1059
      %v1075 = vpack.c.b16 %v1062, %v1061
      %v1076 = vpack.c.b16 %v1064, %v1063
      %v1077 = vpack.c.b16 %v1066, %v1065
      %v1078 = vpack.c.b16 %v1068, %v1067
      %v1079 = vpack.c.b16 %v1070, %v1069
      %v1080 = vpack.c.b16 %v1072, %v1071
      %1089 = vmatpush.bf16.msra.mxu0 %v1080
      %1090 = vmatpush.bf16.msra.mxu0 %v1079
      %1091 = vmatpush.bf16.msra.mxu0 %v1078
      %1092 = vmatpush.bf16.msra.mxu0 %v1077
      %1093 = vmatpush.bf16.msra.mxu0 %v1076
      %1094 = vmatpush.bf16.msra.mxu0 %v1075
      %1095 = vmatpush.bf16.msra.mxu0 %v1074
      %1096 = vmatpush.bf16.msra.mxu0 %v1073
      %1097 = vmatmul.bf16.gmra.mxu0 %v1040
      %v1098 = vpop.f32.mrf.mxu0
      %v1099 = vadd.f32 0.0, %v1098
      %v1100 = vpop.f32.mrf.mxu0
      %1101 = vdwg.mxu0
      %v1102 = vmul.f32 %v1099, 0.25
      %v1103 = vmul.f32 %v1007, %v1023
      %v1104 = vpack.c.bf16 %v1103, %v1103
      %1105 = vmatpush.bf16.msra.mxu0 %v1080
      %1106 = vmatpush.bf16.msra.mxu0 %v1079
      %1107 = vmatpush.bf16.msra.mxu0 %v1078
      %1108 = vmatpush.bf16.msra.mxu0 %v1077
      %1109 = vmatpush.bf16.msra.mxu0 %v1076
      %1110 = vmatpush.bf16.msra.mxu0 %v1075
      %1111 = vmatpush.bf16.msra.mxu0 %v1074
      %1112 = vmatpush.bf16.msra.mxu0 %v1073
      %1113 = vmatmul.bf16.gmra.mxu0 %v1104
      %v1114 = vpop.f32.mrf.mxu0
      %v1115 = vadd.f32 0.0, %v1114
      %v1116 = vpop.f32.mrf.mxu0
      %1117 = vdwg.mxu0
      %v1118 = vmul.f32 %v1115, 0.25
      %v1119 = vmul.f32 %v1009, %v1021
      %v1120 = vpack.c.bf16 %v1119, %v1119
      %1121 = vmatpush.bf16.msra.mxu0 %v1080
      %1122 = vmatpush.bf16.msra.mxu0 %v1079
      %1123 = vmatpush.bf16.msra.mxu0 %v1078
      %1124 = vmatpush.bf16.msra.mxu0 %v1077
      %1125 = vmatpush.bf16.msra.mxu0 %v1076
      %1126 = vmatpush.bf16.msra.mxu0 %v1075
      %1127 = vmatpush.bf16.msra.mxu0 %v1074
      %1128 = vmatpush.bf16.msra.mxu0 %v1073
      %1129 = vmatmul.bf16.gmra.mxu0 %v1120
      %v1130 = vpop.f32.mrf.mxu0
      %v1131 = vadd.f32 0.0, %v1130
      %v1132 = vpop.f32.mrf.mxu0
      %1133 = vdwg.mxu0
      %v1134 = vmul.f32 %v1131, 0.25
      %v1135 = vmul.f32 %v1009, %v1023
      %v1136 = vpack.c.bf16 %v1135, %v1135
      %1137 = vmatpush.bf16.msra.mxu0 %v1080
      %1138 = vmatpush.bf16.msra.mxu0 %v1079
      %1139 = vmatpush.bf16.msra.mxu0 %v1078
      %1140 = vmatpush.bf16.msra.mxu0 %v1077
      %1141 = vmatpush.bf16.msra.mxu0 %v1076
      %1142 = vmatpush.bf16.msra.mxu0 %v1075
      %1143 = vmatpush.bf16.msra.mxu0 %v1074
      %1144 = vmatpush.bf16.msra.mxu0 %v1073
      %1145 = vmatmul.bf16.gmra.mxu0 %v1136
      %v1146 = vpop.f32.mrf.mxu0
      %v1147 = vadd.f32 0.0, %v1146
      %v1148 = vpop.f32.mrf.mxu0
      %1149 = vdwg.mxu0
      %v1150 = vmul.f32 %v1147, 0.25
      %v1151 = vmax.f32 %v1102, %v1118
      %v1152 = vsub.f32 %v1102, %v1151
      %v1153 = vmul.f32 %v1152, 1.442695
      %v1154 = vpow.pop %v1153
      %v1155 = vsub.f32 %v1118, %v1151
      %v1156 = vmul.f32 %v1155, 1.442695
      %v1157 = vpow.pop %v1156
      %v1158 = vadd.f32 %v1154, %v1157
      %v1159 = vrcp.pop %v1158
      %v1160 = vmul.f32 %v1154, %v1159
      %v1161 = vmul.f32 %v1157, %v1159
      %v1162 = vmax.f32 %v1134, %v1150
      %v1163 = vsub.f32 %v1134, %v1162
      %v1164 = vmul.f32 %v1163, 1.442695
      %v1165 = vpow.pop %v1164
      %v1166 = vsub.f32 %v1150, %v1162
      %v1167 = vmul.f32 %v1166, 1.442695
      %v1168 = vpow.pop %v1167
      %v1169 = vadd.f32 %v1165, %v1168
      %v1170 = vrcp.pop %v1169
      %v1171 = vmul.f32 %v1165, %v1170
      %v1172 = vmul.f32 %v1168, %v1170
      %v1173 = vpack.c.bf16 %v1160, %v1160
      %v1190 = vunpack.c.l.b16 %v812
      %v1191 = vunpack.c.l.b16 %v813
      %v1192 = vunpack.c.l.b16 %v814
      %v1193 = vunpack.c.l.b16 %v815
      %v1194 = vunpack.c.l.b16 %v816
      %v1195 = vunpack.c.l.b16 %v817
      %v1196 = vunpack.c.l.b16 %v818
      %v1197 = vunpack.c.l.b16 %v819
      %v1198 = vunpack.c.l.b16 %v820
      %v1199 = vunpack.c.l.b16 %v821
      %v1200 = vunpack.c.l.b16 %v822
      %v1201 = vunpack.c.l.b16 %v823
      %v1202 = vunpack.c.l.b16 %v824
      %v1203 = vunpack.c.l.b16 %v825
      %v1204 = vunpack.c.l.b16 %v826
      %v1205 = vunpack.c.l.b16 %v827
      %v1206 = vpack.c.b16 %v1191, %v1190
      %v1207 = vpack.c.b16 %v1193, %v1192
      %v1208 = vpack.c.b16 %v1195, %v1194
      %v1209 = vpack.c.b16 %v1197, %v1196
      %v1210 = vpack.c.b16 %v1199, %v1198
      %v1211 = vpack.c.b16 %v1201, %v1200
      %v1212 = vpack.c.b16 %v1203, %v1202
      %v1213 = vpack.c.b16 %v1205, %v1204
      %1222 = vmatpush.bf16.msra.mxu0 %v1213
      %1223 = vmatpush.bf16.msra.mxu0 %v1212
      %1224 = vmatpush.bf16.msra.mxu0 %v1211
      %1225 = vmatpush.bf16.msra.mxu0 %v1210
      %1226 = vmatpush.bf16.msra.mxu0 %v1209
      %1227 = vmatpush.bf16.msra.mxu0 %v1208
      %1228 = vmatpush.bf16.msra.mxu0 %v1207
      %1229 = vmatpush.bf16.msra.mxu0 %v1206
      %1230 = vmatmul.bf16.gmra.mxu0 %v1173
      %v1231 = vpop.f32.mrf.mxu0
      %v1232 = vadd.f32 0.0, %v1231
      %v1233 = vpop.f32.mrf.mxu0
      %1234 = vdwg.mxu0
      %v1235 = vmul.f32 %v1232, %v1035
      %v1236 = vpack.c.bf16 %v1161, %v1161
      %1237 = vmatpush.bf16.msra.mxu0 %v1213
      %1238 = vmatpush.bf16.msra.mxu0 %v1212
      %1239 = vmatpush.bf16.msra.mxu0 %v1211
      %1240 = vmatpush.bf16.msra.mxu0 %v1210
      %1241 = vmatpush.bf16.msra.mxu0 %v1209
      %1242 = vmatpush.bf16.msra.mxu0 %v1208
      %1243 = vmatpush.bf16.msra.mxu0 %v1207
      %1244 = vmatpush.bf16.msra.mxu0 %v1206
      %1245 = vmatmul.bf16.gmra.mxu0 %v1236
      %v1246 = vpop.f32.mrf.mxu0
      %v1247 = vadd.f32 0.0, %v1246
      %v1248 = vpop.f32.mrf.mxu0
      %1249 = vdwg.mxu0
      %v1250 = vmul.f32 %v1247, %v1037
      %v1251 = vadd.f32 %v1235, %v1250
      %v1252 = vpack.c.bf16 %v1171, %v1171
      %1253 = vmatpush.bf16.msra.mxu0 %v1213
      %1254 = vmatpush.bf16.msra.mxu0 %v1212
      %1255 = vmatpush.bf16.msra.mxu0 %v1211
      %1256 = vmatpush.bf16.msra.mxu0 %v1210
      %1257 = vmatpush.bf16.msra.mxu0 %v1209
      %1258 = vmatpush.bf16.msra.mxu0 %v1208
      %1259 = vmatpush.bf16.msra.mxu0 %v1207
      %1260 = vmatpush.bf16.msra.mxu0 %v1206
      %1261 = vmatmul.bf16.gmra.mxu0 %v1252
      %v1262 = vpop.f32.mrf.mxu0
      %v1263 = vadd.f32 0.0, %v1262
      %v1264 = vpop.f32.mrf.mxu0
      %1265 = vdwg.mxu0
      %v1266 = vmul.f32 %v1263, %v1035
      %v1267 = vpack.c.bf16 %v1172, %v1172
      %1268 = vmatpush.bf16.msra.mxu0 %v1213
      %1269 = vmatpush.bf16.msra.mxu0 %v1212
      %1270 = vmatpush.bf16.msra.mxu0 %v1211
      %1271 = vmatpush.bf16.msra.mxu0 %v1210
      %1272 = vmatpush.bf16.msra.mxu0 %v1209
      %1273 = vmatpush.bf16.msra.mxu0 %v1208
      %1274 = vmatpush.bf16.msra.mxu0 %v1207
      %1275 = vmatpush.bf16.msra.mxu0 %v1206
      %1276 = vmatmul.bf16.gmra.mxu0 %v1267
      %v1277 = vpop.f32.mrf.mxu0
      %v1278 = vadd.f32 0.0, %v1277
      %v1279 = vpop.f32.mrf.mxu0
      %1280 = vdwg.mxu0
      %v1281 = vmul.f32 %v1278, %v1037
      %v1282 = vadd.f32 %v1266, %v1281
      %v1283 = vld [vmem:[#allocation18] sm:$0xf]
      %v1284 = vld [vmem:[#allocation18 + $0x4] sm:$0xf]
      %v1285 = vld [vmem:[#allocation18 + $0x8] sm:$0xf]
      %v1286 = vld [vmem:[#allocation18 + $0xc] sm:$0xf]
      %v1287 = vld [vmem:[#allocation18 + $0x10] sm:$0xf]
      %v1288 = vld [vmem:[#allocation18 + $0x14] sm:$0xf]
      %v1289 = vld [vmem:[#allocation18 + $0x18] sm:$0xf]
      %v1290 = vld [vmem:[#allocation18 + $0x1c] sm:$0xf]
      %v1291 = vld [vmem:[#allocation18 + $0x20] sm:$0xf]
      %v1292 = vld [vmem:[#allocation18 + $0x24] sm:$0xf]
      %v1293 = vld [vmem:[#allocation18 + $0x28] sm:$0xf]
      %v1294 = vld [vmem:[#allocation18 + $0x2c] sm:$0xf]
      %v1295 = vld [vmem:[#allocation18 + $0x30] sm:$0xf]
      %v1296 = vld [vmem:[#allocation18 + $0x34] sm:$0xf]
      %v1297 = vld [vmem:[#allocation18 + $0x38] sm:$0xf]
      %v1298 = vld [vmem:[#allocation18 + $0x3c] sm:$0xf]
      %v1299 = vld [vmem:[#allocation20] sm:$0x1]
      %v1300 = vpack.c.bf16 %v1282, %v1251
      %v1302 = vperm.slane %v1299, 0
      %v1320 = vunpack.c.l.b16 %v1283
      %v1321 = vunpack.c.l.b16 %v1284
      %v1322 = vunpack.c.l.b16 %v1285
      %v1323 = vunpack.c.l.b16 %v1286
      %v1324 = vunpack.c.l.b16 %v1287
      %v1325 = vunpack.c.l.b16 %v1288
      %v1326 = vunpack.c.l.b16 %v1289
      %v1327 = vunpack.c.l.b16 %v1290
      %v1328 = vunpack.c.l.b16 %v1291
      %v1329 = vunpack.c.l.b16 %v1292
      %v1330 = vunpack.c.l.b16 %v1293
      %v1331 = vunpack.c.l.b16 %v1294
      %v1332 = vunpack.c.l.b16 %v1295
      %v1333 = vunpack.c.l.b16 %v1296
      %v1334 = vunpack.c.l.b16 %v1297
      %v1335 = vunpack.c.l.b16 %v1298
      %v1336 = vpack.c.b16 %v1321, %v1320
      %v1337 = vpack.c.b16 %v1323, %v1322
      %v1338 = vpack.c.b16 %v1325, %v1324
      %v1339 = vpack.c.b16 %v1327, %v1326
      %v1340 = vpack.c.b16 %v1329, %v1328
      %v1341 = vpack.c.b16 %v1331, %v1330
      %v1342 = vpack.c.b16 %v1333, %v1332
      %v1343 = vpack.c.b16 %v1335, %v1334
      %1352 = vmatpush.bf16.msra.mxu0 %v1343
      %1353 = vmatpush.bf16.msra.mxu0 %v1342
      %1354 = vmatpush.bf16.msra.mxu0 %v1341
      %1355 = vmatpush.bf16.msra.mxu0 %v1340
      %1356 = vmatpush.bf16.msra.mxu0 %v1339
      %1357 = vmatpush.bf16.msra.mxu0 %v1338
      %1358 = vmatpush.bf16.msra.mxu0 %v1337
      %1359 = vmatpush.bf16.msra.mxu0 %v1336
      %1360 = vmatmul.bf16.gmra.mxu0 %v1300
      %v1361 = vpop.f32.mrf.mxu0
      %v1362 = vadd.f32 %v1302, %v1361
      %v1363 = vpop.f32.mrf.mxu0
      %v1364 = vadd.f32 %v1302, %v1363
      %1365 = vdwg.mxu0
      %v1366 = vadd.f32 %v677, %v1362
      %v1367 = vadd.f32 %v793, %v1364
      %v1368 = vld [vmem:[#allocation21] sm:$0x1]
      %v1369 = vld [vmem:[#allocation23] sm:$0x1]
      %1370 = vadd.xlane.f32.xlu0 %v1366
      %v1371 = vpop.xlane.xlu0 %1370
      %1372 = vadd.xlane.f32.xlu0 %v1367
      %v1373 = vpop.xlane.xlu0 %1372
      %v1374 = vrcp.pop 128.0
      %v1375 = vmul.f32 128.0, %v1374
      %v1376 = vsub.f32 1.0, %v1375
      %v1377 = vmul.f32 %v1374, %v1376
      %v1378 = vadd.f32 %v1374, %v1377
      %vm1379 = vweird.f32 %v1374
      %v1380 = vsel %vm1379, %v1374, %v1378
      %v1381 = vmul.f32 %v1371, %v1380
      %v1382 = vmul.f32 %v1373, %v1380
      %v1383 = vmul.f32 %v1366, %v1366
      %v1384 = vmul.f32 %v1367, %v1367
      %1385 = vadd.xlane.f32.xlu0 %v1383
      %v1386 = vpop.xlane.xlu0 %1385
      %1387 = vadd.xlane.f32.xlu0 %v1384
      %v1388 = vpop.xlane.xlu0 %1387
      %v1389 = vmul.f32 %v1386, %v1380
      %v1390 = vmul.f32 %v1388, %v1380
      %v1391 = vmul.f32 %v1381, %v1381
      %v1392 = vmul.f32 %v1382, %v1382
      %v1393 = vsub.f32 %v1389, %v1391
      %v1394 = vsub.f32 %v1390, %v1392
      %v1395 = vmax.f32 %v1393, 0.0
      %v1396 = vmax.f32 %v1394, 0.0
      %v1397 = vsub.f32 %v1366, %v1381
      %v1398 = vsub.f32 %v1367, %v1382
      %v1399 = vadd.f32 %v1395, 1e-05
      %v1400 = vadd.f32 %v1396, 1e-05
      %v1401 = vrsqrt.pop %v1399
      %v1402 = vmul.f32 %v1401, %v1399
      %v1403 = vmul.f32 %v1402, %v1401
      %v1404 = vmul.f32 0.5, %v1403
      %v1405 = vsub.f32 1.5, %v1404
      %v1406 = vmul.f32 %v1401, %v1405
      %vm1407 = vweird.f32 %v1399
      %vm1408 = vweird.f32 %v1401
      %vm1409 = vmor %vm1407, %vm1408
      %v1410 = vsel %vm1409, %v1401, %v1406
      %v1411 = vrsqrt.pop %v1400
      %v1412 = vmul.f32 %v1411, %v1400
      %v1413 = vmul.f32 %v1412, %v1411
      %v1414 = vmul.f32 0.5, %v1413
      %v1415 = vsub.f32 1.5, %v1414
      %v1416 = vmul.f32 %v1411, %v1415
      %vm1417 = vweird.f32 %v1400
      %vm1418 = vweird.f32 %v1411
      %vm1419 = vmor %vm1417, %vm1418
      %v1420 = vsel %vm1419, %v1411, %v1416
      %v1421 = vmul.f32 %v1397, %v1410
      %v1422 = vmul.f32 %v1398, %v1420
      %v1424 = vperm.slane %v1368, 0
      %v1426 = vmul.f32 %v1421, %v1424
      %v1427 = vmul.f32 %v1422, %v1424
      %v1429 = vperm.slane %v1369, 0
      %v1431 = vadd.f32 %v1426, %v1429
      %v1432 = vadd.f32 %v1427, %v1429
      %v1433 = vld [vmem:[#allocation24] sm:$0xff]
      %v1434 = vld [vmem:[#allocation24 + $0x8] sm:$0xff]
      %v1435 = vld [vmem:[#allocation24 + $0x10] sm:$0xff]
      %v1436 = vld [vmem:[#allocation24 + $0x18] sm:$0xff]
      %v1437 = vld [vmem:[#allocation24 + $0x20] sm:$0xff]
      %v1438 = vld [vmem:[#allocation24 + $0x28] sm:$0xff]
      %v1439 = vld [vmem:[#allocation24 + $0x30] sm:$0xff]
      %v1440 = vld [vmem:[#allocation24 + $0x38] sm:$0xff]
      %v1441 = vld [vmem:[#allocation24 + $0x40] sm:$0xff]
      %v1442 = vld [vmem:[#allocation24 + $0x48] sm:$0xff]
      %v1443 = vld [vmem:[#allocation24 + $0x50] sm:$0xff]
      %v1444 = vld [vmem:[#allocation24 + $0x58] sm:$0xff]
      %v1445 = vld [vmem:[#allocation24 + $0x60] sm:$0xff]
      %v1446 = vld [vmem:[#allocation24 + $0x68] sm:$0xff]
      %v1447 = vld [vmem:[#allocation24 + $0x70] sm:$0xff]
      %v1448 = vld [vmem:[#allocation24 + $0x78] sm:$0xff]
      %v1449 = vld [vmem:[#allocation24 + $0x80] sm:$0xff]
      %v1450 = vld [vmem:[#allocation24 + $0x88] sm:$0xff]
      %v1451 = vld [vmem:[#allocation24 + $0x90] sm:$0xff]
      %v1452 = vld [vmem:[#allocation24 + $0x98] sm:$0xff]
      %v1453 = vld [vmem:[#allocation24 + $0xa0] sm:$0xff]
      %v1454 = vld [vmem:[#allocation24 + $0xa8] sm:$0xff]
      %v1455 = vld [vmem:[#allocation24 + $0xb0] sm:$0xff]
      %v1456 = vld [vmem:[#allocation24 + $0xb8] sm:$0xff]
      %v1457 = vld [vmem:[#allocation24 + $0xc0] sm:$0xff]
      %v1458 = vld [vmem:[#allocation24 + $0xc8] sm:$0xff]
      %v1459 = vld [vmem:[#allocation24 + $0xd0] sm:$0xff]
      %v1460 = vld [vmem:[#allocation24 + $0xd8] sm:$0xff]
      %v1461 = vld [vmem:[#allocation24 + $0xe0] sm:$0xff]
      %v1462 = vld [vmem:[#allocation24 + $0xe8] sm:$0xff]
      %v1463 = vld [vmem:[#allocation24 + $0xf0] sm:$0xff]
      %v1464 = vld [vmem:[#allocation24 + $0xf8] sm:$0xff]
      %v1465 = vld [vmem:[#allocation26] sm:$0xf]
      %v1466 = vpack.c.bf16 %v1432, %v1431
      %v1468 = vperm.slane %v1465, 0
      %v1469 = vperm.slane %v1465, 1
      %v1470 = vperm.slane %v1465, 2
      %v1471 = vperm.slane %v1465, 3
      %v1508 = vunpack.c.l.b16 %v1433
      %v1509 = vunpack.c.h.b16 %v1433
      %v1510 = vunpack.c.l.b16 %v1434
      %v1511 = vunpack.c.h.b16 %v1434
      %v1512 = vunpack.c.l.b16 %v1435
      %v1513 = vunpack.c.h.b16 %v1435
      %v1514 = vunpack.c.l.b16 %v1436
      %v1515 = vunpack.c.h.b16 %v1436
      %v1516 = vunpack.c.l.b16 %v1437
      %v1517 = vunpack.c.h.b16 %v1437
      %v1518 = vunpack.c.l.b16 %v1438
      %v1519 = vunpack.c.h.b16 %v1438
      %v1520 = vunpack.c.l.b16 %v1439
      %v1521 = vunpack.c.h.b16 %v1439
      %v1522 = vunpack.c.l.b16 %v1440
      %v1523 = vunpack.c.h.b16 %v1440
      %v1524 = vunpack.c.l.b16 %v1441
      %v1525 = vunpack.c.h.b16 %v1441
      %v1526 = vunpack.c.l.b16 %v1442
      %v1527 = vunpack.c.h.b16 %v1442
      %v1528 = vunpack.c.l.b16 %v1443
      %v1529 = vunpack.c.h.b16 %v1443
      %v1530 = vunpack.c.l.b16 %v1444
      %v1531 = vunpack.c.h.b16 %v1444
      %v1532 = vunpack.c.l.b16 %v1445
      %v1533 = vunpack.c.h.b16 %v1445
      %v1534 = vunpack.c.l.b16 %v1446
      %v1535 = vunpack.c.h.b16 %v1446
      %v1536 = vunpack.c.l.b16 %v1447
      %v1537 = vunpack.c.h.b16 %v1447
      %v1538 = vunpack.c.l.b16 %v1448
      %v1539 = vunpack.c.h.b16 %v1448
      %v1540 = vunpack.c.l.b16 %v1449
      %v1541 = vunpack.c.h.b16 %v1449
      %v1542 = vunpack.c.l.b16 %v1450
      %v1543 = vunpack.c.h.b16 %v1450
      %v1544 = vunpack.c.l.b16 %v1451
      %v1545 = vunpack.c.h.b16 %v1451
      %v1546 = vunpack.c.l.b16 %v1452
      %v1547 = vunpack.c.h.b16 %v1452
      %v1548 = vunpack.c.l.b16 %v1453
      %v1549 = vunpack.c.h.b16 %v1453
      %v1550 = vunpack.c.l.b16 %v1454
      %v1551 = vunpack.c.h.b16 %v1454
      %v1552 = vunpack.c.l.b16 %v1455
      %v1553 = vunpack.c.h.b16 %v1455
      %v1554 = vunpack.c.l.b16 %v1456
      %v1555 = vunpack.c.h.b16 %v1456
      %v1556 = vunpack.c.l.b16 %v1457
      %v1557 = vunpack.c.h.b16 %v1457
      %v1558 = vunpack.c.l.b16 %v1458
      %v1559 = vunpack.c.h.b16 %v1458
      %v1560 = vunpack.c.l.b16 %v1459
      %v1561 = vunpack.c.h.b16 %v1459
      %v1562 = vunpack.c.l.b16 %v1460
      %v1563 = vunpack.c.h.b16 %v1460
      %v1564 = vunpack.c.l.b16 %v1461
      %v1565 = vunpack.c.h.b16 %v1461
      %v1566 = vunpack.c.l.b16 %v1462
      %v1567 = vunpack.c.h.b16 %v1462
      %v1568 = vunpack.c.l.b16 %v1463
      %v1569 = vunpack.c.h.b16 %v1463
      %v1570 = vunpack.c.l.b16 %v1464
      %v1571 = vunpack.c.h.b16 %v1464
      %v1572 = vpack.c.b16 %v1512, %v1508
      %v1573 = vpack.c.b16 %v1513, %v1509
      %v1574 = vpack.c.b16 %v1514, %v1510
      %v1575 = vpack.c.b16 %v1515, %v1511
      %v1576 = vpack.c.b16 %v1520, %v1516
      %v1577 = vpack.c.b16 %v1521, %v1517
      %v1578 = vpack.c.b16 %v1522, %v1518
      %v1579 = vpack.c.b16 %v1523, %v1519
      %v1580 = vpack.c.b16 %v1528, %v1524
      %v1581 = vpack.c.b16 %v1529, %v1525
      %v1582 = vpack.c.b16 %v1530, %v1526
      %v1583 = vpack.c.b16 %v1531, %v1527
      %v1584 = vpack.c.b16 %v1536, %v1532
      %v1585 = vpack.c.b16 %v1537, %v1533
      %v1586 = vpack.c.b16 %v1538, %v1534
      %v1587 = vpack.c.b16 %v1539, %v1535
      %v1588 = vpack.c.b16 %v1544, %v1540
      %v1589 = vpack.c.b16 %v1545, %v1541
      %v1590 = vpack.c.b16 %v1546, %v1542
      %v1591 = vpack.c.b16 %v1547, %v1543
      %v1592 = vpack.c.b16 %v1552, %v1548
      %v1593 = vpack.c.b16 %v1553, %v1549
      %v1594 = vpack.c.b16 %v1554, %v1550
      %v1595 = vpack.c.b16 %v1555, %v1551
      %v1596 = vpack.c.b16 %v1560, %v1556
      %v1597 = vpack.c.b16 %v1561, %v1557
      %v1598 = vpack.c.b16 %v1562, %v1558
      %v1599 = vpack.c.b16 %v1563, %v1559
      %v1600 = vpack.c.b16 %v1568, %v1564
      %v1601 = vpack.c.b16 %v1569, %v1565
      %v1602 = vpack.c.b16 %v1570, %v1566
      %v1603 = vpack.c.b16 %v1571, %v1567
      %1636 = vmatpush.bf16.msra.mxu0 %v1600
      %1637 = vmatpush.bf16.msra.mxu0 %v1596
      %1638 = vmatpush.bf16.msra.mxu0 %v1592
      %1639 = vmatpush.bf16.msra.mxu0 %v1588
      %1640 = vmatpush.bf16.msra.mxu0 %v1584
      %1641 = vmatpush.bf16.msra.mxu0 %v1580
      %1642 = vmatpush.bf16.msra.mxu0 %v1576
      %1643 = vmatpush.bf16.msra.mxu0 %v1572
      %1644 = vmatmul.bf16.gmra.mxu0 %v1466
      %v1645 = vpop.f32.mrf.mxu0
      %v1646 = vadd.f32 %v1468, %v1645
      %v1647 = vpop.f32.mrf.mxu0
      %v1648 = vadd.f32 %v1468, %v1647
      %1649 = vdwg.mxu0
      %1650 = vmatpush.bf16.msra.mxu0 %v1601
      %1651 = vmatpush.bf16.msra.mxu0 %v1597
      %1652 = vmatpush.bf16.msra.mxu0 %v1593
      %1653 = vmatpush.bf16.msra.mxu0 %v1589
      %1654 = vmatpush.bf16.msra.mxu0 %v1585
      %1655 = vmatpush.bf16.msra.mxu0 %v1581
      %1656 = vmatpush.bf16.msra.mxu0 %v1577
      %1657 = vmatpush.bf16.msra.mxu0 %v1573
      %1658 = vmatmul.bf16.gmra.mxu0 %v1466
      %v1659 = vpop.f32.mrf.mxu0
      %v1660 = vadd.f32 %v1469, %v1659
      %v1661 = vpop.f32.mrf.mxu0
      %v1662 = vadd.f32 %v1469, %v1661
      %1663 = vdwg.mxu0
      %1664 = vmatpush.bf16.msra.mxu0 %v1602
      %1665 = vmatpush.bf16.msra.mxu0 %v1598
      %1666 = vmatpush.bf16.msra.mxu0 %v1594
      %1667 = vmatpush.bf16.msra.mxu0 %v1590
      %1668 = vmatpush.bf16.msra.mxu0 %v1586
      %1669 = vmatpush.bf16.msra.mxu0 %v1582
      %1670 = vmatpush.bf16.msra.mxu0 %v1578
      %1671 = vmatpush.bf16.msra.mxu0 %v1574
      %1672 = vmatmul.bf16.gmra.mxu0 %v1466
      %v1673 = vpop.f32.mrf.mxu0
      %v1674 = vadd.f32 %v1470, %v1673
      %v1675 = vpop.f32.mrf.mxu0
      %v1676 = vadd.f32 %v1470, %v1675
      %1677 = vdwg.mxu0
      %1678 = vmatpush.bf16.msra.mxu0 %v1603
      %1679 = vmatpush.bf16.msra.mxu0 %v1599
      %1680 = vmatpush.bf16.msra.mxu0 %v1595
      %1681 = vmatpush.bf16.msra.mxu0 %v1591
      %1682 = vmatpush.bf16.msra.mxu0 %v1587
      %1683 = vmatpush.bf16.msra.mxu0 %v1583
      %1684 = vmatpush.bf16.msra.mxu0 %v1579
      %1685 = vmatpush.bf16.msra.mxu0 %v1575
      %1686 = vmatmul.bf16.gmra.mxu0 %v1466
      %v1687 = vpop.f32.mrf.mxu0
      %v1688 = vadd.f32 %v1471, %v1687
      %v1689 = vpop.f32.mrf.mxu0
      %v1690 = vadd.f32 %v1471, %v1689
      %1691 = vdwg.mxu0
      %v1692 = vmax.f32 %v1646, 0.0
      %v1693 = vmax.f32 %v1660, 0.0
      %v1694 = vmax.f32 %v1674, 0.0
      %v1695 = vmax.f32 %v1688, 0.0
      %v1696 = vmax.f32 %v1648, 0.0
      %v1697 = vmax.f32 %v1662, 0.0
      %v1698 = vmax.f32 %v1676, 0.0
      %v1699 = vmax.f32 %v1690, 0.0
      %v1700 = vld [vmem:[#allocation27] sm:$0xf]
      %v1701 = vld [vmem:[#allocation27 + $0x4] sm:$0xf]
      %v1702 = vld [vmem:[#allocation27 + $0x8] sm:$0xf]
      %v1703 = vld [vmem:[#allocation27 + $0xc] sm:$0xf]
      %v1704 = vld [vmem:[#allocation27 + $0x10] sm:$0xf]
      %v1705 = vld [vmem:[#allocation27 + $0x14] sm:$0xf]
      %v1706 = vld [vmem:[#allocation27 + $0x18] sm:$0xf]
      %v1707 = vld [vmem:[#allocation27 + $0x1c] sm:$0xf]
      %v1708 = vld [vmem:[#allocation27 + $0x20] sm:$0xf]
      %v1709 = vld [vmem:[#allocation27 + $0x24] sm:$0xf]
      %v1710 = vld [vmem:[#allocation27 + $0x28] sm:$0xf]
      %v1711 = vld [vmem:[#allocation27 + $0x2c] sm:$0xf]
      %v1712 = vld [vmem:[#allocation27 + $0x30] sm:$0xf]
      %v1713 = vld [vmem:[#allocation27 + $0x34] sm:$0xf]
      %v1714 = vld [vmem:[#allocation27 + $0x38] sm:$0xf]
      %v1715 = vld [vmem:[#allocation27 + $0x3c] sm:$0xf]
      %v1716 = vld [vmem:[#allocation27 + $0x40] sm:$0xf]
      %v1717 = vld [vmem:[#allocation27 + $0x44] sm:$0xf]
      %v1718 = vld [vmem:[#allocation27 + $0x48] sm:$0xf]
      %v1719 = vld [vmem:[#allocation27 + $0x4c] sm:$0xf]
      %v1720 = vld [vmem:[#allocation27 + $0x50] sm:$0xf]
      %v1721 = vld [vmem:[#allocation27 + $0x54] sm:$0xf]
      %v1722 = vld [vmem:[#allocation27 + $0x58] sm:$0xf]
      %v1723 = vld [vmem:[#allocation27 + $0x5c] sm:$0xf]
      %v1724 = vld [vmem:[#allocation27 + $0x60] sm:$0xf]
      %v1725 = vld [vmem:[#allocation27 + $0x64] sm:$0xf]
      %v1726 = vld [vmem:[#allocation27 + $0x68] sm:$0xf]
      %v1727 = vld [vmem:[#allocation27 + $0x6c] sm:$0xf]
      %v1728 = vld [vmem:[#allocation27 + $0x70] sm:$0xf]
      %v1729 = vld [vmem:[#allocation27 + $0x74] sm:$0xf]
      %v1730 = vld [vmem:[#allocation27 + $0x78] sm:$0xf]
      %v1731 = vld [vmem:[#allocation27 + $0x7c] sm:$0xf]
      %v1732 = vld [vmem:[#allocation27 + $0x80] sm:$0xf]
      %v1733 = vld [vmem:[#allocation27 + $0x84] sm:$0xf]
      %v1734 = vld [vmem:[#allocation27 + $0x88] sm:$0xf]
      %v1735 = vld [vmem:[#allocation27 + $0x8c] sm:$0xf]
      %v1736 = vld [vmem:[#allocation27 + $0x90] sm:$0xf]
      %v1737 = vld [vmem:[#allocation27 + $0x94] sm:$0xf]
      %v1738 = vld [vmem:[#allocation27 + $0x98] sm:$0xf]
      %v1739 = vld [vmem:[#allocation27 + $0x9c] sm:$0xf]
      %v1740 = vld [vmem:[#allocation27 + $0xa0] sm:$0xf]
      %v1741 = vld [vmem:[#allocation27 + $0xa4] sm:$0xf]
      %v1742 = vld [vmem:[#allocation27 + $0xa8] sm:$0xf]
      %v1743 = vld [vmem:[#allocation27 + $0xac] sm:$0xf]
      %v1744 = vld [vmem:[#allocation27 + $0xb0] sm:$0xf]
      %v1745 = vld [vmem:[#allocation27 + $0xb4] sm:$0xf]
      %v1746 = vld [vmem:[#allocation27 + $0xb8] sm:$0xf]
      %v1747 = vld [vmem:[#allocation27 + $0xbc] sm:$0xf]
      %v1748 = vld [vmem:[#allocation27 + $0xc0] sm:$0xf]
      %v1749 = vld [vmem:[#allocation27 + $0xc4] sm:$0xf]
      %v1750 = vld [vmem:[#allocation27 + $0xc8] sm:$0xf]
      %v1751 = vld [vmem:[#allocation27 + $0xcc] sm:$0xf]
      %v1752 = vld [vmem:[#allocation27 + $0xd0] sm:$0xf]
      %v1753 = vld [vmem:[#allocation27 + $0xd4] sm:$0xf]
      %v1754 = vld [vmem:[#allocation27 + $0xd8] sm:$0xf]
      %v1755 = vld [vmem:[#allocation27 + $0xdc] sm:$0xf]
      %v1756 = vld [vmem:[#allocation27 + $0xe0] sm:$0xf]
      %v1757 = vld [vmem:[#allocation27 + $0xe4] sm:$0xf]
      %v1758 = vld [vmem:[#allocation27 + $0xe8] sm:$0xf]
      %v1759 = vld [vmem:[#allocation27 + $0xec] sm:$0xf]
      %v1760 = vld [vmem:[#allocation27 + $0xf0] sm:$0xf]
      %v1761 = vld [vmem:[#allocation27 + $0xf4] sm:$0xf]
      %v1762 = vld [vmem:[#allocation27 + $0xf8] sm:$0xf]
      %v1763 = vld [vmem:[#allocation27 + $0xfc] sm:$0xf]
      %v1764 = vld [vmem:[#allocation29] sm:$0x1]
      %v1765 = vpack.c.bf16 %v1696, %v1692
      %v1766 = vpack.c.bf16 %v1697, %v1693
      %v1767 = vpack.c.bf16 %v1698, %v1694
      %v1768 = vpack.c.bf16 %v1699, %v1695
      %v1770 = vperm.slane %v1764, 0
      %v1836 = vunpack.c.l.b16 %v1700
      %v1837 = vunpack.c.l.b16 %v1701
      %v1838 = vunpack.c.l.b16 %v1702
      %v1839 = vunpack.c.l.b16 %v1703
      %v1840 = vunpack.c.l.b16 %v1704
      %v1841 = vunpack.c.l.b16 %v1705
      %v1842 = vunpack.c.l.b16 %v1706
      %v1843 = vunpack.c.l.b16 %v1707
      %v1844 = vunpack.c.l.b16 %v1708
      %v1845 = vunpack.c.l.b16 %v1709
      %v1846 = vunpack.c.l.b16 %v1710
      %v1847 = vunpack.c.l.b16 %v1711
      %v1848 = vunpack.c.l.b16 %v1712
      %v1849 = vunpack.c.l.b16 %v1713
      %v1850 = vunpack.c.l.b16 %v1714
      %v1851 = vunpack.c.l.b16 %v1715
      %v1852 = vunpack.c.l.b16 %v1716
      %v1853 = vunpack.c.l.b16 %v1717
      %v1854 = vunpack.c.l.b16 %v1718
      %v1855 = vunpack.c.l.b16 %v1719
      %v1856 = vunpack.c.l.b16 %v1720
      %v1857 = vunpack.c.l.b16 %v1721
      %v1858 = vunpack.c.l.b16 %v1722
      %v1859 = vunpack.c.l.b16 %v1723
      %v1860 = vunpack.c.l.b16 %v1724
      %v1861 = vunpack.c.l.b16 %v1725
      %v1862 = vunpack.c.l.b16 %v1726
      %v1863 = vunpack.c.l.b16 %v1727
      %v1864 = vunpack.c.l.b16 %v1728
      %v1865 = vunpack.c.l.b16 %v1729
      %v1866 = vunpack.c.l.b16 %v1730
      %v1867 = vunpack.c.l.b16 %v1731
      %v1868 = vunpack.c.l.b16 %v1732
      %v1869 = vunpack.c.l.b16 %v1733
      %v1870 = vunpack.c.l.b16 %v1734
      %v1871 = vunpack.c.l.b16 %v1735
      %v1872 = vunpack.c.l.b16 %v1736
      %v1873 = vunpack.c.l.b16 %v1737
      %v1874 = vunpack.c.l.b16 %v1738
      %v1875 = vunpack.c.l.b16 %v1739
      %v1876 = vunpack.c.l.b16 %v1740
      %v1877 = vunpack.c.l.b16 %v1741
      %v1878 = vunpack.c.l.b16 %v1742
      %v1879 = vunpack.c.l.b16 %v1743
      %v1880 = vunpack.c.l.b16 %v1744
      %v1881 = vunpack.c.l.b16 %v1745
      %v1882 = vunpack.c.l.b16 %v1746
      %v1883 = vunpack.c.l.b16 %v1747
      %v1884 = vunpack.c.l.b16 %v1748
      %v1885 = vunpack.c.l.b16 %v1749
      %v1886 = vunpack.c.l.b16 %v1750
      %v1887 = vunpack.c.l.b16 %v1751
      %v1888 = vunpack.c.l.b16 %v1752
      %v1889 = vunpack.c.l.b16 %v1753
      %v1890 = vunpack.c.l.b16 %v1754
      %v1891 = vunpack.c.l.b16 %v1755
      %v1892 = vunpack.c.l.b16 %v1756
      %v1893 = vunpack.c.l.b16 %v1757
      %v1894 = vunpack.c.l.b16 %v1758
      %v1895 = vunpack.c.l.b16 %v1759
      %v1896 = vunpack.c.l.b16 %v1760
      %v1897 = vunpack.c.l.b16 %v1761
      %v1898 = vunpack.c.l.b16 %v1762
      %v1899 = vunpack.c.l.b16 %v1763
      %v1900 = vpack.c.b16 %v1837, %v1836
      %v1901 = vpack.c.b16 %v1839, %v1838
      %v1902 = vpack.c.b16 %v1841, %v1840
      %v1903 = vpack.c.b16 %v1843, %v1842
      %v1904 = vpack.c.b16 %v1845, %v1844
      %v1905 = vpack.c.b16 %v1847, %v1846
      %v1906 = vpack.c.b16 %v1849, %v1848
      %v1907 = vpack.c.b16 %v1851, %v1850
      %v1908 = vpack.c.b16 %v1853, %v1852
      %v1909 = vpack.c.b16 %v1855, %v1854
      %v1910 = vpack.c.b16 %v1857, %v1856
      %v1911 = vpack.c.b16 %v1859, %v1858
      %v1912 = vpack.c.b16 %v1861, %v1860
      %v1913 = vpack.c.b16 %v1863, %v1862
      %v1914 = vpack.c.b16 %v1865, %v1864
      %v1915 = vpack.c.b16 %v1867, %v1866
      %v1916 = vpack.c.b16 %v1869, %v1868
      %v1917 = vpack.c.b16 %v1871, %v1870
      %v1918 = vpack.c.b16 %v1873, %v1872
      %v1919 = vpack.c.b16 %v1875, %v1874
      %v1920 = vpack.c.b16 %v1877, %v1876
      %v1921 = vpack.c.b16 %v1879, %v1878
      %v1922 = vpack.c.b16 %v1881, %v1880
      %v1923 = vpack.c.b16 %v1883, %v1882
      %v1924 = vpack.c.b16 %v1885, %v1884
      %v1925 = vpack.c.b16 %v1887, %v1886
      %v1926 = vpack.c.b16 %v1889, %v1888
      %v1927 = vpack.c.b16 %v1891, %v1890
      %v1928 = vpack.c.b16 %v1893, %v1892
      %v1929 = vpack.c.b16 %v1895, %v1894
      %v1930 = vpack.c.b16 %v1897, %v1896
      %v1931 = vpack.c.b16 %v1899, %v1898
      %1964 = vmatpush.bf16.msra.mxu0 %v1907
      %1965 = vmatpush.bf16.msra.mxu0 %v1906
      %1966 = vmatpush.bf16.msra.mxu0 %v1905
      %1967 = vmatpush.bf16.msra.mxu0 %v1904
      %1968 = vmatpush.bf16.msra.mxu0 %v1903
      %1969 = vmatpush.bf16.msra.mxu0 %v1902
      %1970 = vmatpush.bf16.msra.mxu0 %v1901
      %1971 = vmatpush.bf16.msra.mxu0 %v1900
      %1972 = vmatmul.bf16.gmra.mxu0 %v1765
      %v1973 = vpop.f32.mrf.mxu0
      %v1974 = vadd.f32 %v1770, %v1973
      %v1975 = vpop.f32.mrf.mxu0
      %v1976 = vadd.f32 %v1770, %v1975
      %1977 = vdwg.mxu0
      %1978 = vmatpush.bf16.msra.mxu0 %v1915
      %1979 = vmatpush.bf16.msra.mxu0 %v1914
      %1980 = vmatpush.bf16.msra.mxu0 %v1913
      %1981 = vmatpush.bf16.msra.mxu0 %v1912
      %1982 = vmatpush.bf16.msra.mxu0 %v1911
      %1983 = vmatpush.bf16.msra.mxu0 %v1910
      %1984 = vmatpush.bf16.msra.mxu0 %v1909
      %1985 = vmatpush.bf16.msra.mxu0 %v1908
      %1986 = vmatmul.bf16.gmra.mxu0 %v1766
      %v1987 = vpop.f32.mrf.mxu0
      %v1988 = vadd.f32 %v1974, %v1987
      %v1989 = vpop.f32.mrf.mxu0
      %v1990 = vadd.f32 %v1976, %v1989
      %1991 = vdwg.mxu0
      %1992 = vmatpush.bf16.msra.mxu0 %v1923
      %1993 = vmatpush.bf16.msra.mxu0 %v1922
      %1994 = vmatpush.bf16.msra.mxu0 %v1921
      %1995 = vmatpush.bf16.msra.mxu0 %v1920
      %1996 = vmatpush.bf16.msra.mxu0 %v1919
      %1997 = vmatpush.bf16.msra.mxu0 %v1918
      %1998 = vmatpush.bf16.msra.mxu0 %v1917
      %1999 = vmatpush.bf16.msra.mxu0 %v1916
      %2000 = vmatmul.bf16.gmra.mxu0 %v1767
      %v2001 = vpop.f32.mrf.mxu0
      %v2002 = vadd.f32 %v1988, %v2001
      %v2003 = vpop.f32.mrf.mxu0
      %v2004 = vadd.f32 %v1990, %v2003
      %2005 = vdwg.mxu0
      %2006 = vmatpush.bf16.msra.mxu0 %v1931
      %2007 = vmatpush.bf16.msra.mxu0 %v1930
      %2008 = vmatpush.bf16.msra.mxu0 %v1929
      %2009 = vmatpush.bf16.msra.mxu0 %v1928
      %2010 = vmatpush.bf16.msra.mxu0 %v1927
      %2011 = vmatpush.bf16.msra.mxu0 %v1926
      %2012 = vmatpush.bf16.msra.mxu0 %v1925
      %2013 = vmatpush.bf16.msra.mxu0 %v1924
      %2014 = vmatmul.bf16.gmra.mxu0 %v1768
      %v2015 = vpop.f32.mrf.mxu0
      %v2016 = vadd.f32 %v2002, %v2015
      %v2017 = vpop.f32.mrf.mxu0
      %v2018 = vadd.f32 %v2004, %v2017
      %2019 = vdwg.mxu0
      %v2020 = vadd.f32 %v1431, %v2016
      %v2021 = vadd.f32 %v1432, %v2018
      %v2022 = vld [vmem:[#allocation30] sm:$0x1]
      %v2023 = vld [vmem:[#allocation32] sm:$0x1]
      %2024 = vadd.xlane.f32.xlu0 %v2020
      %v2025 = vpop.xlane.xlu0 %2024
      %2026 = vadd.xlane.f32.xlu0 %v2021
      %v2027 = vpop.xlane.xlu0 %2026
      %v2028 = vmul.f32 %v2025, %v1380
      %v2029 = vmul.f32 %v2027, %v1380
      %v2030 = vmul.f32 %v2020, %v2020
      %v2031 = vmul.f32 %v2021, %v2021
      %2032 = vadd.xlane.f32.xlu0 %v2030
      %v2033 = vpop.xlane.xlu0 %2032
      %2034 = vadd.xlane.f32.xlu0 %v2031
      %v2035 = vpop.xlane.xlu0 %2034
      %v2036 = vmul.f32 %v2033, %v1380
      %v2037 = vmul.f32 %v2035, %v1380
      %v2038 = vmul.f32 %v2028, %v2028
      %v2039 = vmul.f32 %v2029, %v2029
      %v2040 = vsub.f32 %v2036, %v2038
      %v2041 = vsub.f32 %v2037, %v2039
      %v2042 = vmax.f32 %v2040, 0.0
      %v2043 = vmax.f32 %v2041, 0.0
      %v2044 = vsub.f32 %v2020, %v2028
      %v2045 = vsub.f32 %v2021, %v2029
      %v2046 = vadd.f32 %v2042, 1e-05
      %v2047 = vadd.f32 %v2043, 1e-05
      %v2048 = vrsqrt.pop %v2046
      %v2049 = vmul.f32 %v2048, %v2046
      %v2050 = vmul.f32 %v2049, %v2048
      %v2051 = vmul.f32 0.5, %v2050
      %v2052 = vsub.f32 1.5, %v2051
      %v2053 = vmul.f32 %v2048, %v2052
      %vm2054 = vweird.f32 %v2046
      %vm2055 = vweird.f32 %v2048
      %vm2056 = vmor %vm2054, %vm2055
      %v2057 = vsel %vm2056, %v2048, %v2053
      %v2058 = vrsqrt.pop %v2047
      %v2059 = vmul.f32 %v2058, %v2047
      %v2060 = vmul.f32 %v2059, %v2058
      %v2061 = vmul.f32 0.5, %v2060
      %v2062 = vsub.f32 1.5, %v2061
      %v2063 = vmul.f32 %v2058, %v2062
      %vm2064 = vweird.f32 %v2047
      %vm2065 = vweird.f32 %v2058
      %vm2066 = vmor %vm2064, %vm2065
      %v2067 = vsel %vm2066, %v2058, %v2063
      %v2068 = vmul.f32 %v2044, %v2057
      %v2069 = vmul.f32 %v2045, %v2067
      %v2071 = vperm.slane %v2022, 0
      %v2073 = vmul.f32 %v2068, %v2071
      %v2074 = vmul.f32 %v2069, %v2071
      %v2076 = vperm.slane %v2023, 0
      %v2078 = vadd.f32 %v2073, %v2076
      %v2079 = vadd.f32 %v2074, %v2076
      %s2080 = scalar_lea.vmem [#allocation15], 192
      %v2081 = vld [vmem:[%s2080] sm:$0xff]
      %v2082 = vld [vmem:[%s2080 + $0x8] sm:$0xf]
      %v2083 = vld [vmem:[%s2080 + $0xc] sm:$0xff]
      %v2084 = vld [vmem:[%s2080 + $0x14] sm:$0xf]
      %v2085 = vld [vmem:[%s2080 + $0x18] sm:$0xff]
      %v2086 = vld [vmem:[%s2080 + $0x20] sm:$0xf]
      %v2087 = vld [vmem:[%s2080 + $0x24] sm:$0xff]
      %v2088 = vld [vmem:[%s2080 + $0x2c] sm:$0xf]
      %v2089 = vld [vmem:[%s2080 + $0x30] sm:$0xff]
      %v2090 = vld [vmem:[%s2080 + $0x38] sm:$0xf]
      %v2091 = vld [vmem:[%s2080 + $0x3c] sm:$0xff]
      %v2092 = vld [vmem:[%s2080 + $0x44] sm:$0xf]
      %v2093 = vld [vmem:[%s2080 + $0x48] sm:$0xff]
      %v2094 = vld [vmem:[%s2080 + $0x50] sm:$0xf]
      %v2095 = vld [vmem:[%s2080 + $0x54] sm:$0xff]
      %v2096 = vld [vmem:[%s2080 + $0x5c] sm:$0xf]
      %v2097 = vld [vmem:[%s2080 + $0x60] sm:$0xff]
      %v2098 = vld [vmem:[%s2080 + $0x68] sm:$0xf]
      %v2099 = vld [vmem:[%s2080 + $0x6c] sm:$0xff]
      %v2100 = vld [vmem:[%s2080 + $0x74] sm:$0xf]
      %v2101 = vld [vmem:[%s2080 + $0x78] sm:$0xff]
      %v2102 = vld [vmem:[%s2080 + $0x80] sm:$0xf]
      %v2103 = vld [vmem:[%s2080 + $0x84] sm:$0xff]
      %v2104 = vld [vmem:[%s2080 + $0x8c] sm:$0xf]
      %v2105 = vld [vmem:[%s2080 + $0x90] sm:$0xff]
      %v2106 = vld [vmem:[%s2080 + $0x98] sm:$0xf]
      %v2107 = vld [vmem:[%s2080 + $0x9c] sm:$0xff]
      %v2108 = vld [vmem:[%s2080 + $0xa4] sm:$0xf]
      %v2109 = vld [vmem:[%s2080 + $0xa8] sm:$0xff]
      %v2110 = vld [vmem:[%s2080 + $0xb0] sm:$0xf]
      %v2111 = vld [vmem:[%s2080 + $0xb4] sm:$0xff]
      %v2112 = vld [vmem:[%s2080 + $0xbc] sm:$0xf]
      %s2113 = scalar_lea.vmem [#allocation17], 3
      %v2114 = vld [vmem:[%s2113] sm:$0x7]
      %v2115 = vpack.c.bf16 %v2079, %v2078
      %v2117 = vperm.slane %v2114, 0
      %v2118 = vperm.slane %v2114, 1
      %v2119 = vperm.slane %v2114, 2
      %v2155 = vunpack.c.l.b16 %v2081
      %v2156 = vunpack.c.h.b16 %v2081
      %v2157 = vunpack.c.l.b16 %v2082
      %v2158 = vunpack.c.l.b16 %v2083
      %v2159 = vunpack.c.h.b16 %v2083
      %v2160 = vunpack.c.l.b16 %v2084
      %v2161 = vunpack.c.l.b16 %v2085
      %v2162 = vunpack.c.h.b16 %v2085
      %v2163 = vunpack.c.l.b16 %v2086
      %v2164 = vunpack.c.l.b16 %v2087
      %v2165 = vunpack.c.h.b16 %v2087
      %v2166 = vunpack.c.l.b16 %v2088
      %v2167 = vunpack.c.l.b16 %v2089
      %v2168 = vunpack.c.h.b16 %v2089
      %v2169 = vunpack.c.l.b16 %v2090
      %v2170 = vunpack.c.l.b16 %v2091
      %v2171 = vunpack.c.h.b16 %v2091
      %v2172 = vunpack.c.l.b16 %v2092
      %v2173 = vunpack.c.l.b16 %v2093
      %v2174 = vunpack.c.h.b16 %v2093
      %v2175 = vunpack.c.l.b16 %v2094
      %v2176 = vunpack.c.l.b16 %v2095
      %v2177 = vunpack.c.h.b16 %v2095
      %v2178 = vunpack.c.l.b16 %v2096
      %v2179 = vunpack.c.l.b16 %v2097
      %v2180 = vunpack.c.h.b16 %v2097
      %v2181 = vunpack.c.l.b16 %v2098
      %v2182 = vunpack.c.l.b16 %v2099
      %v2183 = vunpack.c.h.b16 %v2099
      %v2184 = vunpack.c.l.b16 %v2100
      %v2185 = vunpack.c.l.b16 %v2101
      %v2186 = vunpack.c.h.b16 %v2101
      %v2187 = vunpack.c.l.b16 %v2102
      %v2188 = vunpack.c.l.b16 %v2103
      %v2189 = vunpack.c.h.b16 %v2103
      %v2190 = vunpack.c.l.b16 %v2104
      %v2191 = vunpack.c.l.b16 %v2105
      %v2192 = vunpack.c.h.b16 %v2105
      %v2193 = vunpack.c.l.b16 %v2106
      %v2194 = vunpack.c.l.b16 %v2107
      %v2195 = vunpack.c.h.b16 %v2107
      %v2196 = vunpack.c.l.b16 %v2108
      %v2197 = vunpack.c.l.b16 %v2109
      %v2198 = vunpack.c.h.b16 %v2109
      %v2199 = vunpack.c.l.b16 %v2110
      %v2200 = vunpack.c.l.b16 %v2111
      %v2201 = vunpack.c.h.b16 %v2111
      %v2202 = vunpack.c.l.b16 %v2112
      %v2203 = vpack.c.b16 %v2158, %v2155
      %v2204 = vpack.c.b16 %v2159, %v2156
      %v2205 = vpack.c.b16 %v2160, %v2157
      %v2206 = vpack.c.b16 %v2164, %v2161
      %v2207 = vpack.c.b16 %v2165, %v2162
      %v2208 = vpack.c.b16 %v2166, %v2163
      %v2209 = vpack.c.b16 %v2170, %v2167
      %v2210 = vpack.c.b16 %v2171, %v2168
      %v2211 = vpack.c.b16 %v2172, %v2169
      %v2212 = vpack.c.b16 %v2176, %v2173
      %v2213 = vpack.c.b16 %v2177, %v2174
      %v2214 = vpack.c.b16 %v2178, %v2175
      %v2215 = vpack.c.b16 %v2182, %v2179
      %v2216 = vpack.c.b16 %v2183, %v2180
      %v2217 = vpack.c.b16 %v2184, %v2181
      %v2218 = vpack.c.b16 %v2188, %v2185
      %v2219 = vpack.c.b16 %v2189, %v2186
      %v2220 = vpack.c.b16 %v2190, %v2187
      %v2221 = vpack.c.b16 %v2194, %v2191
      %v2222 = vpack.c.b16 %v2195, %v2192
      %v2223 = vpack.c.b16 %v2196, %v2193
      %v2224 = vpack.c.b16 %v2200, %v2197
      %v2225 = vpack.c.b16 %v2201, %v2198
      %v2226 = vpack.c.b16 %v2202, %v2199
      %2251 = vmatpush.bf16.msra.mxu0 %v2224
      %2252 = vmatpush.bf16.msra.mxu0 %v2221
      %2253 = vmatpush.bf16.msra.mxu0 %v2218
      %2254 = vmatpush.bf16.msra.mxu0 %v2215
      %2255 = vmatpush.bf16.msra.mxu0 %v2212
      %2256 = vmatpush.bf16.msra.mxu0 %v2209
      %2257 = vmatpush.bf16.msra.mxu0 %v2206
      %2258 = vmatpush.bf16.msra.mxu0 %v2203
      %2259 = vmatmul.bf16.gmra.mxu0 %v2115
      %v2260 = vpop.f32.mrf.mxu0
      %v2261 = vadd.f32 %v2117, %v2260
      %v2262 = vpop.f32.mrf.mxu0
      %v2263 = vadd.f32 %v2117, %v2262
      %2264 = vdwg.mxu0
      %2265 = vmatpush.bf16.msra.mxu0 %v2225
      %2266 = vmatpush.bf16.msra.mxu0 %v2222
      %2267 = vmatpush.bf16.msra.mxu0 %v2219
      %2268 = vmatpush.bf16.msra.mxu0 %v2216
      %2269 = vmatpush.bf16.msra.mxu0 %v2213
      %2270 = vmatpush.bf16.msra.mxu0 %v2210
      %2271 = vmatpush.bf16.msra.mxu0 %v2207
      %2272 = vmatpush.bf16.msra.mxu0 %v2204
      %2273 = vmatmul.bf16.gmra.mxu0 %v2115
      %v2274 = vpop.f32.mrf.mxu0
      %v2275 = vadd.f32 %v2118, %v2274
      %v2276 = vpop.f32.mrf.mxu0
      %v2277 = vadd.f32 %v2118, %v2276
      %2278 = vdwg.mxu0
      %2279 = vmatpush.bf16.msra.mxu0 %v2226
      %2280 = vmatpush.bf16.msra.mxu0 %v2223
      %2281 = vmatpush.bf16.msra.mxu0 %v2220
      %2282 = vmatpush.bf16.msra.mxu0 %v2217
      %2283 = vmatpush.bf16.msra.mxu0 %v2214
      %2284 = vmatpush.bf16.msra.mxu0 %v2211
      %2285 = vmatpush.bf16.msra.mxu0 %v2208
      %2286 = vmatpush.bf16.msra.mxu0 %v2205
      %2287 = vmatmul.bf16.gmra.mxu0 %v2115
      %v2288 = vpop.f32.mrf.mxu0
      %v2289 = vadd.f32 %v2119, %v2288
      %v2290 = vpop.f32.mrf.mxu0
      %v2291 = vadd.f32 %v2119, %v2290
      %2292 = vdwg.mxu0
      %v2293 = vmul.f32 %v2261, %v2275
      %v2294 = vpack.c.bf16 %v2293, %v2293
      %2295 = vmatpush.bf16.msra.mxu0 %v1080
      %2296 = vmatpush.bf16.msra.mxu0 %v1079
      %2297 = vmatpush.bf16.msra.mxu0 %v1078
      %2298 = vmatpush.bf16.msra.mxu0 %v1077
      %2299 = vmatpush.bf16.msra.mxu0 %v1076
      %2300 = vmatpush.bf16.msra.mxu0 %v1075
      %2301 = vmatpush.bf16.msra.mxu0 %v1074
      %2302 = vmatpush.bf16.msra.mxu0 %v1073
      %2303 = vmatmul.bf16.gmra.mxu0 %v2294
      %v2304 = vpop.f32.mrf.mxu0
      %v2305 = vadd.f32 0.0, %v2304
      %v2306 = vpop.f32.mrf.mxu0
      %2307 = vdwg.mxu0
      %v2308 = vmul.f32 %v2305, 0.25
      %v2309 = vmul.f32 %v2261, %v2277
      %v2310 = vpack.c.bf16 %v2309, %v2309
      %2311 = vmatpush.bf16.msra.mxu0 %v1080
      %2312 = vmatpush.bf16.msra.mxu0 %v1079
      %2313 = vmatpush.bf16.msra.mxu0 %v1078
      %2314 = vmatpush.bf16.msra.mxu0 %v1077
      %2315 = vmatpush.bf16.msra.mxu0 %v1076
      %2316 = vmatpush.bf16.msra.mxu0 %v1075
      %2317 = vmatpush.bf16.msra.mxu0 %v1074
      %2318 = vmatpush.bf16.msra.mxu0 %v1073
      %2319 = vmatmul.bf16.gmra.mxu0 %v2310
      %v2320 = vpop.f32.mrf.mxu0
      %v2321 = vadd.f32 0.0, %v2320
      %v2322 = vpop.f32.mrf.mxu0
      %2323 = vdwg.mxu0
      %v2324 = vmul.f32 %v2321, 0.25
      %v2325 = vmul.f32 %v2263, %v2275
      %v2326 = vpack.c.bf16 %v2325, %v2325
      %2327 = vmatpush.bf16.msra.mxu0 %v1080
      %2328 = vmatpush.bf16.msra.mxu0 %v1079
      %2329 = vmatpush.bf16.msra.mxu0 %v1078
      %2330 = vmatpush.bf16.msra.mxu0 %v1077
      %2331 = vmatpush.bf16.msra.mxu0 %v1076
      %2332 = vmatpush.bf16.msra.mxu0 %v1075
      %2333 = vmatpush.bf16.msra.mxu0 %v1074
      %2334 = vmatpush.bf16.msra.mxu0 %v1073
      %2335 = vmatmul.bf16.gmra.mxu0 %v2326
      %v2336 = vpop.f32.mrf.mxu0
      %v2337 = vadd.f32 0.0, %v2336
      %v2338 = vpop.f32.mrf.mxu0
      %2339 = vdwg.mxu0
      %v2340 = vmul.f32 %v2337, 0.25
      %v2341 = vmul.f32 %v2263, %v2277
      %v2342 = vpack.c.bf16 %v2341, %v2341
      %2343 = vmatpush.bf16.msra.mxu0 %v1080
      %2344 = vmatpush.bf16.msra.mxu0 %v1079
      %2345 = vmatpush.bf16.msra.mxu0 %v1078
      %2346 = vmatpush.bf16.msra.mxu0 %v1077
      %2347 = vmatpush.bf16.msra.mxu0 %v1076
      %2348 = vmatpush.bf16.msra.mxu0 %v1075
      %2349 = vmatpush.bf16.msra.mxu0 %v1074
      %2350 = vmatpush.bf16.msra.mxu0 %v1073
      %2351 = vmatmul.bf16.gmra.mxu0 %v2342
      %v2352 = vpop.f32.mrf.mxu0
      %v2353 = vadd.f32 0.0, %v2352
      %v2354 = vpop.f32.mrf.mxu0
      %2355 = vdwg.mxu0
      %v2356 = vmul.f32 %v2353, 0.25
      %v2357 = vmax.f32 %v2308, %v2324
      %v2358 = vsub.f32 %v2308, %v2357
      %v2359 = vmul.f32 %v2358, 1.442695
      %v2360 = vpow.pop %v2359
      %v2361 = vsub.f32 %v2324, %v2357
      %v2362 = vmul.f32 %v2361, 1.442695
      %v2363 = vpow.pop %v2362
      %v2364 = vadd.f32 %v2360, %v2363
      %v2365 = vrcp.pop %v2364
      %v2366 = vmul.f32 %v2360, %v2365
      %v2367 = vmul.f32 %v2363, %v2365
      %v2368 = vmax.f32 %v2340, %v2356
      %v2369 = vsub.f32 %v2340, %v2368
      %v2370 = vmul.f32 %v2369, 1.442695
      %v2371 = vpow.pop %v2370
      %v2372 = vsub.f32 %v2356, %v2368
      %v2373 = vmul.f32 %v2372, 1.442695
      %v2374 = vpow.pop %v2373
      %v2375 = vadd.f32 %v2371, %v2374
      %v2376 = vrcp.pop %v2375
      %v2377 = vmul.f32 %v2371, %v2376
      %v2378 = vmul.f32 %v2374, %v2376
      %v2379 = vpack.c.bf16 %v2366, %v2366
      %2380 = vmatpush.bf16.msra.mxu0 %v1213
      %2381 = vmatpush.bf16.msra.mxu0 %v1212
      %2382 = vmatpush.bf16.msra.mxu0 %v1211
      %2383 = vmatpush.bf16.msra.mxu0 %v1210
      %2384 = vmatpush.bf16.msra.mxu0 %v1209
      %2385 = vmatpush.bf16.msra.mxu0 %v1208
      %2386 = vmatpush.bf16.msra.mxu0 %v1207
      %2387 = vmatpush.bf16.msra.mxu0 %v1206
      %2388 = vmatmul.bf16.gmra.mxu0 %v2379
      %v2389 = vpop.f32.mrf.mxu0
      %v2390 = vadd.f32 0.0, %v2389
      %v2391 = vpop.f32.mrf.mxu0
      %2392 = vdwg.mxu0
      %v2393 = vmul.f32 %v2390, %v2289
      %v2394 = vpack.c.bf16 %v2367, %v2367
      %2395 = vmatpush.bf16.msra.mxu0 %v1213
      %2396 = vmatpush.bf16.msra.mxu0 %v1212
      %2397 = vmatpush.bf16.msra.mxu0 %v1211
      %2398 = vmatpush.bf16.msra.mxu0 %v1210
      %2399 = vmatpush.bf16.msra.mxu0 %v1209
      %2400 = vmatpush.bf16.msra.mxu0 %v1208
      %2401 = vmatpush.bf16.msra.mxu0 %v1207
      %2402 = vmatpush.bf16.msra.mxu0 %v1206
      %2403 = vmatmul.bf16.gmra.mxu0 %v2394
      %v2404 = vpop.f32.mrf.mxu0
      %v2405 = vadd.f32 0.0, %v2404
      %v2406 = vpop.f32.mrf.mxu0
      %2407 = vdwg.mxu0
      %v2408 = vmul.f32 %v2405, %v2291
      %v2409 = vadd.f32 %v2393, %v2408
      %v2410 = vpack.c.bf16 %v2377, %v2377
      %2411 = vmatpush.bf16.msra.mxu0 %v1213
      %2412 = vmatpush.bf16.msra.mxu0 %v1212
      %2413 = vmatpush.bf16.msra.mxu0 %v1211
      %2414 = vmatpush.bf16.msra.mxu0 %v1210
      %2415 = vmatpush.bf16.msra.mxu0 %v1209
      %2416 = vmatpush.bf16.msra.mxu0 %v1208
      %2417 = vmatpush.bf16.msra.mxu0 %v1207
      %2418 = vmatpush.bf16.msra.mxu0 %v1206
      %2419 = vmatmul.bf16.gmra.mxu0 %v2410
      %v2420 = vpop.f32.mrf.mxu0
      %v2421 = vadd.f32 0.0, %v2420
      %v2422 = vpop.f32.mrf.mxu0
      %2423 = vdwg.mxu0
      %v2424 = vmul.f32 %v2421, %v2289
      %v2425 = vpack.c.bf16 %v2378, %v2378
      %2426 = vmatpush.bf16.msra.mxu0 %v1213
      %2427 = vmatpush.bf16.msra.mxu0 %v1212
      %2428 = vmatpush.bf16.msra.mxu0 %v1211
      %2429 = vmatpush.bf16.msra.mxu0 %v1210
      %2430 = vmatpush.bf16.msra.mxu0 %v1209
      %2431 = vmatpush.bf16.msra.mxu0 %v1208
      %2432 = vmatpush.bf16.msra.mxu0 %v1207
      %2433 = vmatpush.bf16.msra.mxu0 %v1206
      %2434 = vmatmul.bf16.gmra.mxu0 %v2425
      %v2435 = vpop.f32.mrf.mxu0
      %v2436 = vadd.f32 0.0, %v2435
      %v2437 = vpop.f32.mrf.mxu0
      %2438 = vdwg.mxu0
      %v2439 = vmul.f32 %v2436, %v2291
      %v2440 = vadd.f32 %v2424, %v2439
      %s2441 = scalar_lea.vmem [#allocation18], 64
      %v2442 = vld [vmem:[%s2441] sm:$0xf]
      %v2443 = vld [vmem:[%s2441 + $0x4] sm:$0xf]
      %v2444 = vld [vmem:[%s2441 + $0x8] sm:$0xf]
      %v2445 = vld [vmem:[%s2441 + $0xc] sm:$0xf]
      %v2446 = vld [vmem:[%s2441 + $0x10] sm:$0xf]
      %v2447 = vld [vmem:[%s2441 + $0x14] sm:$0xf]
      %v2448 = vld [vmem:[%s2441 + $0x18] sm:$0xf]
      %v2449 = vld [vmem:[%s2441 + $0x1c] sm:$0xf]
      %v2450 = vld [vmem:[%s2441 + $0x20] sm:$0xf]
      %v2451 = vld [vmem:[%s2441 + $0x24] sm:$0xf]
      %v2452 = vld [vmem:[%s2441 + $0x28] sm:$0xf]
      %v2453 = vld [vmem:[%s2441 + $0x2c] sm:$0xf]
      %v2454 = vld [vmem:[%s2441 + $0x30] sm:$0xf]
      %v2455 = vld [vmem:[%s2441 + $0x34] sm:$0xf]
      %v2456 = vld [vmem:[%s2441 + $0x38] sm:$0xf]
      %v2457 = vld [vmem:[%s2441 + $0x3c] sm:$0xf]
      %s2458 = scalar_lea.vmem [#allocation20], 1
      %v2459 = vld [vmem:[%s2458] sm:$0x1]
      %v2460 = vpack.c.bf16 %v2440, %v2409
      %v2462 = vperm.slane %v2459, 0
      %v2480 = vunpack.c.l.b16 %v2442
      %v2481 = vunpack.c.l.b16 %v2443
      %v2482 = vunpack.c.l.b16 %v2444
      %v2483 = vunpack.c.l.b16 %v2445
      %v2484 = vunpack.c.l.b16 %v2446
      %v2485 = vunpack.c.l.b16 %v2447
      %v2486 = vunpack.c.l.b16 %v2448
      %v2487 = vunpack.c.l.b16 %v2449
      %v2488 = vunpack.c.l.b16 %v2450
      %v2489 = vunpack.c.l.b16 %v2451
      %v2490 = vunpack.c.l.b16 %v2452
      %v2491 = vunpack.c.l.b16 %v2453
      %v2492 = vunpack.c.l.b16 %v2454
      %v2493 = vunpack.c.l.b16 %v2455
      %v2494 = vunpack.c.l.b16 %v2456
      %v2495 = vunpack.c.l.b16 %v2457
      %v2496 = vpack.c.b16 %v2481, %v2480
      %v2497 = vpack.c.b16 %v2483, %v2482
      %v2498 = vpack.c.b16 %v2485, %v2484
      %v2499 = vpack.c.b16 %v2487, %v2486
      %v2500 = vpack.c.b16 %v2489, %v2488
      %v2501 = vpack.c.b16 %v2491, %v2490
      %v2502 = vpack.c.b16 %v2493, %v2492
      %v2503 = vpack.c.b16 %v2495, %v2494
      %2512 = vmatpush.bf16.msra.mxu0 %v2503
      %2513 = vmatpush.bf16.msra.mxu0 %v2502
      %2514 = vmatpush.bf16.msra.mxu0 %v2501
      %2515 = vmatpush.bf16.msra.mxu0 %v2500
      %2516 = vmatpush.bf16.msra.mxu0 %v2499
      %2517 = vmatpush.bf16.msra.mxu0 %v2498
      %2518 = vmatpush.bf16.msra.mxu0 %v2497
      %2519 = vmatpush.bf16.msra.mxu0 %v2496
      %2520 = vmatmul.bf16.gmra.mxu0 %v2460
      %v2521 = vpop.f32.mrf.mxu0
      %v2522 = vadd.f32 %v2462, %v2521
      %v2523 = vpop.f32.mrf.mxu0
      %v2524 = vadd.f32 %v2462, %v2523
      %2525 = vdwg.mxu0
      %v2526 = vadd.f32 %v2078, %v2522
      %v2527 = vadd.f32 %v2079, %v2524
      %s2528 = scalar_lea.vmem [#allocation21], 1
      %v2529 = vld [vmem:[%s2528] sm:$0x1]
      %s2530 = scalar_lea.vmem [#allocation23], 1
      %v2531 = vld [vmem:[%s2530] sm:$0x1]
      %2532 = vadd.xlane.f32.xlu0 %v2526
      %v2533 = vpop.xlane.xlu0 %2532
      %2534 = vadd.xlane.f32.xlu0 %v2527
      %v2535 = vpop.xlane.xlu0 %2534
      %v2536 = vmul.f32 %v2533, %v1380
      %v2537 = vmul.f32 %v2535, %v1380
      %v2538 = vmul.f32 %v2526, %v2526
      %v2539 = vmul.f32 %v2527, %v2527
      %2540 = vadd.xlane.f32.xlu0 %v2538
      %v2541 = vpop.xlane.xlu0 %2540
      %2542 = vadd.xlane.f32.xlu0 %v2539
      %v2543 = vpop.xlane.xlu0 %2542
      %v2544 = vmul.f32 %v2541, %v1380
      %v2545 = vmul.f32 %v2543, %v1380
      %v2546 = vmul.f32 %v2536, %v2536
      %v2547 = vmul.f32 %v2537, %v2537
      %v2548 = vsub.f32 %v2544, %v2546
      %v2549 = vsub.f32 %v2545, %v2547
      %v2550 = vmax.f32 %v2548, 0.0
      %v2551 = vmax.f32 %v2549, 0.0
      %v2552 = vsub.f32 %v2526, %v2536
      %v2553 = vsub.f32 %v2527, %v2537
      %v2554 = vadd.f32 %v2550, 1e-05
      %v2555 = vadd.f32 %v2551, 1e-05
      %v2556 = vrsqrt.pop %v2554
      %v2557 = vmul.f32 %v2556, %v2554
      %v2558 = vmul.f32 %v2557, %v2556
      %v2559 = vmul.f32 0.5, %v2558
      %v2560 = vsub.f32 1.5, %v2559
      %v2561 = vmul.f32 %v2556, %v2560
      %vm2562 = vweird.f32 %v2554
      %vm2563 = vweird.f32 %v2556
      %vm2564 = vmor %vm2562, %vm2563
      %v2565 = vsel %vm2564, %v2556, %v2561
      %v2566 = vrsqrt.pop %v2555
      %v2567 = vmul.f32 %v2566, %v2555
      %v2568 = vmul.f32 %v2567, %v2566
      %v2569 = vmul.f32 0.5, %v2568
      %v2570 = vsub.f32 1.5, %v2569
      %v2571 = vmul.f32 %v2566, %v2570
      %vm2572 = vweird.f32 %v2555
      %vm2573 = vweird.f32 %v2566
      %vm2574 = vmor %vm2572, %vm2573
      %v2575 = vsel %vm2574, %v2566, %v2571
      %v2576 = vmul.f32 %v2552, %v2565
      %v2577 = vmul.f32 %v2553, %v2575
      %v2579 = vperm.slane %v2529, 0
      %v2581 = vmul.f32 %v2576, %v2579
      %v2582 = vmul.f32 %v2577, %v2579
      %v2584 = vperm.slane %v2531, 0
      %v2586 = vadd.f32 %v2581, %v2584
      %v2587 = vadd.f32 %v2582, %v2584
      %s2588 = scalar_lea.vmem [#allocation24], 256
      %v2589 = vld [vmem:[%s2588] sm:$0xff]
      %v2590 = vld [vmem:[%s2588 + $0x8] sm:$0xff]
      %v2591 = vld [vmem:[%s2588 + $0x10] sm:$0xff]
      %v2592 = vld [vmem:[%s2588 + $0x18] sm:$0xff]
      %v2593 = vld [vmem:[%s2588 + $0x20] sm:$0xff]
      %v2594 = vld [vmem:[%s2588 + $0x28] sm:$0xff]
      %v2595 = vld [vmem:[%s2588 + $0x30] sm:$0xff]
      %v2596 = vld [vmem:[%s2588 + $0x38] sm:$0xff]
      %v2597 = vld [vmem:[%s2588 + $0x40] sm:$0xff]
      %v2598 = vld [vmem:[%s2588 + $0x48] sm:$0xff]
      %v2599 = vld [vmem:[%s2588 + $0x50] sm:$0xff]
      %v2600 = vld [vmem:[%s2588 + $0x58] sm:$0xff]
      %v2601 = vld [vmem:[%s2588 + $0x60] sm:$0xff]
      %v2602 = vld [vmem:[%s2588 + $0x68] sm:$0xff]
      %v2603 = vld [vmem:[%s2588 + $0x70] sm:$0xff]
      %v2604 = vld [vmem:[%s2588 + $0x78] sm:$0xff]
      %v2605 = vld [vmem:[%s2588 + $0x80] sm:$0xff]
      %v2606 = vld [vmem:[%s2588 + $0x88] sm:$0xff]
      %v2607 = vld [vmem:[%s2588 + $0x90] sm:$0xff]
      %v2608 = vld [vmem:[%s2588 + $0x98] sm:$0xff]
      %v2609 = vld [vmem:[%s2588 + $0xa0] sm:$0xff]
      %v2610 = vld [vmem:[%s2588 + $0xa8] sm:$0xff]
      %v2611 = vld [vmem:[%s2588 + $0xb0] sm:$0xff]
      %v2612 = vld [vmem:[%s2588 + $0xb8] sm:$0xff]
      %v2613 = vld [vmem:[%s2588 + $0xc0] sm:$0xff]
      %v2614 = vld [vmem:[%s2588 + $0xc8] sm:$0xff]
      %v2615 = vld [vmem:[%s2588 + $0xd0] sm:$0xff]
      %v2616 = vld [vmem:[%s2588 + $0xd8] sm:$0xff]
      %v2617 = vld [vmem:[%s2588 + $0xe0] sm:$0xff]
      %v2618 = vld [vmem:[%s2588 + $0xe8] sm:$0xff]
      %v2619 = vld [vmem:[%s2588 + $0xf0] sm:$0xff]
      %v2620 = vld [vmem:[%s2588 + $0xf8] sm:$0xff]
      %s2621 = scalar_lea.vmem [#allocation26], 4
      %v2622 = vld [vmem:[%s2621] sm:$0xf]
      %v2623 = vpack.c.bf16 %v2587, %v2586
      %v2625 = vperm.slane %v2622, 0
      %v2626 = vperm.slane %v2622, 1
      %v2627 = vperm.slane %v2622, 2
      %v2628 = vperm.slane %v2622, 3
      %v2665 = vunpack.c.l.b16 %v2589
      %v2666 = vunpack.c.h.b16 %v2589
      %v2667 = vunpack.c.l.b16 %v2590
      %v2668 = vunpack.c.h.b16 %v2590
      %v2669 = vunpack.c.l.b16 %v2591
      %v2670 = vunpack.c.h.b16 %v2591
      %v2671 = vunpack.c.l.b16 %v2592
      %v2672 = vunpack.c.h.b16 %v2592
      %v2673 = vunpack.c.l.b16 %v2593
      %v2674 = vunpack.c.h.b16 %v2593
      %v2675 = vunpack.c.l.b16 %v2594
      %v2676 = vunpack.c.h.b16 %v2594
      %v2677 = vunpack.c.l.b16 %v2595
      %v2678 = vunpack.c.h.b16 %v2595
      %v2679 = vunpack.c.l.b16 %v2596
      %v2680 = vunpack.c.h.b16 %v2596
      %v2681 = vunpack.c.l.b16 %v2597
      %v2682 = vunpack.c.h.b16 %v2597
      %v2683 = vunpack.c.l.b16 %v2598
      %v2684 = vunpack.c.h.b16 %v2598
      %v2685 = vunpack.c.l.b16 %v2599
      %v2686 = vunpack.c.h.b16 %v2599
      %v2687 = vunpack.c.l.b16 %v2600
      %v2688 = vunpack.c.h.b16 %v2600
      %v2689 = vunpack.c.l.b16 %v2601
      %v2690 = vunpack.c.h.b16 %v2601
      %v2691 = vunpack.c.l.b16 %v2602
      %v2692 = vunpack.c.h.b16 %v2602
      %v2693 = vunpack.c.l.b16 %v2603
      %v2694 = vunpack.c.h.b16 %v2603
      %v2695 = vunpack.c.l.b16 %v2604
      %v2696 = vunpack.c.h.b16 %v2604
      %v2697 = vunpack.c.l.b16 %v2605
      %v2698 = vunpack.c.h.b16 %v2605
      %v2699 = vunpack.c.l.b16 %v2606
      %v2700 = vunpack.c.h.b16 %v2606
      %v2701 = vunpack.c.l.b16 %v2607
      %v2702 = vunpack.c.h.b16 %v2607
      %v2703 = vunpack.c.l.b16 %v2608
      %v2704 = vunpack.c.h.b16 %v2608
      %v2705 = vunpack.c.l.b16 %v2609
      %v2706 = vunpack.c.h.b16 %v2609
      %v2707 = vunpack.c.l.b16 %v2610
      %v2708 = vunpack.c.h.b16 %v2610
      %v2709 = vunpack.c.l.b16 %v2611
      %v2710 = vunpack.c.h.b16 %v2611
      %v2711 = vunpack.c.l.b16 %v2612
      %v2712 = vunpack.c.h.b16 %v2612
      %v2713 = vunpack.c.l.b16 %v2613
      %v2714 = vunpack.c.h.b16 %v2613
      %v2715 = vunpack.c.l.b16 %v2614
      %v2716 = vunpack.c.h.b16 %v2614
      %v2717 = vunpack.c.l.b16 %v2615
      %v2718 = vunpack.c.h.b16 %v2615
      %v2719 = vunpack.c.l.b16 %v2616
      %v2720 = vunpack.c.h.b16 %v2616
      %v2721 = vunpack.c.l.b16 %v2617
      %v2722 = vunpack.c.h.b16 %v2617
      %v2723 = vunpack.c.l.b16 %v2618
      %v2724 = vunpack.c.h.b16 %v2618
      %v2725 = vunpack.c.l.b16 %v2619
      %v2726 = vunpack.c.h.b16 %v2619
      %v2727 = vunpack.c.l.b16 %v2620
      %v2728 = vunpack.c.h.b16 %v2620
      %v2729 = vpack.c.b16 %v2669, %v2665
      %v2730 = vpack.c.b16 %v2670, %v2666
      %v2731 = vpack.c.b16 %v2671, %v2667
      %v2732 = vpack.c.b16 %v2672, %v2668
      %v2733 = vpack.c.b16 %v2677, %v2673
      %v2734 = vpack.c.b16 %v2678, %v2674
      %v2735 = vpack.c.b16 %v2679, %v2675
      %v2736 = vpack.c.b16 %v2680, %v2676
      %v2737 = vpack.c.b16 %v2685, %v2681
      %v2738 = vpack.c.b16 %v2686, %v2682
      %v2739 = vpack.c.b16 %v2687, %v2683
      %v2740 = vpack.c.b16 %v2688, %v2684
      %v2741 = vpack.c.b16 %v2693, %v2689
      %v2742 = vpack.c.b16 %v2694, %v2690
      %v2743 = vpack.c.b16 %v2695, %v2691
      %v2744 = vpack.c.b16 %v2696, %v2692
      %v2745 = vpack.c.b16 %v2701, %v2697
      %v2746 = vpack.c.b16 %v2702, %v2698
      %v2747 = vpack.c.b16 %v2703, %v2699
      %v2748 = vpack.c.b16 %v2704, %v2700
      %v2749 = vpack.c.b16 %v2709, %v2705
      %v2750 = vpack.c.b16 %v2710, %v2706
      %v2751 = vpack.c.b16 %v2711, %v2707
      %v2752 = vpack.c.b16 %v2712, %v2708
      %v2753 = vpack.c.b16 %v2717, %v2713
      %v2754 = vpack.c.b16 %v2718, %v2714
      %v2755 = vpack.c.b16 %v2719, %v2715
      %v2756 = vpack.c.b16 %v2720, %v2716
      %v2757 = vpack.c.b16 %v2725, %v2721
      %v2758 = vpack.c.b16 %v2726, %v2722
      %v2759 = vpack.c.b16 %v2727, %v2723
      %v2760 = vpack.c.b16 %v2728, %v2724
      %2793 = vmatpush.bf16.msra.mxu0 %v2757
      %2794 = vmatpush.bf16.msra.mxu0 %v2753
      %2795 = vmatpush.bf16.msra.mxu0 %v2749
      %2796 = vmatpush.bf16.msra.mxu0 %v2745
      %2797 = vmatpush.bf16.msra.mxu0 %v2741
      %2798 = vmatpush.bf16.msra.mxu0 %v2737
      %2799 = vmatpush.bf16.msra.mxu0 %v2733
      %2800 = vmatpush.bf16.msra.mxu0 %v2729
      %2801 = vmatmul.bf16.gmra.mxu0 %v2623
      %v2802 = vpop.f32.mrf.mxu0
      %v2803 = vadd.f32 %v2625, %v2802
      %v2804 = vpop.f32.mrf.mxu0
      %v2805 = vadd.f32 %v2625, %v2804
      %2806 = vdwg.mxu0
      %2807 = vmatpush.bf16.msra.mxu0 %v2758
      %2808 = vmatpush.bf16.msra.mxu0 %v2754
      %2809 = vmatpush.bf16.msra.mxu0 %v2750
      %2810 = vmatpush.bf16.msra.mxu0 %v2746
      %2811 = vmatpush.bf16.msra.mxu0 %v2742
      %2812 = vmatpush.bf16.msra.mxu0 %v2738
      %2813 = vmatpush.bf16.msra.mxu0 %v2734
      %2814 = vmatpush.bf16.msra.mxu0 %v2730
      %2815 = vmatmul.bf16.gmra.mxu0 %v2623
      %v2816 = vpop.f32.mrf.mxu0
      %v2817 = vadd.f32 %v2626, %v2816
      %v2818 = vpop.f32.mrf.mxu0
      %v2819 = vadd.f32 %v2626, %v2818
      %2820 = vdwg.mxu0
      %2821 = vmatpush.bf16.msra.mxu0 %v2759
      %2822 = vmatpush.bf16.msra.mxu0 %v2755
      %2823 = vmatpush.bf16.msra.mxu0 %v2751
      %2824 = vmatpush.bf16.msra.mxu0 %v2747
      %2825 = vmatpush.bf16.msra.mxu0 %v2743
      %2826 = vmatpush.bf16.msra.mxu0 %v2739
      %2827 = vmatpush.bf16.msra.mxu0 %v2735
      %2828 = vmatpush.bf16.msra.mxu0 %v2731
      %2829 = vmatmul.bf16.gmra.mxu0 %v2623
      %v2830 = vpop.f32.mrf.mxu0
      %v2831 = vadd.f32 %v2627, %v2830
      %v2832 = vpop.f32.mrf.mxu0
      %v2833 = vadd.f32 %v2627, %v2832
      %2834 = vdwg.mxu0
      %2835 = vmatpush.bf16.msra.mxu0 %v2760
      %2836 = vmatpush.bf16.msra.mxu0 %v2756
      %2837 = vmatpush.bf16.msra.mxu0 %v2752
      %2838 = vmatpush.bf16.msra.mxu0 %v2748
      %2839 = vmatpush.bf16.msra.mxu0 %v2744
      %2840 = vmatpush.bf16.msra.mxu0 %v2740
      %2841 = vmatpush.bf16.msra.mxu0 %v2736
      %2842 = vmatpush.bf16.msra.mxu0 %v2732
      %2843 = vmatmul.bf16.gmra.mxu0 %v2623
      %v2844 = vpop.f32.mrf.mxu0
      %v2845 = vadd.f32 %v2628, %v2844
      %v2846 = vpop.f32.mrf.mxu0
      %v2847 = vadd.f32 %v2628, %v2846
      %2848 = vdwg.mxu0
      %v2849 = vmax.f32 %v2803, 0.0
      %v2850 = vmax.f32 %v2817, 0.0
      %v2851 = vmax.f32 %v2831, 0.0
      %v2852 = vmax.f32 %v2845, 0.0
      %v2853 = vmax.f32 %v2805, 0.0
      %v2854 = vmax.f32 %v2819, 0.0
      %v2855 = vmax.f32 %v2833, 0.0
      %v2856 = vmax.f32 %v2847, 0.0
      %s2857 = scalar_lea.vmem [#allocation27], 256
      %v2858 = vld [vmem:[%s2857] sm:$0xf]
      %v2859 = vld [vmem:[%s2857 + $0x4] sm:$0xf]
      %v2860 = vld [vmem:[%s2857 + $0x8] sm:$0xf]
      %v2861 = vld [vmem:[%s2857 + $0xc] sm:$0xf]
      %v2862 = vld [vmem:[%s2857 + $0x10] sm:$0xf]
      %v2863 = vld [vmem:[%s2857 + $0x14] sm:$0xf]
      %v2864 = vld [vmem:[%s2857 + $0x18] sm:$0xf]
      %v2865 = vld [vmem:[%s2857 + $0x1c] sm:$0xf]
      %v2866 = vld [vmem:[%s2857 + $0x20] sm:$0xf]
      %v2867 = vld [vmem:[%s2857 + $0x24] sm:$0xf]
      %v2868 = vld [vmem:[%s2857 + $0x28] sm:$0xf]
      %v2869 = vld [vmem:[%s2857 + $0x2c] sm:$0xf]
      %v2870 = vld [vmem:[%s2857 + $0x30] sm:$0xf]
      %v2871 = vld [vmem:[%s2857 + $0x34] sm:$0xf]
      %v2872 = vld [vmem:[%s2857 + $0x38] sm:$0xf]
      %v2873 = vld [vmem:[%s2857 + $0x3c] sm:$0xf]
      %v2874 = vld [vmem:[%s2857 + $0x40] sm:$0xf]
      %v2875 = vld [vmem:[%s2857 + $0x44] sm:$0xf]
      %v2876 = vld [vmem:[%s2857 + $0x48] sm:$0xf]
      %v2877 = vld [vmem:[%s2857 + $0x4c] sm:$0xf]
      %v2878 = vld [vmem:[%s2857 + $0x50] sm:$0xf]
      %v2879 = vld [vmem:[%s2857 + $0x54] sm:$0xf]
      %v2880 = vld [vmem:[%s2857 + $0x58] sm:$0xf]
      %v2881 = vld [vmem:[%s2857 + $0x5c] sm:$0xf]
      %v2882 = vld [vmem:[%s2857 + $0x60] sm:$0xf]
      %v2883 = vld [vmem:[%s2857 + $0x64] sm:$0xf]
      %v2884 = vld [vmem:[%s2857 + $0x68] sm:$0xf]
      %v2885 = vld [vmem:[%s2857 + $0x6c] sm:$0xf]
      %v2886 = vld [vmem:[%s2857 + $0x70] sm:$0xf]
      %v2887 = vld [vmem:[%s2857 + $0x74] sm:$0xf]
      %v2888 = vld [vmem:[%s2857 + $0x78] sm:$0xf]
      %v2889 = vld [vmem:[%s2857 + $0x7c] sm:$0xf]
      %v2890 = vld [vmem:[%s2857 + $0x80] sm:$0xf]
      %v2891 = vld [vmem:[%s2857 + $0x84] sm:$0xf]
      %v2892 = vld [vmem:[%s2857 + $0x88] sm:$0xf]
      %v2893 = vld [vmem:[%s2857 + $0x8c] sm:$0xf]
      %v2894 = vld [vmem:[%s2857 + $0x90] sm:$0xf]
      %v2895 = vld [vmem:[%s2857 + $0x94] sm:$0xf]
      %v2896 = vld [vmem:[%s2857 + $0x98] sm:$0xf]
      %v2897 = vld [vmem:[%s2857 + $0x9c] sm:$0xf]
      %v2898 = vld [vmem:[%s2857 + $0xa0] sm:$0xf]
      %v2899 = vld [vmem:[%s2857 + $0xa4] sm:$0xf]
      %v2900 = vld [vmem:[%s2857 + $0xa8] sm:$0xf]
      %v2901 = vld [vmem:[%s2857 + $0xac] sm:$0xf]
      %v2902 = vld [vmem:[%s2857 + $0xb0] sm:$0xf]
      %v2903 = vld [vmem:[%s2857 + $0xb4] sm:$0xf]
      %v2904 = vld [vmem:[%s2857 + $0xb8] sm:$0xf]
      %v2905 = vld [vmem:[%s2857 + $0xbc] sm:$0xf]
      %v2906 = vld [vmem:[%s2857 + $0xc0] sm:$0xf]
      %v2907 = vld [vmem:[%s2857 + $0xc4] sm:$0xf]
      %v2908 = vld [vmem:[%s2857 + $0xc8] sm:$0xf]
      %v2909 = vld [vmem:[%s2857 + $0xcc] sm:$0xf]
      %v2910 = vld [vmem:[%s2857 + $0xd0] sm:$0xf]
      %v2911 = vld [vmem:[%s2857 + $0xd4] sm:$0xf]
      %v2912 = vld [vmem:[%s2857 + $0xd8] sm:$0xf]
      %v2913 = vld [vmem:[%s2857 + $0xdc] sm:$0xf]
      %v2914 = vld [vmem:[%s2857 + $0xe0] sm:$0xf]
      %v2915 = vld [vmem:[%s2857 + $0xe4] sm:$0xf]
      %v2916 = vld [vmem:[%s2857 + $0xe8] sm:$0xf]
      %v2917 = vld [vmem:[%s2857 + $0xec] sm:$0xf]
      %v2918 = vld [vmem:[%s2857 + $0xf0] sm:$0xf]
      %v2919 = vld [vmem:[%s2857 + $0xf4] sm:$0xf]
      %v2920 = vld [vmem:[%s2857 + $0xf8] sm:$0xf]
      %v2921 = vld [vmem:[%s2857 + $0xfc] sm:$0xf]
      %s2922 = scalar_lea.vmem [#allocation29], 1
      %v2923 = vld [vmem:[%s2922] sm:$0x1]
      %v2924 = vpack.c.bf16 %v2853, %v2849
      %v2925 = vpack.c.bf16 %v2854, %v2850
      %v2926 = vpack.c.bf16 %v2855, %v2851
      %v2927 = vpack.c.bf16 %v2856, %v2852
      %v2929 = vperm.slane %v2923, 0
      %v2995 = vunpack.c.l.b16 %v2858
      %v2996 = vunpack.c.l.b16 %v2859
      %v2997 = vunpack.c.l.b16 %v2860
      %v2998 = vunpack.c.l.b16 %v2861
      %v2999 = vunpack.c.l.b16 %v2862
      %v3000 = vunpack.c.l.b16 %v2863
      %v3001 = vunpack.c.l.b16 %v2864
      %v3002 = vunpack.c.l.b16 %v2865
      %v3003 = vunpack.c.l.b16 %v2866
      %v3004 = vunpack.c.l.b16 %v2867
      %v3005 = vunpack.c.l.b16 %v2868
      %v3006 = vunpack.c.l.b16 %v2869
      %v3007 = vunpack.c.l.b16 %v2870
      %v3008 = vunpack.c.l.b16 %v2871
      %v3009 = vunpack.c.l.b16 %v2872
      %v3010 = vunpack.c.l.b16 %v2873
      %v3011 = vunpack.c.l.b16 %v2874
      %v3012 = vunpack.c.l.b16 %v2875
      %v3013 = vunpack.c.l.b16 %v2876
      %v3014 = vunpack.c.l.b16 %v2877
      %v3015 = vunpack.c.l.b16 %v2878
      %v3016 = vunpack.c.l.b16 %v2879
      %v3017 = vunpack.c.l.b16 %v2880
      %v3018 = vunpack.c.l.b16 %v2881
      %v3019 = vunpack.c.l.b16 %v2882
      %v3020 = vunpack.c.l.b16 %v2883
      %v3021 = vunpack.c.l.b16 %v2884
      %v3022 = vunpack.c.l.b16 %v2885
      %v3023 = vunpack.c.l.b16 %v2886
      %v3024 = vunpack.c.l.b16 %v2887
      %v3025 = vunpack.c.l.b16 %v2888
      %v3026 = vunpack.c.l.b16 %v2889
      %v3027 = vunpack.c.l.b16 %v2890
      %v3028 = vunpack.c.l.b16 %v2891
      %v3029 = vunpack.c.l.b16 %v2892
      %v3030 = vunpack.c.l.b16 %v2893
      %v3031 = vunpack.c.l.b16 %v2894
      %v3032 = vunpack.c.l.b16 %v2895
      %v3033 = vunpack.c.l.b16 %v2896
      %v3034 = vunpack.c.l.b16 %v2897
      %v3035 = vunpack.c.l.b16 %v2898
      %v3036 = vunpack.c.l.b16 %v2899
      %v3037 = vunpack.c.l.b16 %v2900
      %v3038 = vunpack.c.l.b16 %v2901
      %v3039 = vunpack.c.l.b16 %v2902
      %v3040 = vunpack.c.l.b16 %v2903
      %v3041 = vunpack.c.l.b16 %v2904
      %v3042 = vunpack.c.l.b16 %v2905
      %v3043 = vunpack.c.l.b16 %v2906
      %v3044 = vunpack.c.l.b16 %v2907
      %v3045 = vunpack.c.l.b16 %v2908
      %v3046 = vunpack.c.l.b16 %v2909
      %v3047 = vunpack.c.l.b16 %v2910
      %v3048 = vunpack.c.l.b16 %v2911
      %v3049 = vunpack.c.l.b16 %v2912
      %v3050 = vunpack.c.l.b16 %v2913
      %v3051 = vunpack.c.l.b16 %v2914
      %v3052 = vunpack.c.l.b16 %v2915
      %v3053 = vunpack.c.l.b16 %v2916
      %v3054 = vunpack.c.l.b16 %v2917
      %v3055 = vunpack.c.l.b16 %v2918
      %v3056 = vunpack.c.l.b16 %v2919
      %v3057 = vunpack.c.l.b16 %v2920
      %v3058 = vunpack.c.l.b16 %v2921
      %v3059 = vpack.c.b16 %v2996, %v2995
      %v3060 = vpack.c.b16 %v2998, %v2997
      %v3061 = vpack.c.b16 %v3000, %v2999
      %v3062 = vpack.c.b16 %v3002, %v3001
      %v3063 = vpack.c.b16 %v3004, %v3003
      %v3064 = vpack.c.b16 %v3006, %v3005
      %v3065 = vpack.c.b16 %v3008, %v3007
      %v3066 = vpack.c.b16 %v3010, %v3009
      %v3067 = vpack.c.b16 %v3012, %v3011
      %v3068 = vpack.c.b16 %v3014, %v3013
      %v3069 = vpack.c.b16 %v3016, %v3015
      %v3070 = vpack.c.b16 %v3018, %v3017
      %v3071 = vpack.c.b16 %v3020, %v3019
      %v3072 = vpack.c.b16 %v3022, %v3021
      %v3073 = vpack.c.b16 %v3024, %v3023
      %v3074 = vpack.c.b16 %v3026, %v3025
      %v3075 = vpack.c.b16 %v3028, %v3027
      %v3076 = vpack.c.b16 %v3030, %v3029
      %v3077 = vpack.c.b16 %v3032, %v3031
      %v3078 = vpack.c.b16 %v3034, %v3033
      %v3079 = vpack.c.b16 %v3036, %v3035
      %v3080 = vpack.c.b16 %v3038, %v3037
      %v3081 = vpack.c.b16 %v3040, %v3039
      %v3082 = vpack.c.b16 %v3042, %v3041
      %v3083 = vpack.c.b16 %v3044, %v3043
      %v3084 = vpack.c.b16 %v3046, %v3045
      %v3085 = vpack.c.b16 %v3048, %v3047
      %v3086 = vpack.c.b16 %v3050, %v3049
      %v3087 = vpack.c.b16 %v3052, %v3051
      %v3088 = vpack.c.b16 %v3054, %v3053
      %v3089 = vpack.c.b16 %v3056, %v3055
      %v3090 = vpack.c.b16 %v3058, %v3057
      %3123 = vmatpush.bf16.msra.mxu0 %v3066
      %3124 = vmatpush.bf16.msra.mxu0 %v3065
      %3125 = vmatpush.bf16.msra.mxu0 %v3064
      %3126 = vmatpush.bf16.msra.mxu0 %v3063
      %3127 = vmatpush.bf16.msra.mxu0 %v3062
      %3128 = vmatpush.bf16.msra.mxu0 %v3061
      %3129 = vmatpush.bf16.msra.mxu0 %v3060
      %3130 = vmatpush.bf16.msra.mxu0 %v3059
      %3131 = vmatmul.bf16.gmra.mxu0 %v2924
      %v3132 = vpop.f32.mrf.mxu0
      %v3133 = vadd.f32 %v2929, %v3132
      %v3134 = vpop.f32.mrf.mxu0
      %v3135 = vadd.f32 %v2929, %v3134
      %3136 = vdwg.mxu0
      %3137 = vmatpush.bf16.msra.mxu0 %v3074
      %3138 = vmatpush.bf16.msra.mxu0 %v3073
      %3139 = vmatpush.bf16.msra.mxu0 %v3072
      %3140 = vmatpush.bf16.msra.mxu0 %v3071
      %3141 = vmatpush.bf16.msra.mxu0 %v3070
      %3142 = vmatpush.bf16.msra.mxu0 %v3069
      %3143 = vmatpush.bf16.msra.mxu0 %v3068
      %3144 = vmatpush.bf16.msra.mxu0 %v3067
      %3145 = vmatmul.bf16.gmra.mxu0 %v2925
      %v3146 = vpop.f32.mrf.mxu0
      %v3147 = vadd.f32 %v3133, %v3146
      %v3148 = vpop.f32.mrf.mxu0
      %v3149 = vadd.f32 %v3135, %v3148
      %3150 = vdwg.mxu0
      %3151 = vmatpush.bf16.msra.mxu0 %v3082
      %3152 = vmatpush.bf16.msra.mxu0 %v3081
      %3153 = vmatpush.bf16.msra.mxu0 %v3080
      %3154 = vmatpush.bf16.msra.mxu0 %v3079
      %3155 = vmatpush.bf16.msra.mxu0 %v3078
      %3156 = vmatpush.bf16.msra.mxu0 %v3077
      %3157 = vmatpush.bf16.msra.mxu0 %v3076
      %3158 = vmatpush.bf16.msra.mxu0 %v3075
      %3159 = vmatmul.bf16.gmra.mxu0 %v2926
      %v3160 = vpop.f32.mrf.mxu0
      %v3161 = vadd.f32 %v3147, %v3160
      %v3162 = vpop.f32.mrf.mxu0
      %v3163 = vadd.f32 %v3149, %v3162
      %3164 = vdwg.mxu0
      %3165 = vmatpush.bf16.msra.mxu0 %v3090
      %3166 = vmatpush.bf16.msra.mxu0 %v3089
      %3167 = vmatpush.bf16.msra.mxu0 %v3088
      %3168 = vmatpush.bf16.msra.mxu0 %v3087
      %3169 = vmatpush.bf16.msra.mxu0 %v3086
      %3170 = vmatpush.bf16.msra.mxu0 %v3085
      %3171 = vmatpush.bf16.msra.mxu0 %v3084
      %3172 = vmatpush.bf16.msra.mxu0 %v3083
      %3173 = vmatmul.bf16.gmra.mxu0 %v2927
      %v3174 = vpop.f32.mrf.mxu0
      %v3175 = vadd.f32 %v3161, %v3174
      %v3176 = vpop.f32.mrf.mxu0
      %v3177 = vadd.f32 %v3163, %v3176
      %3178 = vdwg.mxu0
      %v3179 = vadd.f32 %v2586, %v3175
      %v3180 = vadd.f32 %v2587, %v3177
      %s3181 = scalar_lea.vmem [#allocation30], 1
      %v3182 = vld [vmem:[%s3181] sm:$0x1]
      %s3183 = scalar_lea.vmem [#allocation32], 1
      %v3184 = vld [vmem:[%s3183] sm:$0x1]
      %3185 = vadd.xlane.f32.xlu0 %v3179
      %v3186 = vpop.xlane.xlu0 %3185
      %3187 = vadd.xlane.f32.xlu0 %v3180
      %v3188 = vpop.xlane.xlu0 %3187
      %v3189 = vmul.f32 %v3186, %v1380
      %v3190 = vmul.f32 %v3188, %v1380
      %v3191 = vmul.f32 %v3179, %v3179
      %v3192 = vmul.f32 %v3180, %v3180
      %3193 = vadd.xlane.f32.xlu0 %v3191
      %v3194 = vpop.xlane.xlu0 %3193
      %3195 = vadd.xlane.f32.xlu0 %v3192
      %v3196 = vpop.xlane.xlu0 %3195
      %v3197 = vmul.f32 %v3194, %v1380
      %v3198 = vmul.f32 %v3196, %v1380
      %v3199 = vmul.f32 %v3189, %v3189
      %v3200 = vmul.f32 %v3190, %v3190
      %v3201 = vsub.f32 %v3197, %v3199
      %v3202 = vsub.f32 %v3198, %v3200
      %v3203 = vmax.f32 %v3201, 0.0
      %v3204 = vmax.f32 %v3202, 0.0
      %v3205 = vsub.f32 %v3179, %v3189
      %v3206 = vsub.f32 %v3180, %v3190
      %v3207 = vadd.f32 %v3203, 1e-05
      %v3208 = vadd.f32 %v3204, 1e-05
      %v3209 = vrsqrt.pop %v3207
      %v3210 = vmul.f32 %v3209, %v3207
      %v3211 = vmul.f32 %v3210, %v3209
      %v3212 = vmul.f32 0.5, %v3211
      %v3213 = vsub.f32 1.5, %v3212
      %v3214 = vmul.f32 %v3209, %v3213
      %vm3215 = vweird.f32 %v3207
      %vm3216 = vweird.f32 %v3209
      %vm3217 = vmor %vm3215, %vm3216
      %v3218 = vsel %vm3217, %v3209, %v3214
      %v3219 = vrsqrt.pop %v3208
      %v3220 = vmul.f32 %v3219, %v3208
      %v3221 = vmul.f32 %v3220, %v3219
      %v3222 = vmul.f32 0.5, %v3221
      %v3223 = vsub.f32 1.5, %v3222
      %v3224 = vmul.f32 %v3219, %v3223
      %vm3225 = vweird.f32 %v3208
      %vm3226 = vweird.f32 %v3219
      %vm3227 = vmor %vm3225, %vm3226
      %v3228 = vsel %vm3227, %v3219, %v3224
      %v3229 = vmul.f32 %v3205, %v3218
      %v3230 = vmul.f32 %v3206, %v3228
      %v3232 = vperm.slane %v3182, 0
      %v3234 = vmul.f32 %v3229, %v3232
      %v3235 = vmul.f32 %v3230, %v3232
      %v3237 = vperm.slane %v3184, 0
      %v3239 = vadd.f32 %v3234, %v3237
      %v3240 = vadd.f32 %v3235, %v3237
      %v3241 = vadd.f32 %v3239, %v3240
      %v3242 = vmul.f32 %v3241, 0.5
      %v3243 = vld [vmem:[%s21] sm:$0xf]
      %v3244 = vld [vmem:[%s21 + $0x4] sm:$0xf]
      %v3245 = vld [vmem:[%s21 + $0x8] sm:$0xf]
      %v3246 = vld [vmem:[%s21 + $0xc] sm:$0xf]
      %v3247 = vld [vmem:[%s21 + $0x10] sm:$0xf]
      %v3248 = vld [vmem:[%s21 + $0x14] sm:$0xf]
      %v3249 = vld [vmem:[%s21 + $0x18] sm:$0xf]
      %v3250 = vld [vmem:[%s21 + $0x1c] sm:$0xf]
      %v3251 = vld [vmem:[%s21 + $0x20] sm:$0xf]
      %v3252 = vld [vmem:[%s21 + $0x24] sm:$0xf]
      %v3253 = vld [vmem:[%s21 + $0x28] sm:$0xf]
      %v3254 = vld [vmem:[%s21 + $0x2c] sm:$0xf]
      %v3255 = vld [vmem:[%s21 + $0x30] sm:$0xf]
      %v3256 = vld [vmem:[%s21 + $0x34] sm:$0xf]
      %v3257 = vld [vmem:[%s21 + $0x38] sm:$0xf]
      %v3258 = vld [vmem:[%s21 + $0x3c] sm:$0xf]
      %v3259 = vld [vmem:[%s22] sm:$0x1]
      %v3260 = vpack.c.bf16 %v3242, %v3242
      %v3262 = vperm.slane %v3259, 0
      %v3280 = vunpack.c.l.b16 %v3243
      %v3281 = vunpack.c.l.b16 %v3244
      %v3282 = vunpack.c.l.b16 %v3245
      %v3283 = vunpack.c.l.b16 %v3246
      %v3284 = vunpack.c.l.b16 %v3247
      %v3285 = vunpack.c.l.b16 %v3248
      %v3286 = vunpack.c.l.b16 %v3249
      %v3287 = vunpack.c.l.b16 %v3250
      %v3288 = vunpack.c.l.b16 %v3251
      %v3289 = vunpack.c.l.b16 %v3252
      %v3290 = vunpack.c.l.b16 %v3253
      %v3291 = vunpack.c.l.b16 %v3254
      %v3292 = vunpack.c.l.b16 %v3255
      %v3293 = vunpack.c.l.b16 %v3256
      %v3294 = vunpack.c.l.b16 %v3257
      %v3295 = vunpack.c.l.b16 %v3258
      %v3296 = vpack.c.b16 %v3281, %v3280
      %v3297 = vpack.c.b16 %v3283, %v3282
      %v3298 = vpack.c.b16 %v3285, %v3284
      %v3299 = vpack.c.b16 %v3287, %v3286
      %v3300 = vpack.c.b16 %v3289, %v3288
      %v3301 = vpack.c.b16 %v3291, %v3290
      %v3302 = vpack.c.b16 %v3293, %v3292
      %v3303 = vpack.c.b16 %v3295, %v3294
      %3312 = vmatpush.bf16.msra.mxu0 %v3303
      %3313 = vmatpush.bf16.msra.mxu0 %v3302
      %3314 = vmatpush.bf16.msra.mxu0 %v3301
      %3315 = vmatpush.bf16.msra.mxu0 %v3300
      %3316 = vmatpush.bf16.msra.mxu0 %v3299
      %3317 = vmatpush.bf16.msra.mxu0 %v3298
      %3318 = vmatpush.bf16.msra.mxu0 %v3297
      %3319 = vmatpush.bf16.msra.mxu0 %v3296
      %3320 = vmatmul.bf16.gmra.mxu0 %v3260
      %v3321 = vpop.f32.mrf.mxu0
      %v3322 = vadd.f32 %v3262, %v3321
      %v3323 = vpop.f32.mrf.mxu0
      %3324 = vdwg.mxu0
      %v3325 = vmax.f32 %v3322, 0.0
      %v3326 = vld [vmem:[#allocation33] sm:$0xf]
      %v3327 = vld [vmem:[#allocation33 + $0x4] sm:$0xf]
      %v3328 = vld [vmem:[#allocation33 + $0x8] sm:$0xf]
      %v3329 = vld [vmem:[#allocation33 + $0xc] sm:$0xf]
      %v3330 = vld [vmem:[%s24] sm:$0x1]
      %v3331 = vpack.c.bf16 %v3325, %v3325
      %v3333 = vperm.slane %v3330, 0
      %v3339 = vunpack.c.l.b16 %v3326
      %v3340 = vunpack.c.l.b16 %v3327
      %v3341 = vunpack.c.l.b16 %v3328
      %v3342 = vunpack.c.l.b16 %v3329
      %v3343 = vpack.c.b16 %v3340, %v3339
      %v3344 = vpack.c.b16 %v3342, %v3341
      %v3348 = vsel %vm766, %v3331, 0
      %3350 = vmatpush.bf16.msra.mxu0 0
      %3351 = vmatpush.bf16.msra.mxu0 0
      %3352 = vmatpush.bf16.msra.mxu0 0
      %3353 = vmatpush.bf16.msra.mxu0 0
      %3354 = vmatpush.bf16.msra.mxu0 0
      %3355 = vmatpush.bf16.msra.mxu0 0
      %3356 = vmatpush.bf16.msra.mxu0 %v3344
      %3357 = vmatpush.bf16.msra.mxu0 %v3343
      %3358 = vmatmul.bf16.gmra.mxu0 %v3348
      %v3359 = vpop.f32.mrf.mxu0
      %v3360 = vadd.f32 %v3333, %v3359
      %v3361 = vpop.f32.mrf.mxu0
      %3362 = vdwg.mxu0
      %v3363 = vxor.u32 %v3360, 2147483648
      %v3364 = vmul.f32 %v3363, 1.442695
      %v3365 = vpow.pop %v3364
      %v3366 = vadd.f32 %v3365, 1.0
      %v3367 = vrcp.pop %v3366
      %v3368 = vmul.f32 %v3366, %v3367
      %v3369 = vsub.f32 1.0, %v3368
      %v3370 = vmul.f32 %v3367, %v3369
      %v3371 = vadd.f32 %v3367, %v3370
      %vm3372 = vweird.f32 %v3366
      %vm3373 = vweird.f32 %v3367
      %vm3374 = vmor %vm3372, %vm3373
      %v3375 = vsel %vm3374, %v3367, %v3371
      %v3376 = vand.u32 2147483647, %v3366
      %vm3377 = vcmp.eq.f32.partialorder %v3376, 8.507059e+37
      %v3378 = vand.u32 %v3366, 2147483648
      %v3379 = vor.u32 1.1754944e-38, %v3378
      %v3380 = vsel %vm3377, %v3379, %v3375
      %v3381 = vmul.f32 1.0, %v3380
      %3382 = vst [vmem:[#allocation35] sm:$0xff] %v3381
    $region189: #{tpu_custom_call.1} parent=1 // pred_fallthru
      _
    // Predicated region
    $region190: #{tpu_custom_call.1} parent=1 // pred_check
      _
    $region191: #{tpu_custom_call.1} parent=1 // pred_check_branch
      %3384 = sbr.rel (0) target = $region193
    $region192: #{tpu_custom_call.1} parent=1 // pred_region
      %3386 = vsyncadd [#allocation5], 0
      %s3388 = sshll.u32 [#allocation35], 4
      %s3389 = int_to_ptr.vmem [resolvable:$true] %s3388
      %s3390 = sshll.u32 %s25, 4
      %s3391 = int_to_ptr.hbm [resolvable:$true] %s3390
      %3393 = dma.vmem_to_hbm [thread:$0]  %s3389, 128, %s3391, [#allocation5]
    $region193: #{tpu_custom_call.1} parent=1 // pred_fallthru
      _
    // Predicated region
    $region194: #{tpu_custom_call.1} parent=1 // pred_check
      _
    $region195: #{tpu_custom_call.1} parent=1 // pred_check_branch
      %3395 = sbr.rel (0) target = $region197
    $region196: #{tpu_custom_call.1} parent=1 // pred_region
      %3397 = dma.done [#allocation5], 128
    $region197: #{tpu_custom_call.1} parent=1 // pred_fallthru
      _
    %3398 = vsyncpa [#allocation4], 1
    %3399 = vsyncpa [#allocation7], 1
    %3400 = vsyncpa [#allocation10], 1
    %3401 = vsyncpa [#allocation13], 1
    %3402 = vsyncpa [#allocation16], 1
    %3403 = vsyncpa [#allocation19], 1
    %3404 = vsyncpa [#allocation22], 1
    %3405 = vsyncpa [#allocation25], 1
    %3406 = vsyncpa [#allocation28], 1
    %3407 = vsyncpa [#allocation31], 1
    %3408 = vsyncpa [#allocation34], 1
    %3409 = vsyncpa [#allocation5], 1

</llo_original>
